<compile_context>
chip_gen: v7x
topology: tpu7x:2x2x1
jax: 0.10.0
libtpu: 0.0.40
codegen_flags: <defaults>
</compile_context>

<pallas_src>
import functools

import jax
import jax.numpy as jnp
from jax.experimental import pallas as pl
from jax.experimental.pallas import tpu as pltpu


# ----------------------------------------------------------------------------
# in-kernel math helpers
# ----------------------------------------------------------------------------
def _gelu(x):
    # tanh-approx GELU: the transcendental routes to the (otherwise idle) EUP slot.
    # TODO(synk): PyTorch nn.GELU defaults to the exact erf form (~1e-3 delta).
    c = 0.7978845608028654  # sqrt(2/pi)
    return 0.5 * x * (1.0 + jnp.tanh(c * (x + 0.044715 * x * x * x)))


def _layer_norm(x, gamma, beta, eps=1e-5):
    # PyTorch nn.LayerNorm over the last dim, biased variance, eps=1e-5.
    mu = jnp.mean(x, axis=-1, keepdims=True)
    d = x - mu
    var = jnp.mean(d * d, axis=-1, keepdims=True)
    return d * jax.lax.rsqrt(var + eps) * gamma + beta


def _projection_head(x, w1, b1, w2, b2, gamma, beta):
    # projected = Linear(x); h = GELU(projected); h = Linear(h); (+dropout = id)
    # h = h + projected; out = LayerNorm(h)
    projected = jnp.dot(x.astype(w1.dtype), w1,
                        preferred_element_type=jnp.float32) + b1
    h = _gelu(projected)
    h = jnp.dot(h, w2, preferred_element_type=jnp.float32) + b2
    h = h + projected
    return _layer_norm(h, gamma, beta)


# ----------------------------------------------------------------------------
# fused kernel: image encoder + traj encoder + 2x projection head + CLIP loss
# ----------------------------------------------------------------------------
def ctip_fused_kernel(
    # data
    ximg_ref, traj_ref, tgt_ref,
    # image encoder (linear stand-in for resnet18; bf16 weight, 1024-padded)
    iw_ref, ib_ref,
    # traj encoder: conv weights as (K, Cin, Cout), + LayerNorm(128)
    c1w_ref, c1b_ref, c2w_ref, c2b_ref, c3w_ref, c3b_ref, teg_ref, teb_ref,
    # image projection head (bf16 w1, 1024-padded rows)
    ipw1_ref, ipb1_ref, ipw2_ref, ipb2_ref, ipg_ref, ipbeta_ref,
    # traj projection head
    tpw1_ref, tpb1_ref, tpw2_ref, tpb2_ref, tpg_ref, tpbeta_ref,
    # output (1,1) loss
    o_ref,
    *, batch, traj_len, inv_temperature):
    B, L, K = batch, traj_len, 3
    N = B * L

    # ---------------- image features ---------------------------------------
    # TODO(synk): torchvision resnet18 (IMAGENET1K_V1) backbone replaced by a
    # single linear feature extractor producing the (zero-padded) 1000-dim output.
    img_feat = jnp.dot(ximg_ref[...], iw_ref[...],
                       preferred_element_type=jnp.float32) + ib_ref[...]

    # ---------------- traj encoder ------------------------------------------
    # traj_ref is (B*L, 2): batches stacked along rows (per-batch stride L).
    def up(h, s):
        # h[(n + s) mod N] along the sublane axis (XLU rotate); s is static.
        return h if s == 0 else pltpu.roll(h, N - s, axis=0)

    def conv_gelu(h, w_ref, b_ref, tap_stride):
        # "valid" Conv1d as a sum of K row-shifted matmuls (no im2col concat).
        acc = jnp.dot(h, w_ref[0], preferred_element_type=jnp.float32)
        for k in range(1, K):
            acc = acc + jnp.dot(up(h, k * tap_stride), w_ref[k],
                                preferred_element_type=jnp.float32)
        return _gelu(acc + b_ref[...])

    x = traj_ref[...]                                    # (N, 2)  f32
    h1 = conv_gelu(x, c1w_ref, c1b_ref, 1)               # (N, 16), valid t in [0, L-2)
    h2 = conv_gelu(h1, c2w_ref, c2b_ref, 1)              # (N, 64), valid t in [0, L-4)
    # MaxPool1d(2): valid pooled values live at even in-batch offsets 2j.
    pooled = jnp.maximum(h2, up(h2, 1))                  # (N, 64)
    # Conv1d #3 over the pooled sequence -> dilation-2 taps over the even rows.
    h3 = conv_gelu(pooled, c3w_ref, c3b_ref, 2)          # (N, 128), valid at 2j, j < (L-4)//2 - 2
    # MaxPool1d(3) over the first 3 valid conv3 outputs per batch, then squeeze.
    m = jnp.maximum(h3, jnp.maximum(up(h3, 2), up(h3, 4)))
    traj_feat = m.reshape(B, L, m.shape[-1])[:, 0, :]    # rows L*b -> (B, 128)
    # nn.Dropout: identity in the inference forward.
    traj_feat = _layer_norm(traj_feat, teg_ref[...], teb_ref[...])

    # ---------------- projection heads --------------------------------------
    img_emb = _projection_head(img_feat, ipw1_ref[...], ipb1_ref[...],
                               ipw2_ref[...], ipb2_ref[...],
                               ipg_ref[...], ipbeta_ref[...])     # (B, 256)
    traj_emb = _projection_head(traj_feat, tpw1_ref[...], tpb1_ref[...],
                                tpw2_ref[...], tpb2_ref[...],
                                tpg_ref[...], tpbeta_ref[...])    # (B, 256)

    # ---------------- CLIP-style symmetric cross-entropy loss ---------------
    tgt = tgt_ref[...]
    # traj_emb @ img_emb.T without materializing the transpose (NT dot_general).
    logits = jax.lax.dot_general(traj_emb, img_emb, (((1,), (1,)), ((), ())),
                                 preferred_element_type=jnp.float32)
    logits = logits * inv_temperature
    tinv = jnp.where(tgt == 0.0, 1.0, 0.0)
    logits = logits * tinv - 1000.0 * tgt

    eye = (jax.lax.broadcasted_iota(jnp.int32, (B, B), 0)
           == jax.lax.broadcasted_iota(jnp.int32, (B, B), 1)).astype(jnp.float32)
    diag = jnp.sum(logits * eye, axis=1, keepdims=True)           # (B,1), shared by both CEs

    m_r = jnp.max(logits, axis=1, keepdims=True)
    lse_r = m_r + jnp.log(jnp.sum(jnp.exp(logits - m_r), axis=1, keepdims=True))
    m_c = jnp.max(logits, axis=0, keepdims=True)
    lse_c = m_c + jnp.log(jnp.sum(jnp.exp(logits - m_c), axis=0, keepdims=True))

    inv_b = 1.0 / B
    mean_lse_r = jnp.sum(lse_r, axis=0, keepdims=True) * inv_b    # (1,1)
    mean_lse_c = jnp.sum(lse_c, axis=1, keepdims=True) * inv_b    # (1,1)
    mean_diag = jnp.sum(diag, axis=0, keepdims=True) * inv_b      # (1,1)
    # 0.5*(CE(logits, arange) + CE(logits.T, arange))
    o_ref[...] = 0.5 * (mean_lse_r + mean_lse_c) - mean_diag


# ----------------------------------------------------------------------------
# wrapper
# ----------------------------------------------------------------------------
def ctip_forward(params, image, traj, targets, temperature=1.0):
    B = image.shape[0]
    L = traj.shape[-1]

    # NCHW flatten + bf16 cast in the wrapper (halves x_img DMA; f32 accumulation
    # happens inside the kernel matmul).
    x_img = image.reshape(B, -1).astype(jnp.bfloat16)
    # channels-last, batches stacked along rows: (B*L, 2)
    traj2d = jnp.transpose(traj, (0, 2, 1)).reshape(B * L, traj.shape[1])
    traj2d = traj2d.astype(jnp.float32)
    targets = targets.astype(jnp.float32)

    args = (x_img, traj2d, targets,
            params['img_enc_w'], params['img_enc_b'],
            params['tc1_w'], params['tc1_b'],
            params['tc2_w'], params['tc2_b'],
            params['tc3_w'], params['tc3_b'],
            params['te_ln_g'], params['te_ln_b'],
            params['ip_w1'], params['ip_b1'], params['ip_w2'], params['ip_b2'],
            params['ip_ln_g'], params['ip_ln_b'],
            params['tp_w1'], params['tp_b1'], params['tp_w2'], params['tp_b2'],
            params['tp_ln_g'], params['tp_ln_b'])

    kernel = functools.partial(ctip_fused_kernel, batch=B, traj_len=L,
                               inv_temperature=1.0 / float(temperature))
    loss = pl.pallas_call(
        kernel,
        out_shape=jax.ShapeDtypeStruct((1, 1), jnp.float32),
        in_specs=[pl.BlockSpec(memory_space=pltpu.MemorySpace.VMEM)] * len(args),
        out_specs=pl.BlockSpec(memory_space=pltpu.MemorySpace.VMEM),
        compiler_params=pltpu.CompilerParams(
            vmem_limit_bytes=32 * 1024 * 1024),
    )(*args)
    return loss[0, 0]


def get_targets(waypoint_ori, threshold):
    # plain-JAX port of CTIPModel.get_targets (host-side label construction)
    B, L, _ = waypoint_ori.shape
    tr = waypoint_ori[:, L // 2:, 1]                              # (B, L//2)
    diff = jnp.abs(tr[None, :, :] - tr[:, None, :])               # (B, B, L//2)
    label = jnp.any(diff < threshold, axis=2).astype(jnp.float32)
    return label * (1.0 - jnp.eye(B, dtype=jnp.float32))          # zero the diagonal


def init_params(key, image_dim, image_embedding=1000, projection_dim=256):
    ks = jax.random.split(key, 8)
    # lane-dense zero-padding of the 1000-dim image embedding (math unchanged)
    emb_pad = ((image_embedding + 127) // 128) * 128              # 1024
    pad = emb_pad - image_embedding

    def w(k, fan_in, fan_out):
        return (jax.random.normal(k, (fan_in, fan_out), jnp.float32)
                / jnp.sqrt(jnp.float32(fan_in)))

    def conv_w(k, ksz, cin, cout):
        # stored as (K, Cin, Cout); PyTorch Conv1d layout is (Cout, Cin, K)
        return (jax.random.normal(k, (ksz, cin, cout), jnp.float32)
                / jnp.sqrt(jnp.float32(cin * ksz)))

    img_w = jnp.pad(w(ks[0], image_dim, image_embedding), ((0, 0), (0, pad)))
    ip_w1 = jnp.pad(w(ks[4], image_embedding, projection_dim), ((0, pad), (0, 0)))

    return {
        # large weights in bf16 (halves HBM->VMEM DMA); matmuls accumulate in f32
        'img_enc_w': img_w.astype(jnp.bfloat16),
        'img_enc_b': jnp.zeros((1, emb_pad), jnp.float32),
        # TrajEncoder
        'tc1_w': conv_w(ks[1], 3, 2, 16), 'tc1_b': jnp.zeros((1, 16), jnp.float32),
        'tc2_w': conv_w(ks[2], 3, 16, 64), 'tc2_b': jnp.zeros((1, 64), jnp.float32),
        'tc3_w': conv_w(ks[3], 3, 64, 128), 'tc3_b': jnp.zeros((1, 128), jnp.float32),
        'te_ln_g': jnp.ones((1, 128), jnp.float32),
        'te_ln_b': jnp.zeros((1, 128), jnp.float32),
        # image ProjectionHead (1000 padded to 1024 -> 256)
        'ip_w1': ip_w1.astype(jnp.bfloat16),
        'ip_b1': jnp.zeros((1, projection_dim), jnp.float32),
        'ip_w2': w(ks[5], projection_dim, projection_dim),
        'ip_b2': jnp.zeros((1, projection_dim), jnp.float32),
        'ip_ln_g': jnp.ones((1, projection_dim), jnp.float32),
        'ip_ln_b': jnp.zeros((1, projection_dim), jnp.float32),
        # traj ProjectionHead (128 -> 256)
        'tp_w1': w(ks[6], 128, projection_dim),
        'tp_b1': jnp.zeros((1, projection_dim), jnp.float32),
        'tp_w2': w(ks[7], projection_dim, projection_dim),
        'tp_b2': jnp.zeros((1, projection_dim), jnp.float32),
        'tp_ln_g': jnp.ones((1, projection_dim), jnp.float32),
        'tp_ln_b': jnp.zeros((1, projection_dim), jnp.float32),
    }


if __name__ == "__main__":
    key = jax.random.PRNGKey(0)
    k_img, k_traj, k_par = jax.random.split(key, 3)

    B, C, H, W = 4, 3, 16, 16
    L = 16  # conv/pool chain ends with pooled length 1 (as required by .squeeze())

    image = jax.random.normal(k_img, (B, C, H, W), jnp.float32)   # NCHW, like PyTorch
    traj = jax.random.normal(k_traj, (B, 2, L), jnp.float32)      # NCW, like PyTorch Conv1d

    # targets built like CTIPModel.get_targets from a (B, length, channel) tensor
    waypoint_ori = jnp.transpose(traj, (0, 2, 1))
    targets = get_targets(waypoint_ori, threshold=0.3)

    params = init_params(k_par, image_dim=C * H * W)

    loss = jax.jit(ctip_forward)(params, image, traj, targets)
    loss = jax.block_until_ready(loss)
    assert bool(jnp.isfinite(loss))
    print("KERNEL_OK")
</pallas_src>

<mosaic_0001>
module attributes {stable_mosaic.version = 11 : i64} {
  func.func @ctip_fused_kernel(%arg0: memref<4x768xbf16, #tpu.memory_space<vmem>>, %arg1: memref<64x2xf32, #tpu.memory_space<vmem>>, %arg2: memref<4x4xf32, #tpu.memory_space<vmem>>, %arg3: memref<768x1024xbf16, #tpu.memory_space<vmem>>, %arg4: memref<1x1024xf32, #tpu.memory_space<vmem>>, %arg5: memref<3x2x16xf32, #tpu.memory_space<vmem>>, %arg6: memref<1x16xf32, #tpu.memory_space<vmem>>, %arg7: memref<3x16x64xf32, #tpu.memory_space<vmem>>, %arg8: memref<1x64xf32, #tpu.memory_space<vmem>>, %arg9: memref<3x64x128xf32, #tpu.memory_space<vmem>>, %arg10: memref<1x128xf32, #tpu.memory_space<vmem>>, %arg11: memref<1x128xf32, #tpu.memory_space<vmem>>, %arg12: memref<1x128xf32, #tpu.memory_space<vmem>>, %arg13: memref<1024x256xbf16, #tpu.memory_space<vmem>>, %arg14: memref<1x256xf32, #tpu.memory_space<vmem>>, %arg15: memref<256x256xf32, #tpu.memory_space<vmem>>, %arg16: memref<1x256xf32, #tpu.memory_space<vmem>>, %arg17: memref<1x256xf32, #tpu.memory_space<vmem>>, %arg18: memref<1x256xf32, #tpu.memory_space<vmem>>, %arg19: memref<128x256xf32, #tpu.memory_space<vmem>>, %arg20: memref<1x256xf32, #tpu.memory_space<vmem>>, %arg21: memref<256x256xf32, #tpu.memory_space<vmem>>, %arg22: memref<1x256xf32, #tpu.memory_space<vmem>>, %arg23: memref<1x256xf32, #tpu.memory_space<vmem>>, %arg24: memref<1x256xf32, #tpu.memory_space<vmem>>, %arg25: memref<1x1xf32, #tpu.memory_space<vmem>>) attributes {dimension_semantics = [], scalar_prefetch = 0 : i64, scratch_operands = 0 : i64, tpu.core_type = #tpu.core_type<tc>} {
    %c0 = arith.constant 0 : index
    %c0_0 = arith.constant 0 : index
    %0 = vector.load %arg0[%c0, %c0_0] : memref<4x768xbf16, #tpu.memory_space<vmem>>, vector<4x768xbf16>
    %c0_1 = arith.constant 0 : index
    %c0_2 = arith.constant 0 : index
    %1 = vector.load %arg3[%c0_1, %c0_2] : memref<768x1024xbf16, #tpu.memory_space<vmem>>, vector<768x1024xbf16>
    %cst = arith.constant dense<0.000000e+00> : vector<4x1024xf32>
    %2 = tpu.matmul %0, %1, %cst {dimension_numbers = #tpu.dot_dimension_numbers<[1], [0], [0], [1], [0, 0, 1, 1], [], []>} : vector<4x768xbf16>, vector<768x1024xbf16>, vector<4x1024xf32> -> vector<4x1024xf32>
    %c0_3 = arith.constant 0 : index
    %c0_4 = arith.constant 0 : index
    %3 = vector.load %arg4[%c0_3, %c0_4] : memref<1x1024xf32, #tpu.memory_space<vmem>>, vector<1x1024xf32>
    %4 = vector.broadcast %3 : vector<1x1024xf32> to vector<4x1024xf32>
    %5 = arith.addf %2, %4 : vector<4x1024xf32>
    %c0_5 = arith.constant 0 : index
    %c0_6 = arith.constant 0 : index
    %6 = vector.load %arg1[%c0_5, %c0_6] : memref<64x2xf32, #tpu.memory_space<vmem>>, vector<64x2xf32>
    %c0_7 = arith.constant 0 : index
    %c0_8 = arith.constant 0 : index
    %c0_9 = arith.constant 0 : index
    %7 = vector.load %arg5[%c0_7, %c0_8, %c0_9] : memref<3x2x16xf32, #tpu.memory_space<vmem>>, vector<1x2x16xf32>
    %8 = vector.shape_cast %7 : vector<1x2x16xf32> to vector<2x16xf32>
    %cst_10 = arith.constant dense<0.000000e+00> : vector<64x16xf32>
    %9 = tpu.matmul %6, %8, %cst_10 {dimension_numbers = #tpu.dot_dimension_numbers<[1], [0], [0], [1], [0, 0, 1, 1], [], []>} : vector<64x2xf32>, vector<2x16xf32>, vector<64x16xf32> -> vector<64x16xf32>
    %c63_i32 = arith.constant 63 : i32
    %10 = tpu.dynamic_rotate %6 by %c63_i32 dim 0 : vector<64x2xf32>, i32 -> vector<64x2xf32>
    %c1 = arith.constant 1 : index
    %c0_11 = arith.constant 0 : index
    %c0_12 = arith.constant 0 : index
    %11 = vector.load %arg5[%c1, %c0_11, %c0_12] : memref<3x2x16xf32, #tpu.memory_space<vmem>>, vector<1x2x16xf32>
    %12 = vector.shape_cast %11 : vector<1x2x16xf32> to vector<2x16xf32>
    %cst_13 = arith.constant dense<0.000000e+00> : vector<64x16xf32>
    %13 = tpu.matmul %10, %12, %cst_13 {dimension_numbers = #tpu.dot_dimension_numbers<[1], [0], [0], [1], [0, 0, 1, 1], [], []>} : vector<64x2xf32>, vector<2x16xf32>, vector<64x16xf32> -> vector<64x16xf32>
    %14 = arith.addf %9, %13 : vector<64x16xf32>
    %c62_i32 = arith.constant 62 : i32
    %15 = tpu.dynamic_rotate %6 by %c62_i32 dim 0 : vector<64x2xf32>, i32 -> vector<64x2xf32>
    %c2 = arith.constant 2 : index
    %c0_14 = arith.constant 0 : index
    %c0_15 = arith.constant 0 : index
    %16 = vector.load %arg5[%c2, %c0_14, %c0_15] : memref<3x2x16xf32, #tpu.memory_space<vmem>>, vector<1x2x16xf32>
    %17 = vector.shape_cast %16 : vector<1x2x16xf32> to vector<2x16xf32>
    %cst_16 = arith.constant dense<0.000000e+00> : vector<64x16xf32>
    %18 = tpu.matmul %15, %17, %cst_16 {dimension_numbers = #tpu.dot_dimension_numbers<[1], [0], [0], [1], [0, 0, 1, 1], [], []>} : vector<64x2xf32>, vector<2x16xf32>, vector<64x16xf32> -> vector<64x16xf32>
    %19 = arith.addf %14, %18 : vector<64x16xf32>
    %c0_17 = arith.constant 0 : index
    %c0_18 = arith.constant 0 : index
    %20 = vector.load %arg6[%c0_17, %c0_18] : memref<1x16xf32, #tpu.memory_space<vmem>>, vector<1x16xf32>
    %21 = vector.broadcast %20 : vector<1x16xf32> to vector<64x16xf32>
    %22 = arith.addf %19, %21 : vector<64x16xf32>
    %cst_19 = arith.constant 5.000000e-01 : f32
    %23 = vector.broadcast %cst_19 : f32 to vector<64x16xf32>
    %24 = arith.mulf %23, %22 : vector<64x16xf32>
    %cst_20 = arith.constant 4.471500e-02 : f32
    %25 = vector.broadcast %cst_20 : f32 to vector<64x16xf32>
    %26 = arith.mulf %25, %22 : vector<64x16xf32>
    %27 = arith.mulf %26, %22 : vector<64x16xf32>
    %28 = arith.mulf %27, %22 : vector<64x16xf32>
    %29 = arith.addf %22, %28 : vector<64x16xf32>
    %cst_21 = arith.constant 0.797884583 : f32
    %30 = vector.broadcast %cst_21 : f32 to vector<64x16xf32>
    %31 = arith.mulf %30, %29 : vector<64x16xf32>
    %32 = math.tanh %31 : vector<64x16xf32>
    %cst_22 = arith.constant 1.000000e+00 : f32
    %33 = vector.broadcast %cst_22 : f32 to vector<64x16xf32>
    %34 = arith.addf %33, %32 : vector<64x16xf32>
    %35 = arith.mulf %24, %34 : vector<64x16xf32>
    %c0_23 = arith.constant 0 : index
    %c0_24 = arith.constant 0 : index
    %c0_25 = arith.constant 0 : index
    %36 = vector.load %arg7[%c0_23, %c0_24, %c0_25] : memref<3x16x64xf32, #tpu.memory_space<vmem>>, vector<1x16x64xf32>
    %37 = vector.shape_cast %36 : vector<1x16x64xf32> to vector<16x64xf32>
    %cst_26 = arith.constant dense<0.000000e+00> : vector<64x64xf32>
    %38 = tpu.matmul %35, %37, %cst_26 {dimension_numbers = #tpu.dot_dimension_numbers<[1], [0], [0], [1], [0, 0, 1, 1], [], []>} : vector<64x16xf32>, vector<16x64xf32>, vector<64x64xf32> -> vector<64x64xf32>
    %c63_i32_27 = arith.constant 63 : i32
    %39 = tpu.dynamic_rotate %35 by %c63_i32_27 dim 0 : vector<64x16xf32>, i32 -> vector<64x16xf32>
    %c1_28 = arith.constant 1 : index
    %c0_29 = arith.constant 0 : index
    %c0_30 = arith.constant 0 : index
    %40 = vector.load %arg7[%c1_28, %c0_29, %c0_30] : memref<3x16x64xf32, #tpu.memory_space<vmem>>, vector<1x16x64xf32>
    %41 = vector.shape_cast %40 : vector<1x16x64xf32> to vector<16x64xf32>
    %cst_31 = arith.constant dense<0.000000e+00> : vector<64x64xf32>
    %42 = tpu.matmul %39, %41, %cst_31 {dimension_numbers = #tpu.dot_dimension_numbers<[1], [0], [0], [1], [0, 0, 1, 1], [], []>} : vector<64x16xf32>, vector<16x64xf32>, vector<64x64xf32> -> vector<64x64xf32>
    %43 = arith.addf %38, %42 : vector<64x64xf32>
    %c62_i32_32 = arith.constant 62 : i32
    %44 = tpu.dynamic_rotate %35 by %c62_i32_32 dim 0 : vector<64x16xf32>, i32 -> vector<64x16xf32>
    %c2_33 = arith.constant 2 : index
    %c0_34 = arith.constant 0 : index
    %c0_35 = arith.constant 0 : index
    %45 = vector.load %arg7[%c2_33, %c0_34, %c0_35] : memref<3x16x64xf32, #tpu.memory_space<vmem>>, vector<1x16x64xf32>
    %46 = vector.shape_cast %45 : vector<1x16x64xf32> to vector<16x64xf32>
    %cst_36 = arith.constant dense<0.000000e+00> : vector<64x64xf32>
    %47 = tpu.matmul %44, %46, %cst_36 {dimension_numbers = #tpu.dot_dimension_numbers<[1], [0], [0], [1], [0, 0, 1, 1], [], []>} : vector<64x16xf32>, vector<16x64xf32>, vector<64x64xf32> -> vector<64x64xf32>
    %48 = arith.addf %43, %47 : vector<64x64xf32>
    %c0_37 = arith.constant 0 : index
    %c0_38 = arith.constant 0 : index
    %49 = vector.load %arg8[%c0_37, %c0_38] : memref<1x64xf32, #tpu.memory_space<vmem>>, vector<1x64xf32>
    %50 = vector.broadcast %49 : vector<1x64xf32> to vector<64x64xf32>
    %51 = arith.addf %48, %50 : vector<64x64xf32>
    %cst_39 = arith.constant 5.000000e-01 : f32
    %52 = vector.broadcast %cst_39 : f32 to vector<64x64xf32>
    %53 = arith.mulf %52, %51 : vector<64x64xf32>
    %cst_40 = arith.constant 4.471500e-02 : f32
    %54 = vector.broadcast %cst_40 : f32 to vector<64x64xf32>
    %55 = arith.mulf %54, %51 : vector<64x64xf32>
    %56 = arith.mulf %55, %51 : vector<64x64xf32>
    %57 = arith.mulf %56, %51 : vector<64x64xf32>
    %58 = arith.addf %51, %57 : vector<64x64xf32>
    %cst_41 = arith.constant 0.797884583 : f32
    %59 = vector.broadcast %cst_41 : f32 to vector<64x64xf32>
    %60 = arith.mulf %59, %58 : vector<64x64xf32>
    %61 = math.tanh %60 : vector<64x64xf32>
    %cst_42 = arith.constant 1.000000e+00 : f32
    %62 = vector.broadcast %cst_42 : f32 to vector<64x64xf32>
    %63 = arith.addf %62, %61 : vector<64x64xf32>
    %64 = arith.mulf %53, %63 : vector<64x64xf32>
    %c63_i32_43 = arith.constant 63 : i32
    %65 = tpu.dynamic_rotate %64 by %c63_i32_43 dim 0 : vector<64x64xf32>, i32 -> vector<64x64xf32>
    %66 = arith.maximumf %64, %65 : vector<64x64xf32>
    %c0_44 = arith.constant 0 : index
    %c0_45 = arith.constant 0 : index
    %c0_46 = arith.constant 0 : index
    %67 = vector.load %arg9[%c0_44, %c0_45, %c0_46] : memref<3x64x128xf32, #tpu.memory_space<vmem>>, vector<1x64x128xf32>
    %68 = vector.shape_cast %67 : vector<1x64x128xf32> to vector<64x128xf32>
    %cst_47 = arith.constant dense<0.000000e+00> : vector<64x128xf32>
    %69 = tpu.matmul %66, %68, %cst_47 {dimension_numbers = #tpu.dot_dimension_numbers<[1], [0], [0], [1], [0, 0, 1, 1], [], []>} : vector<64x64xf32>, vector<64x128xf32>, vector<64x128xf32> -> vector<64x128xf32>
    %c62_i32_48 = arith.constant 62 : i32
    %70 = tpu.dynamic_rotate %66 by %c62_i32_48 dim 0 : vector<64x64xf32>, i32 -> vector<64x64xf32>
    %c1_49 = arith.constant 1 : index
    %c0_50 = arith.constant 0 : index
    %c0_51 = arith.constant 0 : index
    %71 = vector.load %arg9[%c1_49, %c0_50, %c0_51] : memref<3x64x128xf32, #tpu.memory_space<vmem>>, vector<1x64x128xf32>
    %72 = vector.shape_cast %71 : vector<1x64x128xf32> to vector<64x128xf32>
    %cst_52 = arith.constant dense<0.000000e+00> : vector<64x128xf32>
    %73 = tpu.matmul %70, %72, %cst_52 {dimension_numbers = #tpu.dot_dimension_numbers<[1], [0], [0], [1], [0, 0, 1, 1], [], []>} : vector<64x64xf32>, vector<64x128xf32>, vector<64x128xf32> -> vector<64x128xf32>
    %74 = arith.addf %69, %73 : vector<64x128xf32>
    %c60_i32 = arith.constant 60 : i32
    %75 = tpu.dynamic_rotate %66 by %c60_i32 dim 0 : vector<64x64xf32>, i32 -> vector<64x64xf32>
    %c2_53 = arith.constant 2 : index
    %c0_54 = arith.constant 0 : index
    %c0_55 = arith.constant 0 : index
    %76 = vector.load %arg9[%c2_53, %c0_54, %c0_55] : memref<3x64x128xf32, #tpu.memory_space<vmem>>, vector<1x64x128xf32>
    %77 = vector.shape_cast %76 : vector<1x64x128xf32> to vector<64x128xf32>
    %cst_56 = arith.constant dense<0.000000e+00> : vector<64x128xf32>
    %78 = tpu.matmul %75, %77, %cst_56 {dimension_numbers = #tpu.dot_dimension_numbers<[1], [0], [0], [1], [0, 0, 1, 1], [], []>} : vector<64x64xf32>, vector<64x128xf32>, vector<64x128xf32> -> vector<64x128xf32>
    %79 = arith.addf %74, %78 : vector<64x128xf32>
    %c0_57 = arith.constant 0 : index
    %c0_58 = arith.constant 0 : index
    %80 = vector.load %arg10[%c0_57, %c0_58] : memref<1x128xf32, #tpu.memory_space<vmem>>, vector<1x128xf32>
    %81 = vector.broadcast %80 : vector<1x128xf32> to vector<64x128xf32>
    %82 = arith.addf %79, %81 : vector<64x128xf32>
    %cst_59 = arith.constant 5.000000e-01 : f32
    %83 = vector.broadcast %cst_59 : f32 to vector<64x128xf32>
    %84 = arith.mulf %83, %82 : vector<64x128xf32>
    %cst_60 = arith.constant 4.471500e-02 : f32
    %85 = vector.broadcast %cst_60 : f32 to vector<64x128xf32>
    %86 = arith.mulf %85, %82 : vector<64x128xf32>
    %87 = arith.mulf %86, %82 : vector<64x128xf32>
    %88 = arith.mulf %87, %82 : vector<64x128xf32>
    %89 = arith.addf %82, %88 : vector<64x128xf32>
    %cst_61 = arith.constant 0.797884583 : f32
    %90 = vector.broadcast %cst_61 : f32 to vector<64x128xf32>
    %91 = arith.mulf %90, %89 : vector<64x128xf32>
    %92 = math.tanh %91 : vector<64x128xf32>
    %cst_62 = arith.constant 1.000000e+00 : f32
    %93 = vector.broadcast %cst_62 : f32 to vector<64x128xf32>
    %94 = arith.addf %93, %92 : vector<64x128xf32>
    %95 = arith.mulf %84, %94 : vector<64x128xf32>
    %c62_i32_63 = arith.constant 62 : i32
    %96 = tpu.dynamic_rotate %95 by %c62_i32_63 dim 0 : vector<64x128xf32>, i32 -> vector<64x128xf32>
    %c60_i32_64 = arith.constant 60 : i32
    %97 = tpu.dynamic_rotate %95 by %c60_i32_64 dim 0 : vector<64x128xf32>, i32 -> vector<64x128xf32>
    %98 = arith.maximumf %96, %97 : vector<64x128xf32>
    %99 = arith.maximumf %95, %98 : vector<64x128xf32>
    %100 = vector.shape_cast %99 : vector<64x128xf32> to vector<4x16x128xf32>
    %101 = vector.extract_strided_slice %100 {offsets = [0, 0, 0], sizes = [4, 1, 128], strides = [1, 1, 1]} : vector<4x16x128xf32> to vector<4x1x128xf32>
    %102 = vector.shape_cast %101 : vector<4x1x128xf32> to vector<4x128xf32>
    %c0_65 = arith.constant 0 : index
    %c0_66 = arith.constant 0 : index
    %103 = vector.load %arg11[%c0_65, %c0_66] : memref<1x128xf32, #tpu.memory_space<vmem>>, vector<1x128xf32>
    %c0_67 = arith.constant 0 : index
    %c0_68 = arith.constant 0 : index
    %104 = vector.load %arg12[%c0_67, %c0_68] : memref<1x128xf32, #tpu.memory_space<vmem>>, vector<1x128xf32>
    %cst_69 = arith.constant dense<0.000000e+00> : vector<4xf32>
    %105 = vector.multi_reduction <add>, %102, %cst_69 [1] : vector<4x128xf32> to vector<4xf32>
    %106 = vector.shape_cast %105 : vector<4xf32> to vector<4x1xf32>
    %cst_70 = arith.constant 1.280000e+02 : f32
    %107 = vector.broadcast %cst_70 : f32 to vector<4x1xf32>
    %108 = arith.divf %106, %107 : vector<4x1xf32>
    %109 = vector.broadcast %108 : vector<4x1xf32> to vector<4x128xf32>
    %110 = arith.subf %102, %109 : vector<4x128xf32>
    %111 = arith.mulf %110, %110 : vector<4x128xf32>
    %cst_71 = arith.constant dense<0.000000e+00> : vector<4xf32>
    %112 = vector.multi_reduction <add>, %111, %cst_71 [1] : vector<4x128xf32> to vector<4xf32>
    %113 = vector.shape_cast %112 : vector<4xf32> to vector<4x1xf32>
    %cst_72 = arith.constant 1.280000e+02 : f32
    %114 = vector.broadcast %cst_72 : f32 to vector<4x1xf32>
    %115 = arith.divf %113, %114 : vector<4x1xf32>
    %cst_73 = arith.constant 9.99999974E-6 : f32
    %116 = vector.broadcast %cst_73 : f32 to vector<4x1xf32>
    %117 = arith.addf %115, %116 : vector<4x1xf32>
    %118 = math.rsqrt %117 : vector<4x1xf32>
    %119 = vector.broadcast %118 : vector<4x1xf32> to vector<4x128xf32>
    %120 = arith.mulf %110, %119 : vector<4x128xf32>
    %121 = vector.broadcast %103 : vector<1x128xf32> to vector<4x128xf32>
    %122 = arith.mulf %120, %121 : vector<4x128xf32>
    %123 = vector.broadcast %104 : vector<1x128xf32> to vector<4x128xf32>
    %124 = arith.addf %122, %123 : vector<4x128xf32>
    %c0_74 = arith.constant 0 : index
    %c0_75 = arith.constant 0 : index
    %125 = vector.load %arg13[%c0_74, %c0_75] : memref<1024x256xbf16, #tpu.memory_space<vmem>>, vector<1024x256xbf16>
    %c0_76 = arith.constant 0 : index
    %c0_77 = arith.constant 0 : index
    %126 = vector.load %arg14[%c0_76, %c0_77] : memref<1x256xf32, #tpu.memory_space<vmem>>, vector<1x256xf32>
    %c0_78 = arith.constant 0 : index
    %c0_79 = arith.constant 0 : index
    %127 = vector.load %arg15[%c0_78, %c0_79] : memref<256x256xf32, #tpu.memory_space<vmem>>, vector<256x256xf32>
    %c0_80 = arith.constant 0 : index
    %c0_81 = arith.constant 0 : index
    %128 = vector.load %arg16[%c0_80, %c0_81] : memref<1x256xf32, #tpu.memory_space<vmem>>, vector<1x256xf32>
    %c0_82 = arith.constant 0 : index
    %c0_83 = arith.constant 0 : index
    %129 = vector.load %arg17[%c0_82, %c0_83] : memref<1x256xf32, #tpu.memory_space<vmem>>, vector<1x256xf32>
    %c0_84 = arith.constant 0 : index
    %c0_85 = arith.constant 0 : index
    %130 = vector.load %arg18[%c0_84, %c0_85] : memref<1x256xf32, #tpu.memory_space<vmem>>, vector<1x256xf32>
    %131 = arith.truncf %5 : vector<4x1024xf32> to vector<4x1024xbf16>
    %cst_86 = arith.constant dense<0.000000e+00> : vector<4x256xf32>
    %132 = tpu.matmul %131, %125, %cst_86 {dimension_numbers = #tpu.dot_dimension_numbers<[1], [0], [0], [1], [0, 0, 1, 1], [], []>} : vector<4x1024xbf16>, vector<1024x256xbf16>, vector<4x256xf32> -> vector<4x256xf32>
    %133 = vector.broadcast %126 : vector<1x256xf32> to vector<4x256xf32>
    %134 = arith.addf %132, %133 : vector<4x256xf32>
    %cst_87 = arith.constant 5.000000e-01 : f32
    %135 = vector.broadcast %cst_87 : f32 to vector<4x256xf32>
    %136 = arith.mulf %135, %134 : vector<4x256xf32>
    %cst_88 = arith.constant 4.471500e-02 : f32
    %137 = vector.broadcast %cst_88 : f32 to vector<4x256xf32>
    %138 = arith.mulf %137, %134 : vector<4x256xf32>
    %139 = arith.mulf %138, %134 : vector<4x256xf32>
    %140 = arith.mulf %139, %134 : vector<4x256xf32>
    %141 = arith.addf %134, %140 : vector<4x256xf32>
    %cst_89 = arith.constant 0.797884583 : f32
    %142 = vector.broadcast %cst_89 : f32 to vector<4x256xf32>
    %143 = arith.mulf %142, %141 : vector<4x256xf32>
    %144 = math.tanh %143 : vector<4x256xf32>
    %cst_90 = arith.constant 1.000000e+00 : f32
    %145 = vector.broadcast %cst_90 : f32 to vector<4x256xf32>
    %146 = arith.addf %145, %144 : vector<4x256xf32>
    %147 = arith.mulf %136, %146 : vector<4x256xf32>
    %cst_91 = arith.constant dense<0.000000e+00> : vector<4x256xf32>
    %148 = tpu.matmul %147, %127, %cst_91 {dimension_numbers = #tpu.dot_dimension_numbers<[1], [0], [0], [1], [0, 0, 1, 1], [], []>} : vector<4x256xf32>, vector<256x256xf32>, vector<4x256xf32> -> vector<4x256xf32>
    %149 = vector.broadcast %128 : vector<1x256xf32> to vector<4x256xf32>
    %150 = arith.addf %148, %149 : vector<4x256xf32>
    %151 = arith.addf %150, %134 : vector<4x256xf32>
    %cst_92 = arith.constant dense<0.000000e+00> : vector<4xf32>
    %152 = vector.multi_reduction <add>, %151, %cst_92 [1] : vector<4x256xf32> to vector<4xf32>
    %153 = vector.shape_cast %152 : vector<4xf32> to vector<4x1xf32>
    %cst_93 = arith.constant 2.560000e+02 : f32
    %154 = vector.broadcast %cst_93 : f32 to vector<4x1xf32>
    %155 = arith.divf %153, %154 : vector<4x1xf32>
    %156 = vector.broadcast %155 : vector<4x1xf32> to vector<4x256xf32>
    %157 = arith.subf %151, %156 : vector<4x256xf32>
    %158 = arith.mulf %157, %157 : vector<4x256xf32>
    %cst_94 = arith.constant dense<0.000000e+00> : vector<4xf32>
    %159 = vector.multi_reduction <add>, %158, %cst_94 [1] : vector<4x256xf32> to vector<4xf32>
    %160 = vector.shape_cast %159 : vector<4xf32> to vector<4x1xf32>
    %cst_95 = arith.constant 2.560000e+02 : f32
    %161 = vector.broadcast %cst_95 : f32 to vector<4x1xf32>
    %162 = arith.divf %160, %161 : vector<4x1xf32>
    %cst_96 = arith.constant 9.99999974E-6 : f32
    %163 = vector.broadcast %cst_96 : f32 to vector<4x1xf32>
    %164 = arith.addf %162, %163 : vector<4x1xf32>
    %165 = math.rsqrt %164 : vector<4x1xf32>
    %166 = vector.broadcast %165 : vector<4x1xf32> to vector<4x256xf32>
    %167 = arith.mulf %157, %166 : vector<4x256xf32>
    %168 = vector.broadcast %129 : vector<1x256xf32> to vector<4x256xf32>
    %169 = arith.mulf %167, %168 : vector<4x256xf32>
    %170 = vector.broadcast %130 : vector<1x256xf32> to vector<4x256xf32>
    %171 = arith.addf %169, %170 : vector<4x256xf32>
    %c0_97 = arith.constant 0 : index
    %c0_98 = arith.constant 0 : index
    %172 = vector.load %arg19[%c0_97, %c0_98] : memref<128x256xf32, #tpu.memory_space<vmem>>, vector<128x256xf32>
    %c0_99 = arith.constant 0 : index
    %c0_100 = arith.constant 0 : index
    %173 = vector.load %arg20[%c0_99, %c0_100] : memref<1x256xf32, #tpu.memory_space<vmem>>, vector<1x256xf32>
    %c0_101 = arith.constant 0 : index
    %c0_102 = arith.constant 0 : index
    %174 = vector.load %arg21[%c0_101, %c0_102] : memref<256x256xf32, #tpu.memory_space<vmem>>, vector<256x256xf32>
    %c0_103 = arith.constant 0 : index
    %c0_104 = arith.constant 0 : index
    %175 = vector.load %arg22[%c0_103, %c0_104] : memref<1x256xf32, #tpu.memory_space<vmem>>, vector<1x256xf32>
    %c0_105 = arith.constant 0 : index
    %c0_106 = arith.constant 0 : index
    %176 = vector.load %arg23[%c0_105, %c0_106] : memref<1x256xf32, #tpu.memory_space<vmem>>, vector<1x256xf32>
    %c0_107 = arith.constant 0 : index
    %c0_108 = arith.constant 0 : index
    %177 = vector.load %arg24[%c0_107, %c0_108] : memref<1x256xf32, #tpu.memory_space<vmem>>, vector<1x256xf32>
    %cst_109 = arith.constant dense<0.000000e+00> : vector<4x256xf32>
    %178 = tpu.matmul %124, %172, %cst_109 {dimension_numbers = #tpu.dot_dimension_numbers<[1], [0], [0], [1], [0, 0, 1, 1], [], []>} : vector<4x128xf32>, vector<128x256xf32>, vector<4x256xf32> -> vector<4x256xf32>
    %179 = vector.broadcast %173 : vector<1x256xf32> to vector<4x256xf32>
    %180 = arith.addf %178, %179 : vector<4x256xf32>
    %cst_110 = arith.constant 5.000000e-01 : f32
    %181 = vector.broadcast %cst_110 : f32 to vector<4x256xf32>
    %182 = arith.mulf %181, %180 : vector<4x256xf32>
    %cst_111 = arith.constant 4.471500e-02 : f32
    %183 = vector.broadcast %cst_111 : f32 to vector<4x256xf32>
    %184 = arith.mulf %183, %180 : vector<4x256xf32>
    %185 = arith.mulf %184, %180 : vector<4x256xf32>
    %186 = arith.mulf %185, %180 : vector<4x256xf32>
    %187 = arith.addf %180, %186 : vector<4x256xf32>
    %cst_112 = arith.constant 0.797884583 : f32
    %188 = vector.broadcast %cst_112 : f32 to vector<4x256xf32>
    %189 = arith.mulf %188, %187 : vector<4x256xf32>
    %190 = math.tanh %189 : vector<4x256xf32>
    %cst_113 = arith.constant 1.000000e+00 : f32
    %191 = vector.broadcast %cst_113 : f32 to vector<4x256xf32>
    %192 = arith.addf %191, %190 : vector<4x256xf32>
    %193 = arith.mulf %182, %192 : vector<4x256xf32>
    %cst_114 = arith.constant dense<0.000000e+00> : vector<4x256xf32>
    %194 = tpu.matmul %193, %174, %cst_114 {dimension_numbers = #tpu.dot_dimension_numbers<[1], [0], [0], [1], [0, 0, 1, 1], [], []>} : vector<4x256xf32>, vector<256x256xf32>, vector<4x256xf32> -> vector<4x256xf32>
    %195 = vector.broadcast %175 : vector<1x256xf32> to vector<4x256xf32>
    %196 = arith.addf %194, %195 : vector<4x256xf32>
    %197 = arith.addf %196, %180 : vector<4x256xf32>
    %cst_115 = arith.constant dense<0.000000e+00> : vector<4xf32>
    %198 = vector.multi_reduction <add>, %197, %cst_115 [1] : vector<4x256xf32> to vector<4xf32>
    %199 = vector.shape_cast %198 : vector<4xf32> to vector<4x1xf32>
    %cst_116 = arith.constant 2.560000e+02 : f32
    %200 = vector.broadcast %cst_116 : f32 to vector<4x1xf32>
    %201 = arith.divf %199, %200 : vector<4x1xf32>
    %202 = vector.broadcast %201 : vector<4x1xf32> to vector<4x256xf32>
    %203 = arith.subf %197, %202 : vector<4x256xf32>
    %204 = arith.mulf %203, %203 : vector<4x256xf32>
    %cst_117 = arith.constant dense<0.000000e+00> : vector<4xf32>
    %205 = vector.multi_reduction <add>, %204, %cst_117 [1] : vector<4x256xf32> to vector<4xf32>
    %206 = vector.shape_cast %205 : vector<4xf32> to vector<4x1xf32>
    %cst_118 = arith.constant 2.560000e+02 : f32
    %207 = vector.broadcast %cst_118 : f32 to vector<4x1xf32>
    %208 = arith.divf %206, %207 : vector<4x1xf32>
    %cst_119 = arith.constant 9.99999974E-6 : f32
    %209 = vector.broadcast %cst_119 : f32 to vector<4x1xf32>
    %210 = arith.addf %208, %209 : vector<4x1xf32>
    %211 = math.rsqrt %210 : vector<4x1xf32>
    %212 = vector.broadcast %211 : vector<4x1xf32> to vector<4x256xf32>
    %213 = arith.mulf %203, %212 : vector<4x256xf32>
    %214 = vector.broadcast %176 : vector<1x256xf32> to vector<4x256xf32>
    %215 = arith.mulf %213, %214 : vector<4x256xf32>
    %216 = vector.broadcast %177 : vector<1x256xf32> to vector<4x256xf32>
    %217 = arith.addf %215, %216 : vector<4x256xf32>
    %c0_120 = arith.constant 0 : index
    %c0_121 = arith.constant 0 : index
    %218 = vector.load %arg2[%c0_120, %c0_121] : memref<4x4xf32, #tpu.memory_space<vmem>>, vector<4x4xf32>
    %cst_122 = arith.constant dense<0.000000e+00> : vector<4x4xf32>
    %219 = tpu.matmul %217, %171, %cst_122 {dimension_numbers = #tpu.dot_dimension_numbers<[1], [1], [0], [0], [0, 0, 1, 0], [], []>} : vector<4x256xf32>, vector<4x256xf32>, vector<4x4xf32> -> vector<4x4xf32>
    %cst_123 = arith.constant 1.000000e+00 : f32
    %220 = vector.broadcast %cst_123 : f32 to vector<4x4xf32>
    %221 = arith.mulf %219, %220 : vector<4x4xf32>
    %cst_124 = arith.constant 0.000000e+00 : f32
    %222 = vector.broadcast %cst_124 : f32 to vector<4x4xf32>
    %223 = arith.cmpf oeq, %218, %222 : vector<4x4xf32>
    %cst_125 = arith.constant 1.000000e+00 : f32
    %cst_126 = arith.constant 0.000000e+00 : f32
    %224 = vector.broadcast %cst_125 : f32 to vector<4x4xf32>
    %225 = vector.broadcast %cst_126 : f32 to vector<4x4xf32>
    %226 = arith.select %223, %224, %225 : vector<4x4xi1>, vector<4x4xf32>
    %227 = arith.mulf %221, %226 : vector<4x4xf32>
    %cst_127 = arith.constant 1.000000e+03 : f32
    %228 = vector.broadcast %cst_127 : f32 to vector<4x4xf32>
    %229 = arith.mulf %228, %218 : vector<4x4xf32>
    %230 = arith.subf %227, %229 : vector<4x4xf32>
    %231 = tpu.iota {dimensions = array<i32: 0>} : vector<4x4xi32>
    %232 = tpu.iota {dimensions = array<i32: 1>} : vector<4x4xi32>
    %233 = arith.cmpi eq, %231, %232 : vector<4x4xi32>
    %234 = arith.extui %233 : vector<4x4xi1> to vector<4x4xi32>
    %235 = arith.sitofp %234 : vector<4x4xi32> to vector<4x4xf32>
    %236 = arith.mulf %230, %235 : vector<4x4xf32>
    %cst_128 = arith.constant dense<0.000000e+00> : vector<4xf32>
    %237 = vector.multi_reduction <add>, %236, %cst_128 [1] : vector<4x4xf32> to vector<4xf32>
    %238 = vector.shape_cast %237 : vector<4xf32> to vector<4x1xf32>
    %cst_129 = arith.constant dense<0xFF800000> : vector<4xf32>
    %239 = vector.multi_reduction <maximumf>, %230, %cst_129 [1] : vector<4x4xf32> to vector<4xf32>
    %240 = vector.shape_cast %239 : vector<4xf32> to vector<4x1xf32>
    %241 = vector.broadcast %240 : vector<4x1xf32> to vector<4x4xf32>
    %242 = arith.subf %230, %241 : vector<4x4xf32>
    %243 = math.exp %242 : vector<4x4xf32>
    %cst_130 = arith.constant dense<0.000000e+00> : vector<4xf32>
    %244 = vector.multi_reduction <add>, %243, %cst_130 [1] : vector<4x4xf32> to vector<4xf32>
    %245 = vector.shape_cast %244 : vector<4xf32> to vector<4x1xf32>
    %246 = math.log %245 : vector<4x1xf32>
    %247 = arith.addf %240, %246 : vector<4x1xf32>
    %cst_131 = arith.constant dense<0xFF800000> : vector<4xf32>
    %248 = vector.multi_reduction <maximumf>, %230, %cst_131 [0] : vector<4x4xf32> to vector<4xf32>
    %249 = vector.shape_cast %248 : vector<4xf32> to vector<1x4xf32>
    %250 = vector.broadcast %249 : vector<1x4xf32> to vector<4x4xf32>
    %251 = arith.subf %230, %250 : vector<4x4xf32>
    %252 = math.exp %251 : vector<4x4xf32>
    %cst_132 = arith.constant dense<0.000000e+00> : vector<4xf32>
    %253 = vector.multi_reduction <add>, %252, %cst_132 [0] : vector<4x4xf32> to vector<4xf32>
    %254 = vector.shape_cast %253 : vector<4xf32> to vector<1x4xf32>
    %255 = math.log %254 : vector<1x4xf32>
    %256 = arith.addf %249, %255 : vector<1x4xf32>
    %cst_133 = arith.constant dense<0.000000e+00> : vector<1xf32>
    %257 = vector.multi_reduction <add>, %247, %cst_133 [0] : vector<4x1xf32> to vector<1xf32>
    %258 = vector.shape_cast %257 : vector<1xf32> to vector<1x1xf32>
    %cst_134 = arith.constant 2.500000e-01 : f32
    %259 = vector.broadcast %cst_134 : f32 to vector<1x1xf32>
    %260 = arith.mulf %258, %259 : vector<1x1xf32>
    %cst_135 = arith.constant dense<0.000000e+00> : vector<1xf32>
    %261 = vector.multi_reduction <add>, %256, %cst_135 [1] : vector<1x4xf32> to vector<1xf32>
    %262 = vector.shape_cast %261 : vector<1xf32> to vector<1x1xf32>
    %cst_136 = arith.constant 2.500000e-01 : f32
    %263 = vector.broadcast %cst_136 : f32 to vector<1x1xf32>
    %264 = arith.mulf %262, %263 : vector<1x1xf32>
    %cst_137 = arith.constant dense<0.000000e+00> : vector<1xf32>
    %265 = vector.multi_reduction <add>, %238, %cst_137 [0] : vector<4x1xf32> to vector<1xf32>
    %266 = vector.shape_cast %265 : vector<1xf32> to vector<1x1xf32>
    %cst_138 = arith.constant 2.500000e-01 : f32
    %267 = vector.broadcast %cst_138 : f32 to vector<1x1xf32>
    %268 = arith.mulf %266, %267 : vector<1x1xf32>
    %269 = arith.addf %260, %264 : vector<1x1xf32>
    %cst_139 = arith.constant 5.000000e-01 : f32
    %270 = vector.broadcast %cst_139 : f32 to vector<1x1xf32>
    %271 = arith.mulf %270, %269 : vector<1x1xf32>
    %272 = arith.subf %271, %268 : vector<1x1xf32>
    %c0_140 = arith.constant 0 : index
    %c0_141 = arith.constant 0 : index
    %273 = vector.load %arg25[%c0_140, %c0_141] : memref<1x1xf32, #tpu.memory_space<vmem>>, vector<1x1xf32>
    tpu.vector_store %arg25[%c0_140, %c0_141], %272 {strides = array<i32>} : memref<1x1xf32, #tpu.memory_space<vmem>>, vector<1x1xf32>,
    return
  }
}

</mosaic_0001>

<llo_original>
// kernel: ctip_forward.1
$region0: #{ctip_forward.1}
  #allocation0 [shape = 'u32[]', space=smem, size = 0x4, offset = 0x4, fixed_abs, tag = 'smem constant byte address 0x4 - core index']
  #allocation1 [shape = 'u32[144,128]{1,0:T(1,128)}', space=vmem, size = 0x12000, scoped, tag = 'internal scratch']
  %s0 = inlined_call_operand.vmem [shape: bf16[4,768], index: 0, kind: input, shape index: {}]
  %s1 = inlined_call_operand.vmem [shape: f32[64,2], index: 1, kind: input, shape index: {}]
  %s2 = inlined_call_operand.hbm [shape: f32[4,4], index: 2, kind: input, shape index: {}]
  %s3 = inlined_call_operand.hbm [shape: bf16[768,1024], index: 3, kind: input, shape index: {}]
  %s4 = inlined_call_operand.hbm [shape: f32[1,1024], index: 4, kind: input, shape index: {}]
  %s5 = inlined_call_operand.hbm [shape: f32[3,2,16], index: 5, kind: input, shape index: {}]
  %s6 = inlined_call_operand.hbm [shape: f32[1,16], index: 6, kind: input, shape index: {}]
  %s7 = inlined_call_operand.hbm [shape: f32[3,16,64], index: 7, kind: input, shape index: {}]
  %s8 = inlined_call_operand.hbm [shape: f32[1,64], index: 8, kind: input, shape index: {}]
  %s9 = inlined_call_operand.hbm [shape: f32[3,64,128], index: 9, kind: input, shape index: {}]
  %s10 = inlined_call_operand.hbm [shape: f32[1,128], index: 10, kind: input, shape index: {}]
  %s11 = inlined_call_operand.hbm [shape: f32[1,128], index: 11, kind: input, shape index: {}]
  %s12 = inlined_call_operand.hbm [shape: f32[1,128], index: 12, kind: input, shape index: {}]
  %s13 = inlined_call_operand.hbm [shape: bf16[1024,256], index: 13, kind: input, shape index: {}]
  %s14 = inlined_call_operand.hbm [shape: f32[1,256], index: 14, kind: input, shape index: {}]
  %s15 = inlined_call_operand.hbm [shape: f32[256,256], index: 15, kind: input, shape index: {}]
  %s16 = inlined_call_operand.hbm [shape: f32[1,256], index: 16, kind: input, shape index: {}]
  %s17 = inlined_call_operand.hbm [shape: f32[1,256], index: 17, kind: input, shape index: {}]
  %s18 = inlined_call_operand.hbm [shape: f32[1,256], index: 18, kind: input, shape index: {}]
  %s19 = inlined_call_operand.hbm [shape: f32[128,256], index: 19, kind: input, shape index: {}]
  %s20 = inlined_call_operand.hbm [shape: f32[1,256], index: 20, kind: input, shape index: {}]
  %s21 = inlined_call_operand.hbm [shape: f32[256,256], index: 21, kind: input, shape index: {}]
  %s22 = inlined_call_operand.hbm [shape: f32[1,256], index: 22, kind: input, shape index: {}]
  %s23 = inlined_call_operand.hbm [shape: f32[1,256], index: 23, kind: input, shape index: {}]
  %s24 = inlined_call_operand.hbm [shape: f32[1,256], index: 24, kind: input, shape index: {}]
  %s25 = inlined_call_operand.hbm [shape: f32[1,1], index: 25, kind: output, shape index: {}]
  %s26 = sld [smem:[#allocation0]]
  $region202: #{ctip_forward.1} parent=0
    _
  %s28 = ssub.s32 1, %s26
  %s29 = scalar_select 0, %s28, %s26
  $region1: #{ctip_forward.1} parent=0
    #allocation2 [shape = 'u8[2048]{0}', space=vmem, size = 0x800, scoped, tag = 'input window, operand 2, single buffered']
    #allocation3 [shape = 's32[1]{0}', space=sflag, size = 0x4, scoped, tag = 'scoped memory for ctip_forward.1']
    #allocation4 [shape = 's32[1]{0}', space=sflag, size = 0x4, scoped, tag = 'scoped memory for ctip_forward.1']
    #allocation5 [shape = 'u8[1572864]{0}', space=vmem, size = 0x180000, scoped, tag = 'input window, operand 3, single buffered']
    #allocation6 [shape = 's32[1]{0}', space=sflag, size = 0x4, scoped, tag = 'scoped memory for ctip_forward.1']
    #allocation7 [shape = 'u8[4096]{0}', space=vmem, size = 0x1000, scoped, tag = 'input window, operand 4, single buffered']
    #allocation8 [shape = 'u8[3072]{0}', space=vmem, size = 0xc00, scoped, tag = 'input window, operand 5, single buffered']
    #allocation9 [shape = 's32[1]{0}', space=sflag, size = 0x4, scoped, tag = 'scoped memory for ctip_forward.1']
    #allocation10 [shape = 'u8[512]{0}', space=vmem, size = 0x400, scoped, tag = 'input window, operand 6, single buffered']
    #allocation11 [shape = 'u8[24576]{0}', space=vmem, size = 0x6000, scoped, tag = 'input window, operand 7, single buffered']
    #allocation12 [shape = 's32[1]{0}', space=sflag, size = 0x4, scoped, tag = 'scoped memory for ctip_forward.1']
    #allocation13 [shape = 'u8[512]{0}', space=vmem, size = 0x400, scoped, tag = 'input window, operand 8, single buffered']
    #allocation14 [shape = 'u8[98304]{0}', space=vmem, size = 0x18000, scoped, tag = 'input window, operand 9, single buffered']
    #allocation15 [shape = 's32[1]{0}', space=sflag, size = 0x4, scoped, tag = 'scoped memory for ctip_forward.1']
    #allocation16 [shape = 'u8[512]{0}', space=vmem, size = 0x400, scoped, tag = 'input window, operand 10, single buffered']
    #allocation17 [shape = 'u8[512]{0}', space=vmem, size = 0x400, scoped, tag = 'input window, operand 11, single buffered']
    #allocation18 [shape = 's32[1]{0}', space=sflag, size = 0x4, scoped, tag = 'scoped memory for ctip_forward.1']
    #allocation19 [shape = 'u8[512]{0}', space=vmem, size = 0x400, scoped, tag = 'input window, operand 12, single buffered']
    #allocation20 [shape = 'u8[524288]{0}', space=vmem, size = 0x80000, scoped, tag = 'input window, operand 13, single buffered']
    #allocation21 [shape = 's32[1]{0}', space=sflag, size = 0x4, scoped, tag = 'scoped memory for ctip_forward.1']
    #allocation22 [shape = 'u8[1024]{0}', space=vmem, size = 0x400, scoped, tag = 'input window, operand 14, single buffered']
    #allocation23 [shape = 'u8[262144]{0}', space=vmem, size = 0x40000, scoped, tag = 'input window, operand 15, single buffered']
    #allocation24 [shape = 's32[1]{0}', space=sflag, size = 0x4, scoped, tag = 'scoped memory for ctip_forward.1']
    #allocation25 [shape = 'u8[1024]{0}', space=vmem, size = 0x400, scoped, tag = 'input window, operand 16, single buffered']
    #allocation26 [shape = 'u8[1024]{0}', space=vmem, size = 0x400, scoped, tag = 'input window, operand 17, single buffered']
    #allocation27 [shape = 's32[1]{0}', space=sflag, size = 0x4, scoped, tag = 'scoped memory for ctip_forward.1']
    #allocation28 [shape = 'u8[1024]{0}', space=vmem, size = 0x400, scoped, tag = 'input window, operand 18, single buffered']
    #allocation29 [shape = 'u8[131072]{0}', space=vmem, size = 0x20000, scoped, tag = 'input window, operand 19, single buffered']
    #allocation30 [shape = 's32[1]{0}', space=sflag, size = 0x4, scoped, tag = 'scoped memory for ctip_forward.1']
    #allocation31 [shape = 'u8[1024]{0}', space=vmem, size = 0x400, scoped, tag = 'input window, operand 20, single buffered']
    #allocation32 [shape = 'u8[262144]{0}', space=vmem, size = 0x40000, scoped, tag = 'input window, operand 21, single buffered']
    #allocation33 [shape = 's32[1]{0}', space=sflag, size = 0x4, scoped, tag = 'scoped memory for ctip_forward.1']
    #allocation34 [shape = 'u8[1024]{0}', space=vmem, size = 0x400, scoped, tag = 'input window, operand 22, single buffered']
    #allocation35 [shape = 'u8[1024]{0}', space=vmem, size = 0x400, scoped, tag = 'input window, operand 23, single buffered']
    #allocation36 [shape = 's32[1]{0}', space=sflag, size = 0x4, scoped, tag = 'scoped memory for ctip_forward.1']
    #allocation37 [shape = 'u8[1024]{0}', space=vmem, size = 0x400, scoped, tag = 'input window, operand 24, single buffered']
    #allocation38 [shape = 'u8[512]{0}', space=vmem, size = 0x400, scoped, tag = 'output window, operand 0, single buffered']
    %30 = vsyncpa [#allocation3], 0
    %31 = vsyncpa [#allocation6], 0
    %32 = vsyncpa [#allocation9], 0
    %33 = vsyncpa [#allocation12], 0
    %34 = vsyncpa [#allocation15], 0
    %35 = vsyncpa [#allocation18], 0
    %36 = vsyncpa [#allocation21], 0
    %37 = vsyncpa [#allocation24], 0
    %38 = vsyncpa [#allocation27], 0
    %39 = vsyncpa [#allocation30], 0
    %40 = vsyncpa [#allocation33], 0
    %41 = vsyncpa [#allocation36], 0
    %42 = vsyncpa [#allocation4], 0
    // Predicated region
    $region2: #{ctip_forward.1} parent=1 // pred_check
      _
    $region3: #{ctip_forward.1} parent=1 // pred_check_branch
      %44 = sbr.rel (0) target = $region5
    $region4: #{ctip_forward.1} parent=1 // pred_region
      _
    $region5: #{ctip_forward.1} parent=1 // pred_fallthru
      _
    // Predicated region
    $region6: #{ctip_forward.1} parent=1 // pred_check
      _
    $region7: #{ctip_forward.1} parent=1 // pred_check_branch
      %46 = sbr.rel (0) target = $region9
    $region8: #{ctip_forward.1} parent=1 // pred_region
      _
    $region9: #{ctip_forward.1} parent=1 // pred_fallthru
      _
    // Predicated region
    $region10: #{ctip_forward.1} parent=1 // pred_check
      _
    $region11: #{ctip_forward.1} parent=1 // pred_check_branch
      %48 = sbr.rel (0) target = $region13
    $region12: #{ctip_forward.1} parent=1 // pred_region
      %s50 = ssub.s32 64, 64
      %51 = vsyncadd [#allocation3], %s50
      %s53 = sshll.u32 [#allocation2], 4
      %s54 = int_to_ptr.vmem [resolvable:$true] %s53
      %56 = dma.hbm_to_vmem [thread:$0]  %s2, 64, %s54, [#allocation3]
    $region13: #{ctip_forward.1} parent=1 // pred_fallthru
      _
    // Predicated region
    $region14: #{ctip_forward.1} parent=1 // pred_check
      _
    $region15: #{ctip_forward.1} parent=1 // pred_check_branch
      %58 = sbr.rel (0) target = $region17
    $region16: #{ctip_forward.1} parent=1 // pred_region
      %s60 = ssub.s32 49152, 49152
      %61 = vsyncadd [#allocation6], %s60
      %s62 = sshll.u32 [#allocation5], 4
      %s63 = int_to_ptr.vmem [resolvable:$true] %s62
      %68 = dma.hbm_to_vmem [thread:$0]  %s3, 49152, %s63, [#allocation6], 512, 512, 32
    $region17: #{ctip_forward.1} parent=1 // pred_fallthru
      _
    // Predicated region
    $region18: #{ctip_forward.1} parent=1 // pred_check
      _
    $region19: #{ctip_forward.1} parent=1 // pred_check_branch
      %70 = sbr.rel (0) target = $region21
    $region20: #{ctip_forward.1} parent=1 // pred_region
      %s72 = ssub.s32 128, 128
      %73 = vsyncadd [#allocation6], %s72
      %s75 = sshll.u32 [#allocation7], 4
      %s76 = int_to_ptr.vmem [resolvable:$true] %s75
      %78 = dma.hbm_to_vmem [thread:$0]  %s4, 128, %s76, [#allocation6]
    $region21: #{ctip_forward.1} parent=1 // pred_fallthru
      _
    // Predicated region
    $region22: #{ctip_forward.1} parent=1 // pred_check
      _
    $region23: #{ctip_forward.1} parent=1 // pred_check_branch
      %80 = sbr.rel (0) target = $region25
    $region24: #{ctip_forward.1} parent=1 // pred_region
      %s82 = ssub.s32 96, 96
      %83 = vsyncadd [#allocation9], %s82
      %s84 = sshll.u32 [#allocation8], 4
      %s85 = int_to_ptr.vmem [resolvable:$true] %s84
      %90 = dma.hbm_to_vmem [thread:$0]  %s5, 96, %s85, [#allocation9], 32, 32, 2
    $region25: #{ctip_forward.1} parent=1 // pred_fallthru
      _
    // Predicated region
    $region26: #{ctip_forward.1} parent=1 // pred_check
      _
    $region27: #{ctip_forward.1} parent=1 // pred_check_branch
      %92 = sbr.rel (0) target = $region29
    $region28: #{ctip_forward.1} parent=1 // pred_region
      %s94 = ssub.s32 16, 16
      %95 = vsyncadd [#allocation9], %s94
      %s97 = sshll.u32 [#allocation10], 4
      %s98 = int_to_ptr.vmem [resolvable:$true] %s97
      %100 = dma.hbm_to_vmem [thread:$0]  %s6, 16, %s98, [#allocation9]
    $region29: #{ctip_forward.1} parent=1 // pred_fallthru
      _
    // Predicated region
    $region30: #{ctip_forward.1} parent=1 // pred_check
      _
    $region31: #{ctip_forward.1} parent=1 // pred_check_branch
      %102 = sbr.rel (0) target = $region33
    $region32: #{ctip_forward.1} parent=1 // pred_region
      %s104 = ssub.s32 768, 768
      %105 = vsyncadd [#allocation12], %s104
      %s106 = sshll.u32 [#allocation11], 4
      %s107 = int_to_ptr.vmem [resolvable:$true] %s106
      %112 = dma.hbm_to_vmem [thread:$0]  %s7, 768, %s107, [#allocation12], 128, 128, 8
    $region33: #{ctip_forward.1} parent=1 // pred_fallthru
      _
    // Predicated region
    $region34: #{ctip_forward.1} parent=1 // pred_check
      _
    $region35: #{ctip_forward.1} parent=1 // pred_check_branch
      %114 = sbr.rel (0) target = $region37
    $region36: #{ctip_forward.1} parent=1 // pred_region
      %s116 = ssub.s32 16, 16
      %117 = vsyncadd [#allocation12], %s116
      %s119 = sshll.u32 [#allocation13], 4
      %s120 = int_to_ptr.vmem [resolvable:$true] %s119
      %122 = dma.hbm_to_vmem [thread:$0]  %s8, 16, %s120, [#allocation12]
    $region37: #{ctip_forward.1} parent=1 // pred_fallthru
      _
    // Predicated region
    $region38: #{ctip_forward.1} parent=1 // pred_check
      _
    $region39: #{ctip_forward.1} parent=1 // pred_check_branch
      %124 = sbr.rel (0) target = $region41
    $region40: #{ctip_forward.1} parent=1 // pred_region
      %s126 = ssub.s32 3072, 3072
      %127 = vsyncadd [#allocation15], %s126
      %s128 = sshll.u32 [#allocation14], 4
      %s129 = int_to_ptr.vmem [resolvable:$true] %s128
      %134 = dma.hbm_to_vmem [thread:$0]  %s9, 3072, %s129, [#allocation15], 128, 128, 8
    $region41: #{ctip_forward.1} parent=1 // pred_fallthru
      _
    // Predicated region
    $region42: #{ctip_forward.1} parent=1 // pred_check
      _
    $region43: #{ctip_forward.1} parent=1 // pred_check_branch
      %136 = sbr.rel (0) target = $region45
    $region44: #{ctip_forward.1} parent=1 // pred_region
      %s138 = ssub.s32 16, 16
      %139 = vsyncadd [#allocation15], %s138
      %s141 = sshll.u32 [#allocation16], 4
      %s142 = int_to_ptr.vmem [resolvable:$true] %s141
      %144 = dma.hbm_to_vmem [thread:$0]  %s10, 16, %s142, [#allocation15]
    $region45: #{ctip_forward.1} parent=1 // pred_fallthru
      _
    // Predicated region
    $region46: #{ctip_forward.1} parent=1 // pred_check
      _
    $region47: #{ctip_forward.1} parent=1 // pred_check_branch
      %146 = sbr.rel (0) target = $region49
    $region48: #{ctip_forward.1} parent=1 // pred_region
      %s148 = ssub.s32 16, 16
      %149 = vsyncadd [#allocation18], %s148
      %s151 = sshll.u32 [#allocation17], 4
      %s152 = int_to_ptr.vmem [resolvable:$true] %s151
      %154 = dma.hbm_to_vmem [thread:$0]  %s11, 16, %s152, [#allocation18]
    $region49: #{ctip_forward.1} parent=1 // pred_fallthru
      _
    // Predicated region
    $region50: #{ctip_forward.1} parent=1 // pred_check
      _
    $region51: #{ctip_forward.1} parent=1 // pred_check_branch
      %156 = sbr.rel (0) target = $region53
    $region52: #{ctip_forward.1} parent=1 // pred_region
      %s158 = ssub.s32 16, 16
      %159 = vsyncadd [#allocation18], %s158
      %s161 = sshll.u32 [#allocation19], 4
      %s162 = int_to_ptr.vmem [resolvable:$true] %s161
      %164 = dma.hbm_to_vmem [thread:$0]  %s12, 16, %s162, [#allocation18]
    $region53: #{ctip_forward.1} parent=1 // pred_fallthru
      _
    // Predicated region
    $region54: #{ctip_forward.1} parent=1 // pred_check
      _
    $region55: #{ctip_forward.1} parent=1 // pred_check_branch
      %166 = sbr.rel (0) target = $region57
    $region56: #{ctip_forward.1} parent=1 // pred_region
      %s168 = ssub.s32 16384, 16384
      %169 = vsyncadd [#allocation21], %s168
      %s170 = sshll.u32 [#allocation20], 4
      %s171 = int_to_ptr.vmem [resolvable:$true] %s170
      %176 = dma.hbm_to_vmem [thread:$0]  %s13, 16384, %s171, [#allocation21], 128, 128, 8
    $region57: #{ctip_forward.1} parent=1 // pred_fallthru
      _
    // Predicated region
    $region58: #{ctip_forward.1} parent=1 // pred_check
      _
    $region59: #{ctip_forward.1} parent=1 // pred_check_branch
      %178 = sbr.rel (0) target = $region61
    $region60: #{ctip_forward.1} parent=1 // pred_region
      %s180 = ssub.s32 32, 32
      %181 = vsyncadd [#allocation21], %s180
      %s183 = sshll.u32 [#allocation22], 4
      %s184 = int_to_ptr.vmem [resolvable:$true] %s183
      %186 = dma.hbm_to_vmem [thread:$0]  %s14, 32, %s184, [#allocation21]
    $region61: #{ctip_forward.1} parent=1 // pred_fallthru
      _
    // Predicated region
    $region62: #{ctip_forward.1} parent=1 // pred_check
      _
    $region63: #{ctip_forward.1} parent=1 // pred_check_branch
      %188 = sbr.rel (0) target = $region65
    $region64: #{ctip_forward.1} parent=1 // pred_region
      %s190 = ssub.s32 8192, 8192
      %191 = vsyncadd [#allocation24], %s190
      %s192 = sshll.u32 [#allocation23], 4
      %s193 = int_to_ptr.vmem [resolvable:$true] %s192
      %198 = dma.hbm_to_vmem [thread:$0]  %s15, 8192, %s193, [#allocation24], 256, 256, 16
    $region65: #{ctip_forward.1} parent=1 // pred_fallthru
      _
    // Predicated region
    $region66: #{ctip_forward.1} parent=1 // pred_check
      _
    $region67: #{ctip_forward.1} parent=1 // pred_check_branch
      %200 = sbr.rel (0) target = $region69
    $region68: #{ctip_forward.1} parent=1 // pred_region
      %s202 = ssub.s32 32, 32
      %203 = vsyncadd [#allocation24], %s202
      %s205 = sshll.u32 [#allocation25], 4
      %s206 = int_to_ptr.vmem [resolvable:$true] %s205
      %208 = dma.hbm_to_vmem [thread:$0]  %s16, 32, %s206, [#allocation24]
    $region69: #{ctip_forward.1} parent=1 // pred_fallthru
      _
    // Predicated region
    $region70: #{ctip_forward.1} parent=1 // pred_check
      _
    $region71: #{ctip_forward.1} parent=1 // pred_check_branch
      %210 = sbr.rel (0) target = $region73
    $region72: #{ctip_forward.1} parent=1 // pred_region
      %s212 = ssub.s32 32, 32
      %213 = vsyncadd [#allocation27], %s212
      %s215 = sshll.u32 [#allocation26], 4
      %s216 = int_to_ptr.vmem [resolvable:$true] %s215
      %218 = dma.hbm_to_vmem [thread:$0]  %s17, 32, %s216, [#allocation27]
    $region73: #{ctip_forward.1} parent=1 // pred_fallthru
      _
    // Predicated region
    $region74: #{ctip_forward.1} parent=1 // pred_check
      _
    $region75: #{ctip_forward.1} parent=1 // pred_check_branch
      %220 = sbr.rel (0) target = $region77
    $region76: #{ctip_forward.1} parent=1 // pred_region
      %s222 = ssub.s32 32, 32
      %223 = vsyncadd [#allocation27], %s222
      %s225 = sshll.u32 [#allocation28], 4
      %s226 = int_to_ptr.vmem [resolvable:$true] %s225
      %228 = dma.hbm_to_vmem [thread:$0]  %s18, 32, %s226, [#allocation27]
    $region77: #{ctip_forward.1} parent=1 // pred_fallthru
      _
    // Predicated region
    $region78: #{ctip_forward.1} parent=1 // pred_check
      _
    $region79: #{ctip_forward.1} parent=1 // pred_check_branch
      %230 = sbr.rel (0) target = $region81
    $region80: #{ctip_forward.1} parent=1 // pred_region
      %s232 = ssub.s32 4096, 4096
      %233 = vsyncadd [#allocation30], %s232
      %s234 = sshll.u32 [#allocation29], 4
      %s235 = int_to_ptr.vmem [resolvable:$true] %s234
      %240 = dma.hbm_to_vmem [thread:$0]  %s19, 4096, %s235, [#allocation30], 256, 256, 16
    $region81: #{ctip_forward.1} parent=1 // pred_fallthru
      _
    // Predicated region
    $region82: #{ctip_forward.1} parent=1 // pred_check
      _
    $region83: #{ctip_forward.1} parent=1 // pred_check_branch
      %242 = sbr.rel (0) target = $region85
    $region84: #{ctip_forward.1} parent=1 // pred_region
      %s244 = ssub.s32 32, 32
      %245 = vsyncadd [#allocation30], %s244
      %s247 = sshll.u32 [#allocation31], 4
      %s248 = int_to_ptr.vmem [resolvable:$true] %s247
      %250 = dma.hbm_to_vmem [thread:$0]  %s20, 32, %s248, [#allocation30]
    $region85: #{ctip_forward.1} parent=1 // pred_fallthru
      _
    // Predicated region
    $region86: #{ctip_forward.1} parent=1 // pred_check
      _
    $region87: #{ctip_forward.1} parent=1 // pred_check_branch
      %252 = sbr.rel (0) target = $region89
    $region88: #{ctip_forward.1} parent=1 // pred_region
      %s254 = ssub.s32 8192, 8192
      %255 = vsyncadd [#allocation33], %s254
      %s256 = sshll.u32 [#allocation32], 4
      %s257 = int_to_ptr.vmem [resolvable:$true] %s256
      %262 = dma.hbm_to_vmem [thread:$0]  %s21, 8192, %s257, [#allocation33], 256, 256, 16
    $region89: #{ctip_forward.1} parent=1 // pred_fallthru
      _
    // Predicated region
    $region90: #{ctip_forward.1} parent=1 // pred_check
      _
    $region91: #{ctip_forward.1} parent=1 // pred_check_branch
      %264 = sbr.rel (0) target = $region93
    $region92: #{ctip_forward.1} parent=1 // pred_region
      %s266 = ssub.s32 32, 32
      %267 = vsyncadd [#allocation33], %s266
      %s269 = sshll.u32 [#allocation34], 4
      %s270 = int_to_ptr.vmem [resolvable:$true] %s269
      %272 = dma.hbm_to_vmem [thread:$0]  %s22, 32, %s270, [#allocation33]
    $region93: #{ctip_forward.1} parent=1 // pred_fallthru
      _
    // Predicated region
    $region94: #{ctip_forward.1} parent=1 // pred_check
      _
    $region95: #{ctip_forward.1} parent=1 // pred_check_branch
      %274 = sbr.rel (0) target = $region97
    $region96: #{ctip_forward.1} parent=1 // pred_region
      %s276 = ssub.s32 32, 32
      %277 = vsyncadd [#allocation36], %s276
      %s279 = sshll.u32 [#allocation35], 4
      %s280 = int_to_ptr.vmem [resolvable:$true] %s279
      %282 = dma.hbm_to_vmem [thread:$0]  %s23, 32, %s280, [#allocation36]
    $region97: #{ctip_forward.1} parent=1 // pred_fallthru
      _
    // Predicated region
    $region98: #{ctip_forward.1} parent=1 // pred_check
      _
    $region99: #{ctip_forward.1} parent=1 // pred_check_branch
      %284 = sbr.rel (0) target = $region101
    $region100: #{ctip_forward.1} parent=1 // pred_region
      %s286 = ssub.s32 32, 32
      %287 = vsyncadd [#allocation36], %s286
      %s289 = sshll.u32 [#allocation37], 4
      %s290 = int_to_ptr.vmem [resolvable:$true] %s289
      %292 = dma.hbm_to_vmem [thread:$0]  %s24, 32, %s290, [#allocation36]
    $region101: #{ctip_forward.1} parent=1 // pred_fallthru
      _
    // Predicated region
    $region102: #{ctip_forward.1} parent=1 // pred_check
      _
    $region103: #{ctip_forward.1} parent=1 // pred_check_branch
      %294 = sbr.rel (0) target = $region105
    $region104: #{ctip_forward.1} parent=1 // pred_region
      %295 = dma.done [#allocation3], 64
    $region105: #{ctip_forward.1} parent=1 // pred_fallthru
      _
    // Predicated region
    $region106: #{ctip_forward.1} parent=1 // pred_check
      _
    $region107: #{ctip_forward.1} parent=1 // pred_check_branch
      %297 = sbr.rel (0) target = $region109
    $region108: #{ctip_forward.1} parent=1 // pred_region
      %298 = dma.done [#allocation6], 49152
    $region109: #{ctip_forward.1} parent=1 // pred_fallthru
      _
    // Predicated region
    $region110: #{ctip_forward.1} parent=1 // pred_check
      _
    $region111: #{ctip_forward.1} parent=1 // pred_check_branch
      %300 = sbr.rel (0) target = $region113
    $region112: #{ctip_forward.1} parent=1 // pred_region
      %301 = dma.done [#allocation6], 128
    $region113: #{ctip_forward.1} parent=1 // pred_fallthru
      _
    // Predicated region
    $region114: #{ctip_forward.1} parent=1 // pred_check
      _
    $region115: #{ctip_forward.1} parent=1 // pred_check_branch
      %303 = sbr.rel (0) target = $region117
    $region116: #{ctip_forward.1} parent=1 // pred_region
      %304 = dma.done [#allocation9], 96
    $region117: #{ctip_forward.1} parent=1 // pred_fallthru
      _
    // Predicated region
    $region118: #{ctip_forward.1} parent=1 // pred_check
      _
    $region119: #{ctip_forward.1} parent=1 // pred_check_branch
      %306 = sbr.rel (0) target = $region121
    $region120: #{ctip_forward.1} parent=1 // pred_region
      %307 = dma.done [#allocation9], 16
    $region121: #{ctip_forward.1} parent=1 // pred_fallthru
      _
    // Predicated region
    $region122: #{ctip_forward.1} parent=1 // pred_check
      _
    $region123: #{ctip_forward.1} parent=1 // pred_check_branch
      %309 = sbr.rel (0) target = $region125
    $region124: #{ctip_forward.1} parent=1 // pred_region
      %310 = dma.done [#allocation12], 768
    $region125: #{ctip_forward.1} parent=1 // pred_fallthru
      _
    // Predicated region
    $region126: #{ctip_forward.1} parent=1 // pred_check
      _
    $region127: #{ctip_forward.1} parent=1 // pred_check_branch
      %312 = sbr.rel (0) target = $region129
    $region128: #{ctip_forward.1} parent=1 // pred_region
      %313 = dma.done [#allocation12], 16
    $region129: #{ctip_forward.1} parent=1 // pred_fallthru
      _
    // Predicated region
    $region130: #{ctip_forward.1} parent=1 // pred_check
      _
    $region131: #{ctip_forward.1} parent=1 // pred_check_branch
      %315 = sbr.rel (0) target = $region133
    $region132: #{ctip_forward.1} parent=1 // pred_region
      %316 = dma.done [#allocation15], 3072
    $region133: #{ctip_forward.1} parent=1 // pred_fallthru
      _
    // Predicated region
    $region134: #{ctip_forward.1} parent=1 // pred_check
      _
    $region135: #{ctip_forward.1} parent=1 // pred_check_branch
      %318 = sbr.rel (0) target = $region137
    $region136: #{ctip_forward.1} parent=1 // pred_region
      %319 = dma.done [#allocation15], 16
    $region137: #{ctip_forward.1} parent=1 // pred_fallthru
      _
    // Predicated region
    $region138: #{ctip_forward.1} parent=1 // pred_check
      _
    $region139: #{ctip_forward.1} parent=1 // pred_check_branch
      %321 = sbr.rel (0) target = $region141
    $region140: #{ctip_forward.1} parent=1 // pred_region
      %322 = dma.done [#allocation18], 16
    $region141: #{ctip_forward.1} parent=1 // pred_fallthru
      _
    // Predicated region
    $region142: #{ctip_forward.1} parent=1 // pred_check
      _
    $region143: #{ctip_forward.1} parent=1 // pred_check_branch
      %324 = sbr.rel (0) target = $region145
    $region144: #{ctip_forward.1} parent=1 // pred_region
      %325 = dma.done [#allocation18], 16
    $region145: #{ctip_forward.1} parent=1 // pred_fallthru
      _
    // Predicated region
    $region146: #{ctip_forward.1} parent=1 // pred_check
      _
    $region147: #{ctip_forward.1} parent=1 // pred_check_branch
      %327 = sbr.rel (0) target = $region149
    $region148: #{ctip_forward.1} parent=1 // pred_region
      %328 = dma.done [#allocation21], 16384
    $region149: #{ctip_forward.1} parent=1 // pred_fallthru
      _
    // Predicated region
    $region150: #{ctip_forward.1} parent=1 // pred_check
      _
    $region151: #{ctip_forward.1} parent=1 // pred_check_branch
      %330 = sbr.rel (0) target = $region153
    $region152: #{ctip_forward.1} parent=1 // pred_region
      %331 = dma.done [#allocation21], 32
    $region153: #{ctip_forward.1} parent=1 // pred_fallthru
      _
    // Predicated region
    $region154: #{ctip_forward.1} parent=1 // pred_check
      _
    $region155: #{ctip_forward.1} parent=1 // pred_check_branch
      %333 = sbr.rel (0) target = $region157
    $region156: #{ctip_forward.1} parent=1 // pred_region
      %334 = dma.done [#allocation24], 8192
    $region157: #{ctip_forward.1} parent=1 // pred_fallthru
      _
    // Predicated region
    $region158: #{ctip_forward.1} parent=1 // pred_check
      _
    $region159: #{ctip_forward.1} parent=1 // pred_check_branch
      %336 = sbr.rel (0) target = $region161
    $region160: #{ctip_forward.1} parent=1 // pred_region
      %337 = dma.done [#allocation24], 32
    $region161: #{ctip_forward.1} parent=1 // pred_fallthru
      _
    // Predicated region
    $region162: #{ctip_forward.1} parent=1 // pred_check
      _
    $region163: #{ctip_forward.1} parent=1 // pred_check_branch
      %339 = sbr.rel (0) target = $region165
    $region164: #{ctip_forward.1} parent=1 // pred_region
      %340 = dma.done [#allocation27], 32
    $region165: #{ctip_forward.1} parent=1 // pred_fallthru
      _
    // Predicated region
    $region166: #{ctip_forward.1} parent=1 // pred_check
      _
    $region167: #{ctip_forward.1} parent=1 // pred_check_branch
      %342 = sbr.rel (0) target = $region169
    $region168: #{ctip_forward.1} parent=1 // pred_region
      %343 = dma.done [#allocation27], 32
    $region169: #{ctip_forward.1} parent=1 // pred_fallthru
      _
    // Predicated region
    $region170: #{ctip_forward.1} parent=1 // pred_check
      _
    $region171: #{ctip_forward.1} parent=1 // pred_check_branch
      %345 = sbr.rel (0) target = $region173
    $region172: #{ctip_forward.1} parent=1 // pred_region
      %346 = dma.done [#allocation30], 4096
    $region173: #{ctip_forward.1} parent=1 // pred_fallthru
      _
    // Predicated region
    $region174: #{ctip_forward.1} parent=1 // pred_check
      _
    $region175: #{ctip_forward.1} parent=1 // pred_check_branch
      %348 = sbr.rel (0) target = $region177
    $region176: #{ctip_forward.1} parent=1 // pred_region
      %349 = dma.done [#allocation30], 32
    $region177: #{ctip_forward.1} parent=1 // pred_fallthru
      _
    // Predicated region
    $region178: #{ctip_forward.1} parent=1 // pred_check
      _
    $region179: #{ctip_forward.1} parent=1 // pred_check_branch
      %351 = sbr.rel (0) target = $region181
    $region180: #{ctip_forward.1} parent=1 // pred_region
      %352 = dma.done [#allocation33], 8192
    $region181: #{ctip_forward.1} parent=1 // pred_fallthru
      _
    // Predicated region
    $region182: #{ctip_forward.1} parent=1 // pred_check
      _
    $region183: #{ctip_forward.1} parent=1 // pred_check_branch
      %354 = sbr.rel (0) target = $region185
    $region184: #{ctip_forward.1} parent=1 // pred_region
      %355 = dma.done [#allocation33], 32
    $region185: #{ctip_forward.1} parent=1 // pred_fallthru
      _
    // Predicated region
    $region186: #{ctip_forward.1} parent=1 // pred_check
      _
    $region187: #{ctip_forward.1} parent=1 // pred_check_branch
      %357 = sbr.rel (0) target = $region189
    $region188: #{ctip_forward.1} parent=1 // pred_region
      %358 = dma.done [#allocation36], 32
    $region189: #{ctip_forward.1} parent=1 // pred_fallthru
      _
    // Predicated region
    $region190: #{ctip_forward.1} parent=1 // pred_check
      _
    $region191: #{ctip_forward.1} parent=1 // pred_check_branch
      %360 = sbr.rel (0) target = $region193
    $region192: #{ctip_forward.1} parent=1 // pred_region
      %361 = dma.done [#allocation36], 32
    $region193: #{ctip_forward.1} parent=1 // pred_fallthru
      _
    %v362 = vld [vmem:[%s0] sm:$0xff]
    %v363 = vld [vmem:[%s0 + $0x8] sm:$0xf]
    %v364 = vld [vmem:[#allocation5] sm:$0xff]
    %v365 = vld [vmem:[#allocation5 + $0x8] sm:$0xff]
    %v366 = vld [vmem:[#allocation5 + $0x10] sm:$0xff]
    %v367 = vld [vmem:[#allocation5 + $0x18] sm:$0xff]
    %v368 = vld [vmem:[#allocation5 + $0x20] sm:$0xff]
    %v369 = vld [vmem:[#allocation5 + $0x28] sm:$0xff]
    %v370 = vld [vmem:[#allocation5 + $0x30] sm:$0xff]
    %v371 = vld [vmem:[#allocation5 + $0x38] sm:$0xff]
    %v372 = vld [vmem:[#allocation5 + $0x40] sm:$0xff]
    %v373 = vld [vmem:[#allocation5 + $0x48] sm:$0xff]
    %v374 = vld [vmem:[#allocation5 + $0x50] sm:$0xff]
    %v375 = vld [vmem:[#allocation5 + $0x58] sm:$0xff]
    %v376 = vld [vmem:[#allocation5 + $0x60] sm:$0xff]
    %v377 = vld [vmem:[#allocation5 + $0x68] sm:$0xff]
    %v378 = vld [vmem:[#allocation5 + $0x70] sm:$0xff]
    %v379 = vld [vmem:[#allocation5 + $0x78] sm:$0xff]
    %v380 = vld [vmem:[#allocation5 + $0x80] sm:$0xff]
    %v381 = vld [vmem:[#allocation5 + $0x88] sm:$0xff]
    %v382 = vld [vmem:[#allocation5 + $0x90] sm:$0xff]
    %v383 = vld [vmem:[#allocation5 + $0x98] sm:$0xff]
    %v384 = vld [vmem:[#allocation5 + $0xa0] sm:$0xff]
    %v385 = vld [vmem:[#allocation5 + $0xa8] sm:$0xff]
    %v386 = vld [vmem:[#allocation5 + $0xb0] sm:$0xff]
    %v387 = vld [vmem:[#allocation5 + $0xb8] sm:$0xff]
    %v388 = vld [vmem:[#allocation5 + $0xc0] sm:$0xff]
    %v389 = vld [vmem:[#allocation5 + $0xc8] sm:$0xff]
    %v390 = vld [vmem:[#allocation5 + $0xd0] sm:$0xff]
    %v391 = vld [vmem:[#allocation5 + $0xd8] sm:$0xff]
    %v392 = vld [vmem:[#allocation5 + $0xe0] sm:$0xff]
    %v393 = vld [vmem:[#allocation5 + $0xe8] sm:$0xff]
    %v394 = vld [vmem:[#allocation5 + $0xf0] sm:$0xff]
    %v395 = vld [vmem:[#allocation5 + $0xf8] sm:$0xff]
    %v396 = vld [vmem:[#allocation5 + $0x100] sm:$0xff]
    %v397 = vld [vmem:[#allocation5 + $0x108] sm:$0xff]
    %v398 = vld [vmem:[#allocation5 + $0x110] sm:$0xff]
    %v399 = vld [vmem:[#allocation5 + $0x118] sm:$0xff]
    %v400 = vld [vmem:[#allocation5 + $0x120] sm:$0xff]
    %v401 = vld [vmem:[#allocation5 + $0x128] sm:$0xff]
    %v402 = vld [vmem:[#allocation5 + $0x130] sm:$0xff]
    %v403 = vld [vmem:[#allocation5 + $0x138] sm:$0xff]
    %v404 = vld [vmem:[#allocation5 + $0x140] sm:$0xff]
    %v405 = vld [vmem:[#allocation5 + $0x148] sm:$0xff]
    %v406 = vld [vmem:[#allocation5 + $0x150] sm:$0xff]
    %v407 = vld [vmem:[#allocation5 + $0x158] sm:$0xff]
    %v408 = vld [vmem:[#allocation5 + $0x160] sm:$0xff]
    %v409 = vld [vmem:[#allocation5 + $0x168] sm:$0xff]
    %v410 = vld [vmem:[#allocation5 + $0x170] sm:$0xff]
    %v411 = vld [vmem:[#allocation5 + $0x178] sm:$0xff]
    %v412 = vld [vmem:[#allocation5 + $0x180] sm:$0xff]
    %v413 = vld [vmem:[#allocation5 + $0x188] sm:$0xff]
    %v414 = vld [vmem:[#allocation5 + $0x190] sm:$0xff]
    %v415 = vld [vmem:[#allocation5 + $0x198] sm:$0xff]
    %v416 = vld [vmem:[#allocation5 + $0x1a0] sm:$0xff]
    %v417 = vld [vmem:[#allocation5 + $0x1a8] sm:$0xff]
    %v418 = vld [vmem:[#allocation5 + $0x1b0] sm:$0xff]
    %v419 = vld [vmem:[#allocation5 + $0x1b8] sm:$0xff]
    %v420 = vld [vmem:[#allocation5 + $0x1c0] sm:$0xff]
    %v421 = vld [vmem:[#allocation5 + $0x1c8] sm:$0xff]
    %v422 = vld [vmem:[#allocation5 + $0x1d0] sm:$0xff]
    %v423 = vld [vmem:[#allocation5 + $0x1d8] sm:$0xff]
    %v424 = vld [vmem:[#allocation5 + $0x1e0] sm:$0xff]
    %v425 = vld [vmem:[#allocation5 + $0x1e8] sm:$0xff]
    %v426 = vld [vmem:[#allocation5 + $0x1f0] sm:$0xff]
    %v427 = vld [vmem:[#allocation5 + $0x1f8] sm:$0xff]
    %v428 = vld [vmem:[#allocation5 + $0x200] sm:$0xff]
    %v429 = vld [vmem:[#allocation5 + $0x208] sm:$0xff]
    %v430 = vld [vmem:[#allocation5 + $0x210] sm:$0xff]
    %v431 = vld [vmem:[#allocation5 + $0x218] sm:$0xff]
    %v432 = vld [vmem:[#allocation5 + $0x220] sm:$0xff]
    %v433 = vld [vmem:[#allocation5 + $0x228] sm:$0xff]
    %v434 = vld [vmem:[#allocation5 + $0x230] sm:$0xff]
    %v435 = vld [vmem:[#allocation5 + $0x238] sm:$0xff]
    %v436 = vld [vmem:[#allocation5 + $0x240] sm:$0xff]
    %v437 = vld [vmem:[#allocation5 + $0x248] sm:$0xff]
    %v438 = vld [vmem:[#allocation5 + $0x250] sm:$0xff]
    %v439 = vld [vmem:[#allocation5 + $0x258] sm:$0xff]
    %v440 = vld [vmem:[#allocation5 + $0x260] sm:$0xff]
    %v441 = vld [vmem:[#allocation5 + $0x268] sm:$0xff]
    %v442 = vld [vmem:[#allocation5 + $0x270] sm:$0xff]
    %v443 = vld [vmem:[#allocation5 + $0x278] sm:$0xff]
    %v444 = vld [vmem:[#allocation5 + $0x280] sm:$0xff]
    %v445 = vld [vmem:[#allocation5 + $0x288] sm:$0xff]
    %v446 = vld [vmem:[#allocation5 + $0x290] sm:$0xff]
    %v447 = vld [vmem:[#allocation5 + $0x298] sm:$0xff]
    %v448 = vld [vmem:[#allocation5 + $0x2a0] sm:$0xff]
    %v449 = vld [vmem:[#allocation5 + $0x2a8] sm:$0xff]
    %v450 = vld [vmem:[#allocation5 + $0x2b0] sm:$0xff]
    %v451 = vld [vmem:[#allocation5 + $0x2b8] sm:$0xff]
    %v452 = vld [vmem:[#allocation5 + $0x2c0] sm:$0xff]
    %v453 = vld [vmem:[#allocation5 + $0x2c8] sm:$0xff]
    %v454 = vld [vmem:[#allocation5 + $0x2d0] sm:$0xff]
    %v455 = vld [vmem:[#allocation5 + $0x2d8] sm:$0xff]
    %v456 = vld [vmem:[#allocation5 + $0x2e0] sm:$0xff]
    %v457 = vld [vmem:[#allocation5 + $0x2e8] sm:$0xff]
    %v458 = vld [vmem:[#allocation5 + $0x2f0] sm:$0xff]
    %v459 = vld [vmem:[#allocation5 + $0x2f8] sm:$0xff]
    %v460 = vld [vmem:[#allocation5 + $0x300] sm:$0xff]
    %v461 = vld [vmem:[#allocation5 + $0x308] sm:$0xff]
    %v462 = vld [vmem:[#allocation5 + $0x310] sm:$0xff]
    %v463 = vld [vmem:[#allocation5 + $0x318] sm:$0xff]
    %v464 = vld [vmem:[#allocation5 + $0x320] sm:$0xff]
    %v465 = vld [vmem:[#allocation5 + $0x328] sm:$0xff]
    %v466 = vld [vmem:[#allocation5 + $0x330] sm:$0xff]
    %v467 = vld [vmem:[#allocation5 + $0x338] sm:$0xff]
    %v468 = vld [vmem:[#allocation5 + $0x340] sm:$0xff]
    %v469 = vld [vmem:[#allocation5 + $0x348] sm:$0xff]
    %v470 = vld [vmem:[#allocation5 + $0x350] sm:$0xff]
    %v471 = vld [vmem:[#allocation5 + $0x358] sm:$0xff]
    %v472 = vld [vmem:[#allocation5 + $0x360] sm:$0xff]
    %v473 = vld [vmem:[#allocation5 + $0x368] sm:$0xff]
    %v474 = vld [vmem:[#allocation5 + $0x370] sm:$0xff]
    %v475 = vld [vmem:[#allocation5 + $0x378] sm:$0xff]
    %v476 = vld [vmem:[#allocation5 + $0x380] sm:$0xff]
    %v477 = vld [vmem:[#allocation5 + $0x388] sm:$0xff]
    %v478 = vld [vmem:[#allocation5 + $0x390] sm:$0xff]
    %v479 = vld [vmem:[#allocation5 + $0x398] sm:$0xff]
    %v480 = vld [vmem:[#allocation5 + $0x3a0] sm:$0xff]
    %v481 = vld [vmem:[#allocation5 + $0x3a8] sm:$0xff]
    %v482 = vld [vmem:[#allocation5 + $0x3b0] sm:$0xff]
    %v483 = vld [vmem:[#allocation5 + $0x3b8] sm:$0xff]
    %v484 = vld [vmem:[#allocation5 + $0x3c0] sm:$0xff]
    %v485 = vld [vmem:[#allocation5 + $0x3c8] sm:$0xff]
    %v486 = vld [vmem:[#allocation5 + $0x3d0] sm:$0xff]
    %v487 = vld [vmem:[#allocation5 + $0x3d8] sm:$0xff]
    %v488 = vld [vmem:[#allocation5 + $0x3e0] sm:$0xff]
    %v489 = vld [vmem:[#allocation5 + $0x3e8] sm:$0xff]
    %v490 = vld [vmem:[#allocation5 + $0x3f0] sm:$0xff]
    %v491 = vld [vmem:[#allocation5 + $0x3f8] sm:$0xff]
    %v492 = vld [vmem:[#allocation5 + $0x400] sm:$0xff]
    %v493 = vld [vmem:[#allocation5 + $0x408] sm:$0xff]
    %v494 = vld [vmem:[#allocation5 + $0x410] sm:$0xff]
    %v495 = vld [vmem:[#allocation5 + $0x418] sm:$0xff]
    %v496 = vld [vmem:[#allocation5 + $0x420] sm:$0xff]
    %v497 = vld [vmem:[#allocation5 + $0x428] sm:$0xff]
    %v498 = vld [vmem:[#allocation5 + $0x430] sm:$0xff]
    %v499 = vld [vmem:[#allocation5 + $0x438] sm:$0xff]
    %v500 = vld [vmem:[#allocation5 + $0x440] sm:$0xff]
    %v501 = vld [vmem:[#allocation5 + $0x448] sm:$0xff]
    %v502 = vld [vmem:[#allocation5 + $0x450] sm:$0xff]
    %v503 = vld [vmem:[#allocation5 + $0x458] sm:$0xff]
    %v504 = vld [vmem:[#allocation5 + $0x460] sm:$0xff]
    %v505 = vld [vmem:[#allocation5 + $0x468] sm:$0xff]
    %v506 = vld [vmem:[#allocation5 + $0x470] sm:$0xff]
    %v507 = vld [vmem:[#allocation5 + $0x478] sm:$0xff]
    %v508 = vld [vmem:[#allocation5 + $0x480] sm:$0xff]
    %v509 = vld [vmem:[#allocation5 + $0x488] sm:$0xff]
    %v510 = vld [vmem:[#allocation5 + $0x490] sm:$0xff]
    %v511 = vld [vmem:[#allocation5 + $0x498] sm:$0xff]
    %v512 = vld [vmem:[#allocation5 + $0x4a0] sm:$0xff]
    %v513 = vld [vmem:[#allocation5 + $0x4a8] sm:$0xff]
    %v514 = vld [vmem:[#allocation5 + $0x4b0] sm:$0xff]
    %v515 = vld [vmem:[#allocation5 + $0x4b8] sm:$0xff]
    %v516 = vld [vmem:[#allocation5 + $0x4c0] sm:$0xff]
    %v517 = vld [vmem:[#allocation5 + $0x4c8] sm:$0xff]
    %v518 = vld [vmem:[#allocation5 + $0x4d0] sm:$0xff]
    %v519 = vld [vmem:[#allocation5 + $0x4d8] sm:$0xff]
    %v520 = vld [vmem:[#allocation5 + $0x4e0] sm:$0xff]
    %v521 = vld [vmem:[#allocation5 + $0x4e8] sm:$0xff]
    %v522 = vld [vmem:[#allocation5 + $0x4f0] sm:$0xff]
    %v523 = vld [vmem:[#allocation5 + $0x4f8] sm:$0xff]
    %v524 = vld [vmem:[#allocation5 + $0x500] sm:$0xff]
    %v525 = vld [vmem:[#allocation5 + $0x508] sm:$0xff]
    %v526 = vld [vmem:[#allocation5 + $0x510] sm:$0xff]
    %v527 = vld [vmem:[#allocation5 + $0x518] sm:$0xff]
    %v528 = vld [vmem:[#allocation5 + $0x520] sm:$0xff]
    %v529 = vld [vmem:[#allocation5 + $0x528] sm:$0xff]
    %v530 = vld [vmem:[#allocation5 + $0x530] sm:$0xff]
    %v531 = vld [vmem:[#allocation5 + $0x538] sm:$0xff]
    %v532 = vld [vmem:[#allocation5 + $0x540] sm:$0xff]
    %v533 = vld [vmem:[#allocation5 + $0x548] sm:$0xff]
    %v534 = vld [vmem:[#allocation5 + $0x550] sm:$0xff]
    %v535 = vld [vmem:[#allocation5 + $0x558] sm:$0xff]
    %v536 = vld [vmem:[#allocation5 + $0x560] sm:$0xff]
    %v537 = vld [vmem:[#allocation5 + $0x568] sm:$0xff]
    %v538 = vld [vmem:[#allocation5 + $0x570] sm:$0xff]
    %v539 = vld [vmem:[#allocation5 + $0x578] sm:$0xff]
    %v540 = vld [vmem:[#allocation5 + $0x580] sm:$0xff]
    %v541 = vld [vmem:[#allocation5 + $0x588] sm:$0xff]
    %v542 = vld [vmem:[#allocation5 + $0x590] sm:$0xff]
    %v543 = vld [vmem:[#allocation5 + $0x598] sm:$0xff]
    %v544 = vld [vmem:[#allocation5 + $0x5a0] sm:$0xff]
    %v545 = vld [vmem:[#allocation5 + $0x5a8] sm:$0xff]
    %v546 = vld [vmem:[#allocation5 + $0x5b0] sm:$0xff]
    %v547 = vld [vmem:[#allocation5 + $0x5b8] sm:$0xff]
    %v548 = vld [vmem:[#allocation5 + $0x5c0] sm:$0xff]
    %v549 = vld [vmem:[#allocation5 + $0x5c8] sm:$0xff]
    %v550 = vld [vmem:[#allocation5 + $0x5d0] sm:$0xff]
    %v551 = vld [vmem:[#allocation5 + $0x5d8] sm:$0xff]
    %v552 = vld [vmem:[#allocation5 + $0x5e0] sm:$0xff]
    %v553 = vld [vmem:[#allocation5 + $0x5e8] sm:$0xff]
    %v554 = vld [vmem:[#allocation5 + $0x5f0] sm:$0xff]
    %v555 = vld [vmem:[#allocation5 + $0x5f8] sm:$0xff]
    %v556 = vld [vmem:[#allocation5 + $0x600] sm:$0xff]
    %v557 = vld [vmem:[#allocation5 + $0x608] sm:$0xff]
    %v558 = vld [vmem:[#allocation5 + $0x610] sm:$0xff]
    %v559 = vld [vmem:[#allocation5 + $0x618] sm:$0xff]
    %v560 = vld [vmem:[#allocation5 + $0x620] sm:$0xff]
    %v561 = vld [vmem:[#allocation5 + $0x628] sm:$0xff]
    %v562 = vld [vmem:[#allocation5 + $0x630] sm:$0xff]
    %v563 = vld [vmem:[#allocation5 + $0x638] sm:$0xff]
    %v564 = vld [vmem:[#allocation5 + $0x640] sm:$0xff]
    %v565 = vld [vmem:[#allocation5 + $0x648] sm:$0xff]
    %v566 = vld [vmem:[#allocation5 + $0x650] sm:$0xff]
    %v567 = vld [vmem:[#allocation5 + $0x658] sm:$0xff]
    %v568 = vld [vmem:[#allocation5 + $0x660] sm:$0xff]
    %v569 = vld [vmem:[#allocation5 + $0x668] sm:$0xff]
    %v570 = vld [vmem:[#allocation5 + $0x670] sm:$0xff]
    %v571 = vld [vmem:[#allocation5 + $0x678] sm:$0xff]
    %v572 = vld [vmem:[#allocation5 + $0x680] sm:$0xff]
    %v573 = vld [vmem:[#allocation5 + $0x688] sm:$0xff]
    %v574 = vld [vmem:[#allocation5 + $0x690] sm:$0xff]
    %v575 = vld [vmem:[#allocation5 + $0x698] sm:$0xff]
    %v576 = vld [vmem:[#allocation5 + $0x6a0] sm:$0xff]
    %v577 = vld [vmem:[#allocation5 + $0x6a8] sm:$0xff]
    %v578 = vld [vmem:[#allocation5 + $0x6b0] sm:$0xff]
    %v579 = vld [vmem:[#allocation5 + $0x6b8] sm:$0xff]
    %v580 = vld [vmem:[#allocation5 + $0x6c0] sm:$0xff]
    %v581 = vld [vmem:[#allocation5 + $0x6c8] sm:$0xff]
    %v582 = vld [vmem:[#allocation5 + $0x6d0] sm:$0xff]
    %v583 = vld [vmem:[#allocation5 + $0x6d8] sm:$0xff]
    %v584 = vld [vmem:[#allocation5 + $0x6e0] sm:$0xff]
    %v585 = vld [vmem:[#allocation5 + $0x6e8] sm:$0xff]
    %v586 = vld [vmem:[#allocation5 + $0x6f0] sm:$0xff]
    %v587 = vld [vmem:[#allocation5 + $0x6f8] sm:$0xff]
    %v588 = vld [vmem:[#allocation5 + $0x700] sm:$0xff]
    %v589 = vld [vmem:[#allocation5 + $0x708] sm:$0xff]
    %v590 = vld [vmem:[#allocation5 + $0x710] sm:$0xff]
    %v591 = vld [vmem:[#allocation5 + $0x718] sm:$0xff]
    %v592 = vld [vmem:[#allocation5 + $0x720] sm:$0xff]
    %v593 = vld [vmem:[#allocation5 + $0x728] sm:$0xff]
    %v594 = vld [vmem:[#allocation5 + $0x730] sm:$0xff]
    %v595 = vld [vmem:[#allocation5 + $0x738] sm:$0xff]
    %v596 = vld [vmem:[#allocation5 + $0x740] sm:$0xff]
    %v597 = vld [vmem:[#allocation5 + $0x748] sm:$0xff]
    %v598 = vld [vmem:[#allocation5 + $0x750] sm:$0xff]
    %v599 = vld [vmem:[#allocation5 + $0x758] sm:$0xff]
    %v600 = vld [vmem:[#allocation5 + $0x760] sm:$0xff]
    %v601 = vld [vmem:[#allocation5 + $0x768] sm:$0xff]
    %v602 = vld [vmem:[#allocation5 + $0x770] sm:$0xff]
    %v603 = vld [vmem:[#allocation5 + $0x778] sm:$0xff]
    %v604 = vld [vmem:[#allocation5 + $0x780] sm:$0xff]
    %v605 = vld [vmem:[#allocation5 + $0x788] sm:$0xff]
    %v606 = vld [vmem:[#allocation5 + $0x790] sm:$0xff]
    %v607 = vld [vmem:[#allocation5 + $0x798] sm:$0xff]
    %v608 = vld [vmem:[#allocation5 + $0x7a0] sm:$0xff]
    %v609 = vld [vmem:[#allocation5 + $0x7a8] sm:$0xff]
    %v610 = vld [vmem:[#allocation5 + $0x7b0] sm:$0xff]
    %v611 = vld [vmem:[#allocation5 + $0x7b8] sm:$0xff]
    %v612 = vld [vmem:[#allocation5 + $0x7c0] sm:$0xff]
    %v613 = vld [vmem:[#allocation5 + $0x7c8] sm:$0xff]
    %v614 = vld [vmem:[#allocation5 + $0x7d0] sm:$0xff]
    %v615 = vld [vmem:[#allocation5 + $0x7d8] sm:$0xff]
    %v616 = vld [vmem:[#allocation5 + $0x7e0] sm:$0xff]
    %v617 = vld [vmem:[#allocation5 + $0x7e8] sm:$0xff]
    %v618 = vld [vmem:[#allocation5 + $0x7f0] sm:$0xff]
    %v619 = vld [vmem:[#allocation5 + $0x7f8] sm:$0xff]
    %v620 = vld [vmem:[#allocation5 + $0x800] sm:$0xff]
    %v621 = vld [vmem:[#allocation5 + $0x808] sm:$0xff]
    %v622 = vld [vmem:[#allocation5 + $0x810] sm:$0xff]
    %v623 = vld [vmem:[#allocation5 + $0x818] sm:$0xff]
    %v624 = vld [vmem:[#allocation5 + $0x820] sm:$0xff]
    %v625 = vld [vmem:[#allocation5 + $0x828] sm:$0xff]
    %v626 = vld [vmem:[#allocation5 + $0x830] sm:$0xff]
    %v627 = vld [vmem:[#allocation5 + $0x838] sm:$0xff]
    %v628 = vld [vmem:[#allocation5 + $0x840] sm:$0xff]
    %v629 = vld [vmem:[#allocation5 + $0x848] sm:$0xff]
    %v630 = vld [vmem:[#allocation5 + $0x850] sm:$0xff]
    %v631 = vld [vmem:[#allocation5 + $0x858] sm:$0xff]
    %v632 = vld [vmem:[#allocation5 + $0x860] sm:$0xff]
    %v633 = vld [vmem:[#allocation5 + $0x868] sm:$0xff]
    %v634 = vld [vmem:[#allocation5 + $0x870] sm:$0xff]
    %v635 = vld [vmem:[#allocation5 + $0x878] sm:$0xff]
    %v636 = vld [vmem:[#allocation5 + $0x880] sm:$0xff]
    %v637 = vld [vmem:[#allocation5 + $0x888] sm:$0xff]
    %v638 = vld [vmem:[#allocation5 + $0x890] sm:$0xff]
    %v639 = vld [vmem:[#allocation5 + $0x898] sm:$0xff]
    %v640 = vld [vmem:[#allocation5 + $0x8a0] sm:$0xff]
    %v641 = vld [vmem:[#allocation5 + $0x8a8] sm:$0xff]
    %v642 = vld [vmem:[#allocation5 + $0x8b0] sm:$0xff]
    %v643 = vld [vmem:[#allocation5 + $0x8b8] sm:$0xff]
    %v644 = vld [vmem:[#allocation5 + $0x8c0] sm:$0xff]
    %v645 = vld [vmem:[#allocation5 + $0x8c8] sm:$0xff]
    %v646 = vld [vmem:[#allocation5 + $0x8d0] sm:$0xff]
    %v647 = vld [vmem:[#allocation5 + $0x8d8] sm:$0xff]
    %v648 = vld [vmem:[#allocation5 + $0x8e0] sm:$0xff]
    %v649 = vld [vmem:[#allocation5 + $0x8e8] sm:$0xff]
    %v650 = vld [vmem:[#allocation5 + $0x8f0] sm:$0xff]
    %v651 = vld [vmem:[#allocation5 + $0x8f8] sm:$0xff]
    %v652 = vld [vmem:[#allocation5 + $0x900] sm:$0xff]
    %v653 = vld [vmem:[#allocation5 + $0x908] sm:$0xff]
    %v654 = vld [vmem:[#allocation5 + $0x910] sm:$0xff]
    %v655 = vld [vmem:[#allocation5 + $0x918] sm:$0xff]
    %v656 = vld [vmem:[#allocation5 + $0x920] sm:$0xff]
    %v657 = vld [vmem:[#allocation5 + $0x928] sm:$0xff]
    %v658 = vld [vmem:[#allocation5 + $0x930] sm:$0xff]
    %v659 = vld [vmem:[#allocation5 + $0x938] sm:$0xff]
    %v660 = vld [vmem:[#allocation5 + $0x940] sm:$0xff]
    %v661 = vld [vmem:[#allocation5 + $0x948] sm:$0xff]
    %v662 = vld [vmem:[#allocation5 + $0x950] sm:$0xff]
    %v663 = vld [vmem:[#allocation5 + $0x958] sm:$0xff]
    %v664 = vld [vmem:[#allocation5 + $0x960] sm:$0xff]
    %v665 = vld [vmem:[#allocation5 + $0x968] sm:$0xff]
    %v666 = vld [vmem:[#allocation5 + $0x970] sm:$0xff]
    %v667 = vld [vmem:[#allocation5 + $0x978] sm:$0xff]
    %v668 = vld [vmem:[#allocation5 + $0x980] sm:$0xff]
    %v669 = vld [vmem:[#allocation5 + $0x988] sm:$0xff]
    %v670 = vld [vmem:[#allocation5 + $0x990] sm:$0xff]
    %v671 = vld [vmem:[#allocation5 + $0x998] sm:$0xff]
    %v672 = vld [vmem:[#allocation5 + $0x9a0] sm:$0xff]
    %v673 = vld [vmem:[#allocation5 + $0x9a8] sm:$0xff]
    %v674 = vld [vmem:[#allocation5 + $0x9b0] sm:$0xff]
    %v675 = vld [vmem:[#allocation5 + $0x9b8] sm:$0xff]
    %v676 = vld [vmem:[#allocation5 + $0x9c0] sm:$0xff]
    %v677 = vld [vmem:[#allocation5 + $0x9c8] sm:$0xff]
    %v678 = vld [vmem:[#allocation5 + $0x9d0] sm:$0xff]
    %v679 = vld [vmem:[#allocation5 + $0x9d8] sm:$0xff]
    %v680 = vld [vmem:[#allocation5 + $0x9e0] sm:$0xff]
    %v681 = vld [vmem:[#allocation5 + $0x9e8] sm:$0xff]
    %v682 = vld [vmem:[#allocation5 + $0x9f0] sm:$0xff]
    %v683 = vld [vmem:[#allocation5 + $0x9f8] sm:$0xff]
    %v684 = vld [vmem:[#allocation5 + $0xa00] sm:$0xff]
    %v685 = vld [vmem:[#allocation5 + $0xa08] sm:$0xff]
    %v686 = vld [vmem:[#allocation5 + $0xa10] sm:$0xff]
    %v687 = vld [vmem:[#allocation5 + $0xa18] sm:$0xff]
    %v688 = vld [vmem:[#allocation5 + $0xa20] sm:$0xff]
    %v689 = vld [vmem:[#allocation5 + $0xa28] sm:$0xff]
    %v690 = vld [vmem:[#allocation5 + $0xa30] sm:$0xff]
    %v691 = vld [vmem:[#allocation5 + $0xa38] sm:$0xff]
    %v692 = vld [vmem:[#allocation5 + $0xa40] sm:$0xff]
    %v693 = vld [vmem:[#allocation5 + $0xa48] sm:$0xff]
    %v694 = vld [vmem:[#allocation5 + $0xa50] sm:$0xff]
    %v695 = vld [vmem:[#allocation5 + $0xa58] sm:$0xff]
    %v696 = vld [vmem:[#allocation5 + $0xa60] sm:$0xff]
    %v697 = vld [vmem:[#allocation5 + $0xa68] sm:$0xff]
    %v698 = vld [vmem:[#allocation5 + $0xa70] sm:$0xff]
    %v699 = vld [vmem:[#allocation5 + $0xa78] sm:$0xff]
    %v700 = vld [vmem:[#allocation5 + $0xa80] sm:$0xff]
    %v701 = vld [vmem:[#allocation5 + $0xa88] sm:$0xff]
    %v702 = vld [vmem:[#allocation5 + $0xa90] sm:$0xff]
    %v703 = vld [vmem:[#allocation5 + $0xa98] sm:$0xff]
    %v704 = vld [vmem:[#allocation5 + $0xaa0] sm:$0xff]
    %v705 = vld [vmem:[#allocation5 + $0xaa8] sm:$0xff]
    %v706 = vld [vmem:[#allocation5 + $0xab0] sm:$0xff]
    %v707 = vld [vmem:[#allocation5 + $0xab8] sm:$0xff]
    %v708 = vld [vmem:[#allocation5 + $0xac0] sm:$0xff]
    %v709 = vld [vmem:[#allocation5 + $0xac8] sm:$0xff]
    %v710 = vld [vmem:[#allocation5 + $0xad0] sm:$0xff]
    %v711 = vld [vmem:[#allocation5 + $0xad8] sm:$0xff]
    %v712 = vld [vmem:[#allocation5 + $0xae0] sm:$0xff]
    %v713 = vld [vmem:[#allocation5 + $0xae8] sm:$0xff]
    %v714 = vld [vmem:[#allocation5 + $0xaf0] sm:$0xff]
    %v715 = vld [vmem:[#allocation5 + $0xaf8] sm:$0xff]
    %v716 = vld [vmem:[#allocation5 + $0xb00] sm:$0xff]
    %v717 = vld [vmem:[#allocation5 + $0xb08] sm:$0xff]
    %v718 = vld [vmem:[#allocation5 + $0xb10] sm:$0xff]
    %v719 = vld [vmem:[#allocation5 + $0xb18] sm:$0xff]
    %v720 = vld [vmem:[#allocation5 + $0xb20] sm:$0xff]
    %v721 = vld [vmem:[#allocation5 + $0xb28] sm:$0xff]
    %v722 = vld [vmem:[#allocation5 + $0xb30] sm:$0xff]
    %v723 = vld [vmem:[#allocation5 + $0xb38] sm:$0xff]
    %v724 = vld [vmem:[#allocation5 + $0xb40] sm:$0xff]
    %v725 = vld [vmem:[#allocation5 + $0xb48] sm:$0xff]
    %v726 = vld [vmem:[#allocation5 + $0xb50] sm:$0xff]
    %v727 = vld [vmem:[#allocation5 + $0xb58] sm:$0xff]
    %v728 = vld [vmem:[#allocation5 + $0xb60] sm:$0xff]
    %v729 = vld [vmem:[#allocation5 + $0xb68] sm:$0xff]
    %v730 = vld [vmem:[#allocation5 + $0xb70] sm:$0xff]
    %v731 = vld [vmem:[#allocation5 + $0xb78] sm:$0xff]
    %v732 = vld [vmem:[#allocation5 + $0xb80] sm:$0xff]
    %v733 = vld [vmem:[#allocation5 + $0xb88] sm:$0xff]
    %v734 = vld [vmem:[#allocation5 + $0xb90] sm:$0xff]
    %v735 = vld [vmem:[#allocation5 + $0xb98] sm:$0xff]
    %v736 = vld [vmem:[#allocation5 + $0xba0] sm:$0xff]
    %v737 = vld [vmem:[#allocation5 + $0xba8] sm:$0xff]
    %v738 = vld [vmem:[#allocation5 + $0xbb0] sm:$0xff]
    %v739 = vld [vmem:[#allocation5 + $0xbb8] sm:$0xff]
    %v740 = vld [vmem:[#allocation5 + $0xbc0] sm:$0xff]
    %v741 = vld [vmem:[#allocation5 + $0xbc8] sm:$0xff]
    %v742 = vld [vmem:[#allocation5 + $0xbd0] sm:$0xff]
    %v743 = vld [vmem:[#allocation5 + $0xbd8] sm:$0xff]
    %v744 = vld [vmem:[#allocation5 + $0xbe0] sm:$0xff]
    %v745 = vld [vmem:[#allocation5 + $0xbe8] sm:$0xff]
    %v746 = vld [vmem:[#allocation5 + $0xbf0] sm:$0xff]
    %v747 = vld [vmem:[#allocation5 + $0xbf8] sm:$0xff]
    %v748 = vld [vmem:[#allocation7] sm:$0xff]
    %v750 = vlaneseq
    %v751 = vshrl.u32 %v750, 7
    %v752 = vsub.s32 0, %v751
    %v753 = vrot.slane %v748, %v752
    %v754 = vlaneseq
    %v755 = vshrl.u32 %v754, 7
    %v756 = vsub.s32 1, %v755
    %v757 = vrot.slane %v748, %v756
    %v758 = vlaneseq
    %v759 = vshrl.u32 %v758, 7
    %v760 = vsub.s32 2, %v759
    %v761 = vrot.slane %v748, %v760
    %v762 = vlaneseq
    %v763 = vshrl.u32 %v762, 7
    %v764 = vsub.s32 3, %v763
    %v765 = vrot.slane %v748, %v764
    %v766 = vlaneseq
    %v767 = vshrl.u32 %v766, 7
    %v768 = vsub.s32 4, %v767
    %v769 = vrot.slane %v748, %v768
    %v770 = vlaneseq
    %v771 = vshrl.u32 %v770, 7
    %v772 = vsub.s32 5, %v771
    %v773 = vrot.slane %v748, %v772
    %v774 = vlaneseq
    %v775 = vshrl.u32 %v774, 7
    %v776 = vsub.s32 6, %v775
    %v777 = vrot.slane %v748, %v776
    %v778 = vlaneseq
    %v779 = vshrl.u32 %v778, 7
    %v780 = vsub.s32 7, %v779
    %v781 = vrot.slane %v748, %v780
    %v792 = vcombine.high %v362, %v362
    %v794 = vunpack.c.l.s4 1983009808
    %v795 = vunpack.c.0.s8 %v794
    %v796 = vlaneseq
    %v797 = vshrl.u32 %v796, 7
    %v798 = vsub.s32 %v795, %v797
    %v799 = vrot.slane %v362, %v798
    %v801 = vunpack.c.l.s4 1983009808
    %v802 = vunpack.c.0.s8 %v801
    %v803 = vlaneseq
    %v804 = vshrl.u32 %v803, 7
    %v805 = vsub.s32 %v802, %v804
    %v806 = vrot.slane %v792, %v805
    %v807 = vcombine.high %v799, %v799
    %v808 = vcombine.high %v806, %v806
    %v810 = vunpack.c.l.s4 1983009808
    %v811 = vunpack.c.0.s8 %v810
    %v812 = vlaneseq
    %v813 = vshrl.u32 %v812, 7
    %v814 = vsub.s32 %v811, %v813
    %v815 = vrot.slane %v363, %v814
    %v816 = vcombine.high %v815, %v815
    %v1207 = vunpack.c.l.b16 %v364
    %v1208 = vunpack.c.h.b16 %v364
    %v1209 = vunpack.c.l.b16 %v365
    %v1210 = vunpack.c.h.b16 %v365
    %v1211 = vunpack.c.l.b16 %v366
    %v1212 = vunpack.c.h.b16 %v366
    %v1213 = vunpack.c.l.b16 %v367
    %v1214 = vunpack.c.h.b16 %v367
    %v1215 = vunpack.c.l.b16 %v368
    %v1216 = vunpack.c.h.b16 %v368
    %v1217 = vunpack.c.l.b16 %v369
    %v1218 = vunpack.c.h.b16 %v369
    %v1219 = vunpack.c.l.b16 %v370
    %v1220 = vunpack.c.h.b16 %v370
    %v1221 = vunpack.c.l.b16 %v371
    %v1222 = vunpack.c.h.b16 %v371
    %v1223 = vunpack.c.l.b16 %v372
    %v1224 = vunpack.c.h.b16 %v372
    %v1225 = vunpack.c.l.b16 %v373
    %v1226 = vunpack.c.h.b16 %v373
    %v1227 = vunpack.c.l.b16 %v374
    %v1228 = vunpack.c.h.b16 %v374
    %v1229 = vunpack.c.l.b16 %v375
    %v1230 = vunpack.c.h.b16 %v375
    %v1231 = vunpack.c.l.b16 %v376
    %v1232 = vunpack.c.h.b16 %v376
    %v1233 = vunpack.c.l.b16 %v377
    %v1234 = vunpack.c.h.b16 %v377
    %v1235 = vunpack.c.l.b16 %v378
    %v1236 = vunpack.c.h.b16 %v378
    %v1237 = vunpack.c.l.b16 %v379
    %v1238 = vunpack.c.h.b16 %v379
    %v1239 = vunpack.c.l.b16 %v380
    %v1240 = vunpack.c.h.b16 %v380
    %v1241 = vunpack.c.l.b16 %v381
    %v1242 = vunpack.c.h.b16 %v381
    %v1243 = vunpack.c.l.b16 %v382
    %v1244 = vunpack.c.h.b16 %v382
    %v1245 = vunpack.c.l.b16 %v383
    %v1246 = vunpack.c.h.b16 %v383
    %v1247 = vunpack.c.l.b16 %v384
    %v1248 = vunpack.c.h.b16 %v384
    %v1249 = vunpack.c.l.b16 %v385
    %v1250 = vunpack.c.h.b16 %v385
    %v1251 = vunpack.c.l.b16 %v386
    %v1252 = vunpack.c.h.b16 %v386
    %v1253 = vunpack.c.l.b16 %v387
    %v1254 = vunpack.c.h.b16 %v387
    %v1255 = vunpack.c.l.b16 %v388
    %v1256 = vunpack.c.h.b16 %v388
    %v1257 = vunpack.c.l.b16 %v389
    %v1258 = vunpack.c.h.b16 %v389
    %v1259 = vunpack.c.l.b16 %v390
    %v1260 = vunpack.c.h.b16 %v390
    %v1261 = vunpack.c.l.b16 %v391
    %v1262 = vunpack.c.h.b16 %v391
    %v1263 = vunpack.c.l.b16 %v392
    %v1264 = vunpack.c.h.b16 %v392
    %v1265 = vunpack.c.l.b16 %v393
    %v1266 = vunpack.c.h.b16 %v393
    %v1267 = vunpack.c.l.b16 %v394
    %v1268 = vunpack.c.h.b16 %v394
    %v1269 = vunpack.c.l.b16 %v395
    %v1270 = vunpack.c.h.b16 %v395
    %v1271 = vunpack.c.l.b16 %v396
    %v1272 = vunpack.c.h.b16 %v396
    %v1273 = vunpack.c.l.b16 %v397
    %v1274 = vunpack.c.h.b16 %v397
    %v1275 = vunpack.c.l.b16 %v398
    %v1276 = vunpack.c.h.b16 %v398
    %v1277 = vunpack.c.l.b16 %v399
    %v1278 = vunpack.c.h.b16 %v399
    %v1279 = vunpack.c.l.b16 %v400
    %v1280 = vunpack.c.h.b16 %v400
    %v1281 = vunpack.c.l.b16 %v401
    %v1282 = vunpack.c.h.b16 %v401
    %v1283 = vunpack.c.l.b16 %v402
    %v1284 = vunpack.c.h.b16 %v402
    %v1285 = vunpack.c.l.b16 %v403
    %v1286 = vunpack.c.h.b16 %v403
    %v1287 = vunpack.c.l.b16 %v404
    %v1288 = vunpack.c.h.b16 %v404
    %v1289 = vunpack.c.l.b16 %v405
    %v1290 = vunpack.c.h.b16 %v405
    %v1291 = vunpack.c.l.b16 %v406
    %v1292 = vunpack.c.h.b16 %v406
    %v1293 = vunpack.c.l.b16 %v407
    %v1294 = vunpack.c.h.b16 %v407
    %v1295 = vunpack.c.l.b16 %v408
    %v1296 = vunpack.c.h.b16 %v408
    %v1297 = vunpack.c.l.b16 %v409
    %v1298 = vunpack.c.h.b16 %v409
    %v1299 = vunpack.c.l.b16 %v410
    %v1300 = vunpack.c.h.b16 %v410
    %v1301 = vunpack.c.l.b16 %v411
    %v1302 = vunpack.c.h.b16 %v411
    %v1303 = vunpack.c.l.b16 %v412
    %v1304 = vunpack.c.h.b16 %v412
    %v1305 = vunpack.c.l.b16 %v413
    %v1306 = vunpack.c.h.b16 %v413
    %v1307 = vunpack.c.l.b16 %v414
    %v1308 = vunpack.c.h.b16 %v414
    %v1309 = vunpack.c.l.b16 %v415
    %v1310 = vunpack.c.h.b16 %v415
    %v1311 = vunpack.c.l.b16 %v416
    %v1312 = vunpack.c.h.b16 %v416
    %v1313 = vunpack.c.l.b16 %v417
    %v1314 = vunpack.c.h.b16 %v417
    %v1315 = vunpack.c.l.b16 %v418
    %v1316 = vunpack.c.h.b16 %v418
    %v1317 = vunpack.c.l.b16 %v419
    %v1318 = vunpack.c.h.b16 %v419
    %v1319 = vunpack.c.l.b16 %v420
    %v1320 = vunpack.c.h.b16 %v420
    %v1321 = vunpack.c.l.b16 %v421
    %v1322 = vunpack.c.h.b16 %v421
    %v1323 = vunpack.c.l.b16 %v422
    %v1324 = vunpack.c.h.b16 %v422
    %v1325 = vunpack.c.l.b16 %v423
    %v1326 = vunpack.c.h.b16 %v423
    %v1327 = vunpack.c.l.b16 %v424
    %v1328 = vunpack.c.h.b16 %v424
    %v1329 = vunpack.c.l.b16 %v425
    %v1330 = vunpack.c.h.b16 %v425
    %v1331 = vunpack.c.l.b16 %v426
    %v1332 = vunpack.c.h.b16 %v426
    %v1333 = vunpack.c.l.b16 %v427
    %v1334 = vunpack.c.h.b16 %v427
    %v1335 = vunpack.c.l.b16 %v428
    %v1336 = vunpack.c.h.b16 %v428
    %v1337 = vunpack.c.l.b16 %v429
    %v1338 = vunpack.c.h.b16 %v429
    %v1339 = vunpack.c.l.b16 %v430
    %v1340 = vunpack.c.h.b16 %v430
    %v1341 = vunpack.c.l.b16 %v431
    %v1342 = vunpack.c.h.b16 %v431
    %v1343 = vunpack.c.l.b16 %v432
    %v1344 = vunpack.c.h.b16 %v432
    %v1345 = vunpack.c.l.b16 %v433
    %v1346 = vunpack.c.h.b16 %v433
    %v1347 = vunpack.c.l.b16 %v434
    %v1348 = vunpack.c.h.b16 %v434
    %v1349 = vunpack.c.l.b16 %v435
    %v1350 = vunpack.c.h.b16 %v435
    %v1351 = vunpack.c.l.b16 %v436
    %v1352 = vunpack.c.h.b16 %v436
    %v1353 = vunpack.c.l.b16 %v437
    %v1354 = vunpack.c.h.b16 %v437
    %v1355 = vunpack.c.l.b16 %v438
    %v1356 = vunpack.c.h.b16 %v438
    %v1357 = vunpack.c.l.b16 %v439
    %v1358 = vunpack.c.h.b16 %v439
    %v1359 = vunpack.c.l.b16 %v440
    %v1360 = vunpack.c.h.b16 %v440
    %v1361 = vunpack.c.l.b16 %v441
    %v1362 = vunpack.c.h.b16 %v441
    %v1363 = vunpack.c.l.b16 %v442
    %v1364 = vunpack.c.h.b16 %v442
    %v1365 = vunpack.c.l.b16 %v443
    %v1366 = vunpack.c.h.b16 %v443
    %v1367 = vunpack.c.l.b16 %v444
    %v1368 = vunpack.c.h.b16 %v444
    %v1369 = vunpack.c.l.b16 %v445
    %v1370 = vunpack.c.h.b16 %v445
    %v1371 = vunpack.c.l.b16 %v446
    %v1372 = vunpack.c.h.b16 %v446
    %v1373 = vunpack.c.l.b16 %v447
    %v1374 = vunpack.c.h.b16 %v447
    %v1375 = vunpack.c.l.b16 %v448
    %v1376 = vunpack.c.h.b16 %v448
    %v1377 = vunpack.c.l.b16 %v449
    %v1378 = vunpack.c.h.b16 %v449
    %v1379 = vunpack.c.l.b16 %v450
    %v1380 = vunpack.c.h.b16 %v450
    %v1381 = vunpack.c.l.b16 %v451
    %v1382 = vunpack.c.h.b16 %v451
    %v1383 = vunpack.c.l.b16 %v452
    %v1384 = vunpack.c.h.b16 %v452
    %v1385 = vunpack.c.l.b16 %v453
    %v1386 = vunpack.c.h.b16 %v453
    %v1387 = vunpack.c.l.b16 %v454
    %v1388 = vunpack.c.h.b16 %v454
    %v1389 = vunpack.c.l.b16 %v455
    %v1390 = vunpack.c.h.b16 %v455
    %v1391 = vunpack.c.l.b16 %v456
    %v1392 = vunpack.c.h.b16 %v456
    %v1393 = vunpack.c.l.b16 %v457
    %v1394 = vunpack.c.h.b16 %v457
    %v1395 = vunpack.c.l.b16 %v458
    %v1396 = vunpack.c.h.b16 %v458
    %v1397 = vunpack.c.l.b16 %v459
    %v1398 = vunpack.c.h.b16 %v459
    %v1399 = vunpack.c.l.b16 %v460
    %v1400 = vunpack.c.h.b16 %v460
    %v1401 = vunpack.c.l.b16 %v461
    %v1402 = vunpack.c.h.b16 %v461
    %v1403 = vunpack.c.l.b16 %v462
    %v1404 = vunpack.c.h.b16 %v462
    %v1405 = vunpack.c.l.b16 %v463
    %v1406 = vunpack.c.h.b16 %v463
    %v1407 = vunpack.c.l.b16 %v464
    %v1408 = vunpack.c.h.b16 %v464
    %v1409 = vunpack.c.l.b16 %v465
    %v1410 = vunpack.c.h.b16 %v465
    %v1411 = vunpack.c.l.b16 %v466
    %v1412 = vunpack.c.h.b16 %v466
    %v1413 = vunpack.c.l.b16 %v467
    %v1414 = vunpack.c.h.b16 %v467
    %v1415 = vunpack.c.l.b16 %v468
    %v1416 = vunpack.c.h.b16 %v468
    %v1417 = vunpack.c.l.b16 %v469
    %v1418 = vunpack.c.h.b16 %v469
    %v1419 = vunpack.c.l.b16 %v470
    %v1420 = vunpack.c.h.b16 %v470
    %v1421 = vunpack.c.l.b16 %v471
    %v1422 = vunpack.c.h.b16 %v471
    %v1423 = vunpack.c.l.b16 %v472
    %v1424 = vunpack.c.h.b16 %v472
    %v1425 = vunpack.c.l.b16 %v473
    %v1426 = vunpack.c.h.b16 %v473
    %v1427 = vunpack.c.l.b16 %v474
    %v1428 = vunpack.c.h.b16 %v474
    %v1429 = vunpack.c.l.b16 %v475
    %v1430 = vunpack.c.h.b16 %v475
    %v1431 = vunpack.c.l.b16 %v476
    %v1432 = vunpack.c.h.b16 %v476
    %v1433 = vunpack.c.l.b16 %v477
    %v1434 = vunpack.c.h.b16 %v477
    %v1435 = vunpack.c.l.b16 %v478
    %v1436 = vunpack.c.h.b16 %v478
    %v1437 = vunpack.c.l.b16 %v479
    %v1438 = vunpack.c.h.b16 %v479
    %v1439 = vunpack.c.l.b16 %v480
    %v1440 = vunpack.c.h.b16 %v480
    %v1441 = vunpack.c.l.b16 %v481
    %v1442 = vunpack.c.h.b16 %v481
    %v1443 = vunpack.c.l.b16 %v482
    %v1444 = vunpack.c.h.b16 %v482
    %v1445 = vunpack.c.l.b16 %v483
    %v1446 = vunpack.c.h.b16 %v483
    %v1447 = vunpack.c.l.b16 %v484
    %v1448 = vunpack.c.h.b16 %v484
    %v1449 = vunpack.c.l.b16 %v485
    %v1450 = vunpack.c.h.b16 %v485
    %v1451 = vunpack.c.l.b16 %v486
    %v1452 = vunpack.c.h.b16 %v486
    %v1453 = vunpack.c.l.b16 %v487
    %v1454 = vunpack.c.h.b16 %v487
    %v1455 = vunpack.c.l.b16 %v488
    %v1456 = vunpack.c.h.b16 %v488
    %v1457 = vunpack.c.l.b16 %v489
    %v1458 = vunpack.c.h.b16 %v489
    %v1459 = vunpack.c.l.b16 %v490
    %v1460 = vunpack.c.h.b16 %v490
    %v1461 = vunpack.c.l.b16 %v491
    %v1462 = vunpack.c.h.b16 %v491
    %v1463 = vunpack.c.l.b16 %v492
    %v1464 = vunpack.c.h.b16 %v492
    %v1465 = vunpack.c.l.b16 %v493
    %v1466 = vunpack.c.h.b16 %v493
    %v1467 = vunpack.c.l.b16 %v494
    %v1468 = vunpack.c.h.b16 %v494
    %v1469 = vunpack.c.l.b16 %v495
    %v1470 = vunpack.c.h.b16 %v495
    %v1471 = vunpack.c.l.b16 %v496
    %v1472 = vunpack.c.h.b16 %v496
    %v1473 = vunpack.c.l.b16 %v497
    %v1474 = vunpack.c.h.b16 %v497
    %v1475 = vunpack.c.l.b16 %v498
    %v1476 = vunpack.c.h.b16 %v498
    %v1477 = vunpack.c.l.b16 %v499
    %v1478 = vunpack.c.h.b16 %v499
    %v1479 = vunpack.c.l.b16 %v500
    %v1480 = vunpack.c.h.b16 %v500
    %v1481 = vunpack.c.l.b16 %v501
    %v1482 = vunpack.c.h.b16 %v501
    %v1483 = vunpack.c.l.b16 %v502
    %v1484 = vunpack.c.h.b16 %v502
    %v1485 = vunpack.c.l.b16 %v503
    %v1486 = vunpack.c.h.b16 %v503
    %v1487 = vunpack.c.l.b16 %v504
    %v1488 = vunpack.c.h.b16 %v504
    %v1489 = vunpack.c.l.b16 %v505
    %v1490 = vunpack.c.h.b16 %v505
    %v1491 = vunpack.c.l.b16 %v506
    %v1492 = vunpack.c.h.b16 %v506
    %v1493 = vunpack.c.l.b16 %v507
    %v1494 = vunpack.c.h.b16 %v507
    %v1495 = vunpack.c.l.b16 %v508
    %v1496 = vunpack.c.h.b16 %v508
    %v1497 = vunpack.c.l.b16 %v509
    %v1498 = vunpack.c.h.b16 %v509
    %v1499 = vunpack.c.l.b16 %v510
    %v1500 = vunpack.c.h.b16 %v510
    %v1501 = vunpack.c.l.b16 %v511
    %v1502 = vunpack.c.h.b16 %v511
    %v1503 = vunpack.c.l.b16 %v512
    %v1504 = vunpack.c.h.b16 %v512
    %v1505 = vunpack.c.l.b16 %v513
    %v1506 = vunpack.c.h.b16 %v513
    %v1507 = vunpack.c.l.b16 %v514
    %v1508 = vunpack.c.h.b16 %v514
    %v1509 = vunpack.c.l.b16 %v515
    %v1510 = vunpack.c.h.b16 %v515
    %v1511 = vunpack.c.l.b16 %v516
    %v1512 = vunpack.c.h.b16 %v516
    %v1513 = vunpack.c.l.b16 %v517
    %v1514 = vunpack.c.h.b16 %v517
    %v1515 = vunpack.c.l.b16 %v518
    %v1516 = vunpack.c.h.b16 %v518
    %v1517 = vunpack.c.l.b16 %v519
    %v1518 = vunpack.c.h.b16 %v519
    %v1519 = vunpack.c.l.b16 %v520
    %v1520 = vunpack.c.h.b16 %v520
    %v1521 = vunpack.c.l.b16 %v521
    %v1522 = vunpack.c.h.b16 %v521
    %v1523 = vunpack.c.l.b16 %v522
    %v1524 = vunpack.c.h.b16 %v522
    %v1525 = vunpack.c.l.b16 %v523
    %v1526 = vunpack.c.h.b16 %v523
    %v1527 = vunpack.c.l.b16 %v524
    %v1528 = vunpack.c.h.b16 %v524
    %v1529 = vunpack.c.l.b16 %v525
    %v1530 = vunpack.c.h.b16 %v525
    %v1531 = vunpack.c.l.b16 %v526
    %v1532 = vunpack.c.h.b16 %v526
    %v1533 = vunpack.c.l.b16 %v527
    %v1534 = vunpack.c.h.b16 %v527
    %v1535 = vunpack.c.l.b16 %v528
    %v1536 = vunpack.c.h.b16 %v528
    %v1537 = vunpack.c.l.b16 %v529
    %v1538 = vunpack.c.h.b16 %v529
    %v1539 = vunpack.c.l.b16 %v530
    %v1540 = vunpack.c.h.b16 %v530
    %v1541 = vunpack.c.l.b16 %v531
    %v1542 = vunpack.c.h.b16 %v531
    %v1543 = vunpack.c.l.b16 %v532
    %v1544 = vunpack.c.h.b16 %v532
    %v1545 = vunpack.c.l.b16 %v533
    %v1546 = vunpack.c.h.b16 %v533
    %v1547 = vunpack.c.l.b16 %v534
    %v1548 = vunpack.c.h.b16 %v534
    %v1549 = vunpack.c.l.b16 %v535
    %v1550 = vunpack.c.h.b16 %v535
    %v1551 = vunpack.c.l.b16 %v536
    %v1552 = vunpack.c.h.b16 %v536
    %v1553 = vunpack.c.l.b16 %v537
    %v1554 = vunpack.c.h.b16 %v537
    %v1555 = vunpack.c.l.b16 %v538
    %v1556 = vunpack.c.h.b16 %v538
    %v1557 = vunpack.c.l.b16 %v539
    %v1558 = vunpack.c.h.b16 %v539
    %v1559 = vunpack.c.l.b16 %v540
    %v1560 = vunpack.c.h.b16 %v540
    %v1561 = vunpack.c.l.b16 %v541
    %v1562 = vunpack.c.h.b16 %v541
    %v1563 = vunpack.c.l.b16 %v542
    %v1564 = vunpack.c.h.b16 %v542
    %v1565 = vunpack.c.l.b16 %v543
    %v1566 = vunpack.c.h.b16 %v543
    %v1567 = vunpack.c.l.b16 %v544
    %v1568 = vunpack.c.h.b16 %v544
    %v1569 = vunpack.c.l.b16 %v545
    %v1570 = vunpack.c.h.b16 %v545
    %v1571 = vunpack.c.l.b16 %v546
    %v1572 = vunpack.c.h.b16 %v546
    %v1573 = vunpack.c.l.b16 %v547
    %v1574 = vunpack.c.h.b16 %v547
    %v1575 = vunpack.c.l.b16 %v548
    %v1576 = vunpack.c.h.b16 %v548
    %v1577 = vunpack.c.l.b16 %v549
    %v1578 = vunpack.c.h.b16 %v549
    %v1579 = vunpack.c.l.b16 %v550
    %v1580 = vunpack.c.h.b16 %v550
    %v1581 = vunpack.c.l.b16 %v551
    %v1582 = vunpack.c.h.b16 %v551
    %v1583 = vunpack.c.l.b16 %v552
    %v1584 = vunpack.c.h.b16 %v552
    %v1585 = vunpack.c.l.b16 %v553
    %v1586 = vunpack.c.h.b16 %v553
    %v1587 = vunpack.c.l.b16 %v554
    %v1588 = vunpack.c.h.b16 %v554
    %v1589 = vunpack.c.l.b16 %v555
    %v1590 = vunpack.c.h.b16 %v555
    %v1591 = vunpack.c.l.b16 %v556
    %v1592 = vunpack.c.h.b16 %v556
    %v1593 = vunpack.c.l.b16 %v557
    %v1594 = vunpack.c.h.b16 %v557
    %v1595 = vunpack.c.l.b16 %v558
    %v1596 = vunpack.c.h.b16 %v558
    %v1597 = vunpack.c.l.b16 %v559
    %v1598 = vunpack.c.h.b16 %v559
    %v1599 = vunpack.c.l.b16 %v560
    %v1600 = vunpack.c.h.b16 %v560
    %v1601 = vunpack.c.l.b16 %v561
    %v1602 = vunpack.c.h.b16 %v561
    %v1603 = vunpack.c.l.b16 %v562
    %v1604 = vunpack.c.h.b16 %v562
    %v1605 = vunpack.c.l.b16 %v563
    %v1606 = vunpack.c.h.b16 %v563
    %v1607 = vunpack.c.l.b16 %v564
    %v1608 = vunpack.c.h.b16 %v564
    %v1609 = vunpack.c.l.b16 %v565
    %v1610 = vunpack.c.h.b16 %v565
    %v1611 = vunpack.c.l.b16 %v566
    %v1612 = vunpack.c.h.b16 %v566
    %v1613 = vunpack.c.l.b16 %v567
    %v1614 = vunpack.c.h.b16 %v567
    %v1615 = vunpack.c.l.b16 %v568
    %v1616 = vunpack.c.h.b16 %v568
    %v1617 = vunpack.c.l.b16 %v569
    %v1618 = vunpack.c.h.b16 %v569
    %v1619 = vunpack.c.l.b16 %v570
    %v1620 = vunpack.c.h.b16 %v570
    %v1621 = vunpack.c.l.b16 %v571
    %v1622 = vunpack.c.h.b16 %v571
    %v1623 = vunpack.c.l.b16 %v572
    %v1624 = vunpack.c.h.b16 %v572
    %v1625 = vunpack.c.l.b16 %v573
    %v1626 = vunpack.c.h.b16 %v573
    %v1627 = vunpack.c.l.b16 %v574
    %v1628 = vunpack.c.h.b16 %v574
    %v1629 = vunpack.c.l.b16 %v575
    %v1630 = vunpack.c.h.b16 %v575
    %v1631 = vunpack.c.l.b16 %v576
    %v1632 = vunpack.c.h.b16 %v576
    %v1633 = vunpack.c.l.b16 %v577
    %v1634 = vunpack.c.h.b16 %v577
    %v1635 = vunpack.c.l.b16 %v578
    %v1636 = vunpack.c.h.b16 %v578
    %v1637 = vunpack.c.l.b16 %v579
    %v1638 = vunpack.c.h.b16 %v579
    %v1639 = vunpack.c.l.b16 %v580
    %v1640 = vunpack.c.h.b16 %v580
    %v1641 = vunpack.c.l.b16 %v581
    %v1642 = vunpack.c.h.b16 %v581
    %v1643 = vunpack.c.l.b16 %v582
    %v1644 = vunpack.c.h.b16 %v582
    %v1645 = vunpack.c.l.b16 %v583
    %v1646 = vunpack.c.h.b16 %v583
    %v1647 = vunpack.c.l.b16 %v584
    %v1648 = vunpack.c.h.b16 %v584
    %v1649 = vunpack.c.l.b16 %v585
    %v1650 = vunpack.c.h.b16 %v585
    %v1651 = vunpack.c.l.b16 %v586
    %v1652 = vunpack.c.h.b16 %v586
    %v1653 = vunpack.c.l.b16 %v587
    %v1654 = vunpack.c.h.b16 %v587
    %v1655 = vunpack.c.l.b16 %v588
    %v1656 = vunpack.c.h.b16 %v588
    %v1657 = vunpack.c.l.b16 %v589
    %v1658 = vunpack.c.h.b16 %v589
    %v1659 = vunpack.c.l.b16 %v590
    %v1660 = vunpack.c.h.b16 %v590
    %v1661 = vunpack.c.l.b16 %v591
    %v1662 = vunpack.c.h.b16 %v591
    %v1663 = vunpack.c.l.b16 %v592
    %v1664 = vunpack.c.h.b16 %v592
    %v1665 = vunpack.c.l.b16 %v593
    %v1666 = vunpack.c.h.b16 %v593
    %v1667 = vunpack.c.l.b16 %v594
    %v1668 = vunpack.c.h.b16 %v594
    %v1669 = vunpack.c.l.b16 %v595
    %v1670 = vunpack.c.h.b16 %v595
    %v1671 = vunpack.c.l.b16 %v596
    %v1672 = vunpack.c.h.b16 %v596
    %v1673 = vunpack.c.l.b16 %v597
    %v1674 = vunpack.c.h.b16 %v597
    %v1675 = vunpack.c.l.b16 %v598
    %v1676 = vunpack.c.h.b16 %v598
    %v1677 = vunpack.c.l.b16 %v599
    %v1678 = vunpack.c.h.b16 %v599
    %v1679 = vunpack.c.l.b16 %v600
    %v1680 = vunpack.c.h.b16 %v600
    %v1681 = vunpack.c.l.b16 %v601
    %v1682 = vunpack.c.h.b16 %v601
    %v1683 = vunpack.c.l.b16 %v602
    %v1684 = vunpack.c.h.b16 %v602
    %v1685 = vunpack.c.l.b16 %v603
    %v1686 = vunpack.c.h.b16 %v603
    %v1687 = vunpack.c.l.b16 %v604
    %v1688 = vunpack.c.h.b16 %v604
    %v1689 = vunpack.c.l.b16 %v605
    %v1690 = vunpack.c.h.b16 %v605
    %v1691 = vunpack.c.l.b16 %v606
    %v1692 = vunpack.c.h.b16 %v606
    %v1693 = vunpack.c.l.b16 %v607
    %v1694 = vunpack.c.h.b16 %v607
    %v1695 = vunpack.c.l.b16 %v608
    %v1696 = vunpack.c.h.b16 %v608
    %v1697 = vunpack.c.l.b16 %v609
    %v1698 = vunpack.c.h.b16 %v609
    %v1699 = vunpack.c.l.b16 %v610
    %v1700 = vunpack.c.h.b16 %v610
    %v1701 = vunpack.c.l.b16 %v611
    %v1702 = vunpack.c.h.b16 %v611
    %v1703 = vunpack.c.l.b16 %v612
    %v1704 = vunpack.c.h.b16 %v612
    %v1705 = vunpack.c.l.b16 %v613
    %v1706 = vunpack.c.h.b16 %v613
    %v1707 = vunpack.c.l.b16 %v614
    %v1708 = vunpack.c.h.b16 %v614
    %v1709 = vunpack.c.l.b16 %v615
    %v1710 = vunpack.c.h.b16 %v615
    %v1711 = vunpack.c.l.b16 %v616
    %v1712 = vunpack.c.h.b16 %v616
    %v1713 = vunpack.c.l.b16 %v617
    %v1714 = vunpack.c.h.b16 %v617
    %v1715 = vunpack.c.l.b16 %v618
    %v1716 = vunpack.c.h.b16 %v618
    %v1717 = vunpack.c.l.b16 %v619
    %v1718 = vunpack.c.h.b16 %v619
    %v1719 = vunpack.c.l.b16 %v620
    %v1720 = vunpack.c.h.b16 %v620
    %v1721 = vunpack.c.l.b16 %v621
    %v1722 = vunpack.c.h.b16 %v621
    %v1723 = vunpack.c.l.b16 %v622
    %v1724 = vunpack.c.h.b16 %v622
    %v1725 = vunpack.c.l.b16 %v623
    %v1726 = vunpack.c.h.b16 %v623
    %v1727 = vunpack.c.l.b16 %v624
    %v1728 = vunpack.c.h.b16 %v624
    %v1729 = vunpack.c.l.b16 %v625
    %v1730 = vunpack.c.h.b16 %v625
    %v1731 = vunpack.c.l.b16 %v626
    %v1732 = vunpack.c.h.b16 %v626
    %v1733 = vunpack.c.l.b16 %v627
    %v1734 = vunpack.c.h.b16 %v627
    %v1735 = vunpack.c.l.b16 %v628
    %v1736 = vunpack.c.h.b16 %v628
    %v1737 = vunpack.c.l.b16 %v629
    %v1738 = vunpack.c.h.b16 %v629
    %v1739 = vunpack.c.l.b16 %v630
    %v1740 = vunpack.c.h.b16 %v630
    %v1741 = vunpack.c.l.b16 %v631
    %v1742 = vunpack.c.h.b16 %v631
    %v1743 = vunpack.c.l.b16 %v632
    %v1744 = vunpack.c.h.b16 %v632
    %v1745 = vunpack.c.l.b16 %v633
    %v1746 = vunpack.c.h.b16 %v633
    %v1747 = vunpack.c.l.b16 %v634
    %v1748 = vunpack.c.h.b16 %v634
    %v1749 = vunpack.c.l.b16 %v635
    %v1750 = vunpack.c.h.b16 %v635
    %v1751 = vunpack.c.l.b16 %v636
    %v1752 = vunpack.c.h.b16 %v636
    %v1753 = vunpack.c.l.b16 %v637
    %v1754 = vunpack.c.h.b16 %v637
    %v1755 = vunpack.c.l.b16 %v638
    %v1756 = vunpack.c.h.b16 %v638
    %v1757 = vunpack.c.l.b16 %v639
    %v1758 = vunpack.c.h.b16 %v639
    %v1759 = vunpack.c.l.b16 %v640
    %v1760 = vunpack.c.h.b16 %v640
    %v1761 = vunpack.c.l.b16 %v641
    %v1762 = vunpack.c.h.b16 %v641
    %v1763 = vunpack.c.l.b16 %v642
    %v1764 = vunpack.c.h.b16 %v642
    %v1765 = vunpack.c.l.b16 %v643
    %v1766 = vunpack.c.h.b16 %v643
    %v1767 = vunpack.c.l.b16 %v644
    %v1768 = vunpack.c.h.b16 %v644
    %v1769 = vunpack.c.l.b16 %v645
    %v1770 = vunpack.c.h.b16 %v645
    %v1771 = vunpack.c.l.b16 %v646
    %v1772 = vunpack.c.h.b16 %v646
    %v1773 = vunpack.c.l.b16 %v647
    %v1774 = vunpack.c.h.b16 %v647
    %v1775 = vunpack.c.l.b16 %v648
    %v1776 = vunpack.c.h.b16 %v648
    %v1777 = vunpack.c.l.b16 %v649
    %v1778 = vunpack.c.h.b16 %v649
    %v1779 = vunpack.c.l.b16 %v650
    %v1780 = vunpack.c.h.b16 %v650
    %v1781 = vunpack.c.l.b16 %v651
    %v1782 = vunpack.c.h.b16 %v651
    %v1783 = vunpack.c.l.b16 %v652
    %v1784 = vunpack.c.h.b16 %v652
    %v1785 = vunpack.c.l.b16 %v653
    %v1786 = vunpack.c.h.b16 %v653
    %v1787 = vunpack.c.l.b16 %v654
    %v1788 = vunpack.c.h.b16 %v654
    %v1789 = vunpack.c.l.b16 %v655
    %v1790 = vunpack.c.h.b16 %v655
    %v1791 = vunpack.c.l.b16 %v656
    %v1792 = vunpack.c.h.b16 %v656
    %v1793 = vunpack.c.l.b16 %v657
    %v1794 = vunpack.c.h.b16 %v657
    %v1795 = vunpack.c.l.b16 %v658
    %v1796 = vunpack.c.h.b16 %v658
    %v1797 = vunpack.c.l.b16 %v659
    %v1798 = vunpack.c.h.b16 %v659
    %v1799 = vunpack.c.l.b16 %v660
    %v1800 = vunpack.c.h.b16 %v660
    %v1801 = vunpack.c.l.b16 %v661
    %v1802 = vunpack.c.h.b16 %v661
    %v1803 = vunpack.c.l.b16 %v662
    %v1804 = vunpack.c.h.b16 %v662
    %v1805 = vunpack.c.l.b16 %v663
    %v1806 = vunpack.c.h.b16 %v663
    %v1807 = vunpack.c.l.b16 %v664
    %v1808 = vunpack.c.h.b16 %v664
    %v1809 = vunpack.c.l.b16 %v665
    %v1810 = vunpack.c.h.b16 %v665
    %v1811 = vunpack.c.l.b16 %v666
    %v1812 = vunpack.c.h.b16 %v666
    %v1813 = vunpack.c.l.b16 %v667
    %v1814 = vunpack.c.h.b16 %v667
    %v1815 = vunpack.c.l.b16 %v668
    %v1816 = vunpack.c.h.b16 %v668
    %v1817 = vunpack.c.l.b16 %v669
    %v1818 = vunpack.c.h.b16 %v669
    %v1819 = vunpack.c.l.b16 %v670
    %v1820 = vunpack.c.h.b16 %v670
    %v1821 = vunpack.c.l.b16 %v671
    %v1822 = vunpack.c.h.b16 %v671
    %v1823 = vunpack.c.l.b16 %v672
    %v1824 = vunpack.c.h.b16 %v672
    %v1825 = vunpack.c.l.b16 %v673
    %v1826 = vunpack.c.h.b16 %v673
    %v1827 = vunpack.c.l.b16 %v674
    %v1828 = vunpack.c.h.b16 %v674
    %v1829 = vunpack.c.l.b16 %v675
    %v1830 = vunpack.c.h.b16 %v675
    %v1831 = vunpack.c.l.b16 %v676
    %v1832 = vunpack.c.h.b16 %v676
    %v1833 = vunpack.c.l.b16 %v677
    %v1834 = vunpack.c.h.b16 %v677
    %v1835 = vunpack.c.l.b16 %v678
    %v1836 = vunpack.c.h.b16 %v678
    %v1837 = vunpack.c.l.b16 %v679
    %v1838 = vunpack.c.h.b16 %v679
    %v1839 = vunpack.c.l.b16 %v680
    %v1840 = vunpack.c.h.b16 %v680
    %v1841 = vunpack.c.l.b16 %v681
    %v1842 = vunpack.c.h.b16 %v681
    %v1843 = vunpack.c.l.b16 %v682
    %v1844 = vunpack.c.h.b16 %v682
    %v1845 = vunpack.c.l.b16 %v683
    %v1846 = vunpack.c.h.b16 %v683
    %v1847 = vunpack.c.l.b16 %v684
    %v1848 = vunpack.c.h.b16 %v684
    %v1849 = vunpack.c.l.b16 %v685
    %v1850 = vunpack.c.h.b16 %v685
    %v1851 = vunpack.c.l.b16 %v686
    %v1852 = vunpack.c.h.b16 %v686
    %v1853 = vunpack.c.l.b16 %v687
    %v1854 = vunpack.c.h.b16 %v687
    %v1855 = vunpack.c.l.b16 %v688
    %v1856 = vunpack.c.h.b16 %v688
    %v1857 = vunpack.c.l.b16 %v689
    %v1858 = vunpack.c.h.b16 %v689
    %v1859 = vunpack.c.l.b16 %v690
    %v1860 = vunpack.c.h.b16 %v690
    %v1861 = vunpack.c.l.b16 %v691
    %v1862 = vunpack.c.h.b16 %v691
    %v1863 = vunpack.c.l.b16 %v692
    %v1864 = vunpack.c.h.b16 %v692
    %v1865 = vunpack.c.l.b16 %v693
    %v1866 = vunpack.c.h.b16 %v693
    %v1867 = vunpack.c.l.b16 %v694
    %v1868 = vunpack.c.h.b16 %v694
    %v1869 = vunpack.c.l.b16 %v695
    %v1870 = vunpack.c.h.b16 %v695
    %v1871 = vunpack.c.l.b16 %v696
    %v1872 = vunpack.c.h.b16 %v696
    %v1873 = vunpack.c.l.b16 %v697
    %v1874 = vunpack.c.h.b16 %v697
    %v1875 = vunpack.c.l.b16 %v698
    %v1876 = vunpack.c.h.b16 %v698
    %v1877 = vunpack.c.l.b16 %v699
    %v1878 = vunpack.c.h.b16 %v699
    %v1879 = vunpack.c.l.b16 %v700
    %v1880 = vunpack.c.h.b16 %v700
    %v1881 = vunpack.c.l.b16 %v701
    %v1882 = vunpack.c.h.b16 %v701
    %v1883 = vunpack.c.l.b16 %v702
    %v1884 = vunpack.c.h.b16 %v702
    %v1885 = vunpack.c.l.b16 %v703
    %v1886 = vunpack.c.h.b16 %v703
    %v1887 = vunpack.c.l.b16 %v704
    %v1888 = vunpack.c.h.b16 %v704
    %v1889 = vunpack.c.l.b16 %v705
    %v1890 = vunpack.c.h.b16 %v705
    %v1891 = vunpack.c.l.b16 %v706
    %v1892 = vunpack.c.h.b16 %v706
    %v1893 = vunpack.c.l.b16 %v707
    %v1894 = vunpack.c.h.b16 %v707
    %v1895 = vunpack.c.l.b16 %v708
    %v1896 = vunpack.c.h.b16 %v708
    %v1897 = vunpack.c.l.b16 %v709
    %v1898 = vunpack.c.h.b16 %v709
    %v1899 = vunpack.c.l.b16 %v710
    %v1900 = vunpack.c.h.b16 %v710
    %v1901 = vunpack.c.l.b16 %v711
    %v1902 = vunpack.c.h.b16 %v711
    %v1903 = vunpack.c.l.b16 %v712
    %v1904 = vunpack.c.h.b16 %v712
    %v1905 = vunpack.c.l.b16 %v713
    %v1906 = vunpack.c.h.b16 %v713
    %v1907 = vunpack.c.l.b16 %v714
    %v1908 = vunpack.c.h.b16 %v714
    %v1909 = vunpack.c.l.b16 %v715
    %v1910 = vunpack.c.h.b16 %v715
    %v1911 = vunpack.c.l.b16 %v716
    %v1912 = vunpack.c.h.b16 %v716
    %v1913 = vunpack.c.l.b16 %v717
    %v1914 = vunpack.c.h.b16 %v717
    %v1915 = vunpack.c.l.b16 %v718
    %v1916 = vunpack.c.h.b16 %v718
    %v1917 = vunpack.c.l.b16 %v719
    %v1918 = vunpack.c.h.b16 %v719
    %v1919 = vunpack.c.l.b16 %v720
    %v1920 = vunpack.c.h.b16 %v720
    %v1921 = vunpack.c.l.b16 %v721
    %v1922 = vunpack.c.h.b16 %v721
    %v1923 = vunpack.c.l.b16 %v722
    %v1924 = vunpack.c.h.b16 %v722
    %v1925 = vunpack.c.l.b16 %v723
    %v1926 = vunpack.c.h.b16 %v723
    %v1927 = vunpack.c.l.b16 %v724
    %v1928 = vunpack.c.h.b16 %v724
    %v1929 = vunpack.c.l.b16 %v725
    %v1930 = vunpack.c.h.b16 %v725
    %v1931 = vunpack.c.l.b16 %v726
    %v1932 = vunpack.c.h.b16 %v726
    %v1933 = vunpack.c.l.b16 %v727
    %v1934 = vunpack.c.h.b16 %v727
    %v1935 = vunpack.c.l.b16 %v728
    %v1936 = vunpack.c.h.b16 %v728
    %v1937 = vunpack.c.l.b16 %v729
    %v1938 = vunpack.c.h.b16 %v729
    %v1939 = vunpack.c.l.b16 %v730
    %v1940 = vunpack.c.h.b16 %v730
    %v1941 = vunpack.c.l.b16 %v731
    %v1942 = vunpack.c.h.b16 %v731
    %v1943 = vunpack.c.l.b16 %v732
    %v1944 = vunpack.c.h.b16 %v732
    %v1945 = vunpack.c.l.b16 %v733
    %v1946 = vunpack.c.h.b16 %v733
    %v1947 = vunpack.c.l.b16 %v734
    %v1948 = vunpack.c.h.b16 %v734
    %v1949 = vunpack.c.l.b16 %v735
    %v1950 = vunpack.c.h.b16 %v735
    %v1951 = vunpack.c.l.b16 %v736
    %v1952 = vunpack.c.h.b16 %v736
    %v1953 = vunpack.c.l.b16 %v737
    %v1954 = vunpack.c.h.b16 %v737
    %v1955 = vunpack.c.l.b16 %v738
    %v1956 = vunpack.c.h.b16 %v738
    %v1957 = vunpack.c.l.b16 %v739
    %v1958 = vunpack.c.h.b16 %v739
    %v1959 = vunpack.c.l.b16 %v740
    %v1960 = vunpack.c.h.b16 %v740
    %v1961 = vunpack.c.l.b16 %v741
    %v1962 = vunpack.c.h.b16 %v741
    %v1963 = vunpack.c.l.b16 %v742
    %v1964 = vunpack.c.h.b16 %v742
    %v1965 = vunpack.c.l.b16 %v743
    %v1966 = vunpack.c.h.b16 %v743
    %v1967 = vunpack.c.l.b16 %v744
    %v1968 = vunpack.c.h.b16 %v744
    %v1969 = vunpack.c.l.b16 %v745
    %v1970 = vunpack.c.h.b16 %v745
    %v1971 = vunpack.c.l.b16 %v746
    %v1972 = vunpack.c.h.b16 %v746
    %v1973 = vunpack.c.l.b16 %v747
    %v1974 = vunpack.c.h.b16 %v747
    %v1975 = vpack.c.b16 %v1215, %v1207
    %v1976 = vpack.c.b16 %v1216, %v1208
    %v1977 = vpack.c.b16 %v1217, %v1209
    %v1978 = vpack.c.b16 %v1218, %v1210
    %v1979 = vpack.c.b16 %v1219, %v1211
    %v1980 = vpack.c.b16 %v1220, %v1212
    %v1981 = vpack.c.b16 %v1221, %v1213
    %v1982 = vpack.c.b16 %v1222, %v1214
    %v1983 = vpack.c.b16 %v1231, %v1223
    %v1984 = vpack.c.b16 %v1232, %v1224
    %v1985 = vpack.c.b16 %v1233, %v1225
    %v1986 = vpack.c.b16 %v1234, %v1226
    %v1987 = vpack.c.b16 %v1235, %v1227
    %v1988 = vpack.c.b16 %v1236, %v1228
    %v1989 = vpack.c.b16 %v1237, %v1229
    %v1990 = vpack.c.b16 %v1238, %v1230
    %v1991 = vpack.c.b16 %v1247, %v1239
    %v1992 = vpack.c.b16 %v1248, %v1240
    %v1993 = vpack.c.b16 %v1249, %v1241
    %v1994 = vpack.c.b16 %v1250, %v1242
    %v1995 = vpack.c.b16 %v1251, %v1243
    %v1996 = vpack.c.b16 %v1252, %v1244
    %v1997 = vpack.c.b16 %v1253, %v1245
    %v1998 = vpack.c.b16 %v1254, %v1246
    %v1999 = vpack.c.b16 %v1263, %v1255
    %v2000 = vpack.c.b16 %v1264, %v1256
    %v2001 = vpack.c.b16 %v1265, %v1257
    %v2002 = vpack.c.b16 %v1266, %v1258
    %v2003 = vpack.c.b16 %v1267, %v1259
    %v2004 = vpack.c.b16 %v1268, %v1260
    %v2005 = vpack.c.b16 %v1269, %v1261
    %v2006 = vpack.c.b16 %v1270, %v1262
    %v2007 = vpack.c.b16 %v1279, %v1271
    %v2008 = vpack.c.b16 %v1280, %v1272
    %v2009 = vpack.c.b16 %v1281, %v1273
    %v2010 = vpack.c.b16 %v1282, %v1274
    %v2011 = vpack.c.b16 %v1283, %v1275
    %v2012 = vpack.c.b16 %v1284, %v1276
    %v2013 = vpack.c.b16 %v1285, %v1277
    %v2014 = vpack.c.b16 %v1286, %v1278
    %v2015 = vpack.c.b16 %v1295, %v1287
    %v2016 = vpack.c.b16 %v1296, %v1288
    %v2017 = vpack.c.b16 %v1297, %v1289
    %v2018 = vpack.c.b16 %v1298, %v1290
    %v2019 = vpack.c.b16 %v1299, %v1291
    %v2020 = vpack.c.b16 %v1300, %v1292
    %v2021 = vpack.c.b16 %v1301, %v1293
    %v2022 = vpack.c.b16 %v1302, %v1294
    %v2023 = vpack.c.b16 %v1311, %v1303
    %v2024 = vpack.c.b16 %v1312, %v1304
    %v2025 = vpack.c.b16 %v1313, %v1305
    %v2026 = vpack.c.b16 %v1314, %v1306
    %v2027 = vpack.c.b16 %v1315, %v1307
    %v2028 = vpack.c.b16 %v1316, %v1308
    %v2029 = vpack.c.b16 %v1317, %v1309
    %v2030 = vpack.c.b16 %v1318, %v1310
    %v2031 = vpack.c.b16 %v1327, %v1319
    %v2032 = vpack.c.b16 %v1328, %v1320
    %v2033 = vpack.c.b16 %v1329, %v1321
    %v2034 = vpack.c.b16 %v1330, %v1322
    %v2035 = vpack.c.b16 %v1331, %v1323
    %v2036 = vpack.c.b16 %v1332, %v1324
    %v2037 = vpack.c.b16 %v1333, %v1325
    %v2038 = vpack.c.b16 %v1334, %v1326
    %v2039 = vpack.c.b16 %v1343, %v1335
    %v2040 = vpack.c.b16 %v1344, %v1336
    %v2041 = vpack.c.b16 %v1345, %v1337
    %v2042 = vpack.c.b16 %v1346, %v1338
    %v2043 = vpack.c.b16 %v1347, %v1339
    %v2044 = vpack.c.b16 %v1348, %v1340
    %v2045 = vpack.c.b16 %v1349, %v1341
    %v2046 = vpack.c.b16 %v1350, %v1342
    %v2047 = vpack.c.b16 %v1359, %v1351
    %v2048 = vpack.c.b16 %v1360, %v1352
    %v2049 = vpack.c.b16 %v1361, %v1353
    %v2050 = vpack.c.b16 %v1362, %v1354
    %v2051 = vpack.c.b16 %v1363, %v1355
    %v2052 = vpack.c.b16 %v1364, %v1356
    %v2053 = vpack.c.b16 %v1365, %v1357
    %v2054 = vpack.c.b16 %v1366, %v1358
    %v2055 = vpack.c.b16 %v1375, %v1367
    %v2056 = vpack.c.b16 %v1376, %v1368
    %v2057 = vpack.c.b16 %v1377, %v1369
    %v2058 = vpack.c.b16 %v1378, %v1370
    %v2059 = vpack.c.b16 %v1379, %v1371
    %v2060 = vpack.c.b16 %v1380, %v1372
    %v2061 = vpack.c.b16 %v1381, %v1373
    %v2062 = vpack.c.b16 %v1382, %v1374
    %v2063 = vpack.c.b16 %v1391, %v1383
    %v2064 = vpack.c.b16 %v1392, %v1384
    %v2065 = vpack.c.b16 %v1393, %v1385
    %v2066 = vpack.c.b16 %v1394, %v1386
    %v2067 = vpack.c.b16 %v1395, %v1387
    %v2068 = vpack.c.b16 %v1396, %v1388
    %v2069 = vpack.c.b16 %v1397, %v1389
    %v2070 = vpack.c.b16 %v1398, %v1390
    %v2071 = vpack.c.b16 %v1407, %v1399
    %v2072 = vpack.c.b16 %v1408, %v1400
    %v2073 = vpack.c.b16 %v1409, %v1401
    %v2074 = vpack.c.b16 %v1410, %v1402
    %v2075 = vpack.c.b16 %v1411, %v1403
    %v2076 = vpack.c.b16 %v1412, %v1404
    %v2077 = vpack.c.b16 %v1413, %v1405
    %v2078 = vpack.c.b16 %v1414, %v1406
    %v2079 = vpack.c.b16 %v1423, %v1415
    %v2080 = vpack.c.b16 %v1424, %v1416
    %v2081 = vpack.c.b16 %v1425, %v1417
    %v2082 = vpack.c.b16 %v1426, %v1418
    %v2083 = vpack.c.b16 %v1427, %v1419
    %v2084 = vpack.c.b16 %v1428, %v1420
    %v2085 = vpack.c.b16 %v1429, %v1421
    %v2086 = vpack.c.b16 %v1430, %v1422
    %v2087 = vpack.c.b16 %v1439, %v1431
    %v2088 = vpack.c.b16 %v1440, %v1432
    %v2089 = vpack.c.b16 %v1441, %v1433
    %v2090 = vpack.c.b16 %v1442, %v1434
    %v2091 = vpack.c.b16 %v1443, %v1435
    %v2092 = vpack.c.b16 %v1444, %v1436
    %v2093 = vpack.c.b16 %v1445, %v1437
    %v2094 = vpack.c.b16 %v1446, %v1438
    %v2095 = vpack.c.b16 %v1455, %v1447
    %v2096 = vpack.c.b16 %v1456, %v1448
    %v2097 = vpack.c.b16 %v1457, %v1449
    %v2098 = vpack.c.b16 %v1458, %v1450
    %v2099 = vpack.c.b16 %v1459, %v1451
    %v2100 = vpack.c.b16 %v1460, %v1452
    %v2101 = vpack.c.b16 %v1461, %v1453
    %v2102 = vpack.c.b16 %v1462, %v1454
    %v2103 = vpack.c.b16 %v1471, %v1463
    %v2104 = vpack.c.b16 %v1472, %v1464
    %v2105 = vpack.c.b16 %v1473, %v1465
    %v2106 = vpack.c.b16 %v1474, %v1466
    %v2107 = vpack.c.b16 %v1475, %v1467
    %v2108 = vpack.c.b16 %v1476, %v1468
    %v2109 = vpack.c.b16 %v1477, %v1469
    %v2110 = vpack.c.b16 %v1478, %v1470
    %v2111 = vpack.c.b16 %v1487, %v1479
    %v2112 = vpack.c.b16 %v1488, %v1480
    %v2113 = vpack.c.b16 %v1489, %v1481
    %v2114 = vpack.c.b16 %v1490, %v1482
    %v2115 = vpack.c.b16 %v1491, %v1483
    %v2116 = vpack.c.b16 %v1492, %v1484
    %v2117 = vpack.c.b16 %v1493, %v1485
    %v2118 = vpack.c.b16 %v1494, %v1486
    %v2119 = vpack.c.b16 %v1503, %v1495
    %v2120 = vpack.c.b16 %v1504, %v1496
    %v2121 = vpack.c.b16 %v1505, %v1497
    %v2122 = vpack.c.b16 %v1506, %v1498
    %v2123 = vpack.c.b16 %v1507, %v1499
    %v2124 = vpack.c.b16 %v1508, %v1500
    %v2125 = vpack.c.b16 %v1509, %v1501
    %v2126 = vpack.c.b16 %v1510, %v1502
    %v2127 = vpack.c.b16 %v1519, %v1511
    %v2128 = vpack.c.b16 %v1520, %v1512
    %v2129 = vpack.c.b16 %v1521, %v1513
    %v2130 = vpack.c.b16 %v1522, %v1514
    %v2131 = vpack.c.b16 %v1523, %v1515
    %v2132 = vpack.c.b16 %v1524, %v1516
    %v2133 = vpack.c.b16 %v1525, %v1517
    %v2134 = vpack.c.b16 %v1526, %v1518
    %v2135 = vpack.c.b16 %v1535, %v1527
    %v2136 = vpack.c.b16 %v1536, %v1528
    %v2137 = vpack.c.b16 %v1537, %v1529
    %v2138 = vpack.c.b16 %v1538, %v1530
    %v2139 = vpack.c.b16 %v1539, %v1531
    %v2140 = vpack.c.b16 %v1540, %v1532
    %v2141 = vpack.c.b16 %v1541, %v1533
    %v2142 = vpack.c.b16 %v1542, %v1534
    %v2143 = vpack.c.b16 %v1551, %v1543
    %v2144 = vpack.c.b16 %v1552, %v1544
    %v2145 = vpack.c.b16 %v1553, %v1545
    %v2146 = vpack.c.b16 %v1554, %v1546
    %v2147 = vpack.c.b16 %v1555, %v1547
    %v2148 = vpack.c.b16 %v1556, %v1548
    %v2149 = vpack.c.b16 %v1557, %v1549
    %v2150 = vpack.c.b16 %v1558, %v1550
    %v2151 = vpack.c.b16 %v1567, %v1559
    %v2152 = vpack.c.b16 %v1568, %v1560
    %v2153 = vpack.c.b16 %v1569, %v1561
    %v2154 = vpack.c.b16 %v1570, %v1562
    %v2155 = vpack.c.b16 %v1571, %v1563
    %v2156 = vpack.c.b16 %v1572, %v1564
    %v2157 = vpack.c.b16 %v1573, %v1565
    %v2158 = vpack.c.b16 %v1574, %v1566
    %v2159 = vpack.c.b16 %v1583, %v1575
    %v2160 = vpack.c.b16 %v1584, %v1576
    %v2161 = vpack.c.b16 %v1585, %v1577
    %v2162 = vpack.c.b16 %v1586, %v1578
    %v2163 = vpack.c.b16 %v1587, %v1579
    %v2164 = vpack.c.b16 %v1588, %v1580
    %v2165 = vpack.c.b16 %v1589, %v1581
    %v2166 = vpack.c.b16 %v1590, %v1582
    %v2167 = vpack.c.b16 %v1599, %v1591
    %v2168 = vpack.c.b16 %v1600, %v1592
    %v2169 = vpack.c.b16 %v1601, %v1593
    %v2170 = vpack.c.b16 %v1602, %v1594
    %v2171 = vpack.c.b16 %v1603, %v1595
    %v2172 = vpack.c.b16 %v1604, %v1596
    %v2173 = vpack.c.b16 %v1605, %v1597
    %v2174 = vpack.c.b16 %v1606, %v1598
    %v2175 = vpack.c.b16 %v1615, %v1607
    %v2176 = vpack.c.b16 %v1616, %v1608
    %v2177 = vpack.c.b16 %v1617, %v1609
    %v2178 = vpack.c.b16 %v1618, %v1610
    %v2179 = vpack.c.b16 %v1619, %v1611
    %v2180 = vpack.c.b16 %v1620, %v1612
    %v2181 = vpack.c.b16 %v1621, %v1613
    %v2182 = vpack.c.b16 %v1622, %v1614
    %v2183 = vpack.c.b16 %v1631, %v1623
    %v2184 = vpack.c.b16 %v1632, %v1624
    %v2185 = vpack.c.b16 %v1633, %v1625
    %v2186 = vpack.c.b16 %v1634, %v1626
    %v2187 = vpack.c.b16 %v1635, %v1627
    %v2188 = vpack.c.b16 %v1636, %v1628
    %v2189 = vpack.c.b16 %v1637, %v1629
    %v2190 = vpack.c.b16 %v1638, %v1630
    %v2191 = vpack.c.b16 %v1647, %v1639
    %v2192 = vpack.c.b16 %v1648, %v1640
    %v2193 = vpack.c.b16 %v1649, %v1641
    %v2194 = vpack.c.b16 %v1650, %v1642
    %v2195 = vpack.c.b16 %v1651, %v1643
    %v2196 = vpack.c.b16 %v1652, %v1644
    %v2197 = vpack.c.b16 %v1653, %v1645
    %v2198 = vpack.c.b16 %v1654, %v1646
    %v2199 = vpack.c.b16 %v1663, %v1655
    %v2200 = vpack.c.b16 %v1664, %v1656
    %v2201 = vpack.c.b16 %v1665, %v1657
    %v2202 = vpack.c.b16 %v1666, %v1658
    %v2203 = vpack.c.b16 %v1667, %v1659
    %v2204 = vpack.c.b16 %v1668, %v1660
    %v2205 = vpack.c.b16 %v1669, %v1661
    %v2206 = vpack.c.b16 %v1670, %v1662
    %v2207 = vpack.c.b16 %v1679, %v1671
    %v2208 = vpack.c.b16 %v1680, %v1672
    %v2209 = vpack.c.b16 %v1681, %v1673
    %v2210 = vpack.c.b16 %v1682, %v1674
    %v2211 = vpack.c.b16 %v1683, %v1675
    %v2212 = vpack.c.b16 %v1684, %v1676
    %v2213 = vpack.c.b16 %v1685, %v1677
    %v2214 = vpack.c.b16 %v1686, %v1678
    %v2215 = vpack.c.b16 %v1695, %v1687
    %v2216 = vpack.c.b16 %v1696, %v1688
    %v2217 = vpack.c.b16 %v1697, %v1689
    %v2218 = vpack.c.b16 %v1698, %v1690
    %v2219 = vpack.c.b16 %v1699, %v1691
    %v2220 = vpack.c.b16 %v1700, %v1692
    %v2221 = vpack.c.b16 %v1701, %v1693
    %v2222 = vpack.c.b16 %v1702, %v1694
    %v2223 = vpack.c.b16 %v1711, %v1703
    %v2224 = vpack.c.b16 %v1712, %v1704
    %v2225 = vpack.c.b16 %v1713, %v1705
    %v2226 = vpack.c.b16 %v1714, %v1706
    %v2227 = vpack.c.b16 %v1715, %v1707
    %v2228 = vpack.c.b16 %v1716, %v1708
    %v2229 = vpack.c.b16 %v1717, %v1709
    %v2230 = vpack.c.b16 %v1718, %v1710
    %v2231 = vpack.c.b16 %v1727, %v1719
    %v2232 = vpack.c.b16 %v1728, %v1720
    %v2233 = vpack.c.b16 %v1729, %v1721
    %v2234 = vpack.c.b16 %v1730, %v1722
    %v2235 = vpack.c.b16 %v1731, %v1723
    %v2236 = vpack.c.b16 %v1732, %v1724
    %v2237 = vpack.c.b16 %v1733, %v1725
    %v2238 = vpack.c.b16 %v1734, %v1726
    %v2239 = vpack.c.b16 %v1743, %v1735
    %v2240 = vpack.c.b16 %v1744, %v1736
    %v2241 = vpack.c.b16 %v1745, %v1737
    %v2242 = vpack.c.b16 %v1746, %v1738
    %v2243 = vpack.c.b16 %v1747, %v1739
    %v2244 = vpack.c.b16 %v1748, %v1740
    %v2245 = vpack.c.b16 %v1749, %v1741
    %v2246 = vpack.c.b16 %v1750, %v1742
    %v2247 = vpack.c.b16 %v1759, %v1751
    %v2248 = vpack.c.b16 %v1760, %v1752
    %v2249 = vpack.c.b16 %v1761, %v1753
    %v2250 = vpack.c.b16 %v1762, %v1754
    %v2251 = vpack.c.b16 %v1763, %v1755
    %v2252 = vpack.c.b16 %v1764, %v1756
    %v2253 = vpack.c.b16 %v1765, %v1757
    %v2254 = vpack.c.b16 %v1766, %v1758
    %v2255 = vpack.c.b16 %v1775, %v1767
    %v2256 = vpack.c.b16 %v1776, %v1768
    %v2257 = vpack.c.b16 %v1777, %v1769
    %v2258 = vpack.c.b16 %v1778, %v1770
    %v2259 = vpack.c.b16 %v1779, %v1771
    %v2260 = vpack.c.b16 %v1780, %v1772
    %v2261 = vpack.c.b16 %v1781, %v1773
    %v2262 = vpack.c.b16 %v1782, %v1774
    %v2263 = vpack.c.b16 %v1791, %v1783
    %v2264 = vpack.c.b16 %v1792, %v1784
    %v2265 = vpack.c.b16 %v1793, %v1785
    %v2266 = vpack.c.b16 %v1794, %v1786
    %v2267 = vpack.c.b16 %v1795, %v1787
    %v2268 = vpack.c.b16 %v1796, %v1788
    %v2269 = vpack.c.b16 %v1797, %v1789
    %v2270 = vpack.c.b16 %v1798, %v1790
    %v2271 = vpack.c.b16 %v1807, %v1799
    %v2272 = vpack.c.b16 %v1808, %v1800
    %v2273 = vpack.c.b16 %v1809, %v1801
    %v2274 = vpack.c.b16 %v1810, %v1802
    %v2275 = vpack.c.b16 %v1811, %v1803
    %v2276 = vpack.c.b16 %v1812, %v1804
    %v2277 = vpack.c.b16 %v1813, %v1805
    %v2278 = vpack.c.b16 %v1814, %v1806
    %v2279 = vpack.c.b16 %v1823, %v1815
    %v2280 = vpack.c.b16 %v1824, %v1816
    %v2281 = vpack.c.b16 %v1825, %v1817
    %v2282 = vpack.c.b16 %v1826, %v1818
    %v2283 = vpack.c.b16 %v1827, %v1819
    %v2284 = vpack.c.b16 %v1828, %v1820
    %v2285 = vpack.c.b16 %v1829, %v1821
    %v2286 = vpack.c.b16 %v1830, %v1822
    %v2287 = vpack.c.b16 %v1839, %v1831
    %v2288 = vpack.c.b16 %v1840, %v1832
    %v2289 = vpack.c.b16 %v1841, %v1833
    %v2290 = vpack.c.b16 %v1842, %v1834
    %v2291 = vpack.c.b16 %v1843, %v1835
    %v2292 = vpack.c.b16 %v1844, %v1836
    %v2293 = vpack.c.b16 %v1845, %v1837
    %v2294 = vpack.c.b16 %v1846, %v1838
    %v2295 = vpack.c.b16 %v1855, %v1847
    %v2296 = vpack.c.b16 %v1856, %v1848
    %v2297 = vpack.c.b16 %v1857, %v1849
    %v2298 = vpack.c.b16 %v1858, %v1850
    %v2299 = vpack.c.b16 %v1859, %v1851
    %v2300 = vpack.c.b16 %v1860, %v1852
    %v2301 = vpack.c.b16 %v1861, %v1853
    %v2302 = vpack.c.b16 %v1862, %v1854
    %v2303 = vpack.c.b16 %v1871, %v1863
    %v2304 = vpack.c.b16 %v1872, %v1864
    %v2305 = vpack.c.b16 %v1873, %v1865
    %v2306 = vpack.c.b16 %v1874, %v1866
    %v2307 = vpack.c.b16 %v1875, %v1867
    %v2308 = vpack.c.b16 %v1876, %v1868
    %v2309 = vpack.c.b16 %v1877, %v1869
    %v2310 = vpack.c.b16 %v1878, %v1870
    %v2311 = vpack.c.b16 %v1887, %v1879
    %v2312 = vpack.c.b16 %v1888, %v1880
    %v2313 = vpack.c.b16 %v1889, %v1881
    %v2314 = vpack.c.b16 %v1890, %v1882
    %v2315 = vpack.c.b16 %v1891, %v1883
    %v2316 = vpack.c.b16 %v1892, %v1884
    %v2317 = vpack.c.b16 %v1893, %v1885
    %v2318 = vpack.c.b16 %v1894, %v1886
    %v2319 = vpack.c.b16 %v1903, %v1895
    %v2320 = vpack.c.b16 %v1904, %v1896
    %v2321 = vpack.c.b16 %v1905, %v1897
    %v2322 = vpack.c.b16 %v1906, %v1898
    %v2323 = vpack.c.b16 %v1907, %v1899
    %v2324 = vpack.c.b16 %v1908, %v1900
    %v2325 = vpack.c.b16 %v1909, %v1901
    %v2326 = vpack.c.b16 %v1910, %v1902
    %v2327 = vpack.c.b16 %v1919, %v1911
    %v2328 = vpack.c.b16 %v1920, %v1912
    %v2329 = vpack.c.b16 %v1921, %v1913
    %v2330 = vpack.c.b16 %v1922, %v1914
    %v2331 = vpack.c.b16 %v1923, %v1915
    %v2332 = vpack.c.b16 %v1924, %v1916
    %v2333 = vpack.c.b16 %v1925, %v1917
    %v2334 = vpack.c.b16 %v1926, %v1918
    %v2335 = vpack.c.b16 %v1935, %v1927
    %v2336 = vpack.c.b16 %v1936, %v1928
    %v2337 = vpack.c.b16 %v1937, %v1929
    %v2338 = vpack.c.b16 %v1938, %v1930
    %v2339 = vpack.c.b16 %v1939, %v1931
    %v2340 = vpack.c.b16 %v1940, %v1932
    %v2341 = vpack.c.b16 %v1941, %v1933
    %v2342 = vpack.c.b16 %v1942, %v1934
    %v2343 = vpack.c.b16 %v1951, %v1943
    %v2344 = vpack.c.b16 %v1952, %v1944
    %v2345 = vpack.c.b16 %v1953, %v1945
    %v2346 = vpack.c.b16 %v1954, %v1946
    %v2347 = vpack.c.b16 %v1955, %v1947
    %v2348 = vpack.c.b16 %v1956, %v1948
    %v2349 = vpack.c.b16 %v1957, %v1949
    %v2350 = vpack.c.b16 %v1958, %v1950
    %v2351 = vpack.c.b16 %v1967, %v1959
    %v2352 = vpack.c.b16 %v1968, %v1960
    %v2353 = vpack.c.b16 %v1969, %v1961
    %v2354 = vpack.c.b16 %v1970, %v1962
    %v2355 = vpack.c.b16 %v1971, %v1963
    %v2356 = vpack.c.b16 %v1972, %v1964
    %v2357 = vpack.c.b16 %v1973, %v1965
    %v2358 = vpack.c.b16 %v1974, %v1966
    %2743 = vmatprep.subr.bf16.mxu0 %v1976
    %2744 = vmatpush1.bf16.msra.mxu0 %v1975
    %2745 = vmatprep.subr.bf16.mxu0 %v1984
    %2746 = vmatpush1.bf16.msra.mxu0 %v1983
    %2747 = vmatprep.subr.bf16.mxu0 %v1992
    %2748 = vmatpush1.bf16.msra.mxu0 %v1991
    %2749 = vmatprep.subr.bf16.mxu0 %v2000
    %2750 = vmatpush1.bf16.msra.mxu0 %v1999
    %2751 = vmatprep.subr.bf16.mxu0 %v2008
    %2752 = vmatpush1.bf16.msra.mxu0 %v2007
    %2753 = vmatprep.subr.bf16.mxu0 %v2016
    %2754 = vmatpush1.bf16.msra.mxu0 %v2015
    %2755 = vmatprep.subr.bf16.mxu0 %v2024
    %2756 = vmatpush1.bf16.msra.mxu0 %v2023
    %2757 = vmatprep.subr.bf16.mxu0 %v2032
    %2758 = vmatpush1.bf16.msra.mxu0 %v2031
    %2759 = vmatprep.subr.bf16.mxu0 %v2040
    %2760 = vmatpush1.bf16.msra.mxu0 %v2039
    %2761 = vmatprep.subr.bf16.mxu0 %v2048
    %2762 = vmatpush1.bf16.msra.mxu0 %v2047
    %2763 = vmatprep.subr.bf16.mxu0 %v2056
    %2764 = vmatpush1.bf16.msra.mxu0 %v2055
    %2765 = vmatprep.subr.bf16.mxu0 %v2064
    %2766 = vmatpush1.bf16.msra.mxu0 %v2063
    %2767 = vmatprep.subr.bf16.mxu0 %v2072
    %2768 = vmatpush1.bf16.msra.mxu0 %v2071
    %2769 = vmatprep.subr.bf16.mxu0 %v2080
    %2770 = vmatpush1.bf16.msra.mxu0 %v2079
    %2771 = vmatprep.subr.bf16.mxu0 %v2088
    %2772 = vmatpush1.bf16.msra.mxu0 %v2087
    %2773 = vmatprep.subr.bf16.mxu0 %v2096
    %2774 = vmatpush1.bf16.msra.mxu0 %v2095
    %2775 = vmatprep.mubr.bf16.mxu0 %v807
    %2776 = vmatmul.mubr.bf16.gmra.mrb[0].mxu0 %v799
    %v2777 = vpop.f32.mrb[0].mxu0
    %v2778 = vadd.f32 %v753, %v2777
    %v2779 = vpop.f32.mrb[0].mxu0
    %v2780 = vadd.f32 %v757, %v2779
    %v2781 = vpop.f32.mrb[0].mxu0
    %v2782 = vpop.f32.mrb[0].mxu0
    %2783 = vdwg.mxu0
    %2784 = vmatprep.subr.bf16.mxu0 %v2104
    %2785 = vmatpush1.bf16.msra.mxu0 %v2103
    %2786 = vmatprep.subr.bf16.mxu0 %v2112
    %2787 = vmatpush1.bf16.msra.mxu0 %v2111
    %2788 = vmatprep.subr.bf16.mxu0 %v2120
    %2789 = vmatpush1.bf16.msra.mxu0 %v2119
    %2790 = vmatprep.subr.bf16.mxu0 %v2128
    %2791 = vmatpush1.bf16.msra.mxu0 %v2127
    %2792 = vmatprep.subr.bf16.mxu0 %v2136
    %2793 = vmatpush1.bf16.msra.mxu0 %v2135
    %2794 = vmatprep.subr.bf16.mxu0 %v2144
    %2795 = vmatpush1.bf16.msra.mxu0 %v2143
    %2796 = vmatprep.subr.bf16.mxu0 %v2152
    %2797 = vmatpush1.bf16.msra.mxu0 %v2151
    %2798 = vmatprep.subr.bf16.mxu0 %v2160
    %2799 = vmatpush1.bf16.msra.mxu0 %v2159
    %2800 = vmatprep.subr.bf16.mxu0 %v2168
    %2801 = vmatpush1.bf16.msra.mxu0 %v2167
    %2802 = vmatprep.subr.bf16.mxu0 %v2176
    %2803 = vmatpush1.bf16.msra.mxu0 %v2175
    %2804 = vmatprep.subr.bf16.mxu0 %v2184
    %2805 = vmatpush1.bf16.msra.mxu0 %v2183
    %2806 = vmatprep.subr.bf16.mxu0 %v2192
    %2807 = vmatpush1.bf16.msra.mxu0 %v2191
    %2808 = vmatprep.subr.bf16.mxu0 %v2200
    %2809 = vmatpush1.bf16.msra.mxu0 %v2199
    %2810 = vmatprep.subr.bf16.mxu0 %v2208
    %2811 = vmatpush1.bf16.msra.mxu0 %v2207
    %2812 = vmatprep.subr.bf16.mxu0 %v2216
    %2813 = vmatpush1.bf16.msra.mxu0 %v2215
    %2814 = vmatprep.subr.bf16.mxu0 %v2224
    %2815 = vmatpush1.bf16.msra.mxu0 %v2223
    %2816 = vmatprep.mubr.bf16.mxu0 %v808
    %2817 = vmatmul.mubr.bf16.gmra.mrb[0].mxu0 %v806
    %v2818 = vpop.f32.mrb[0].mxu0
    %v2819 = vadd.f32 %v2778, %v2818
    %v2820 = vpop.f32.mrb[0].mxu0
    %v2821 = vadd.f32 %v2780, %v2820
    %v2822 = vpop.f32.mrb[0].mxu0
    %v2823 = vpop.f32.mrb[0].mxu0
    %2824 = vdwg.mxu0
    %2825 = vmatprep.subr.bf16.mxu0 %v2232
    %2826 = vmatpush1.bf16.msra.mxu0 %v2231
    %2827 = vmatprep.subr.bf16.mxu0 %v2240
    %2828 = vmatpush1.bf16.msra.mxu0 %v2239
    %2829 = vmatprep.subr.bf16.mxu0 %v2248
    %2830 = vmatpush1.bf16.msra.mxu0 %v2247
    %2831 = vmatprep.subr.bf16.mxu0 %v2256
    %2832 = vmatpush1.bf16.msra.mxu0 %v2255
    %2833 = vmatprep.subr.bf16.mxu0 %v2264
    %2834 = vmatpush1.bf16.msra.mxu0 %v2263
    %2835 = vmatprep.subr.bf16.mxu0 %v2272
    %2836 = vmatpush1.bf16.msra.mxu0 %v2271
    %2837 = vmatprep.subr.bf16.mxu0 %v2280
    %2838 = vmatpush1.bf16.msra.mxu0 %v2279
    %2839 = vmatprep.subr.bf16.mxu0 %v2288
    %2840 = vmatpush1.bf16.msra.mxu0 %v2287
    %2841 = vmatprep.subr.bf16.mxu0 %v2296
    %2842 = vmatpush1.bf16.msra.mxu0 %v2295
    %2843 = vmatprep.subr.bf16.mxu0 %v2304
    %2844 = vmatpush1.bf16.msra.mxu0 %v2303
    %2845 = vmatprep.subr.bf16.mxu0 %v2312
    %2846 = vmatpush1.bf16.msra.mxu0 %v2311
    %2847 = vmatprep.subr.bf16.mxu0 %v2320
    %2848 = vmatpush1.bf16.msra.mxu0 %v2319
    %2849 = vmatprep.subr.bf16.mxu0 %v2328
    %2850 = vmatpush1.bf16.msra.mxu0 %v2327
    %2851 = vmatprep.subr.bf16.mxu0 %v2336
    %2852 = vmatpush1.bf16.msra.mxu0 %v2335
    %2853 = vmatprep.subr.bf16.mxu0 %v2344
    %2854 = vmatpush1.bf16.msra.mxu0 %v2343
    %2855 = vmatprep.subr.bf16.mxu0 %v2352
    %2856 = vmatpush1.bf16.msra.mxu0 %v2351
    %2857 = vmatprep.mubr.bf16.mxu0 %v816
    %2858 = vmatmul.mubr.bf16.gmra.mrb[0].mxu0 %v815
    %v2859 = vpop.f32.mrb[0].mxu0
    %v2860 = vadd.f32 %v2819, %v2859
    %v2861 = vpop.f32.mrb[0].mxu0
    %v2862 = vadd.f32 %v2821, %v2861
    %v2863 = vpop.f32.mrb[0].mxu0
    %v2864 = vpop.f32.mrb[0].mxu0
    %2865 = vdwg.mxu0
    %2866 = vmatprep.subr.bf16.mxu0 %v1978
    %2867 = vmatpush1.bf16.msra.mxu0 %v1977
    %2868 = vmatprep.subr.bf16.mxu0 %v1986
    %2869 = vmatpush1.bf16.msra.mxu0 %v1985
    %2870 = vmatprep.subr.bf16.mxu0 %v1994
    %2871 = vmatpush1.bf16.msra.mxu0 %v1993
    %2872 = vmatprep.subr.bf16.mxu0 %v2002
    %2873 = vmatpush1.bf16.msra.mxu0 %v2001
    %2874 = vmatprep.subr.bf16.mxu0 %v2010
    %2875 = vmatpush1.bf16.msra.mxu0 %v2009
    %2876 = vmatprep.subr.bf16.mxu0 %v2018
    %2877 = vmatpush1.bf16.msra.mxu0 %v2017
    %2878 = vmatprep.subr.bf16.mxu0 %v2026
    %2879 = vmatpush1.bf16.msra.mxu0 %v2025
    %2880 = vmatprep.subr.bf16.mxu0 %v2034
    %2881 = vmatpush1.bf16.msra.mxu0 %v2033
    %2882 = vmatprep.subr.bf16.mxu0 %v2042
    %2883 = vmatpush1.bf16.msra.mxu0 %v2041
    %2884 = vmatprep.subr.bf16.mxu0 %v2050
    %2885 = vmatpush1.bf16.msra.mxu0 %v2049
    %2886 = vmatprep.subr.bf16.mxu0 %v2058
    %2887 = vmatpush1.bf16.msra.mxu0 %v2057
    %2888 = vmatprep.subr.bf16.mxu0 %v2066
    %2889 = vmatpush1.bf16.msra.mxu0 %v2065
    %2890 = vmatprep.subr.bf16.mxu0 %v2074
    %2891 = vmatpush1.bf16.msra.mxu0 %v2073
    %2892 = vmatprep.subr.bf16.mxu0 %v2082
    %2893 = vmatpush1.bf16.msra.mxu0 %v2081
    %2894 = vmatprep.subr.bf16.mxu0 %v2090
    %2895 = vmatpush1.bf16.msra.mxu0 %v2089
    %2896 = vmatprep.subr.bf16.mxu0 %v2098
    %2897 = vmatpush1.bf16.msra.mxu0 %v2097
    %2898 = vmatprep.mubr.bf16.mxu0 %v807
    %2899 = vmatmul.mubr.bf16.gmra.mrb[0].mxu0 %v799
    %v2900 = vpop.f32.mrb[0].mxu0
    %v2901 = vadd.f32 %v761, %v2900
    %v2902 = vpop.f32.mrb[0].mxu0
    %v2903 = vadd.f32 %v765, %v2902
    %v2904 = vpop.f32.mrb[0].mxu0
    %v2905 = vpop.f32.mrb[0].mxu0
    %2906 = vdwg.mxu0
    %2907 = vmatprep.subr.bf16.mxu0 %v2106
    %2908 = vmatpush1.bf16.msra.mxu0 %v2105
    %2909 = vmatprep.subr.bf16.mxu0 %v2114
    %2910 = vmatpush1.bf16.msra.mxu0 %v2113
    %2911 = vmatprep.subr.bf16.mxu0 %v2122
    %2912 = vmatpush1.bf16.msra.mxu0 %v2121
    %2913 = vmatprep.subr.bf16.mxu0 %v2130
    %2914 = vmatpush1.bf16.msra.mxu0 %v2129
    %2915 = vmatprep.subr.bf16.mxu0 %v2138
    %2916 = vmatpush1.bf16.msra.mxu0 %v2137
    %2917 = vmatprep.subr.bf16.mxu0 %v2146
    %2918 = vmatpush1.bf16.msra.mxu0 %v2145
    %2919 = vmatprep.subr.bf16.mxu0 %v2154
    %2920 = vmatpush1.bf16.msra.mxu0 %v2153
    %2921 = vmatprep.subr.bf16.mxu0 %v2162
    %2922 = vmatpush1.bf16.msra.mxu0 %v2161
    %2923 = vmatprep.subr.bf16.mxu0 %v2170
    %2924 = vmatpush1.bf16.msra.mxu0 %v2169
    %2925 = vmatprep.subr.bf16.mxu0 %v2178
    %2926 = vmatpush1.bf16.msra.mxu0 %v2177
    %2927 = vmatprep.subr.bf16.mxu0 %v2186
    %2928 = vmatpush1.bf16.msra.mxu0 %v2185
    %2929 = vmatprep.subr.bf16.mxu0 %v2194
    %2930 = vmatpush1.bf16.msra.mxu0 %v2193
    %2931 = vmatprep.subr.bf16.mxu0 %v2202
    %2932 = vmatpush1.bf16.msra.mxu0 %v2201
    %2933 = vmatprep.subr.bf16.mxu0 %v2210
    %2934 = vmatpush1.bf16.msra.mxu0 %v2209
    %2935 = vmatprep.subr.bf16.mxu0 %v2218
    %2936 = vmatpush1.bf16.msra.mxu0 %v2217
    %2937 = vmatprep.subr.bf16.mxu0 %v2226
    %2938 = vmatpush1.bf16.msra.mxu0 %v2225
    %2939 = vmatprep.mubr.bf16.mxu0 %v808
    %2940 = vmatmul.mubr.bf16.gmra.mrb[0].mxu0 %v806
    %v2941 = vpop.f32.mrb[0].mxu0
    %v2942 = vadd.f32 %v2901, %v2941
    %v2943 = vpop.f32.mrb[0].mxu0
    %v2944 = vadd.f32 %v2903, %v2943
    %v2945 = vpop.f32.mrb[0].mxu0
    %v2946 = vpop.f32.mrb[0].mxu0
    %2947 = vdwg.mxu0
    %2948 = vmatprep.subr.bf16.mxu0 %v2234
    %2949 = vmatpush1.bf16.msra.mxu0 %v2233
    %2950 = vmatprep.subr.bf16.mxu0 %v2242
    %2951 = vmatpush1.bf16.msra.mxu0 %v2241
    %2952 = vmatprep.subr.bf16.mxu0 %v2250
    %2953 = vmatpush1.bf16.msra.mxu0 %v2249
    %2954 = vmatprep.subr.bf16.mxu0 %v2258
    %2955 = vmatpush1.bf16.msra.mxu0 %v2257
    %2956 = vmatprep.subr.bf16.mxu0 %v2266
    %2957 = vmatpush1.bf16.msra.mxu0 %v2265
    %2958 = vmatprep.subr.bf16.mxu0 %v2274
    %2959 = vmatpush1.bf16.msra.mxu0 %v2273
    %2960 = vmatprep.subr.bf16.mxu0 %v2282
    %2961 = vmatpush1.bf16.msra.mxu0 %v2281
    %2962 = vmatprep.subr.bf16.mxu0 %v2290
    %2963 = vmatpush1.bf16.msra.mxu0 %v2289
    %2964 = vmatprep.subr.bf16.mxu0 %v2298
    %2965 = vmatpush1.bf16.msra.mxu0 %v2297
    %2966 = vmatprep.subr.bf16.mxu0 %v2306
    %2967 = vmatpush1.bf16.msra.mxu0 %v2305
    %2968 = vmatprep.subr.bf16.mxu0 %v2314
    %2969 = vmatpush1.bf16.msra.mxu0 %v2313
    %2970 = vmatprep.subr.bf16.mxu0 %v2322
    %2971 = vmatpush1.bf16.msra.mxu0 %v2321
    %2972 = vmatprep.subr.bf16.mxu0 %v2330
    %2973 = vmatpush1.bf16.msra.mxu0 %v2329
    %2974 = vmatprep.subr.bf16.mxu0 %v2338
    %2975 = vmatpush1.bf16.msra.mxu0 %v2337
    %2976 = vmatprep.subr.bf16.mxu0 %v2346
    %2977 = vmatpush1.bf16.msra.mxu0 %v2345
    %2978 = vmatprep.subr.bf16.mxu0 %v2354
    %2979 = vmatpush1.bf16.msra.mxu0 %v2353
    %2980 = vmatprep.mubr.bf16.mxu0 %v816
    %2981 = vmatmul.mubr.bf16.gmra.mrb[0].mxu0 %v815
    %v2982 = vpop.f32.mrb[0].mxu0
    %v2983 = vadd.f32 %v2942, %v2982
    %v2984 = vpop.f32.mrb[0].mxu0
    %v2985 = vadd.f32 %v2944, %v2984
    %v2986 = vpop.f32.mrb[0].mxu0
    %v2987 = vpop.f32.mrb[0].mxu0
    %2988 = vdwg.mxu0
    %2989 = vmatprep.subr.bf16.mxu0 %v1980
    %2990 = vmatpush1.bf16.msra.mxu0 %v1979
    %2991 = vmatprep.subr.bf16.mxu0 %v1988
    %2992 = vmatpush1.bf16.msra.mxu0 %v1987
    %2993 = vmatprep.subr.bf16.mxu0 %v1996
    %2994 = vmatpush1.bf16.msra.mxu0 %v1995
    %2995 = vmatprep.subr.bf16.mxu0 %v2004
    %2996 = vmatpush1.bf16.msra.mxu0 %v2003
    %2997 = vmatprep.subr.bf16.mxu0 %v2012
    %2998 = vmatpush1.bf16.msra.mxu0 %v2011
    %2999 = vmatprep.subr.bf16.mxu0 %v2020
    %3000 = vmatpush1.bf16.msra.mxu0 %v2019
    %3001 = vmatprep.subr.bf16.mxu0 %v2028
    %3002 = vmatpush1.bf16.msra.mxu0 %v2027
    %3003 = vmatprep.subr.bf16.mxu0 %v2036
    %3004 = vmatpush1.bf16.msra.mxu0 %v2035
    %3005 = vmatprep.subr.bf16.mxu0 %v2044
    %3006 = vmatpush1.bf16.msra.mxu0 %v2043
    %3007 = vmatprep.subr.bf16.mxu0 %v2052
    %3008 = vmatpush1.bf16.msra.mxu0 %v2051
    %3009 = vmatprep.subr.bf16.mxu0 %v2060
    %3010 = vmatpush1.bf16.msra.mxu0 %v2059
    %3011 = vmatprep.subr.bf16.mxu0 %v2068
    %3012 = vmatpush1.bf16.msra.mxu0 %v2067
    %3013 = vmatprep.subr.bf16.mxu0 %v2076
    %3014 = vmatpush1.bf16.msra.mxu0 %v2075
    %3015 = vmatprep.subr.bf16.mxu0 %v2084
    %3016 = vmatpush1.bf16.msra.mxu0 %v2083
    %3017 = vmatprep.subr.bf16.mxu0 %v2092
    %3018 = vmatpush1.bf16.msra.mxu0 %v2091
    %3019 = vmatprep.subr.bf16.mxu0 %v2100
    %3020 = vmatpush1.bf16.msra.mxu0 %v2099
    %3021 = vmatprep.mubr.bf16.mxu0 %v807
    %3022 = vmatmul.mubr.bf16.gmra.mrb[0].mxu0 %v799
    %v3023 = vpop.f32.mrb[0].mxu0
    %v3024 = vadd.f32 %v769, %v3023
    %v3025 = vpop.f32.mrb[0].mxu0
    %v3026 = vadd.f32 %v773, %v3025
    %v3027 = vpop.f32.mrb[0].mxu0
    %v3028 = vpop.f32.mrb[0].mxu0
    %3029 = vdwg.mxu0
    %3030 = vmatprep.subr.bf16.mxu0 %v2108
    %3031 = vmatpush1.bf16.msra.mxu0 %v2107
    %3032 = vmatprep.subr.bf16.mxu0 %v2116
    %3033 = vmatpush1.bf16.msra.mxu0 %v2115
    %3034 = vmatprep.subr.bf16.mxu0 %v2124
    %3035 = vmatpush1.bf16.msra.mxu0 %v2123
    %3036 = vmatprep.subr.bf16.mxu0 %v2132
    %3037 = vmatpush1.bf16.msra.mxu0 %v2131
    %3038 = vmatprep.subr.bf16.mxu0 %v2140
    %3039 = vmatpush1.bf16.msra.mxu0 %v2139
    %3040 = vmatprep.subr.bf16.mxu0 %v2148
    %3041 = vmatpush1.bf16.msra.mxu0 %v2147
    %3042 = vmatprep.subr.bf16.mxu0 %v2156
    %3043 = vmatpush1.bf16.msra.mxu0 %v2155
    %3044 = vmatprep.subr.bf16.mxu0 %v2164
    %3045 = vmatpush1.bf16.msra.mxu0 %v2163
    %3046 = vmatprep.subr.bf16.mxu0 %v2172
    %3047 = vmatpush1.bf16.msra.mxu0 %v2171
    %3048 = vmatprep.subr.bf16.mxu0 %v2180
    %3049 = vmatpush1.bf16.msra.mxu0 %v2179
    %3050 = vmatprep.subr.bf16.mxu0 %v2188
    %3051 = vmatpush1.bf16.msra.mxu0 %v2187
    %3052 = vmatprep.subr.bf16.mxu0 %v2196
    %3053 = vmatpush1.bf16.msra.mxu0 %v2195
    %3054 = vmatprep.subr.bf16.mxu0 %v2204
    %3055 = vmatpush1.bf16.msra.mxu0 %v2203
    %3056 = vmatprep.subr.bf16.mxu0 %v2212
    %3057 = vmatpush1.bf16.msra.mxu0 %v2211
    %3058 = vmatprep.subr.bf16.mxu0 %v2220
    %3059 = vmatpush1.bf16.msra.mxu0 %v2219
    %3060 = vmatprep.subr.bf16.mxu0 %v2228
    %3061 = vmatpush1.bf16.msra.mxu0 %v2227
    %3062 = vmatprep.mubr.bf16.mxu0 %v808
    %3063 = vmatmul.mubr.bf16.gmra.mrb[0].mxu0 %v806
    %v3064 = vpop.f32.mrb[0].mxu0
    %v3065 = vadd.f32 %v3024, %v3064
    %v3066 = vpop.f32.mrb[0].mxu0
    %v3067 = vadd.f32 %v3026, %v3066
    %v3068 = vpop.f32.mrb[0].mxu0
    %v3069 = vpop.f32.mrb[0].mxu0
    %3070 = vdwg.mxu0
    %3071 = vmatprep.subr.bf16.mxu0 %v2236
    %3072 = vmatpush1.bf16.msra.mxu0 %v2235
    %3073 = vmatprep.subr.bf16.mxu0 %v2244
    %3074 = vmatpush1.bf16.msra.mxu0 %v2243
    %3075 = vmatprep.subr.bf16.mxu0 %v2252
    %3076 = vmatpush1.bf16.msra.mxu0 %v2251
    %3077 = vmatprep.subr.bf16.mxu0 %v2260
    %3078 = vmatpush1.bf16.msra.mxu0 %v2259
    %3079 = vmatprep.subr.bf16.mxu0 %v2268
    %3080 = vmatpush1.bf16.msra.mxu0 %v2267
    %3081 = vmatprep.subr.bf16.mxu0 %v2276
    %3082 = vmatpush1.bf16.msra.mxu0 %v2275
    %3083 = vmatprep.subr.bf16.mxu0 %v2284
    %3084 = vmatpush1.bf16.msra.mxu0 %v2283
    %3085 = vmatprep.subr.bf16.mxu0 %v2292
    %3086 = vmatpush1.bf16.msra.mxu0 %v2291
    %3087 = vmatprep.subr.bf16.mxu0 %v2300
    %3088 = vmatpush1.bf16.msra.mxu0 %v2299
    %3089 = vmatprep.subr.bf16.mxu0 %v2308
    %3090 = vmatpush1.bf16.msra.mxu0 %v2307
    %3091 = vmatprep.subr.bf16.mxu0 %v2316
    %3092 = vmatpush1.bf16.msra.mxu0 %v2315
    %3093 = vmatprep.subr.bf16.mxu0 %v2324
    %3094 = vmatpush1.bf16.msra.mxu0 %v2323
    %3095 = vmatprep.subr.bf16.mxu0 %v2332
    %3096 = vmatpush1.bf16.msra.mxu0 %v2331
    %3097 = vmatprep.subr.bf16.mxu0 %v2340
    %3098 = vmatpush1.bf16.msra.mxu0 %v2339
    %3099 = vmatprep.subr.bf16.mxu0 %v2348
    %3100 = vmatpush1.bf16.msra.mxu0 %v2347
    %3101 = vmatprep.subr.bf16.mxu0 %v2356
    %3102 = vmatpush1.bf16.msra.mxu0 %v2355
    %3103 = vmatprep.mubr.bf16.mxu0 %v816
    %3104 = vmatmul.mubr.bf16.gmra.mrb[0].mxu0 %v815
    %v3105 = vpop.f32.mrb[0].mxu0
    %v3106 = vadd.f32 %v3065, %v3105
    %v3107 = vpop.f32.mrb[0].mxu0
    %v3108 = vadd.f32 %v3067, %v3107
    %v3109 = vpop.f32.mrb[0].mxu0
    %v3110 = vpop.f32.mrb[0].mxu0
    %3111 = vdwg.mxu0
    %3112 = vmatprep.subr.bf16.mxu0 %v1982
    %3113 = vmatpush1.bf16.msra.mxu0 %v1981
    %3114 = vmatprep.subr.bf16.mxu0 %v1990
    %3115 = vmatpush1.bf16.msra.mxu0 %v1989
    %3116 = vmatprep.subr.bf16.mxu0 %v1998
    %3117 = vmatpush1.bf16.msra.mxu0 %v1997
    %3118 = vmatprep.subr.bf16.mxu0 %v2006
    %3119 = vmatpush1.bf16.msra.mxu0 %v2005
    %3120 = vmatprep.subr.bf16.mxu0 %v2014
    %3121 = vmatpush1.bf16.msra.mxu0 %v2013
    %3122 = vmatprep.subr.bf16.mxu0 %v2022
    %3123 = vmatpush1.bf16.msra.mxu0 %v2021
    %3124 = vmatprep.subr.bf16.mxu0 %v2030
    %3125 = vmatpush1.bf16.msra.mxu0 %v2029
    %3126 = vmatprep.subr.bf16.mxu0 %v2038
    %3127 = vmatpush1.bf16.msra.mxu0 %v2037
    %3128 = vmatprep.subr.bf16.mxu0 %v2046
    %3129 = vmatpush1.bf16.msra.mxu0 %v2045
    %3130 = vmatprep.subr.bf16.mxu0 %v2054
    %3131 = vmatpush1.bf16.msra.mxu0 %v2053
    %3132 = vmatprep.subr.bf16.mxu0 %v2062
    %3133 = vmatpush1.bf16.msra.mxu0 %v2061
    %3134 = vmatprep.subr.bf16.mxu0 %v2070
    %3135 = vmatpush1.bf16.msra.mxu0 %v2069
    %3136 = vmatprep.subr.bf16.mxu0 %v2078
    %3137 = vmatpush1.bf16.msra.mxu0 %v2077
    %3138 = vmatprep.subr.bf16.mxu0 %v2086
    %3139 = vmatpush1.bf16.msra.mxu0 %v2085
    %3140 = vmatprep.subr.bf16.mxu0 %v2094
    %3141 = vmatpush1.bf16.msra.mxu0 %v2093
    %3142 = vmatprep.subr.bf16.mxu0 %v2102
    %3143 = vmatpush1.bf16.msra.mxu0 %v2101
    %3144 = vmatprep.mubr.bf16.mxu0 %v807
    %3145 = vmatmul.mubr.bf16.gmra.mrb[0].mxu0 %v799
    %v3146 = vpop.f32.mrb[0].mxu0
    %v3147 = vadd.f32 %v777, %v3146
    %v3148 = vpop.f32.mrb[0].mxu0
    %v3149 = vadd.f32 %v781, %v3148
    %v3150 = vpop.f32.mrb[0].mxu0
    %v3151 = vpop.f32.mrb[0].mxu0
    %3152 = vdwg.mxu0
    %3153 = vmatprep.subr.bf16.mxu0 %v2110
    %3154 = vmatpush1.bf16.msra.mxu0 %v2109
    %3155 = vmatprep.subr.bf16.mxu0 %v2118
    %3156 = vmatpush1.bf16.msra.mxu0 %v2117
    %3157 = vmatprep.subr.bf16.mxu0 %v2126
    %3158 = vmatpush1.bf16.msra.mxu0 %v2125
    %3159 = vmatprep.subr.bf16.mxu0 %v2134
    %3160 = vmatpush1.bf16.msra.mxu0 %v2133
    %3161 = vmatprep.subr.bf16.mxu0 %v2142
    %3162 = vmatpush1.bf16.msra.mxu0 %v2141
    %3163 = vmatprep.subr.bf16.mxu0 %v2150
    %3164 = vmatpush1.bf16.msra.mxu0 %v2149
    %3165 = vmatprep.subr.bf16.mxu0 %v2158
    %3166 = vmatpush1.bf16.msra.mxu0 %v2157
    %3167 = vmatprep.subr.bf16.mxu0 %v2166
    %3168 = vmatpush1.bf16.msra.mxu0 %v2165
    %3169 = vmatprep.subr.bf16.mxu0 %v2174
    %3170 = vmatpush1.bf16.msra.mxu0 %v2173
    %3171 = vmatprep.subr.bf16.mxu0 %v2182
    %3172 = vmatpush1.bf16.msra.mxu0 %v2181
    %3173 = vmatprep.subr.bf16.mxu0 %v2190
    %3174 = vmatpush1.bf16.msra.mxu0 %v2189
    %3175 = vmatprep.subr.bf16.mxu0 %v2198
    %3176 = vmatpush1.bf16.msra.mxu0 %v2197
    %3177 = vmatprep.subr.bf16.mxu0 %v2206
    %3178 = vmatpush1.bf16.msra.mxu0 %v2205
    %3179 = vmatprep.subr.bf16.mxu0 %v2214
    %3180 = vmatpush1.bf16.msra.mxu0 %v2213
    %3181 = vmatprep.subr.bf16.mxu0 %v2222
    %3182 = vmatpush1.bf16.msra.mxu0 %v2221
    %3183 = vmatprep.subr.bf16.mxu0 %v2230
    %3184 = vmatpush1.bf16.msra.mxu0 %v2229
    %3185 = vmatprep.mubr.bf16.mxu0 %v808
    %3186 = vmatmul.mubr.bf16.gmra.mrb[0].mxu0 %v806
    %v3187 = vpop.f32.mrb[0].mxu0
    %v3188 = vadd.f32 %v3147, %v3187
    %v3189 = vpop.f32.mrb[0].mxu0
    %v3190 = vadd.f32 %v3149, %v3189
    %v3191 = vpop.f32.mrb[0].mxu0
    %v3192 = vpop.f32.mrb[0].mxu0
    %3193 = vdwg.mxu0
    %3194 = vmatprep.subr.bf16.mxu0 %v2238
    %3195 = vmatpush1.bf16.msra.mxu0 %v2237
    %3196 = vmatprep.subr.bf16.mxu0 %v2246
    %3197 = vmatpush1.bf16.msra.mxu0 %v2245
    %3198 = vmatprep.subr.bf16.mxu0 %v2254
    %3199 = vmatpush1.bf16.msra.mxu0 %v2253
    %3200 = vmatprep.subr.bf16.mxu0 %v2262
    %3201 = vmatpush1.bf16.msra.mxu0 %v2261
    %3202 = vmatprep.subr.bf16.mxu0 %v2270
    %3203 = vmatpush1.bf16.msra.mxu0 %v2269
    %3204 = vmatprep.subr.bf16.mxu0 %v2278
    %3205 = vmatpush1.bf16.msra.mxu0 %v2277
    %3206 = vmatprep.subr.bf16.mxu0 %v2286
    %3207 = vmatpush1.bf16.msra.mxu0 %v2285
    %3208 = vmatprep.subr.bf16.mxu0 %v2294
    %3209 = vmatpush1.bf16.msra.mxu0 %v2293
    %3210 = vmatprep.subr.bf16.mxu0 %v2302
    %3211 = vmatpush1.bf16.msra.mxu0 %v2301
    %3212 = vmatprep.subr.bf16.mxu0 %v2310
    %3213 = vmatpush1.bf16.msra.mxu0 %v2309
    %3214 = vmatprep.subr.bf16.mxu0 %v2318
    %3215 = vmatpush1.bf16.msra.mxu0 %v2317
    %3216 = vmatprep.subr.bf16.mxu0 %v2326
    %3217 = vmatpush1.bf16.msra.mxu0 %v2325
    %3218 = vmatprep.subr.bf16.mxu0 %v2334
    %3219 = vmatpush1.bf16.msra.mxu0 %v2333
    %3220 = vmatprep.subr.bf16.mxu0 %v2342
    %3221 = vmatpush1.bf16.msra.mxu0 %v2341
    %3222 = vmatprep.subr.bf16.mxu0 %v2350
    %3223 = vmatpush1.bf16.msra.mxu0 %v2349
    %3224 = vmatprep.subr.bf16.mxu0 %v2358
    %3225 = vmatpush1.bf16.msra.mxu0 %v2357
    %3226 = vmatprep.mubr.bf16.mxu0 %v816
    %3227 = vmatmul.mubr.bf16.gmra.mrb[0].mxu0 %v815
    %v3228 = vpop.f32.mrb[0].mxu0
    %v3229 = vadd.f32 %v3188, %v3228
    %v3230 = vpop.f32.mrb[0].mxu0
    %v3231 = vadd.f32 %v3190, %v3230
    %v3232 = vpop.f32.mrb[0].mxu0
    %v3233 = vpop.f32.mrb[0].mxu0
    %3234 = vdwg.mxu0
    %v3235 = vld [vmem:[%s1] sm:$0xff]
    %v3236 = vld [vmem:[%s1 + $0x8] sm:$0xff]
    %v3237 = vld [vmem:[%s1 + $0x10] sm:$0xff]
    %v3238 = vld [vmem:[%s1 + $0x18] sm:$0xff]
    %v3239 = vld [vmem:[%s1 + $0x20] sm:$0xff]
    %v3240 = vld [vmem:[%s1 + $0x28] sm:$0xff]
    %v3241 = vld [vmem:[%s1 + $0x30] sm:$0xff]
    %v3242 = vld [vmem:[%s1 + $0x38] sm:$0xff]
    %v3243 = vld [vmem:[#allocation8] sm:$0x3]
    %v3244 = vrot.slane %v3235, 1
    %v3245 = vrot.slane %v3236, 1
    %v3246 = vrot.slane %v3237, 1
    %v3247 = vrot.slane %v3238, 1
    %v3248 = vrot.slane %v3239, 1
    %v3249 = vrot.slane %v3240, 1
    %v3250 = vrot.slane %v3241, 1
    %v3251 = vrot.slane %v3242, 1
    %v3252 = vlaneseq
    %v3253 = vshrl.u32 %v3252, 7
    %vm3254 = vcmp.lt.s32.totalorder %v3253, 7
    %v3255 = vsel %vm3254, %v3250, %v3251
    %v3256 = vsel %vm3254, %v3249, %v3250
    %v3257 = vsel %vm3254, %v3248, %v3249
    %v3258 = vsel %vm3254, %v3247, %v3248
    %v3259 = vsel %vm3254, %v3246, %v3247
    %v3260 = vsel %vm3254, %v3245, %v3246
    %v3261 = vsel %vm3254, %v3244, %v3245
    %v3262 = vsel %vm3254, %v3251, %v3244
    %s3263 = scalar_lea.vmem [#allocation8], 2
    %v3264 = vld [vmem:[%s3263] sm:$0x3]
    %vm3265 = vcmask 15360
    %v3267 = vsel %vm3265, %v3261, 0
    %v3270 = vsel %vm3265, %v3260, 0
    %v3273 = vsel %vm3265, %v3259, 0
    %v3276 = vsel %vm3265, %v3258, 0
    %v3279 = vsel %vm3265, %v3257, 0
    %v3282 = vsel %vm3265, %v3256, 0
    %v3285 = vsel %vm3265, %v3255, 0
    %v3288 = vsel %vm3265, %v3262, 0
    %vm3290 = vcmask 1041408
    %v3292 = vsel %vm3290, %v3264, 0
    %3294 = vmatprep.subr.mxu0 0.0
    %3295 = vmatpush1.msra.mxu0 %v3292
    %3296 = vmatprep.subr.mxu0 0.0
    %3297 = vmatpush1.msra.mxu0 0.0
    %3298 = vmatprep.subr.mxu0 0.0
    %3299 = vmatpush1.msra.mxu0 0.0
    %3300 = vmatprep.subr.mxu0 0.0
    %3301 = vmatpush1.msra.mxu0 0.0
    %3302 = vmatprep.subr.mxu0 0.0
    %3303 = vmatpush1.msra.mxu0 0.0
    %3304 = vmatprep.subr.mxu0 0.0
    %3305 = vmatpush1.msra.mxu0 0.0
    %3306 = vmatprep.subr.mxu0 0.0
    %3307 = vmatpush1.msra.mxu0 0.0
    %3308 = vmatprep.subr.mxu0 0.0
    %3309 = vmatpush1.msra.mxu0 0.0
    %3310 = vmatprep.subr.mxu0 0.0
    %3311 = vmatpush1.msra.mxu0 0.0
    %3312 = vmatprep.subr.mxu0 0.0
    %3313 = vmatpush1.msra.mxu0 0.0
    %3314 = vmatprep.subr.mxu0 0.0
    %3315 = vmatpush1.msra.mxu0 0.0
    %3316 = vmatprep.subr.mxu0 0.0
    %3317 = vmatpush1.msra.mxu0 0.0
    %3318 = vmatprep.subr.mxu0 0.0
    %3319 = vmatpush1.msra.mxu0 0.0
    %3320 = vmatprep.subr.mxu0 0.0
    %3321 = vmatpush1.msra.mxu0 0.0
    %3322 = vmatprep.subr.mxu0 0.0
    %3323 = vmatpush1.msra.mxu0 0.0
    %3324 = vmatprep.subr.mxu0 0.0
    %3325 = vmatpush1.msra.mxu0 0.0
    %3326 = vmatprep.subr.mxu0 0.0
    %3327 = vmatpush1.msra.mxu0 0.0
    %3328 = vmatprep.subr.mxu0 0.0
    %3329 = vmatpush1.msra.mxu0 0.0
    %3330 = vmatprep.subr.mxu0 0.0
    %3331 = vmatpush1.msra.mxu0 0.0
    %3332 = vmatprep.subr.mxu0 0.0
    %3333 = vmatpush1.msra.mxu0 0.0
    %3334 = vmatprep.subr.mxu0 0.0
    %3335 = vmatpush1.msra.mxu0 0.0
    %3336 = vmatprep.subr.mxu0 0.0
    %3337 = vmatpush1.msra.mxu0 0.0
    %3338 = vmatprep.subr.mxu0 0.0
    %3339 = vmatpush1.msra.mxu0 0.0
    %3340 = vmatprep.subr.mxu0 0.0
    %3341 = vmatpush1.msra.mxu0 0.0
    %3342 = vmatprep.subr.mxu0 0.0
    %3343 = vmatpush1.msra.mxu0 0.0
    %3344 = vmatprep.subr.mxu0 0.0
    %3345 = vmatpush1.msra.mxu0 0.0
    %3346 = vmatprep.subr.mxu0 0.0
    %3347 = vmatpush1.msra.mxu0 0.0
    %3348 = vmatprep.subr.mxu0 0.0
    %3349 = vmatpush1.msra.mxu0 0.0
    %3350 = vmatprep.subr.mxu0 0.0
    %3351 = vmatpush1.msra.mxu0 0.0
    %3352 = vmatprep.subr.mxu0 0.0
    %3353 = vmatpush1.msra.mxu0 0.0
    %3354 = vmatprep.subr.mxu0 0.0
    %3355 = vmatpush1.msra.mxu0 0.0
    %3356 = vmatprep.subr.mxu0 0.0
    %3357 = vmatpush1.msra.mxu0 0.0
    %3358 = vmatprep.mubr.f32.mxu0 0.0
    %3359 = vmatmul.mubr.f32.gmra.mrb[0].mxu0 %v3267
    %v3360 = vpop.f32.mrb[0].mxu0
    %v3361 = vadd.f32 0.0, %v3360
    %v3362 = vpop.f32.mrb[0].mxu0
    %3363 = vmatprep.mubr.f32.mxu0 0.0
    %3364 = vmatmul.mubr.f32.gmra.mrb[0].mxu0 %v3270
    %v3365 = vpop.f32.mrb[0].mxu0
    %v3366 = vadd.f32 0.0, %v3365
    %v3367 = vpop.f32.mrb[0].mxu0
    %3368 = vmatprep.mubr.f32.mxu0 0.0
    %3369 = vmatmul.mubr.f32.gmra.mrb[0].mxu0 %v3273
    %v3370 = vpop.f32.mrb[0].mxu0
    %v3371 = vadd.f32 0.0, %v3370
    %v3372 = vpop.f32.mrb[0].mxu0
    %3373 = vmatprep.mubr.f32.mxu0 0.0
    %3374 = vmatmul.mubr.f32.gmra.mrb[0].mxu0 %v3276
    %v3375 = vpop.f32.mrb[0].mxu0
    %v3376 = vadd.f32 0.0, %v3375
    %v3377 = vpop.f32.mrb[0].mxu0
    %3378 = vmatprep.mubr.f32.mxu0 0.0
    %3379 = vmatmul.mubr.f32.gmra.mrb[0].mxu0 %v3279
    %v3380 = vpop.f32.mrb[0].mxu0
    %v3381 = vadd.f32 0.0, %v3380
    %v3382 = vpop.f32.mrb[0].mxu0
    %3383 = vmatprep.mubr.f32.mxu0 0.0
    %3384 = vmatmul.mubr.f32.gmra.mrb[0].mxu0 %v3282
    %v3385 = vpop.f32.mrb[0].mxu0
    %v3386 = vadd.f32 0.0, %v3385
    %v3387 = vpop.f32.mrb[0].mxu0
    %3388 = vmatprep.mubr.f32.mxu0 0.0
    %3389 = vmatmul.mubr.f32.gmra.mrb[0].mxu0 %v3285
    %v3390 = vpop.f32.mrb[0].mxu0
    %v3391 = vadd.f32 0.0, %v3390
    %v3392 = vpop.f32.mrb[0].mxu0
    %3393 = vmatprep.mubr.f32.mxu0 0.0
    %3394 = vmatmul.mubr.f32.gmra.mrb[0].mxu0 %v3288
    %v3395 = vpop.f32.mrb[0].mxu0
    %v3396 = vadd.f32 0.0, %v3395
    %v3397 = vpop.f32.mrb[0].mxu0
    %3398 = vdwg.mxu0
    %v3400 = vsel %vm3265, %v3235, 0
    %v3403 = vsel %vm3265, %v3236, 0
    %v3406 = vsel %vm3265, %v3237, 0
    %v3409 = vsel %vm3265, %v3238, 0
    %v3412 = vsel %vm3265, %v3239, 0
    %v3415 = vsel %vm3265, %v3240, 0
    %v3418 = vsel %vm3265, %v3241, 0
    %v3421 = vsel %vm3265, %v3242, 0
    %v3424 = vsel %vm3290, %v3243, 0
    %3426 = vmatprep.subr.mxu0 0.0
    %3427 = vmatpush1.msra.mxu0 %v3424
    %3428 = vmatprep.subr.mxu0 0.0
    %3429 = vmatpush1.msra.mxu0 0.0
    %3430 = vmatprep.subr.mxu0 0.0
    %3431 = vmatpush1.msra.mxu0 0.0
    %3432 = vmatprep.subr.mxu0 0.0
    %3433 = vmatpush1.msra.mxu0 0.0
    %3434 = vmatprep.subr.mxu0 0.0
    %3435 = vmatpush1.msra.mxu0 0.0
    %3436 = vmatprep.subr.mxu0 0.0
    %3437 = vmatpush1.msra.mxu0 0.0
    %3438 = vmatprep.subr.mxu0 0.0
    %3439 = vmatpush1.msra.mxu0 0.0
    %3440 = vmatprep.subr.mxu0 0.0
    %3441 = vmatpush1.msra.mxu0 0.0
    %3442 = vmatprep.subr.mxu0 0.0
    %3443 = vmatpush1.msra.mxu0 0.0
    %3444 = vmatprep.subr.mxu0 0.0
    %3445 = vmatpush1.msra.mxu0 0.0
    %3446 = vmatprep.subr.mxu0 0.0
    %3447 = vmatpush1.msra.mxu0 0.0
    %3448 = vmatprep.subr.mxu0 0.0
    %3449 = vmatpush1.msra.mxu0 0.0
    %3450 = vmatprep.subr.mxu0 0.0
    %3451 = vmatpush1.msra.mxu0 0.0
    %3452 = vmatprep.subr.mxu0 0.0
    %3453 = vmatpush1.msra.mxu0 0.0
    %3454 = vmatprep.subr.mxu0 0.0
    %3455 = vmatpush1.msra.mxu0 0.0
    %3456 = vmatprep.subr.mxu0 0.0
    %3457 = vmatpush1.msra.mxu0 0.0
    %3458 = vmatprep.subr.mxu0 0.0
    %3459 = vmatpush1.msra.mxu0 0.0
    %3460 = vmatprep.subr.mxu0 0.0
    %3461 = vmatpush1.msra.mxu0 0.0
    %3462 = vmatprep.subr.mxu0 0.0
    %3463 = vmatpush1.msra.mxu0 0.0
    %3464 = vmatprep.subr.mxu0 0.0
    %3465 = vmatpush1.msra.mxu0 0.0
    %3466 = vmatprep.subr.mxu0 0.0
    %3467 = vmatpush1.msra.mxu0 0.0
    %3468 = vmatprep.subr.mxu0 0.0
    %3469 = vmatpush1.msra.mxu0 0.0
    %3470 = vmatprep.subr.mxu0 0.0
    %3471 = vmatpush1.msra.mxu0 0.0
    %3472 = vmatprep.subr.mxu0 0.0
    %3473 = vmatpush1.msra.mxu0 0.0
    %3474 = vmatprep.subr.mxu0 0.0
    %3475 = vmatpush1.msra.mxu0 0.0
    %3476 = vmatprep.subr.mxu0 0.0
    %3477 = vmatpush1.msra.mxu0 0.0
    %3478 = vmatprep.subr.mxu0 0.0
    %3479 = vmatpush1.msra.mxu0 0.0
    %3480 = vmatprep.subr.mxu0 0.0
    %3481 = vmatpush1.msra.mxu0 0.0
    %3482 = vmatprep.subr.mxu0 0.0
    %3483 = vmatpush1.msra.mxu0 0.0
    %3484 = vmatprep.subr.mxu0 0.0
    %3485 = vmatpush1.msra.mxu0 0.0
    %3486 = vmatprep.subr.mxu0 0.0
    %3487 = vmatpush1.msra.mxu0 0.0
    %3488 = vmatprep.subr.mxu0 0.0
    %3489 = vmatpush1.msra.mxu0 0.0
    %3490 = vmatprep.mubr.f32.mxu0 0.0
    %3491 = vmatmul.mubr.f32.gmra.mrb[0].mxu0 %v3400
    %v3492 = vpop.f32.mrb[0].mxu0
    %v3493 = vadd.f32 %v3361, %v3492
    %v3494 = vpop.f32.mrb[0].mxu0
    %3495 = vmatprep.mubr.f32.mxu0 0.0
    %3496 = vmatmul.mubr.f32.gmra.mrb[0].mxu0 %v3403
    %v3497 = vpop.f32.mrb[0].mxu0
    %v3498 = vadd.f32 %v3366, %v3497
    %v3499 = vpop.f32.mrb[0].mxu0
    %3500 = vmatprep.mubr.f32.mxu0 0.0
    %3501 = vmatmul.mubr.f32.gmra.mrb[0].mxu0 %v3406
    %v3502 = vpop.f32.mrb[0].mxu0
    %v3503 = vadd.f32 %v3371, %v3502
    %v3504 = vpop.f32.mrb[0].mxu0
    %3505 = vmatprep.mubr.f32.mxu0 0.0
    %3506 = vmatmul.mubr.f32.gmra.mrb[0].mxu0 %v3409
    %v3507 = vpop.f32.mrb[0].mxu0
    %v3508 = vadd.f32 %v3376, %v3507
    %v3509 = vpop.f32.mrb[0].mxu0
    %3510 = vmatprep.mubr.f32.mxu0 0.0
    %3511 = vmatmul.mubr.f32.gmra.mrb[0].mxu0 %v3412
    %v3512 = vpop.f32.mrb[0].mxu0
    %v3513 = vadd.f32 %v3381, %v3512
    %v3514 = vpop.f32.mrb[0].mxu0
    %3515 = vmatprep.mubr.f32.mxu0 0.0
    %3516 = vmatmul.mubr.f32.gmra.mrb[0].mxu0 %v3415
    %v3517 = vpop.f32.mrb[0].mxu0
    %v3518 = vadd.f32 %v3386, %v3517
    %v3519 = vpop.f32.mrb[0].mxu0
    %3520 = vmatprep.mubr.f32.mxu0 0.0
    %3521 = vmatmul.mubr.f32.gmra.mrb[0].mxu0 %v3418
    %v3522 = vpop.f32.mrb[0].mxu0
    %v3523 = vadd.f32 %v3391, %v3522
    %v3524 = vpop.f32.mrb[0].mxu0
    %3525 = vmatprep.mubr.f32.mxu0 0.0
    %3526 = vmatmul.mubr.f32.gmra.mrb[0].mxu0 %v3421
    %v3527 = vpop.f32.mrb[0].mxu0
    %v3528 = vadd.f32 %v3396, %v3527
    %v3529 = vpop.f32.mrb[0].mxu0
    %3530 = vdwg.mxu0
    %v3531 = vrot.slane %v3235, 2
    %v3532 = vrot.slane %v3236, 2
    %v3533 = vrot.slane %v3237, 2
    %v3534 = vrot.slane %v3238, 2
    %v3535 = vrot.slane %v3239, 2
    %v3536 = vrot.slane %v3240, 2
    %v3537 = vrot.slane %v3241, 2
    %v3538 = vrot.slane %v3242, 2
    %vm3539 = vcmp.lt.s32.totalorder %v3253, 6
    %v3540 = vsel %vm3539, %v3537, %v3538
    %v3541 = vsel %vm3539, %v3536, %v3537
    %v3542 = vsel %vm3539, %v3535, %v3536
    %v3543 = vsel %vm3539, %v3534, %v3535
    %v3544 = vsel %vm3539, %v3533, %v3534
    %v3545 = vsel %vm3539, %v3532, %v3533
    %v3546 = vsel %vm3539, %v3531, %v3532
    %v3547 = vsel %vm3539, %v3538, %v3531
    %s3548 = scalar_lea.vmem [#allocation8], 4
    %v3549 = vld [vmem:[%s3548] sm:$0x3]
    %v3551 = vsel %vm3265, %v3546, 0
    %v3554 = vsel %vm3265, %v3545, 0
    %v3557 = vsel %vm3265, %v3544, 0
    %v3560 = vsel %vm3265, %v3543, 0
    %v3563 = vsel %vm3265, %v3542, 0
    %v3566 = vsel %vm3265, %v3541, 0
    %v3569 = vsel %vm3265, %v3540, 0
    %v3572 = vsel %vm3265, %v3547, 0
    %v3575 = vsel %vm3290, %v3549, 0
    %3577 = vmatprep.subr.mxu0 0.0
    %3578 = vmatpush1.msra.mxu0 %v3575
    %3579 = vmatprep.subr.mxu0 0.0
    %3580 = vmatpush1.msra.mxu0 0.0
    %3581 = vmatprep.subr.mxu0 0.0
    %3582 = vmatpush1.msra.mxu0 0.0
    %3583 = vmatprep.subr.mxu0 0.0
    %3584 = vmatpush1.msra.mxu0 0.0
    %3585 = vmatprep.subr.mxu0 0.0
    %3586 = vmatpush1.msra.mxu0 0.0
    %3587 = vmatprep.subr.mxu0 0.0
    %3588 = vmatpush1.msra.mxu0 0.0
    %3589 = vmatprep.subr.mxu0 0.0
    %3590 = vmatpush1.msra.mxu0 0.0
    %3591 = vmatprep.subr.mxu0 0.0
    %3592 = vmatpush1.msra.mxu0 0.0
    %3593 = vmatprep.subr.mxu0 0.0
    %3594 = vmatpush1.msra.mxu0 0.0
    %3595 = vmatprep.subr.mxu0 0.0
    %3596 = vmatpush1.msra.mxu0 0.0
    %3597 = vmatprep.subr.mxu0 0.0
    %3598 = vmatpush1.msra.mxu0 0.0
    %3599 = vmatprep.subr.mxu0 0.0
    %3600 = vmatpush1.msra.mxu0 0.0
    %3601 = vmatprep.subr.mxu0 0.0
    %3602 = vmatpush1.msra.mxu0 0.0
    %3603 = vmatprep.subr.mxu0 0.0
    %3604 = vmatpush1.msra.mxu0 0.0
    %3605 = vmatprep.subr.mxu0 0.0
    %3606 = vmatpush1.msra.mxu0 0.0
    %3607 = vmatprep.subr.mxu0 0.0
    %3608 = vmatpush1.msra.mxu0 0.0
    %3609 = vmatprep.subr.mxu0 0.0
    %3610 = vmatpush1.msra.mxu0 0.0
    %3611 = vmatprep.subr.mxu0 0.0
    %3612 = vmatpush1.msra.mxu0 0.0
    %3613 = vmatprep.subr.mxu0 0.0
    %3614 = vmatpush1.msra.mxu0 0.0
    %3615 = vmatprep.subr.mxu0 0.0
    %3616 = vmatpush1.msra.mxu0 0.0
    %3617 = vmatprep.subr.mxu0 0.0
    %3618 = vmatpush1.msra.mxu0 0.0
    %3619 = vmatprep.subr.mxu0 0.0
    %3620 = vmatpush1.msra.mxu0 0.0
    %3621 = vmatprep.subr.mxu0 0.0
    %3622 = vmatpush1.msra.mxu0 0.0
    %3623 = vmatprep.subr.mxu0 0.0
    %3624 = vmatpush1.msra.mxu0 0.0
    %3625 = vmatprep.subr.mxu0 0.0
    %3626 = vmatpush1.msra.mxu0 0.0
    %3627 = vmatprep.subr.mxu0 0.0
    %3628 = vmatpush1.msra.mxu0 0.0
    %3629 = vmatprep.subr.mxu0 0.0
    %3630 = vmatpush1.msra.mxu0 0.0
    %3631 = vmatprep.subr.mxu0 0.0
    %3632 = vmatpush1.msra.mxu0 0.0
    %3633 = vmatprep.subr.mxu0 0.0
    %3634 = vmatpush1.msra.mxu0 0.0
    %3635 = vmatprep.subr.mxu0 0.0
    %3636 = vmatpush1.msra.mxu0 0.0
    %3637 = vmatprep.subr.mxu0 0.0
    %3638 = vmatpush1.msra.mxu0 0.0
    %3639 = vmatprep.subr.mxu0 0.0
    %3640 = vmatpush1.msra.mxu0 0.0
    %3641 = vmatprep.mubr.f32.mxu0 0.0
    %3642 = vmatmul.mubr.f32.gmra.mrb[0].mxu0 %v3551
    %v3643 = vpop.f32.mrb[0].mxu0
    %v3644 = vadd.f32 0.0, %v3643
    %v3645 = vpop.f32.mrb[0].mxu0
    %3646 = vmatprep.mubr.f32.mxu0 0.0
    %3647 = vmatmul.mubr.f32.gmra.mrb[0].mxu0 %v3554
    %v3648 = vpop.f32.mrb[0].mxu0
    %v3649 = vadd.f32 0.0, %v3648
    %v3650 = vpop.f32.mrb[0].mxu0
    %3651 = vmatprep.mubr.f32.mxu0 0.0
    %3652 = vmatmul.mubr.f32.gmra.mrb[0].mxu0 %v3557
    %v3653 = vpop.f32.mrb[0].mxu0
    %v3654 = vadd.f32 0.0, %v3653
    %v3655 = vpop.f32.mrb[0].mxu0
    %3656 = vmatprep.mubr.f32.mxu0 0.0
    %3657 = vmatmul.mubr.f32.gmra.mrb[0].mxu0 %v3560
    %v3658 = vpop.f32.mrb[0].mxu0
    %v3659 = vadd.f32 0.0, %v3658
    %v3660 = vpop.f32.mrb[0].mxu0
    %3661 = vmatprep.mubr.f32.mxu0 0.0
    %3662 = vmatmul.mubr.f32.gmra.mrb[0].mxu0 %v3563
    %v3663 = vpop.f32.mrb[0].mxu0
    %v3664 = vadd.f32 0.0, %v3663
    %v3665 = vpop.f32.mrb[0].mxu0
    %3666 = vmatprep.mubr.f32.mxu0 0.0
    %3667 = vmatmul.mubr.f32.gmra.mrb[0].mxu0 %v3566
    %v3668 = vpop.f32.mrb[0].mxu0
    %v3669 = vadd.f32 0.0, %v3668
    %v3670 = vpop.f32.mrb[0].mxu0
    %3671 = vmatprep.mubr.f32.mxu0 0.0
    %3672 = vmatmul.mubr.f32.gmra.mrb[0].mxu0 %v3569
    %v3673 = vpop.f32.mrb[0].mxu0
    %v3674 = vadd.f32 0.0, %v3673
    %v3675 = vpop.f32.mrb[0].mxu0
    %3676 = vmatprep.mubr.f32.mxu0 0.0
    %3677 = vmatmul.mubr.f32.gmra.mrb[0].mxu0 %v3572
    %v3678 = vpop.f32.mrb[0].mxu0
    %v3679 = vadd.f32 0.0, %v3678
    %v3680 = vpop.f32.mrb[0].mxu0
    %3681 = vdwg.mxu0
    %v3682 = vadd.f32 %v3493, %v3644
    %v3683 = vadd.f32 %v3498, %v3649
    %v3684 = vadd.f32 %v3503, %v3654
    %v3685 = vadd.f32 %v3508, %v3659
    %v3686 = vadd.f32 %v3513, %v3664
    %v3687 = vadd.f32 %v3518, %v3669
    %v3688 = vadd.f32 %v3523, %v3674
    %v3689 = vadd.f32 %v3528, %v3679
    %v3690 = vld [vmem:[#allocation10] sm:$0x1]
    %v3692 = vlaneseq
    %v3693 = vshrl.u32 %v3692, 7
    %v3694 = vsub.s32 0, %v3693
    %v3695 = vrot.slane %v3690, %v3694
    %v3697 = vadd.f32 %v3682, %v3695
    %v3698 = vadd.f32 %v3683, %v3695
    %v3699 = vadd.f32 %v3684, %v3695
    %v3700 = vadd.f32 %v3685, %v3695
    %v3701 = vadd.f32 %v3686, %v3695
    %v3702 = vadd.f32 %v3687, %v3695
    %v3703 = vadd.f32 %v3688, %v3695
    %v3704 = vadd.f32 %v3689, %v3695
    %v3705 = vmul.f32 %v3697, 0.5
    %v3706 = vmul.f32 %v3698, 0.5
    %v3707 = vmul.f32 %v3699, 0.5
    %v3708 = vmul.f32 %v3700, 0.5
    %v3709 = vmul.f32 %v3701, 0.5
    %v3710 = vmul.f32 %v3702, 0.5
    %v3711 = vmul.f32 %v3703, 0.5
    %v3712 = vmul.f32 %v3704, 0.5
    %v3713 = vmul.f32 %v3697, 0.044715
    %v3714 = vmul.f32 %v3698, 0.044715
    %v3715 = vmul.f32 %v3699, 0.044715
    %v3716 = vmul.f32 %v3700, 0.044715
    %v3717 = vmul.f32 %v3701, 0.044715
    %v3718 = vmul.f32 %v3702, 0.044715
    %v3719 = vmul.f32 %v3703, 0.044715
    %v3720 = vmul.f32 %v3704, 0.044715
    %v3721 = vmul.f32 %v3713, %v3697
    %v3722 = vmul.f32 %v3714, %v3698
    %v3723 = vmul.f32 %v3715, %v3699
    %v3724 = vmul.f32 %v3716, %v3700
    %v3725 = vmul.f32 %v3717, %v3701
    %v3726 = vmul.f32 %v3718, %v3702
    %v3727 = vmul.f32 %v3719, %v3703
    %v3728 = vmul.f32 %v3720, %v3704
    %v3729 = vmul.f32 %v3721, %v3697
    %v3730 = vmul.f32 %v3722, %v3698
    %v3731 = vmul.f32 %v3723, %v3699
    %v3732 = vmul.f32 %v3724, %v3700
    %v3733 = vmul.f32 %v3725, %v3701
    %v3734 = vmul.f32 %v3726, %v3702
    %v3735 = vmul.f32 %v3727, %v3703
    %v3736 = vmul.f32 %v3728, %v3704
    %v3737 = vadd.f32 %v3697, %v3729
    %v3738 = vadd.f32 %v3698, %v3730
    %v3739 = vadd.f32 %v3699, %v3731
    %v3740 = vadd.f32 %v3700, %v3732
    %v3741 = vadd.f32 %v3701, %v3733
    %v3742 = vadd.f32 %v3702, %v3734
    %v3743 = vadd.f32 %v3703, %v3735
    %v3744 = vadd.f32 %v3704, %v3736
    %v3745 = vmul.f32 %v3737, 0.7978846
    %v3746 = vmul.f32 %v3738, 0.7978846
    %v3747 = vmul.f32 %v3739, 0.7978846
    %v3748 = vmul.f32 %v3740, 0.7978846
    %v3749 = vmul.f32 %v3741, 0.7978846
    %v3750 = vmul.f32 %v3742, 0.7978846
    %v3751 = vmul.f32 %v3743, 0.7978846
    %v3752 = vmul.f32 %v3744, 0.7978846
    %v3753 = vtanh.pop %v3745
    %v3754 = vtanh.pop %v3746
    %v3755 = vtanh.pop %v3747
    %v3756 = vtanh.pop %v3748
    %v3757 = vtanh.pop %v3749
    %v3758 = vtanh.pop %v3750
    %v3759 = vtanh.pop %v3751
    %v3760 = vtanh.pop %v3752
    %v3761 = vadd.f32 %v3753, 1.0
    %v3762 = vadd.f32 %v3754, 1.0
    %v3763 = vadd.f32 %v3755, 1.0
    %v3764 = vadd.f32 %v3756, 1.0
    %v3765 = vadd.f32 %v3757, 1.0
    %v3766 = vadd.f32 %v3758, 1.0
    %v3767 = vadd.f32 %v3759, 1.0
    %v3768 = vadd.f32 %v3760, 1.0
    %v3769 = vmul.f32 %v3705, %v3761
    %v3770 = vmul.f32 %v3706, %v3762
    %v3771 = vmul.f32 %v3707, %v3763
    %v3772 = vmul.f32 %v3708, %v3764
    %v3773 = vmul.f32 %v3709, %v3765
    %v3774 = vmul.f32 %v3710, %v3766
    %v3775 = vmul.f32 %v3711, %v3767
    %v3776 = vmul.f32 %v3712, %v3768
    %v3777 = vld [vmem:[#allocation11] sm:$0xff]
    %v3778 = vld [vmem:[#allocation11 + $0x8] sm:$0xff]
    %v3779 = vrot.slane %v3769, 1
    %v3780 = vrot.slane %v3770, 1
    %v3781 = vrot.slane %v3771, 1
    %v3782 = vrot.slane %v3772, 1
    %v3783 = vrot.slane %v3773, 1
    %v3784 = vrot.slane %v3774, 1
    %v3785 = vrot.slane %v3775, 1
    %v3786 = vrot.slane %v3776, 1
    %v3787 = vsel %vm3254, %v3785, %v3786
    %v3788 = vsel %vm3254, %v3784, %v3785
    %v3789 = vsel %vm3254, %v3783, %v3784
    %v3790 = vsel %vm3254, %v3782, %v3783
    %v3791 = vsel %vm3254, %v3781, %v3782
    %v3792 = vsel %vm3254, %v3780, %v3781
    %v3793 = vsel %vm3254, %v3779, %v3780
    %v3794 = vsel %vm3254, %v3786, %v3779
    %s3795 = scalar_lea.vmem [#allocation11], 16
    %v3796 = vld [vmem:[%s3795] sm:$0xff]
    %v3797 = vld [vmem:[%s3795 + $0x8] sm:$0xff]
    %vm3798 = vcmask 130048
    %v3800 = vsel %vm3798, %v3793, 0
    %v3803 = vsel %vm3798, %v3792, 0
    %v3806 = vsel %vm3798, %v3791, 0
    %v3809 = vsel %vm3798, %v3790, 0
    %v3812 = vsel %vm3798, %v3789, 0
    %v3815 = vsel %vm3798, %v3788, 0
    %v3818 = vsel %vm3798, %v3787, 0
    %v3821 = vsel %vm3798, %v3794, 0
    %3823 = vmatprep.subr.mxu0 0.0
    %3824 = vmatpush1.msra.mxu0 %v3796
    %3825 = vmatprep.subr.mxu0 0.0
    %3826 = vmatpush1.msra.mxu0 %v3797
    %3827 = vmatprep.subr.mxu0 0.0
    %3828 = vmatpush1.msra.mxu0 0.0
    %3829 = vmatprep.subr.mxu0 0.0
    %3830 = vmatpush1.msra.mxu0 0.0
    %3831 = vmatprep.subr.mxu0 0.0
    %3832 = vmatpush1.msra.mxu0 0.0
    %3833 = vmatprep.subr.mxu0 0.0
    %3834 = vmatpush1.msra.mxu0 0.0
    %3835 = vmatprep.subr.mxu0 0.0
    %3836 = vmatpush1.msra.mxu0 0.0
    %3837 = vmatprep.subr.mxu0 0.0
    %3838 = vmatpush1.msra.mxu0 0.0
    %3839 = vmatprep.subr.mxu0 0.0
    %3840 = vmatpush1.msra.mxu0 0.0
    %3841 = vmatprep.subr.mxu0 0.0
    %3842 = vmatpush1.msra.mxu0 0.0
    %3843 = vmatprep.subr.mxu0 0.0
    %3844 = vmatpush1.msra.mxu0 0.0
    %3845 = vmatprep.subr.mxu0 0.0
    %3846 = vmatpush1.msra.mxu0 0.0
    %3847 = vmatprep.subr.mxu0 0.0
    %3848 = vmatpush1.msra.mxu0 0.0
    %3849 = vmatprep.subr.mxu0 0.0
    %3850 = vmatpush1.msra.mxu0 0.0
    %3851 = vmatprep.subr.mxu0 0.0
    %3852 = vmatpush1.msra.mxu0 0.0
    %3853 = vmatprep.subr.mxu0 0.0
    %3854 = vmatpush1.msra.mxu0 0.0
    %3855 = vmatprep.subr.mxu0 0.0
    %3856 = vmatpush1.msra.mxu0 0.0
    %3857 = vmatprep.subr.mxu0 0.0
    %3858 = vmatpush1.msra.mxu0 0.0
    %3859 = vmatprep.subr.mxu0 0.0
    %3860 = vmatpush1.msra.mxu0 0.0
    %3861 = vmatprep.subr.mxu0 0.0
    %3862 = vmatpush1.msra.mxu0 0.0
    %3863 = vmatprep.subr.mxu0 0.0
    %3864 = vmatpush1.msra.mxu0 0.0
    %3865 = vmatprep.subr.mxu0 0.0
    %3866 = vmatpush1.msra.mxu0 0.0
    %3867 = vmatprep.subr.mxu0 0.0
    %3868 = vmatpush1.msra.mxu0 0.0
    %3869 = vmatprep.subr.mxu0 0.0
    %3870 = vmatpush1.msra.mxu0 0.0
    %3871 = vmatprep.subr.mxu0 0.0
    %3872 = vmatpush1.msra.mxu0 0.0
    %3873 = vmatprep.subr.mxu0 0.0
    %3874 = vmatpush1.msra.mxu0 0.0
    %3875 = vmatprep.subr.mxu0 0.0
    %3876 = vmatpush1.msra.mxu0 0.0
    %3877 = vmatprep.subr.mxu0 0.0
    %3878 = vmatpush1.msra.mxu0 0.0
    %3879 = vmatprep.subr.mxu0 0.0
    %3880 = vmatpush1.msra.mxu0 0.0
    %3881 = vmatprep.subr.mxu0 0.0
    %3882 = vmatpush1.msra.mxu0 0.0
    %3883 = vmatprep.subr.mxu0 0.0
    %3884 = vmatpush1.msra.mxu0 0.0
    %3885 = vmatprep.subr.mxu0 0.0
    %3886 = vmatpush1.msra.mxu0 0.0
    %3887 = vmatprep.mubr.f32.mxu0 0.0
    %3888 = vmatmul.mubr.f32.gmra.mrb[0].mxu0 %v3800
    %v3889 = vpop.f32.mrb[0].mxu0
    %v3890 = vadd.f32 0.0, %v3889
    %v3891 = vpop.f32.mrb[0].mxu0
    %3892 = vmatprep.mubr.f32.mxu0 0.0
    %3893 = vmatmul.mubr.f32.gmra.mrb[0].mxu0 %v3803
    %v3894 = vpop.f32.mrb[0].mxu0
    %v3895 = vadd.f32 0.0, %v3894
    %v3896 = vpop.f32.mrb[0].mxu0
    %3897 = vmatprep.mubr.f32.mxu0 0.0
    %3898 = vmatmul.mubr.f32.gmra.mrb[0].mxu0 %v3806
    %v3899 = vpop.f32.mrb[0].mxu0
    %v3900 = vadd.f32 0.0, %v3899
    %v3901 = vpop.f32.mrb[0].mxu0
    %3902 = vmatprep.mubr.f32.mxu0 0.0
    %3903 = vmatmul.mubr.f32.gmra.mrb[0].mxu0 %v3809
    %v3904 = vpop.f32.mrb[0].mxu0
    %v3905 = vadd.f32 0.0, %v3904
    %v3906 = vpop.f32.mrb[0].mxu0
    %3907 = vmatprep.mubr.f32.mxu0 0.0
    %3908 = vmatmul.mubr.f32.gmra.mrb[0].mxu0 %v3812
    %v3909 = vpop.f32.mrb[0].mxu0
    %v3910 = vadd.f32 0.0, %v3909
    %v3911 = vpop.f32.mrb[0].mxu0
    %3912 = vmatprep.mubr.f32.mxu0 0.0
    %3913 = vmatmul.mubr.f32.gmra.mrb[0].mxu0 %v3815
    %v3914 = vpop.f32.mrb[0].mxu0
    %v3915 = vadd.f32 0.0, %v3914
    %v3916 = vpop.f32.mrb[0].mxu0
    %3917 = vmatprep.mubr.f32.mxu0 0.0
    %3918 = vmatmul.mubr.f32.gmra.mrb[0].mxu0 %v3818
    %v3919 = vpop.f32.mrb[0].mxu0
    %v3920 = vadd.f32 0.0, %v3919
    %v3921 = vpop.f32.mrb[0].mxu0
    %3922 = vmatprep.mubr.f32.mxu0 0.0
    %3923 = vmatmul.mubr.f32.gmra.mrb[0].mxu0 %v3821
    %v3924 = vpop.f32.mrb[0].mxu0
    %v3925 = vadd.f32 0.0, %v3924
    %v3926 = vpop.f32.mrb[0].mxu0
    %3927 = vdwg.mxu0
    %v3929 = vsel %vm3798, %v3769, 0
    %v3932 = vsel %vm3798, %v3770, 0
    %v3935 = vsel %vm3798, %v3771, 0
    %v3938 = vsel %vm3798, %v3772, 0
    %v3941 = vsel %vm3798, %v3773, 0
    %v3944 = vsel %vm3798, %v3774, 0
    %v3947 = vsel %vm3798, %v3775, 0
    %v3950 = vsel %vm3798, %v3776, 0
    %3952 = vmatprep.subr.mxu0 0.0
    %3953 = vmatpush1.msra.mxu0 %v3777
    %3954 = vmatprep.subr.mxu0 0.0
    %3955 = vmatpush1.msra.mxu0 %v3778
    %3956 = vmatprep.subr.mxu0 0.0
    %3957 = vmatpush1.msra.mxu0 0.0
    %3958 = vmatprep.subr.mxu0 0.0
    %3959 = vmatpush1.msra.mxu0 0.0
    %3960 = vmatprep.subr.mxu0 0.0
    %3961 = vmatpush1.msra.mxu0 0.0
    %3962 = vmatprep.subr.mxu0 0.0
    %3963 = vmatpush1.msra.mxu0 0.0
    %3964 = vmatprep.subr.mxu0 0.0
    %3965 = vmatpush1.msra.mxu0 0.0
    %3966 = vmatprep.subr.mxu0 0.0
    %3967 = vmatpush1.msra.mxu0 0.0
    %3968 = vmatprep.subr.mxu0 0.0
    %3969 = vmatpush1.msra.mxu0 0.0
    %3970 = vmatprep.subr.mxu0 0.0
    %3971 = vmatpush1.msra.mxu0 0.0
    %3972 = vmatprep.subr.mxu0 0.0
    %3973 = vmatpush1.msra.mxu0 0.0
    %3974 = vmatprep.subr.mxu0 0.0
    %3975 = vmatpush1.msra.mxu0 0.0
    %3976 = vmatprep.subr.mxu0 0.0
    %3977 = vmatpush1.msra.mxu0 0.0
    %3978 = vmatprep.subr.mxu0 0.0
    %3979 = vmatpush1.msra.mxu0 0.0
    %3980 = vmatprep.subr.mxu0 0.0
    %3981 = vmatpush1.msra.mxu0 0.0
    %3982 = vmatprep.subr.mxu0 0.0
    %3983 = vmatpush1.msra.mxu0 0.0
    %3984 = vmatprep.subr.mxu0 0.0
    %3985 = vmatpush1.msra.mxu0 0.0
    %3986 = vmatprep.subr.mxu0 0.0
    %3987 = vmatpush1.msra.mxu0 0.0
    %3988 = vmatprep.subr.mxu0 0.0
    %3989 = vmatpush1.msra.mxu0 0.0
    %3990 = vmatprep.subr.mxu0 0.0
    %3991 = vmatpush1.msra.mxu0 0.0
    %3992 = vmatprep.subr.mxu0 0.0
    %3993 = vmatpush1.msra.mxu0 0.0
    %3994 = vmatprep.subr.mxu0 0.0
    %3995 = vmatpush1.msra.mxu0 0.0
    %3996 = vmatprep.subr.mxu0 0.0
    %3997 = vmatpush1.msra.mxu0 0.0
    %3998 = vmatprep.subr.mxu0 0.0
    %3999 = vmatpush1.msra.mxu0 0.0
    %4000 = vmatprep.subr.mxu0 0.0
    %4001 = vmatpush1.msra.mxu0 0.0
    %4002 = vmatprep.subr.mxu0 0.0
    %4003 = vmatpush1.msra.mxu0 0.0
    %4004 = vmatprep.subr.mxu0 0.0
    %4005 = vmatpush1.msra.mxu0 0.0
    %4006 = vmatprep.subr.mxu0 0.0
    %4007 = vmatpush1.msra.mxu0 0.0
    %4008 = vmatprep.subr.mxu0 0.0
    %4009 = vmatpush1.msra.mxu0 0.0
    %4010 = vmatprep.subr.mxu0 0.0
    %4011 = vmatpush1.msra.mxu0 0.0
    %4012 = vmatprep.subr.mxu0 0.0
    %4013 = vmatpush1.msra.mxu0 0.0
    %4014 = vmatprep.subr.mxu0 0.0
    %4015 = vmatpush1.msra.mxu0 0.0
    %4016 = vmatprep.mubr.f32.mxu0 0.0
    %4017 = vmatmul.mubr.f32.gmra.mrb[0].mxu0 %v3929
    %v4018 = vpop.f32.mrb[0].mxu0
    %v4019 = vadd.f32 %v3890, %v4018
    %v4020 = vpop.f32.mrb[0].mxu0
    %4021 = vmatprep.mubr.f32.mxu0 0.0
    %4022 = vmatmul.mubr.f32.gmra.mrb[0].mxu0 %v3932
    %v4023 = vpop.f32.mrb[0].mxu0
    %v4024 = vadd.f32 %v3895, %v4023
    %v4025 = vpop.f32.mrb[0].mxu0
    %4026 = vmatprep.mubr.f32.mxu0 0.0
    %4027 = vmatmul.mubr.f32.gmra.mrb[0].mxu0 %v3935
    %v4028 = vpop.f32.mrb[0].mxu0
    %v4029 = vadd.f32 %v3900, %v4028
    %v4030 = vpop.f32.mrb[0].mxu0
    %4031 = vmatprep.mubr.f32.mxu0 0.0
    %4032 = vmatmul.mubr.f32.gmra.mrb[0].mxu0 %v3938
    %v4033 = vpop.f32.mrb[0].mxu0
    %v4034 = vadd.f32 %v3905, %v4033
    %v4035 = vpop.f32.mrb[0].mxu0
    %4036 = vmatprep.mubr.f32.mxu0 0.0
    %4037 = vmatmul.mubr.f32.gmra.mrb[0].mxu0 %v3941
    %v4038 = vpop.f32.mrb[0].mxu0
    %v4039 = vadd.f32 %v3910, %v4038
    %v4040 = vpop.f32.mrb[0].mxu0
    %4041 = vmatprep.mubr.f32.mxu0 0.0
    %4042 = vmatmul.mubr.f32.gmra.mrb[0].mxu0 %v3944
    %v4043 = vpop.f32.mrb[0].mxu0
    %v4044 = vadd.f32 %v3915, %v4043
    %v4045 = vpop.f32.mrb[0].mxu0
    %4046 = vmatprep.mubr.f32.mxu0 0.0
    %4047 = vmatmul.mubr.f32.gmra.mrb[0].mxu0 %v3947
    %v4048 = vpop.f32.mrb[0].mxu0
    %v4049 = vadd.f32 %v3920, %v4048
    %v4050 = vpop.f32.mrb[0].mxu0
    %4051 = vmatprep.mubr.f32.mxu0 0.0
    %4052 = vmatmul.mubr.f32.gmra.mrb[0].mxu0 %v3950
    %v4053 = vpop.f32.mrb[0].mxu0
    %v4054 = vadd.f32 %v3925, %v4053
    %v4055 = vpop.f32.mrb[0].mxu0
    %4056 = vdwg.mxu0
    %v4057 = vrot.slane %v3769, 2
    %v4058 = vrot.slane %v3770, 2
    %v4059 = vrot.slane %v3771, 2
    %v4060 = vrot.slane %v3772, 2
    %v4061 = vrot.slane %v3773, 2
    %v4062 = vrot.slane %v3774, 2
    %v4063 = vrot.slane %v3775, 2
    %v4064 = vrot.slane %v3776, 2
    %v4065 = vsel %vm3539, %v4063, %v4064
    %v4066 = vsel %vm3539, %v4062, %v4063
    %v4067 = vsel %vm3539, %v4061, %v4062
    %v4068 = vsel %vm3539, %v4060, %v4061
    %v4069 = vsel %vm3539, %v4059, %v4060
    %v4070 = vsel %vm3539, %v4058, %v4059
    %v4071 = vsel %vm3539, %v4057, %v4058
    %v4072 = vsel %vm3539, %v4064, %v4057
    %s4073 = scalar_lea.vmem [#allocation11], 32
    %v4074 = vld [vmem:[%s4073] sm:$0xff]
    %v4075 = vld [vmem:[%s4073 + $0x8] sm:$0xff]
    %v4077 = vsel %vm3798, %v4071, 0
    %v4080 = vsel %vm3798, %v4070, 0
    %v4083 = vsel %vm3798, %v4069, 0
    %v4086 = vsel %vm3798, %v4068, 0
    %v4089 = vsel %vm3798, %v4067, 0
    %v4092 = vsel %vm3798, %v4066, 0
    %v4095 = vsel %vm3798, %v4065, 0
    %v4098 = vsel %vm3798, %v4072, 0
    %4100 = vmatprep.subr.mxu0 0.0
    %4101 = vmatpush1.msra.mxu0 %v4074
    %4102 = vmatprep.subr.mxu0 0.0
    %4103 = vmatpush1.msra.mxu0 %v4075
    %4104 = vmatprep.subr.mxu0 0.0
    %4105 = vmatpush1.msra.mxu0 0.0
    %4106 = vmatprep.subr.mxu0 0.0
    %4107 = vmatpush1.msra.mxu0 0.0
    %4108 = vmatprep.subr.mxu0 0.0
    %4109 = vmatpush1.msra.mxu0 0.0
    %4110 = vmatprep.subr.mxu0 0.0
    %4111 = vmatpush1.msra.mxu0 0.0
    %4112 = vmatprep.subr.mxu0 0.0
    %4113 = vmatpush1.msra.mxu0 0.0
    %4114 = vmatprep.subr.mxu0 0.0
    %4115 = vmatpush1.msra.mxu0 0.0
    %4116 = vmatprep.subr.mxu0 0.0
    %4117 = vmatpush1.msra.mxu0 0.0
    %4118 = vmatprep.subr.mxu0 0.0
    %4119 = vmatpush1.msra.mxu0 0.0
    %4120 = vmatprep.subr.mxu0 0.0
    %4121 = vmatpush1.msra.mxu0 0.0
    %4122 = vmatprep.subr.mxu0 0.0
    %4123 = vmatpush1.msra.mxu0 0.0
    %4124 = vmatprep.subr.mxu0 0.0
    %4125 = vmatpush1.msra.mxu0 0.0
    %4126 = vmatprep.subr.mxu0 0.0
    %4127 = vmatpush1.msra.mxu0 0.0
    %4128 = vmatprep.subr.mxu0 0.0
    %4129 = vmatpush1.msra.mxu0 0.0
    %4130 = vmatprep.subr.mxu0 0.0
    %4131 = vmatpush1.msra.mxu0 0.0
    %4132 = vmatprep.subr.mxu0 0.0
    %4133 = vmatpush1.msra.mxu0 0.0
    %4134 = vmatprep.subr.mxu0 0.0
    %4135 = vmatpush1.msra.mxu0 0.0
    %4136 = vmatprep.subr.mxu0 0.0
    %4137 = vmatpush1.msra.mxu0 0.0
    %4138 = vmatprep.subr.mxu0 0.0
    %4139 = vmatpush1.msra.mxu0 0.0
    %4140 = vmatprep.subr.mxu0 0.0
    %4141 = vmatpush1.msra.mxu0 0.0
    %4142 = vmatprep.subr.mxu0 0.0
    %4143 = vmatpush1.msra.mxu0 0.0
    %4144 = vmatprep.subr.mxu0 0.0
    %4145 = vmatpush1.msra.mxu0 0.0
    %4146 = vmatprep.subr.mxu0 0.0
    %4147 = vmatpush1.msra.mxu0 0.0
    %4148 = vmatprep.subr.mxu0 0.0
    %4149 = vmatpush1.msra.mxu0 0.0
    %4150 = vmatprep.subr.mxu0 0.0
    %4151 = vmatpush1.msra.mxu0 0.0
    %4152 = vmatprep.subr.mxu0 0.0
    %4153 = vmatpush1.msra.mxu0 0.0
    %4154 = vmatprep.subr.mxu0 0.0
    %4155 = vmatpush1.msra.mxu0 0.0
    %4156 = vmatprep.subr.mxu0 0.0
    %4157 = vmatpush1.msra.mxu0 0.0
    %4158 = vmatprep.subr.mxu0 0.0
    %4159 = vmatpush1.msra.mxu0 0.0
    %4160 = vmatprep.subr.mxu0 0.0
    %4161 = vmatpush1.msra.mxu0 0.0
    %4162 = vmatprep.subr.mxu0 0.0
    %4163 = vmatpush1.msra.mxu0 0.0
    %4164 = vmatprep.mubr.f32.mxu0 0.0
    %4165 = vmatmul.mubr.f32.gmra.mrb[0].mxu0 %v4077
    %v4166 = vpop.f32.mrb[0].mxu0
    %v4167 = vadd.f32 0.0, %v4166
    %v4168 = vpop.f32.mrb[0].mxu0
    %4169 = vmatprep.mubr.f32.mxu0 0.0
    %4170 = vmatmul.mubr.f32.gmra.mrb[0].mxu0 %v4080
    %v4171 = vpop.f32.mrb[0].mxu0
    %v4172 = vadd.f32 0.0, %v4171
    %v4173 = vpop.f32.mrb[0].mxu0
    %4174 = vmatprep.mubr.f32.mxu0 0.0
    %4175 = vmatmul.mubr.f32.gmra.mrb[0].mxu0 %v4083
    %v4176 = vpop.f32.mrb[0].mxu0
    %v4177 = vadd.f32 0.0, %v4176
    %v4178 = vpop.f32.mrb[0].mxu0
    %4179 = vmatprep.mubr.f32.mxu0 0.0
    %4180 = vmatmul.mubr.f32.gmra.mrb[0].mxu0 %v4086
    %v4181 = vpop.f32.mrb[0].mxu0
    %v4182 = vadd.f32 0.0, %v4181
    %v4183 = vpop.f32.mrb[0].mxu0
    %4184 = vmatprep.mubr.f32.mxu0 0.0
    %4185 = vmatmul.mubr.f32.gmra.mrb[0].mxu0 %v4089
    %v4186 = vpop.f32.mrb[0].mxu0
    %v4187 = vadd.f32 0.0, %v4186
    %v4188 = vpop.f32.mrb[0].mxu0
    %4189 = vmatprep.mubr.f32.mxu0 0.0
    %4190 = vmatmul.mubr.f32.gmra.mrb[0].mxu0 %v4092
    %v4191 = vpop.f32.mrb[0].mxu0
    %v4192 = vadd.f32 0.0, %v4191
    %v4193 = vpop.f32.mrb[0].mxu0
    %4194 = vmatprep.mubr.f32.mxu0 0.0
    %4195 = vmatmul.mubr.f32.gmra.mrb[0].mxu0 %v4095
    %v4196 = vpop.f32.mrb[0].mxu0
    %v4197 = vadd.f32 0.0, %v4196
    %v4198 = vpop.f32.mrb[0].mxu0
    %4199 = vmatprep.mubr.f32.mxu0 0.0
    %4200 = vmatmul.mubr.f32.gmra.mrb[0].mxu0 %v4098
    %v4201 = vpop.f32.mrb[0].mxu0
    %v4202 = vadd.f32 0.0, %v4201
    %v4203 = vpop.f32.mrb[0].mxu0
    %4204 = vdwg.mxu0
    %v4205 = vadd.f32 %v4019, %v4167
    %v4206 = vadd.f32 %v4024, %v4172
    %v4207 = vadd.f32 %v4029, %v4177
    %v4208 = vadd.f32 %v4034, %v4182
    %v4209 = vadd.f32 %v4039, %v4187
    %v4210 = vadd.f32 %v4044, %v4192
    %v4211 = vadd.f32 %v4049, %v4197
    %v4212 = vadd.f32 %v4054, %v4202
    %v4213 = vld [vmem:[#allocation13] sm:$0x1]
    %v4215 = vlaneseq
    %v4216 = vshrl.u32 %v4215, 7
    %v4217 = vsub.s32 0, %v4216
    %v4218 = vrot.slane %v4213, %v4217
    %v4220 = vadd.f32 %v4205, %v4218
    %v4221 = vadd.f32 %v4206, %v4218
    %v4222 = vadd.f32 %v4207, %v4218
    %v4223 = vadd.f32 %v4208, %v4218
    %v4224 = vadd.f32 %v4209, %v4218
    %v4225 = vadd.f32 %v4210, %v4218
    %v4226 = vadd.f32 %v4211, %v4218
    %v4227 = vadd.f32 %v4212, %v4218
    %v4228 = vmul.f32 %v4220, 0.5
    %v4229 = vmul.f32 %v4221, 0.5
    %v4230 = vmul.f32 %v4222, 0.5
    %v4231 = vmul.f32 %v4223, 0.5
    %v4232 = vmul.f32 %v4224, 0.5
    %v4233 = vmul.f32 %v4225, 0.5
    %v4234 = vmul.f32 %v4226, 0.5
    %v4235 = vmul.f32 %v4227, 0.5
    %v4236 = vmul.f32 %v4220, 0.044715
    %v4237 = vmul.f32 %v4221, 0.044715
    %v4238 = vmul.f32 %v4222, 0.044715
    %v4239 = vmul.f32 %v4223, 0.044715
    %v4240 = vmul.f32 %v4224, 0.044715
    %v4241 = vmul.f32 %v4225, 0.044715
    %v4242 = vmul.f32 %v4226, 0.044715
    %v4243 = vmul.f32 %v4227, 0.044715
    %v4244 = vmul.f32 %v4236, %v4220
    %v4245 = vmul.f32 %v4237, %v4221
    %v4246 = vmul.f32 %v4238, %v4222
    %v4247 = vmul.f32 %v4239, %v4223
    %v4248 = vmul.f32 %v4240, %v4224
    %v4249 = vmul.f32 %v4241, %v4225
    %v4250 = vmul.f32 %v4242, %v4226
    %v4251 = vmul.f32 %v4243, %v4227
    %v4252 = vmul.f32 %v4244, %v4220
    %v4253 = vmul.f32 %v4245, %v4221
    %v4254 = vmul.f32 %v4246, %v4222
    %v4255 = vmul.f32 %v4247, %v4223
    %v4256 = vmul.f32 %v4248, %v4224
    %v4257 = vmul.f32 %v4249, %v4225
    %v4258 = vmul.f32 %v4250, %v4226
    %v4259 = vmul.f32 %v4251, %v4227
    %v4260 = vadd.f32 %v4220, %v4252
    %v4261 = vadd.f32 %v4221, %v4253
    %v4262 = vadd.f32 %v4222, %v4254
    %v4263 = vadd.f32 %v4223, %v4255
    %v4264 = vadd.f32 %v4224, %v4256
    %v4265 = vadd.f32 %v4225, %v4257
    %v4266 = vadd.f32 %v4226, %v4258
    %v4267 = vadd.f32 %v4227, %v4259
    %v4268 = vmul.f32 %v4260, 0.7978846
    %v4269 = vmul.f32 %v4261, 0.7978846
    %v4270 = vmul.f32 %v4262, 0.7978846
    %v4271 = vmul.f32 %v4263, 0.7978846
    %v4272 = vmul.f32 %v4264, 0.7978846
    %v4273 = vmul.f32 %v4265, 0.7978846
    %v4274 = vmul.f32 %v4266, 0.7978846
    %v4275 = vmul.f32 %v4267, 0.7978846
    %v4276 = vtanh.pop %v4268
    %v4277 = vtanh.pop %v4269
    %v4278 = vtanh.pop %v4270
    %v4279 = vtanh.pop %v4271
    %v4280 = vtanh.pop %v4272
    %v4281 = vtanh.pop %v4273
    %v4282 = vtanh.pop %v4274
    %v4283 = vtanh.pop %v4275
    %v4284 = vadd.f32 %v4276, 1.0
    %v4285 = vadd.f32 %v4277, 1.0
    %v4286 = vadd.f32 %v4278, 1.0
    %v4287 = vadd.f32 %v4279, 1.0
    %v4288 = vadd.f32 %v4280, 1.0
    %v4289 = vadd.f32 %v4281, 1.0
    %v4290 = vadd.f32 %v4282, 1.0
    %v4291 = vadd.f32 %v4283, 1.0
    %v4292 = vmul.f32 %v4228, %v4284
    %v4293 = vmul.f32 %v4229, %v4285
    %v4294 = vmul.f32 %v4230, %v4286
    %v4295 = vmul.f32 %v4231, %v4287
    %v4296 = vmul.f32 %v4232, %v4288
    %v4297 = vmul.f32 %v4233, %v4289
    %v4298 = vmul.f32 %v4234, %v4290
    %v4299 = vmul.f32 %v4235, %v4291
    %v4300 = vrot.slane %v4292, 1
    %v4301 = vrot.slane %v4293, 1
    %v4302 = vrot.slane %v4294, 1
    %v4303 = vrot.slane %v4295, 1
    %v4304 = vrot.slane %v4296, 1
    %v4305 = vrot.slane %v4297, 1
    %v4306 = vrot.slane %v4298, 1
    %v4307 = vrot.slane %v4299, 1
    %v4308 = vsel %vm3254, %v4306, %v4307
    %v4309 = vsel %vm3254, %v4305, %v4306
    %v4310 = vsel %vm3254, %v4304, %v4305
    %v4311 = vsel %vm3254, %v4303, %v4304
    %v4312 = vsel %vm3254, %v4302, %v4303
    %v4313 = vsel %vm3254, %v4301, %v4302
    %v4314 = vsel %vm3254, %v4300, %v4301
    %v4315 = vsel %vm3254, %v4307, %v4300
    %v4316 = vmax.f32 %v4292, %v4314
    %v4317 = vmax.f32 %v4293, %v4313
    %v4318 = vmax.f32 %v4294, %v4312
    %v4319 = vmax.f32 %v4295, %v4311
    %v4320 = vmax.f32 %v4296, %v4310
    %v4321 = vmax.f32 %v4297, %v4309
    %v4322 = vmax.f32 %v4298, %v4308
    %v4323 = vmax.f32 %v4299, %v4315
    %v4324 = vld [vmem:[#allocation14] sm:$0xff]
    %v4325 = vld [vmem:[#allocation14 + $0x8] sm:$0xff]
    %v4326 = vld [vmem:[#allocation14 + $0x10] sm:$0xff]
    %v4327 = vld [vmem:[#allocation14 + $0x18] sm:$0xff]
    %v4328 = vld [vmem:[#allocation14 + $0x20] sm:$0xff]
    %v4329 = vld [vmem:[#allocation14 + $0x28] sm:$0xff]
    %v4330 = vld [vmem:[#allocation14 + $0x30] sm:$0xff]
    %v4331 = vld [vmem:[#allocation14 + $0x38] sm:$0xff]
    %v4332 = vrot.slane %v4316, 2
    %v4333 = vrot.slane %v4317, 2
    %v4334 = vrot.slane %v4318, 2
    %v4335 = vrot.slane %v4319, 2
    %v4336 = vrot.slane %v4320, 2
    %v4337 = vrot.slane %v4321, 2
    %v4338 = vrot.slane %v4322, 2
    %v4339 = vrot.slane %v4323, 2
    %v4340 = vsel %vm3539, %v4338, %v4339
    %v4341 = vsel %vm3539, %v4337, %v4338
    %v4342 = vsel %vm3539, %v4336, %v4337
    %v4343 = vsel %vm3539, %v4335, %v4336
    %v4344 = vsel %vm3539, %v4334, %v4335
    %v4345 = vsel %vm3539, %v4333, %v4334
    %v4346 = vsel %vm3539, %v4332, %v4333
    %v4347 = vsel %vm3539, %v4339, %v4332
    %s4348 = scalar_lea.vmem [#allocation14], 64
    %v4349 = vld [vmem:[%s4348] sm:$0xff]
    %v4350 = vld [vmem:[%s4348 + $0x8] sm:$0xff]
    %v4351 = vld [vmem:[%s4348 + $0x10] sm:$0xff]
    %v4352 = vld [vmem:[%s4348 + $0x18] sm:$0xff]
    %v4353 = vld [vmem:[%s4348 + $0x20] sm:$0xff]
    %v4354 = vld [vmem:[%s4348 + $0x28] sm:$0xff]
    %v4355 = vld [vmem:[%s4348 + $0x30] sm:$0xff]
    %v4356 = vld [vmem:[%s4348 + $0x38] sm:$0xff]
    %vm4357 = vcmask 523264
    %v4359 = vsel %vm4357, %v4346, 0
    %v4362 = vsel %vm4357, %v4345, 0
    %v4365 = vsel %vm4357, %v4344, 0
    %v4368 = vsel %vm4357, %v4343, 0
    %v4371 = vsel %vm4357, %v4342, 0
    %v4374 = vsel %vm4357, %v4341, 0
    %v4377 = vsel %vm4357, %v4340, 0
    %v4380 = vsel %vm4357, %v4347, 0
    %4382 = vmatprep.subr.mxu0 0.0
    %4383 = vmatpush1.msra.mxu0 %v4349
    %4384 = vmatprep.subr.mxu0 0.0
    %4385 = vmatpush1.msra.mxu0 %v4350
    %4386 = vmatprep.subr.mxu0 0.0
    %4387 = vmatpush1.msra.mxu0 %v4351
    %4388 = vmatprep.subr.mxu0 0.0
    %4389 = vmatpush1.msra.mxu0 %v4352
    %4390 = vmatprep.subr.mxu0 0.0
    %4391 = vmatpush1.msra.mxu0 %v4353
    %4392 = vmatprep.subr.mxu0 0.0
    %4393 = vmatpush1.msra.mxu0 %v4354
    %4394 = vmatprep.subr.mxu0 0.0
    %4395 = vmatpush1.msra.mxu0 %v4355
    %4396 = vmatprep.subr.mxu0 0.0
    %4397 = vmatpush1.msra.mxu0 %v4356
    %4398 = vmatprep.subr.mxu0 0.0
    %4399 = vmatpush1.msra.mxu0 0.0
    %4400 = vmatprep.subr.mxu0 0.0
    %4401 = vmatpush1.msra.mxu0 0.0
    %4402 = vmatprep.subr.mxu0 0.0
    %4403 = vmatpush1.msra.mxu0 0.0
    %4404 = vmatprep.subr.mxu0 0.0
    %4405 = vmatpush1.msra.mxu0 0.0
    %4406 = vmatprep.subr.mxu0 0.0
    %4407 = vmatpush1.msra.mxu0 0.0
    %4408 = vmatprep.subr.mxu0 0.0
    %4409 = vmatpush1.msra.mxu0 0.0
    %4410 = vmatprep.subr.mxu0 0.0
    %4411 = vmatpush1.msra.mxu0 0.0
    %4412 = vmatprep.subr.mxu0 0.0
    %4413 = vmatpush1.msra.mxu0 0.0
    %4414 = vmatprep.subr.mxu0 0.0
    %4415 = vmatpush1.msra.mxu0 0.0
    %4416 = vmatprep.subr.mxu0 0.0
    %4417 = vmatpush1.msra.mxu0 0.0
    %4418 = vmatprep.subr.mxu0 0.0
    %4419 = vmatpush1.msra.mxu0 0.0
    %4420 = vmatprep.subr.mxu0 0.0
    %4421 = vmatpush1.msra.mxu0 0.0
    %4422 = vmatprep.subr.mxu0 0.0
    %4423 = vmatpush1.msra.mxu0 0.0
    %4424 = vmatprep.subr.mxu0 0.0
    %4425 = vmatpush1.msra.mxu0 0.0
    %4426 = vmatprep.subr.mxu0 0.0
    %4427 = vmatpush1.msra.mxu0 0.0
    %4428 = vmatprep.subr.mxu0 0.0
    %4429 = vmatpush1.msra.mxu0 0.0
    %4430 = vmatprep.subr.mxu0 0.0
    %4431 = vmatpush1.msra.mxu0 0.0
    %4432 = vmatprep.subr.mxu0 0.0
    %4433 = vmatpush1.msra.mxu0 0.0
    %4434 = vmatprep.subr.mxu0 0.0
    %4435 = vmatpush1.msra.mxu0 0.0
    %4436 = vmatprep.subr.mxu0 0.0
    %4437 = vmatpush1.msra.mxu0 0.0
    %4438 = vmatprep.subr.mxu0 0.0
    %4439 = vmatpush1.msra.mxu0 0.0
    %4440 = vmatprep.subr.mxu0 0.0
    %4441 = vmatpush1.msra.mxu0 0.0
    %4442 = vmatprep.subr.mxu0 0.0
    %4443 = vmatpush1.msra.mxu0 0.0
    %4444 = vmatprep.subr.mxu0 0.0
    %4445 = vmatpush1.msra.mxu0 0.0
    %4446 = vmatprep.mubr.f32.mxu0 0.0
    %4447 = vmatmul.mubr.f32.gmra.mrb[0].mxu0 %v4359
    %v4448 = vpop.f32.mrb[0].mxu0
    %v4449 = vadd.f32 0.0, %v4448
    %v4450 = vpop.f32.mrb[0].mxu0
    %4451 = vmatprep.mubr.f32.mxu0 0.0
    %4452 = vmatmul.mubr.f32.gmra.mrb[0].mxu0 %v4362
    %v4453 = vpop.f32.mrb[0].mxu0
    %v4454 = vadd.f32 0.0, %v4453
    %v4455 = vpop.f32.mrb[0].mxu0
    %4456 = vmatprep.mubr.f32.mxu0 0.0
    %4457 = vmatmul.mubr.f32.gmra.mrb[0].mxu0 %v4365
    %v4458 = vpop.f32.mrb[0].mxu0
    %v4459 = vadd.f32 0.0, %v4458
    %v4460 = vpop.f32.mrb[0].mxu0
    %4461 = vmatprep.mubr.f32.mxu0 0.0
    %4462 = vmatmul.mubr.f32.gmra.mrb[0].mxu0 %v4368
    %v4463 = vpop.f32.mrb[0].mxu0
    %v4464 = vadd.f32 0.0, %v4463
    %v4465 = vpop.f32.mrb[0].mxu0
    %4466 = vmatprep.mubr.f32.mxu0 0.0
    %4467 = vmatmul.mubr.f32.gmra.mrb[0].mxu0 %v4371
    %v4468 = vpop.f32.mrb[0].mxu0
    %v4469 = vadd.f32 0.0, %v4468
    %v4470 = vpop.f32.mrb[0].mxu0
    %4471 = vmatprep.mubr.f32.mxu0 0.0
    %4472 = vmatmul.mubr.f32.gmra.mrb[0].mxu0 %v4374
    %v4473 = vpop.f32.mrb[0].mxu0
    %v4474 = vadd.f32 0.0, %v4473
    %v4475 = vpop.f32.mrb[0].mxu0
    %4476 = vmatprep.mubr.f32.mxu0 0.0
    %4477 = vmatmul.mubr.f32.gmra.mrb[0].mxu0 %v4377
    %v4478 = vpop.f32.mrb[0].mxu0
    %v4479 = vadd.f32 0.0, %v4478
    %v4480 = vpop.f32.mrb[0].mxu0
    %4481 = vmatprep.mubr.f32.mxu0 0.0
    %4482 = vmatmul.mubr.f32.gmra.mrb[0].mxu0 %v4380
    %v4483 = vpop.f32.mrb[0].mxu0
    %v4484 = vadd.f32 0.0, %v4483
    %v4485 = vpop.f32.mrb[0].mxu0
    %4486 = vdwg.mxu0
    %v4488 = vsel %vm4357, %v4316, 0
    %v4491 = vsel %vm4357, %v4317, 0
    %v4494 = vsel %vm4357, %v4318, 0
    %v4497 = vsel %vm4357, %v4319, 0
    %v4500 = vsel %vm4357, %v4320, 0
    %v4503 = vsel %vm4357, %v4321, 0
    %v4506 = vsel %vm4357, %v4322, 0
    %v4509 = vsel %vm4357, %v4323, 0
    %4511 = vmatprep.subr.mxu0 0.0
    %4512 = vmatpush1.msra.mxu0 %v4324
    %4513 = vmatprep.subr.mxu0 0.0
    %4514 = vmatpush1.msra.mxu0 %v4325
    %4515 = vmatprep.subr.mxu0 0.0
    %4516 = vmatpush1.msra.mxu0 %v4326
    %4517 = vmatprep.subr.mxu0 0.0
    %4518 = vmatpush1.msra.mxu0 %v4327
    %4519 = vmatprep.subr.mxu0 0.0
    %4520 = vmatpush1.msra.mxu0 %v4328
    %4521 = vmatprep.subr.mxu0 0.0
    %4522 = vmatpush1.msra.mxu0 %v4329
    %4523 = vmatprep.subr.mxu0 0.0
    %4524 = vmatpush1.msra.mxu0 %v4330
    %4525 = vmatprep.subr.mxu0 0.0
    %4526 = vmatpush1.msra.mxu0 %v4331
    %4527 = vmatprep.subr.mxu0 0.0
    %4528 = vmatpush1.msra.mxu0 0.0
    %4529 = vmatprep.subr.mxu0 0.0
    %4530 = vmatpush1.msra.mxu0 0.0
    %4531 = vmatprep.subr.mxu0 0.0
    %4532 = vmatpush1.msra.mxu0 0.0
    %4533 = vmatprep.subr.mxu0 0.0
    %4534 = vmatpush1.msra.mxu0 0.0
    %4535 = vmatprep.subr.mxu0 0.0
    %4536 = vmatpush1.msra.mxu0 0.0
    %4537 = vmatprep.subr.mxu0 0.0
    %4538 = vmatpush1.msra.mxu0 0.0
    %4539 = vmatprep.subr.mxu0 0.0
    %4540 = vmatpush1.msra.mxu0 0.0
    %4541 = vmatprep.subr.mxu0 0.0
    %4542 = vmatpush1.msra.mxu0 0.0
    %4543 = vmatprep.subr.mxu0 0.0
    %4544 = vmatpush1.msra.mxu0 0.0
    %4545 = vmatprep.subr.mxu0 0.0
    %4546 = vmatpush1.msra.mxu0 0.0
    %4547 = vmatprep.subr.mxu0 0.0
    %4548 = vmatpush1.msra.mxu0 0.0
    %4549 = vmatprep.subr.mxu0 0.0
    %4550 = vmatpush1.msra.mxu0 0.0
    %4551 = vmatprep.subr.mxu0 0.0
    %4552 = vmatpush1.msra.mxu0 0.0
    %4553 = vmatprep.subr.mxu0 0.0
    %4554 = vmatpush1.msra.mxu0 0.0
    %4555 = vmatprep.subr.mxu0 0.0
    %4556 = vmatpush1.msra.mxu0 0.0
    %4557 = vmatprep.subr.mxu0 0.0
    %4558 = vmatpush1.msra.mxu0 0.0
    %4559 = vmatprep.subr.mxu0 0.0
    %4560 = vmatpush1.msra.mxu0 0.0
    %4561 = vmatprep.subr.mxu0 0.0
    %4562 = vmatpush1.msra.mxu0 0.0
    %4563 = vmatprep.subr.mxu0 0.0
    %4564 = vmatpush1.msra.mxu0 0.0
    %4565 = vmatprep.subr.mxu0 0.0
    %4566 = vmatpush1.msra.mxu0 0.0
    %4567 = vmatprep.subr.mxu0 0.0
    %4568 = vmatpush1.msra.mxu0 0.0
    %4569 = vmatprep.subr.mxu0 0.0
    %4570 = vmatpush1.msra.mxu0 0.0
    %4571 = vmatprep.subr.mxu0 0.0
    %4572 = vmatpush1.msra.mxu0 0.0
    %4573 = vmatprep.subr.mxu0 0.0
    %4574 = vmatpush1.msra.mxu0 0.0
    %4575 = vmatprep.mubr.f32.mxu0 0.0
    %4576 = vmatmul.mubr.f32.gmra.mrb[0].mxu0 %v4488
    %v4577 = vpop.f32.mrb[0].mxu0
    %v4578 = vadd.f32 %v4449, %v4577
    %v4579 = vpop.f32.mrb[0].mxu0
    %4580 = vmatprep.mubr.f32.mxu0 0.0
    %4581 = vmatmul.mubr.f32.gmra.mrb[0].mxu0 %v4491
    %v4582 = vpop.f32.mrb[0].mxu0
    %v4583 = vadd.f32 %v4454, %v4582
    %v4584 = vpop.f32.mrb[0].mxu0
    %4585 = vmatprep.mubr.f32.mxu0 0.0
    %4586 = vmatmul.mubr.f32.gmra.mrb[0].mxu0 %v4494
    %v4587 = vpop.f32.mrb[0].mxu0
    %v4588 = vadd.f32 %v4459, %v4587
    %v4589 = vpop.f32.mrb[0].mxu0
    %4590 = vmatprep.mubr.f32.mxu0 0.0
    %4591 = vmatmul.mubr.f32.gmra.mrb[0].mxu0 %v4497
    %v4592 = vpop.f32.mrb[0].mxu0
    %v4593 = vadd.f32 %v4464, %v4592
    %v4594 = vpop.f32.mrb[0].mxu0
    %4595 = vmatprep.mubr.f32.mxu0 0.0
    %4596 = vmatmul.mubr.f32.gmra.mrb[0].mxu0 %v4500
    %v4597 = vpop.f32.mrb[0].mxu0
    %v4598 = vadd.f32 %v4469, %v4597
    %v4599 = vpop.f32.mrb[0].mxu0
    %4600 = vmatprep.mubr.f32.mxu0 0.0
    %4601 = vmatmul.mubr.f32.gmra.mrb[0].mxu0 %v4503
    %v4602 = vpop.f32.mrb[0].mxu0
    %v4603 = vadd.f32 %v4474, %v4602
    %v4604 = vpop.f32.mrb[0].mxu0
    %4605 = vmatprep.mubr.f32.mxu0 0.0
    %4606 = vmatmul.mubr.f32.gmra.mrb[0].mxu0 %v4506
    %v4607 = vpop.f32.mrb[0].mxu0
    %v4608 = vadd.f32 %v4479, %v4607
    %v4609 = vpop.f32.mrb[0].mxu0
    %4610 = vmatprep.mubr.f32.mxu0 0.0
    %4611 = vmatmul.mubr.f32.gmra.mrb[0].mxu0 %v4509
    %v4612 = vpop.f32.mrb[0].mxu0
    %v4613 = vadd.f32 %v4484, %v4612
    %v4614 = vpop.f32.mrb[0].mxu0
    %4615 = vdwg.mxu0
    %v4616 = vrot.slane %v4316, 4
    %v4617 = vrot.slane %v4317, 4
    %v4618 = vrot.slane %v4318, 4
    %v4619 = vrot.slane %v4319, 4
    %v4620 = vrot.slane %v4320, 4
    %v4621 = vrot.slane %v4321, 4
    %v4622 = vrot.slane %v4322, 4
    %v4623 = vrot.slane %v4323, 4
    %vm4624 = vcmp.lt.s32.totalorder %v3253, 4
    %v4625 = vsel %vm4624, %v4622, %v4623
    %v4626 = vsel %vm4624, %v4621, %v4622
    %v4627 = vsel %vm4624, %v4620, %v4621
    %v4628 = vsel %vm4624, %v4619, %v4620
    %v4629 = vsel %vm4624, %v4618, %v4619
    %v4630 = vsel %vm4624, %v4617, %v4618
    %v4631 = vsel %vm4624, %v4616, %v4617
    %v4632 = vsel %vm4624, %v4623, %v4616
    %s4633 = scalar_lea.vmem [#allocation14], 128
    %v4634 = vld [vmem:[%s4633] sm:$0xff]
    %v4635 = vld [vmem:[%s4633 + $0x8] sm:$0xff]
    %v4636 = vld [vmem:[%s4633 + $0x10] sm:$0xff]
    %v4637 = vld [vmem:[%s4633 + $0x18] sm:$0xff]
    %v4638 = vld [vmem:[%s4633 + $0x20] sm:$0xff]
    %v4639 = vld [vmem:[%s4633 + $0x28] sm:$0xff]
    %v4640 = vld [vmem:[%s4633 + $0x30] sm:$0xff]
    %v4641 = vld [vmem:[%s4633 + $0x38] sm:$0xff]
    %v4643 = vsel %vm4357, %v4631, 0
    %v4646 = vsel %vm4357, %v4630, 0
    %v4649 = vsel %vm4357, %v4629, 0
    %v4652 = vsel %vm4357, %v4628, 0
    %v4655 = vsel %vm4357, %v4627, 0
    %v4658 = vsel %vm4357, %v4626, 0
    %v4661 = vsel %vm4357, %v4625, 0
    %v4664 = vsel %vm4357, %v4632, 0
    %4666 = vmatprep.subr.mxu0 0.0
    %4667 = vmatpush1.msra.mxu0 %v4634
    %4668 = vmatprep.subr.mxu0 0.0
    %4669 = vmatpush1.msra.mxu0 %v4635
    %4670 = vmatprep.subr.mxu0 0.0
    %4671 = vmatpush1.msra.mxu0 %v4636
    %4672 = vmatprep.subr.mxu0 0.0
    %4673 = vmatpush1.msra.mxu0 %v4637
    %4674 = vmatprep.subr.mxu0 0.0
    %4675 = vmatpush1.msra.mxu0 %v4638
    %4676 = vmatprep.subr.mxu0 0.0
    %4677 = vmatpush1.msra.mxu0 %v4639
    %4678 = vmatprep.subr.mxu0 0.0
    %4679 = vmatpush1.msra.mxu0 %v4640
    %4680 = vmatprep.subr.mxu0 0.0
    %4681 = vmatpush1.msra.mxu0 %v4641
    %4682 = vmatprep.subr.mxu0 0.0
    %4683 = vmatpush1.msra.mxu0 0.0
    %4684 = vmatprep.subr.mxu0 0.0
    %4685 = vmatpush1.msra.mxu0 0.0
    %4686 = vmatprep.subr.mxu0 0.0
    %4687 = vmatpush1.msra.mxu0 0.0
    %4688 = vmatprep.subr.mxu0 0.0
    %4689 = vmatpush1.msra.mxu0 0.0
    %4690 = vmatprep.subr.mxu0 0.0
    %4691 = vmatpush1.msra.mxu0 0.0
    %4692 = vmatprep.subr.mxu0 0.0
    %4693 = vmatpush1.msra.mxu0 0.0
    %4694 = vmatprep.subr.mxu0 0.0
    %4695 = vmatpush1.msra.mxu0 0.0
    %4696 = vmatprep.subr.mxu0 0.0
    %4697 = vmatpush1.msra.mxu0 0.0
    %4698 = vmatprep.subr.mxu0 0.0
    %4699 = vmatpush1.msra.mxu0 0.0
    %4700 = vmatprep.subr.mxu0 0.0
    %4701 = vmatpush1.msra.mxu0 0.0
    %4702 = vmatprep.subr.mxu0 0.0
    %4703 = vmatpush1.msra.mxu0 0.0
    %4704 = vmatprep.subr.mxu0 0.0
    %4705 = vmatpush1.msra.mxu0 0.0
    %4706 = vmatprep.subr.mxu0 0.0
    %4707 = vmatpush1.msra.mxu0 0.0
    %4708 = vmatprep.subr.mxu0 0.0
    %4709 = vmatpush1.msra.mxu0 0.0
    %4710 = vmatprep.subr.mxu0 0.0
    %4711 = vmatpush1.msra.mxu0 0.0
    %4712 = vmatprep.subr.mxu0 0.0
    %4713 = vmatpush1.msra.mxu0 0.0
    %4714 = vmatprep.subr.mxu0 0.0
    %4715 = vmatpush1.msra.mxu0 0.0
    %4716 = vmatprep.subr.mxu0 0.0
    %4717 = vmatpush1.msra.mxu0 0.0
    %4718 = vmatprep.subr.mxu0 0.0
    %4719 = vmatpush1.msra.mxu0 0.0
    %4720 = vmatprep.subr.mxu0 0.0
    %4721 = vmatpush1.msra.mxu0 0.0
    %4722 = vmatprep.subr.mxu0 0.0
    %4723 = vmatpush1.msra.mxu0 0.0
    %4724 = vmatprep.subr.mxu0 0.0
    %4725 = vmatpush1.msra.mxu0 0.0
    %4726 = vmatprep.subr.mxu0 0.0
    %4727 = vmatpush1.msra.mxu0 0.0
    %4728 = vmatprep.subr.mxu0 0.0
    %4729 = vmatpush1.msra.mxu0 0.0
    %4730 = vmatprep.mubr.f32.mxu0 0.0
    %4731 = vmatmul.mubr.f32.gmra.mrb[0].mxu0 %v4643
    %v4732 = vpop.f32.mrb[0].mxu0
    %v4733 = vadd.f32 0.0, %v4732
    %v4734 = vpop.f32.mrb[0].mxu0
    %4735 = vmatprep.mubr.f32.mxu0 0.0
    %4736 = vmatmul.mubr.f32.gmra.mrb[0].mxu0 %v4646
    %v4737 = vpop.f32.mrb[0].mxu0
    %v4738 = vadd.f32 0.0, %v4737
    %v4739 = vpop.f32.mrb[0].mxu0
    %4740 = vmatprep.mubr.f32.mxu0 0.0
    %4741 = vmatmul.mubr.f32.gmra.mrb[0].mxu0 %v4649
    %v4742 = vpop.f32.mrb[0].mxu0
    %v4743 = vadd.f32 0.0, %v4742
    %v4744 = vpop.f32.mrb[0].mxu0
    %4745 = vmatprep.mubr.f32.mxu0 0.0
    %4746 = vmatmul.mubr.f32.gmra.mrb[0].mxu0 %v4652
    %v4747 = vpop.f32.mrb[0].mxu0
    %v4748 = vadd.f32 0.0, %v4747
    %v4749 = vpop.f32.mrb[0].mxu0
    %4750 = vmatprep.mubr.f32.mxu0 0.0
    %4751 = vmatmul.mubr.f32.gmra.mrb[0].mxu0 %v4655
    %v4752 = vpop.f32.mrb[0].mxu0
    %v4753 = vadd.f32 0.0, %v4752
    %v4754 = vpop.f32.mrb[0].mxu0
    %4755 = vmatprep.mubr.f32.mxu0 0.0
    %4756 = vmatmul.mubr.f32.gmra.mrb[0].mxu0 %v4658
    %v4757 = vpop.f32.mrb[0].mxu0
    %v4758 = vadd.f32 0.0, %v4757
    %v4759 = vpop.f32.mrb[0].mxu0
    %4760 = vmatprep.mubr.f32.mxu0 0.0
    %4761 = vmatmul.mubr.f32.gmra.mrb[0].mxu0 %v4661
    %v4762 = vpop.f32.mrb[0].mxu0
    %v4763 = vadd.f32 0.0, %v4762
    %v4764 = vpop.f32.mrb[0].mxu0
    %4765 = vmatprep.mubr.f32.mxu0 0.0
    %4766 = vmatmul.mubr.f32.gmra.mrb[0].mxu0 %v4664
    %v4767 = vpop.f32.mrb[0].mxu0
    %v4768 = vadd.f32 0.0, %v4767
    %v4769 = vpop.f32.mrb[0].mxu0
    %4770 = vdwg.mxu0
    %v4771 = vadd.f32 %v4578, %v4733
    %v4772 = vadd.f32 %v4583, %v4738
    %v4773 = vadd.f32 %v4588, %v4743
    %v4774 = vadd.f32 %v4593, %v4748
    %v4775 = vadd.f32 %v4598, %v4753
    %v4776 = vadd.f32 %v4603, %v4758
    %v4777 = vadd.f32 %v4608, %v4763
    %v4778 = vadd.f32 %v4613, %v4768
    %v4779 = vld [vmem:[#allocation16] sm:$0x1]
    %v4781 = vlaneseq
    %v4782 = vshrl.u32 %v4781, 7
    %v4783 = vsub.s32 0, %v4782
    %v4784 = vrot.slane %v4779, %v4783
    %v4786 = vadd.f32 %v4771, %v4784
    %v4787 = vadd.f32 %v4772, %v4784
    %v4788 = vadd.f32 %v4773, %v4784
    %v4789 = vadd.f32 %v4774, %v4784
    %v4790 = vadd.f32 %v4775, %v4784
    %v4791 = vadd.f32 %v4776, %v4784
    %v4792 = vadd.f32 %v4777, %v4784
    %v4793 = vadd.f32 %v4778, %v4784
    %v4794 = vmul.f32 %v4786, 0.5
    %v4795 = vmul.f32 %v4787, 0.5
    %v4796 = vmul.f32 %v4788, 0.5
    %v4797 = vmul.f32 %v4789, 0.5
    %v4798 = vmul.f32 %v4790, 0.5
    %v4799 = vmul.f32 %v4791, 0.5
    %v4800 = vmul.f32 %v4792, 0.5
    %v4801 = vmul.f32 %v4793, 0.5
    %v4802 = vmul.f32 %v4786, 0.044715
    %v4803 = vmul.f32 %v4787, 0.044715
    %v4804 = vmul.f32 %v4788, 0.044715
    %v4805 = vmul.f32 %v4789, 0.044715
    %v4806 = vmul.f32 %v4790, 0.044715
    %v4807 = vmul.f32 %v4791, 0.044715
    %v4808 = vmul.f32 %v4792, 0.044715
    %v4809 = vmul.f32 %v4793, 0.044715
    %v4810 = vmul.f32 %v4802, %v4786
    %v4811 = vmul.f32 %v4803, %v4787
    %v4812 = vmul.f32 %v4804, %v4788
    %v4813 = vmul.f32 %v4805, %v4789
    %v4814 = vmul.f32 %v4806, %v4790
    %v4815 = vmul.f32 %v4807, %v4791
    %v4816 = vmul.f32 %v4808, %v4792
    %v4817 = vmul.f32 %v4809, %v4793
    %v4818 = vmul.f32 %v4810, %v4786
    %v4819 = vmul.f32 %v4811, %v4787
    %v4820 = vmul.f32 %v4812, %v4788
    %v4821 = vmul.f32 %v4813, %v4789
    %v4822 = vmul.f32 %v4814, %v4790
    %v4823 = vmul.f32 %v4815, %v4791
    %v4824 = vmul.f32 %v4816, %v4792
    %v4825 = vmul.f32 %v4817, %v4793
    %v4826 = vadd.f32 %v4786, %v4818
    %v4827 = vadd.f32 %v4787, %v4819
    %v4828 = vadd.f32 %v4788, %v4820
    %v4829 = vadd.f32 %v4789, %v4821
    %v4830 = vadd.f32 %v4790, %v4822
    %v4831 = vadd.f32 %v4791, %v4823
    %v4832 = vadd.f32 %v4792, %v4824
    %v4833 = vadd.f32 %v4793, %v4825
    %v4834 = vmul.f32 %v4826, 0.7978846
    %v4835 = vmul.f32 %v4827, 0.7978846
    %v4836 = vmul.f32 %v4828, 0.7978846
    %v4837 = vmul.f32 %v4829, 0.7978846
    %v4838 = vmul.f32 %v4830, 0.7978846
    %v4839 = vmul.f32 %v4831, 0.7978846
    %v4840 = vmul.f32 %v4832, 0.7978846
    %v4841 = vmul.f32 %v4833, 0.7978846
    %v4842 = vtanh.pop %v4834
    %v4843 = vtanh.pop %v4835
    %v4844 = vtanh.pop %v4836
    %v4845 = vtanh.pop %v4837
    %v4846 = vtanh.pop %v4838
    %v4847 = vtanh.pop %v4839
    %v4848 = vtanh.pop %v4840
    %v4849 = vtanh.pop %v4841
    %v4850 = vadd.f32 %v4842, 1.0
    %v4851 = vadd.f32 %v4843, 1.0
    %v4852 = vadd.f32 %v4844, 1.0
    %v4853 = vadd.f32 %v4845, 1.0
    %v4854 = vadd.f32 %v4846, 1.0
    %v4855 = vadd.f32 %v4847, 1.0
    %v4856 = vadd.f32 %v4848, 1.0
    %v4857 = vadd.f32 %v4849, 1.0
    %v4858 = vmul.f32 %v4794, %v4850
    %v4859 = vmul.f32 %v4795, %v4851
    %v4860 = vmul.f32 %v4796, %v4852
    %v4861 = vmul.f32 %v4797, %v4853
    %v4862 = vmul.f32 %v4798, %v4854
    %v4863 = vmul.f32 %v4799, %v4855
    %v4864 = vmul.f32 %v4800, %v4856
    %v4865 = vmul.f32 %v4801, %v4857
    %v4866 = vrot.slane %v4858, 2
    %v4867 = vrot.slane %v4859, 2
    %v4868 = vrot.slane %v4860, 2
    %v4869 = vrot.slane %v4861, 2
    %v4870 = vrot.slane %v4862, 2
    %v4871 = vrot.slane %v4863, 2
    %v4872 = vrot.slane %v4864, 2
    %v4873 = vrot.slane %v4865, 2
    %v4874 = vsel %vm3539, %v4872, %v4873
    %v4875 = vsel %vm3539, %v4870, %v4871
    %v4876 = vsel %vm3539, %v4868, %v4869
    %v4877 = vsel %vm3539, %v4866, %v4867
    %v4878 = vrot.slane %v4858, 4
    %v4879 = vrot.slane %v4859, 4
    %v4880 = vrot.slane %v4860, 4
    %v4881 = vrot.slane %v4861, 4
    %v4882 = vrot.slane %v4862, 4
    %v4883 = vrot.slane %v4863, 4
    %v4884 = vrot.slane %v4864, 4
    %v4885 = vrot.slane %v4865, 4
    %v4886 = vsel %vm4624, %v4884, %v4885
    %v4887 = vsel %vm4624, %v4882, %v4883
    %v4888 = vsel %vm4624, %v4880, %v4881
    %v4889 = vsel %vm4624, %v4878, %v4879
    %v4890 = vmax.f32 %v4877, %v4889
    %v4891 = vmax.f32 %v4876, %v4888
    %v4892 = vmax.f32 %v4875, %v4887
    %v4893 = vmax.f32 %v4874, %v4886
    %v4894 = vmax.f32 %v4858, %v4890
    %v4895 = vmax.f32 %v4860, %v4891
    %v4896 = vmax.f32 %v4862, %v4892
    %v4897 = vmax.f32 %v4864, %v4893
    %v4898 = vld [vmem:[#allocation17] sm:$0x1]
    %v4899 = vld [vmem:[#allocation19] sm:$0x1]
    %v4904 = vrot.slane %v4895, 7
    %vm4905 = vcmask 1041409
    %v4906 = vsel %vm4905, %v4904, %v4894
    %v4907 = vrot.slane %v4896, 6
    %vm4908 = vcmask 1042434
    %v4909 = vsel %vm4908, %v4907, %v4906
    %v4910 = vrot.slane %v4897, 5
    %vm4911 = vcmask 1043459
    %v4912 = vsel %vm4911, %v4910, %v4909
    %vm4914 = vcmask 1043456
    %v4915 = vsel %vm4914, %v4912, 0.0
    %4916 = vadd.xlane.f32.xlu0 %v4915
    %v4917 = vpop.xlane.xlu0 %4916
    %v4918 = vrcp.pop 128.0
    %v4919 = vmul.f32 %v4917, %v4918
    %v4921 = vrot.slane %v4919, 1
    %v4922 = vrot.slane %v4919, 2
    %v4923 = vrot.slane %v4919, 3
    %v4928 = vsub.f32 %v4894, %v4919
    %v4929 = vsub.f32 %v4895, %v4921
    %v4930 = vsub.f32 %v4896, %v4922
    %v4931 = vsub.f32 %v4897, %v4923
    %v4932 = vmul.f32 %v4928, %v4928
    %v4933 = vmul.f32 %v4929, %v4929
    %v4934 = vmul.f32 %v4930, %v4930
    %v4935 = vmul.f32 %v4931, %v4931
    %v4940 = vrot.slane %v4933, 7
    %v4941 = vsel %vm4905, %v4940, %v4932
    %v4942 = vrot.slane %v4934, 6
    %v4943 = vsel %vm4908, %v4942, %v4941
    %v4944 = vrot.slane %v4935, 5
    %v4945 = vsel %vm4911, %v4944, %v4943
    %v4947 = vsel %vm4914, %v4945, 0.0
    %4948 = vadd.xlane.f32.xlu0 %v4947
    %v4949 = vpop.xlane.xlu0 %4948
    %v4950 = vmul.f32 %v4949, %v4918
    %v4951 = vadd.f32 %v4950, 1e-05
    %v4952 = vrsqrt.pop %v4951
    %v4954 = vrot.slane %v4952, 1
    %v4955 = vrot.slane %v4952, 2
    %v4956 = vrot.slane %v4952, 3
    %v4961 = vmul.f32 %v4928, %v4952
    %v4962 = vmul.f32 %v4929, %v4954
    %v4963 = vmul.f32 %v4930, %v4955
    %v4964 = vmul.f32 %v4931, %v4956
    %v4966 = vlaneseq
    %v4967 = vshrl.u32 %v4966, 7
    %v4968 = vsub.s32 0, %v4967
    %v4969 = vrot.slane %v4898, %v4968
    %v4971 = vmul.f32 %v4961, %v4969
    %v4972 = vmul.f32 %v4962, %v4969
    %v4973 = vmul.f32 %v4963, %v4969
    %v4974 = vmul.f32 %v4964, %v4969
    %v4976 = vlaneseq
    %v4977 = vshrl.u32 %v4976, 7
    %v4978 = vsub.s32 0, %v4977
    %v4979 = vrot.slane %v4899, %v4978
    %v4981 = vadd.f32 %v4971, %v4979
    %v4982 = vadd.f32 %v4972, %v4979
    %v4983 = vadd.f32 %v4973, %v4979
    %v4984 = vadd.f32 %v4974, %v4979
    %v4985 = vld [vmem:[#allocation20] sm:$0xff]
    %v4986 = vld [vmem:[#allocation20 + $0x8] sm:$0xff]
    %v4987 = vld [vmem:[#allocation20 + $0x10] sm:$0xff]
    %v4988 = vld [vmem:[#allocation20 + $0x18] sm:$0xff]
    %v4989 = vld [vmem:[#allocation20 + $0x20] sm:$0xff]
    %v4990 = vld [vmem:[#allocation20 + $0x28] sm:$0xff]
    %v4991 = vld [vmem:[#allocation20 + $0x30] sm:$0xff]
    %v4992 = vld [vmem:[#allocation20 + $0x38] sm:$0xff]
    %v4993 = vld [vmem:[#allocation20 + $0x40] sm:$0xff]
    %v4994 = vld [vmem:[#allocation20 + $0x48] sm:$0xff]
    %v4995 = vld [vmem:[#allocation20 + $0x50] sm:$0xff]
    %v4996 = vld [vmem:[#allocation20 + $0x58] sm:$0xff]
    %v4997 = vld [vmem:[#allocation20 + $0x60] sm:$0xff]
    %v4998 = vld [vmem:[#allocation20 + $0x68] sm:$0xff]
    %v4999 = vld [vmem:[#allocation20 + $0x70] sm:$0xff]
    %v5000 = vld [vmem:[#allocation20 + $0x78] sm:$0xff]
    %v5001 = vld [vmem:[#allocation20 + $0x80] sm:$0xff]
    %v5002 = vld [vmem:[#allocation20 + $0x88] sm:$0xff]
    %v5003 = vld [vmem:[#allocation20 + $0x90] sm:$0xff]
    %v5004 = vld [vmem:[#allocation20 + $0x98] sm:$0xff]
    %v5005 = vld [vmem:[#allocation20 + $0xa0] sm:$0xff]
    %v5006 = vld [vmem:[#allocation20 + $0xa8] sm:$0xff]
    %v5007 = vld [vmem:[#allocation20 + $0xb0] sm:$0xff]
    %v5008 = vld [vmem:[#allocation20 + $0xb8] sm:$0xff]
    %v5009 = vld [vmem:[#allocation20 + $0xc0] sm:$0xff]
    %v5010 = vld [vmem:[#allocation20 + $0xc8] sm:$0xff]
    %v5011 = vld [vmem:[#allocation20 + $0xd0] sm:$0xff]
    %v5012 = vld [vmem:[#allocation20 + $0xd8] sm:$0xff]
    %v5013 = vld [vmem:[#allocation20 + $0xe0] sm:$0xff]
    %v5014 = vld [vmem:[#allocation20 + $0xe8] sm:$0xff]
    %v5015 = vld [vmem:[#allocation20 + $0xf0] sm:$0xff]
    %v5016 = vld [vmem:[#allocation20 + $0xf8] sm:$0xff]
    %v5017 = vld [vmem:[#allocation20 + $0x100] sm:$0xff]
    %v5018 = vld [vmem:[#allocation20 + $0x108] sm:$0xff]
    %v5019 = vld [vmem:[#allocation20 + $0x110] sm:$0xff]
    %v5020 = vld [vmem:[#allocation20 + $0x118] sm:$0xff]
    %v5021 = vld [vmem:[#allocation20 + $0x120] sm:$0xff]
    %v5022 = vld [vmem:[#allocation20 + $0x128] sm:$0xff]
    %v5023 = vld [vmem:[#allocation20 + $0x130] sm:$0xff]
    %v5024 = vld [vmem:[#allocation20 + $0x138] sm:$0xff]
    %v5025 = vld [vmem:[#allocation20 + $0x140] sm:$0xff]
    %v5026 = vld [vmem:[#allocation20 + $0x148] sm:$0xff]
    %v5027 = vld [vmem:[#allocation20 + $0x150] sm:$0xff]
    %v5028 = vld [vmem:[#allocation20 + $0x158] sm:$0xff]
    %v5029 = vld [vmem:[#allocation20 + $0x160] sm:$0xff]
    %v5030 = vld [vmem:[#allocation20 + $0x168] sm:$0xff]
    %v5031 = vld [vmem:[#allocation20 + $0x170] sm:$0xff]
    %v5032 = vld [vmem:[#allocation20 + $0x178] sm:$0xff]
    %v5033 = vld [vmem:[#allocation20 + $0x180] sm:$0xff]
    %v5034 = vld [vmem:[#allocation20 + $0x188] sm:$0xff]
    %v5035 = vld [vmem:[#allocation20 + $0x190] sm:$0xff]
    %v5036 = vld [vmem:[#allocation20 + $0x198] sm:$0xff]
    %v5037 = vld [vmem:[#allocation20 + $0x1a0] sm:$0xff]
    %v5038 = vld [vmem:[#allocation20 + $0x1a8] sm:$0xff]
    %v5039 = vld [vmem:[#allocation20 + $0x1b0] sm:$0xff]
    %v5040 = vld [vmem:[#allocation20 + $0x1b8] sm:$0xff]
    %v5041 = vld [vmem:[#allocation20 + $0x1c0] sm:$0xff]
    %v5042 = vld [vmem:[#allocation20 + $0x1c8] sm:$0xff]
    %v5043 = vld [vmem:[#allocation20 + $0x1d0] sm:$0xff]
    %v5044 = vld [vmem:[#allocation20 + $0x1d8] sm:$0xff]
    %v5045 = vld [vmem:[#allocation20 + $0x1e0] sm:$0xff]
    %v5046 = vld [vmem:[#allocation20 + $0x1e8] sm:$0xff]
    %v5047 = vld [vmem:[#allocation20 + $0x1f0] sm:$0xff]
    %v5048 = vld [vmem:[#allocation20 + $0x1f8] sm:$0xff]
    %v5049 = vld [vmem:[#allocation20 + $0x200] sm:$0xff]
    %v5050 = vld [vmem:[#allocation20 + $0x208] sm:$0xff]
    %v5051 = vld [vmem:[#allocation20 + $0x210] sm:$0xff]
    %v5052 = vld [vmem:[#allocation20 + $0x218] sm:$0xff]
    %v5053 = vld [vmem:[#allocation20 + $0x220] sm:$0xff]
    %v5054 = vld [vmem:[#allocation20 + $0x228] sm:$0xff]
    %v5055 = vld [vmem:[#allocation20 + $0x230] sm:$0xff]
    %v5056 = vld [vmem:[#allocation20 + $0x238] sm:$0xff]
    %v5057 = vld [vmem:[#allocation20 + $0x240] sm:$0xff]
    %v5058 = vld [vmem:[#allocation20 + $0x248] sm:$0xff]
    %v5059 = vld [vmem:[#allocation20 + $0x250] sm:$0xff]
    %v5060 = vld [vmem:[#allocation20 + $0x258] sm:$0xff]
    %v5061 = vld [vmem:[#allocation20 + $0x260] sm:$0xff]
    %v5062 = vld [vmem:[#allocation20 + $0x268] sm:$0xff]
    %v5063 = vld [vmem:[#allocation20 + $0x270] sm:$0xff]
    %v5064 = vld [vmem:[#allocation20 + $0x278] sm:$0xff]
    %v5065 = vld [vmem:[#allocation20 + $0x280] sm:$0xff]
    %v5066 = vld [vmem:[#allocation20 + $0x288] sm:$0xff]
    %v5067 = vld [vmem:[#allocation20 + $0x290] sm:$0xff]
    %v5068 = vld [vmem:[#allocation20 + $0x298] sm:$0xff]
    %v5069 = vld [vmem:[#allocation20 + $0x2a0] sm:$0xff]
    %v5070 = vld [vmem:[#allocation20 + $0x2a8] sm:$0xff]
    %v5071 = vld [vmem:[#allocation20 + $0x2b0] sm:$0xff]
    %v5072 = vld [vmem:[#allocation20 + $0x2b8] sm:$0xff]
    %v5073 = vld [vmem:[#allocation20 + $0x2c0] sm:$0xff]
    %v5074 = vld [vmem:[#allocation20 + $0x2c8] sm:$0xff]
    %v5075 = vld [vmem:[#allocation20 + $0x2d0] sm:$0xff]
    %v5076 = vld [vmem:[#allocation20 + $0x2d8] sm:$0xff]
    %v5077 = vld [vmem:[#allocation20 + $0x2e0] sm:$0xff]
    %v5078 = vld [vmem:[#allocation20 + $0x2e8] sm:$0xff]
    %v5079 = vld [vmem:[#allocation20 + $0x2f0] sm:$0xff]
    %v5080 = vld [vmem:[#allocation20 + $0x2f8] sm:$0xff]
    %v5081 = vld [vmem:[#allocation20 + $0x300] sm:$0xff]
    %v5082 = vld [vmem:[#allocation20 + $0x308] sm:$0xff]
    %v5083 = vld [vmem:[#allocation20 + $0x310] sm:$0xff]
    %v5084 = vld [vmem:[#allocation20 + $0x318] sm:$0xff]
    %v5085 = vld [vmem:[#allocation20 + $0x320] sm:$0xff]
    %v5086 = vld [vmem:[#allocation20 + $0x328] sm:$0xff]
    %v5087 = vld [vmem:[#allocation20 + $0x330] sm:$0xff]
    %v5088 = vld [vmem:[#allocation20 + $0x338] sm:$0xff]
    %v5089 = vld [vmem:[#allocation20 + $0x340] sm:$0xff]
    %v5090 = vld [vmem:[#allocation20 + $0x348] sm:$0xff]
    %v5091 = vld [vmem:[#allocation20 + $0x350] sm:$0xff]
    %v5092 = vld [vmem:[#allocation20 + $0x358] sm:$0xff]
    %v5093 = vld [vmem:[#allocation20 + $0x360] sm:$0xff]
    %v5094 = vld [vmem:[#allocation20 + $0x368] sm:$0xff]
    %v5095 = vld [vmem:[#allocation20 + $0x370] sm:$0xff]
    %v5096 = vld [vmem:[#allocation20 + $0x378] sm:$0xff]
    %v5097 = vld [vmem:[#allocation20 + $0x380] sm:$0xff]
    %v5098 = vld [vmem:[#allocation20 + $0x388] sm:$0xff]
    %v5099 = vld [vmem:[#allocation20 + $0x390] sm:$0xff]
    %v5100 = vld [vmem:[#allocation20 + $0x398] sm:$0xff]
    %v5101 = vld [vmem:[#allocation20 + $0x3a0] sm:$0xff]
    %v5102 = vld [vmem:[#allocation20 + $0x3a8] sm:$0xff]
    %v5103 = vld [vmem:[#allocation20 + $0x3b0] sm:$0xff]
    %v5104 = vld [vmem:[#allocation20 + $0x3b8] sm:$0xff]
    %v5105 = vld [vmem:[#allocation20 + $0x3c0] sm:$0xff]
    %v5106 = vld [vmem:[#allocation20 + $0x3c8] sm:$0xff]
    %v5107 = vld [vmem:[#allocation20 + $0x3d0] sm:$0xff]
    %v5108 = vld [vmem:[#allocation20 + $0x3d8] sm:$0xff]
    %v5109 = vld [vmem:[#allocation20 + $0x3e0] sm:$0xff]
    %v5110 = vld [vmem:[#allocation20 + $0x3e8] sm:$0xff]
    %v5111 = vld [vmem:[#allocation20 + $0x3f0] sm:$0xff]
    %v5112 = vld [vmem:[#allocation20 + $0x3f8] sm:$0xff]
    %v5113 = vld [vmem:[#allocation22] sm:$0x3]
    %v5114 = vld [vmem:[#allocation23] sm:$0xff]
    %v5115 = vld [vmem:[#allocation23 + $0x8] sm:$0xff]
    %v5116 = vld [vmem:[#allocation23 + $0x10] sm:$0xff]
    %v5117 = vld [vmem:[#allocation23 + $0x18] sm:$0xff]
    %v5118 = vld [vmem:[#allocation23 + $0x20] sm:$0xff]
    %v5119 = vld [vmem:[#allocation23 + $0x28] sm:$0xff]
    %v5120 = vld [vmem:[#allocation23 + $0x30] sm:$0xff]
    %v5121 = vld [vmem:[#allocation23 + $0x38] sm:$0xff]
    %v5122 = vld [vmem:[#allocation23 + $0x40] sm:$0xff]
    %v5123 = vld [vmem:[#allocation23 + $0x48] sm:$0xff]
    %v5124 = vld [vmem:[#allocation23 + $0x50] sm:$0xff]
    %v5125 = vld [vmem:[#allocation23 + $0x58] sm:$0xff]
    %v5126 = vld [vmem:[#allocation23 + $0x60] sm:$0xff]
    %v5127 = vld [vmem:[#allocation23 + $0x68] sm:$0xff]
    %v5128 = vld [vmem:[#allocation23 + $0x70] sm:$0xff]
    %v5129 = vld [vmem:[#allocation23 + $0x78] sm:$0xff]
    %v5130 = vld [vmem:[#allocation23 + $0x80] sm:$0xff]
    %v5131 = vld [vmem:[#allocation23 + $0x88] sm:$0xff]
    %v5132 = vld [vmem:[#allocation23 + $0x90] sm:$0xff]
    %v5133 = vld [vmem:[#allocation23 + $0x98] sm:$0xff]
    %v5134 = vld [vmem:[#allocation23 + $0xa0] sm:$0xff]
    %v5135 = vld [vmem:[#allocation23 + $0xa8] sm:$0xff]
    %v5136 = vld [vmem:[#allocation23 + $0xb0] sm:$0xff]
    %v5137 = vld [vmem:[#allocation23 + $0xb8] sm:$0xff]
    %v5138 = vld [vmem:[#allocation23 + $0xc0] sm:$0xff]
    %v5139 = vld [vmem:[#allocation23 + $0xc8] sm:$0xff]
    %v5140 = vld [vmem:[#allocation23 + $0xd0] sm:$0xff]
    %v5141 = vld [vmem:[#allocation23 + $0xd8] sm:$0xff]
    %v5142 = vld [vmem:[#allocation23 + $0xe0] sm:$0xff]
    %v5143 = vld [vmem:[#allocation23 + $0xe8] sm:$0xff]
    %v5144 = vld [vmem:[#allocation23 + $0xf0] sm:$0xff]
    %v5145 = vld [vmem:[#allocation23 + $0xf8] sm:$0xff]
    %v5146 = vld [vmem:[#allocation23 + $0x100] sm:$0xff]
    %v5147 = vld [vmem:[#allocation23 + $0x108] sm:$0xff]
    %v5148 = vld [vmem:[#allocation23 + $0x110] sm:$0xff]
    %v5149 = vld [vmem:[#allocation23 + $0x118] sm:$0xff]
    %v5150 = vld [vmem:[#allocation23 + $0x120] sm:$0xff]
    %v5151 = vld [vmem:[#allocation23 + $0x128] sm:$0xff]
    %v5152 = vld [vmem:[#allocation23 + $0x130] sm:$0xff]
    %v5153 = vld [vmem:[#allocation23 + $0x138] sm:$0xff]
    %v5154 = vld [vmem:[#allocation23 + $0x140] sm:$0xff]
    %v5155 = vld [vmem:[#allocation23 + $0x148] sm:$0xff]
    %v5156 = vld [vmem:[#allocation23 + $0x150] sm:$0xff]
    %v5157 = vld [vmem:[#allocation23 + $0x158] sm:$0xff]
    %v5158 = vld [vmem:[#allocation23 + $0x160] sm:$0xff]
    %v5159 = vld [vmem:[#allocation23 + $0x168] sm:$0xff]
    %v5160 = vld [vmem:[#allocation23 + $0x170] sm:$0xff]
    %v5161 = vld [vmem:[#allocation23 + $0x178] sm:$0xff]
    %v5162 = vld [vmem:[#allocation23 + $0x180] sm:$0xff]
    %v5163 = vld [vmem:[#allocation23 + $0x188] sm:$0xff]
    %v5164 = vld [vmem:[#allocation23 + $0x190] sm:$0xff]
    %v5165 = vld [vmem:[#allocation23 + $0x198] sm:$0xff]
    %v5166 = vld [vmem:[#allocation23 + $0x1a0] sm:$0xff]
    %v5167 = vld [vmem:[#allocation23 + $0x1a8] sm:$0xff]
    %v5168 = vld [vmem:[#allocation23 + $0x1b0] sm:$0xff]
    %v5169 = vld [vmem:[#allocation23 + $0x1b8] sm:$0xff]
    %v5170 = vld [vmem:[#allocation23 + $0x1c0] sm:$0xff]
    %v5171 = vld [vmem:[#allocation23 + $0x1c8] sm:$0xff]
    %v5172 = vld [vmem:[#allocation23 + $0x1d0] sm:$0xff]
    %v5173 = vld [vmem:[#allocation23 + $0x1d8] sm:$0xff]
    %v5174 = vld [vmem:[#allocation23 + $0x1e0] sm:$0xff]
    %v5175 = vld [vmem:[#allocation23 + $0x1e8] sm:$0xff]
    %v5176 = vld [vmem:[#allocation23 + $0x1f0] sm:$0xff]
    %v5177 = vld [vmem:[#allocation23 + $0x1f8] sm:$0xff]
    %v5178 = vld [vmem:[#allocation25] sm:$0x3]
    %v5179 = vld [vmem:[#allocation26] sm:$0x3]
    %v5180 = vld [vmem:[#allocation28] sm:$0x3]
    %v5181 = vpack.c.bf16 %v2860, %v2860
    %v5182 = vpack.c.bf16 %v2862, %v2862
    %v5183 = vpack.c.bf16 %v2983, %v2983
    %v5184 = vpack.c.bf16 %v2985, %v2985
    %v5185 = vpack.c.bf16 %v3106, %v3106
    %v5186 = vpack.c.bf16 %v3108, %v3108
    %v5187 = vpack.c.bf16 %v3229, %v3229
    %v5188 = vpack.c.bf16 %v3231, %v3231
    %v5190 = vlaneseq
    %v5191 = vshrl.u32 %v5190, 7
    %v5192 = vsub.s32 0, %v5191
    %v5193 = vrot.slane %v5113, %v5192
    %v5194 = vlaneseq
    %v5195 = vshrl.u32 %v5194, 7
    %v5196 = vsub.s32 1, %v5195
    %v5197 = vrot.slane %v5113, %v5196
    %v5328 = vunpack.c.l.b16 %v4985
    %v5329 = vunpack.c.h.b16 %v4985
    %v5330 = vunpack.c.l.b16 %v4986
    %v5331 = vunpack.c.h.b16 %v4986
    %v5332 = vunpack.c.l.b16 %v4987
    %v5333 = vunpack.c.h.b16 %v4987
    %v5334 = vunpack.c.l.b16 %v4988
    %v5335 = vunpack.c.h.b16 %v4988
    %v5336 = vunpack.c.l.b16 %v4989
    %v5337 = vunpack.c.h.b16 %v4989
    %v5338 = vunpack.c.l.b16 %v4990
    %v5339 = vunpack.c.h.b16 %v4990
    %v5340 = vunpack.c.l.b16 %v4991
    %v5341 = vunpack.c.h.b16 %v4991
    %v5342 = vunpack.c.l.b16 %v4992
    %v5343 = vunpack.c.h.b16 %v4992
    %v5344 = vunpack.c.l.b16 %v4993
    %v5345 = vunpack.c.h.b16 %v4993
    %v5346 = vunpack.c.l.b16 %v4994
    %v5347 = vunpack.c.h.b16 %v4994
    %v5348 = vunpack.c.l.b16 %v4995
    %v5349 = vunpack.c.h.b16 %v4995
    %v5350 = vunpack.c.l.b16 %v4996
    %v5351 = vunpack.c.h.b16 %v4996
    %v5352 = vunpack.c.l.b16 %v4997
    %v5353 = vunpack.c.h.b16 %v4997
    %v5354 = vunpack.c.l.b16 %v4998
    %v5355 = vunpack.c.h.b16 %v4998
    %v5356 = vunpack.c.l.b16 %v4999
    %v5357 = vunpack.c.h.b16 %v4999
    %v5358 = vunpack.c.l.b16 %v5000
    %v5359 = vunpack.c.h.b16 %v5000
    %v5360 = vunpack.c.l.b16 %v5001
    %v5361 = vunpack.c.h.b16 %v5001
    %v5362 = vunpack.c.l.b16 %v5002
    %v5363 = vunpack.c.h.b16 %v5002
    %v5364 = vunpack.c.l.b16 %v5003
    %v5365 = vunpack.c.h.b16 %v5003
    %v5366 = vunpack.c.l.b16 %v5004
    %v5367 = vunpack.c.h.b16 %v5004
    %v5368 = vunpack.c.l.b16 %v5005
    %v5369 = vunpack.c.h.b16 %v5005
    %v5370 = vunpack.c.l.b16 %v5006
    %v5371 = vunpack.c.h.b16 %v5006
    %v5372 = vunpack.c.l.b16 %v5007
    %v5373 = vunpack.c.h.b16 %v5007
    %v5374 = vunpack.c.l.b16 %v5008
    %v5375 = vunpack.c.h.b16 %v5008
    %v5376 = vunpack.c.l.b16 %v5009
    %v5377 = vunpack.c.h.b16 %v5009
    %v5378 = vunpack.c.l.b16 %v5010
    %v5379 = vunpack.c.h.b16 %v5010
    %v5380 = vunpack.c.l.b16 %v5011
    %v5381 = vunpack.c.h.b16 %v5011
    %v5382 = vunpack.c.l.b16 %v5012
    %v5383 = vunpack.c.h.b16 %v5012
    %v5384 = vunpack.c.l.b16 %v5013
    %v5385 = vunpack.c.h.b16 %v5013
    %v5386 = vunpack.c.l.b16 %v5014
    %v5387 = vunpack.c.h.b16 %v5014
    %v5388 = vunpack.c.l.b16 %v5015
    %v5389 = vunpack.c.h.b16 %v5015
    %v5390 = vunpack.c.l.b16 %v5016
    %v5391 = vunpack.c.h.b16 %v5016
    %v5392 = vunpack.c.l.b16 %v5017
    %v5393 = vunpack.c.h.b16 %v5017
    %v5394 = vunpack.c.l.b16 %v5018
    %v5395 = vunpack.c.h.b16 %v5018
    %v5396 = vunpack.c.l.b16 %v5019
    %v5397 = vunpack.c.h.b16 %v5019
    %v5398 = vunpack.c.l.b16 %v5020
    %v5399 = vunpack.c.h.b16 %v5020
    %v5400 = vunpack.c.l.b16 %v5021
    %v5401 = vunpack.c.h.b16 %v5021
    %v5402 = vunpack.c.l.b16 %v5022
    %v5403 = vunpack.c.h.b16 %v5022
    %v5404 = vunpack.c.l.b16 %v5023
    %v5405 = vunpack.c.h.b16 %v5023
    %v5406 = vunpack.c.l.b16 %v5024
    %v5407 = vunpack.c.h.b16 %v5024
    %v5408 = vunpack.c.l.b16 %v5025
    %v5409 = vunpack.c.h.b16 %v5025
    %v5410 = vunpack.c.l.b16 %v5026
    %v5411 = vunpack.c.h.b16 %v5026
    %v5412 = vunpack.c.l.b16 %v5027
    %v5413 = vunpack.c.h.b16 %v5027
    %v5414 = vunpack.c.l.b16 %v5028
    %v5415 = vunpack.c.h.b16 %v5028
    %v5416 = vunpack.c.l.b16 %v5029
    %v5417 = vunpack.c.h.b16 %v5029
    %v5418 = vunpack.c.l.b16 %v5030
    %v5419 = vunpack.c.h.b16 %v5030
    %v5420 = vunpack.c.l.b16 %v5031
    %v5421 = vunpack.c.h.b16 %v5031
    %v5422 = vunpack.c.l.b16 %v5032
    %v5423 = vunpack.c.h.b16 %v5032
    %v5424 = vunpack.c.l.b16 %v5033
    %v5425 = vunpack.c.h.b16 %v5033
    %v5426 = vunpack.c.l.b16 %v5034
    %v5427 = vunpack.c.h.b16 %v5034
    %v5428 = vunpack.c.l.b16 %v5035
    %v5429 = vunpack.c.h.b16 %v5035
    %v5430 = vunpack.c.l.b16 %v5036
    %v5431 = vunpack.c.h.b16 %v5036
    %v5432 = vunpack.c.l.b16 %v5037
    %v5433 = vunpack.c.h.b16 %v5037
    %v5434 = vunpack.c.l.b16 %v5038
    %v5435 = vunpack.c.h.b16 %v5038
    %v5436 = vunpack.c.l.b16 %v5039
    %v5437 = vunpack.c.h.b16 %v5039
    %v5438 = vunpack.c.l.b16 %v5040
    %v5439 = vunpack.c.h.b16 %v5040
    %v5440 = vunpack.c.l.b16 %v5041
    %v5441 = vunpack.c.h.b16 %v5041
    %v5442 = vunpack.c.l.b16 %v5042
    %v5443 = vunpack.c.h.b16 %v5042
    %v5444 = vunpack.c.l.b16 %v5043
    %v5445 = vunpack.c.h.b16 %v5043
    %v5446 = vunpack.c.l.b16 %v5044
    %v5447 = vunpack.c.h.b16 %v5044
    %v5448 = vunpack.c.l.b16 %v5045
    %v5449 = vunpack.c.h.b16 %v5045
    %v5450 = vunpack.c.l.b16 %v5046
    %v5451 = vunpack.c.h.b16 %v5046
    %v5452 = vunpack.c.l.b16 %v5047
    %v5453 = vunpack.c.h.b16 %v5047
    %v5454 = vunpack.c.l.b16 %v5048
    %v5455 = vunpack.c.h.b16 %v5048
    %v5456 = vunpack.c.l.b16 %v5049
    %v5457 = vunpack.c.h.b16 %v5049
    %v5458 = vunpack.c.l.b16 %v5050
    %v5459 = vunpack.c.h.b16 %v5050
    %v5460 = vunpack.c.l.b16 %v5051
    %v5461 = vunpack.c.h.b16 %v5051
    %v5462 = vunpack.c.l.b16 %v5052
    %v5463 = vunpack.c.h.b16 %v5052
    %v5464 = vunpack.c.l.b16 %v5053
    %v5465 = vunpack.c.h.b16 %v5053
    %v5466 = vunpack.c.l.b16 %v5054
    %v5467 = vunpack.c.h.b16 %v5054
    %v5468 = vunpack.c.l.b16 %v5055
    %v5469 = vunpack.c.h.b16 %v5055
    %v5470 = vunpack.c.l.b16 %v5056
    %v5471 = vunpack.c.h.b16 %v5056
    %v5472 = vunpack.c.l.b16 %v5057
    %v5473 = vunpack.c.h.b16 %v5057
    %v5474 = vunpack.c.l.b16 %v5058
    %v5475 = vunpack.c.h.b16 %v5058
    %v5476 = vunpack.c.l.b16 %v5059
    %v5477 = vunpack.c.h.b16 %v5059
    %v5478 = vunpack.c.l.b16 %v5060
    %v5479 = vunpack.c.h.b16 %v5060
    %v5480 = vunpack.c.l.b16 %v5061
    %v5481 = vunpack.c.h.b16 %v5061
    %v5482 = vunpack.c.l.b16 %v5062
    %v5483 = vunpack.c.h.b16 %v5062
    %v5484 = vunpack.c.l.b16 %v5063
    %v5485 = vunpack.c.h.b16 %v5063
    %v5486 = vunpack.c.l.b16 %v5064
    %v5487 = vunpack.c.h.b16 %v5064
    %v5488 = vunpack.c.l.b16 %v5065
    %v5489 = vunpack.c.h.b16 %v5065
    %v5490 = vunpack.c.l.b16 %v5066
    %v5491 = vunpack.c.h.b16 %v5066
    %v5492 = vunpack.c.l.b16 %v5067
    %v5493 = vunpack.c.h.b16 %v5067
    %v5494 = vunpack.c.l.b16 %v5068
    %v5495 = vunpack.c.h.b16 %v5068
    %v5496 = vunpack.c.l.b16 %v5069
    %v5497 = vunpack.c.h.b16 %v5069
    %v5498 = vunpack.c.l.b16 %v5070
    %v5499 = vunpack.c.h.b16 %v5070
    %v5500 = vunpack.c.l.b16 %v5071
    %v5501 = vunpack.c.h.b16 %v5071
    %v5502 = vunpack.c.l.b16 %v5072
    %v5503 = vunpack.c.h.b16 %v5072
    %v5504 = vunpack.c.l.b16 %v5073
    %v5505 = vunpack.c.h.b16 %v5073
    %v5506 = vunpack.c.l.b16 %v5074
    %v5507 = vunpack.c.h.b16 %v5074
    %v5508 = vunpack.c.l.b16 %v5075
    %v5509 = vunpack.c.h.b16 %v5075
    %v5510 = vunpack.c.l.b16 %v5076
    %v5511 = vunpack.c.h.b16 %v5076
    %v5512 = vunpack.c.l.b16 %v5077
    %v5513 = vunpack.c.h.b16 %v5077
    %v5514 = vunpack.c.l.b16 %v5078
    %v5515 = vunpack.c.h.b16 %v5078
    %v5516 = vunpack.c.l.b16 %v5079
    %v5517 = vunpack.c.h.b16 %v5079
    %v5518 = vunpack.c.l.b16 %v5080
    %v5519 = vunpack.c.h.b16 %v5080
    %v5520 = vunpack.c.l.b16 %v5081
    %v5521 = vunpack.c.h.b16 %v5081
    %v5522 = vunpack.c.l.b16 %v5082
    %v5523 = vunpack.c.h.b16 %v5082
    %v5524 = vunpack.c.l.b16 %v5083
    %v5525 = vunpack.c.h.b16 %v5083
    %v5526 = vunpack.c.l.b16 %v5084
    %v5527 = vunpack.c.h.b16 %v5084
    %v5528 = vunpack.c.l.b16 %v5085
    %v5529 = vunpack.c.h.b16 %v5085
    %v5530 = vunpack.c.l.b16 %v5086
    %v5531 = vunpack.c.h.b16 %v5086
    %v5532 = vunpack.c.l.b16 %v5087
    %v5533 = vunpack.c.h.b16 %v5087
    %v5534 = vunpack.c.l.b16 %v5088
    %v5535 = vunpack.c.h.b16 %v5088
    %v5536 = vunpack.c.l.b16 %v5089
    %v5537 = vunpack.c.h.b16 %v5089
    %v5538 = vunpack.c.l.b16 %v5090
    %v5539 = vunpack.c.h.b16 %v5090
    %v5540 = vunpack.c.l.b16 %v5091
    %v5541 = vunpack.c.h.b16 %v5091
    %v5542 = vunpack.c.l.b16 %v5092
    %v5543 = vunpack.c.h.b16 %v5092
    %v5544 = vunpack.c.l.b16 %v5093
    %v5545 = vunpack.c.h.b16 %v5093
    %v5546 = vunpack.c.l.b16 %v5094
    %v5547 = vunpack.c.h.b16 %v5094
    %v5548 = vunpack.c.l.b16 %v5095
    %v5549 = vunpack.c.h.b16 %v5095
    %v5550 = vunpack.c.l.b16 %v5096
    %v5551 = vunpack.c.h.b16 %v5096
    %v5552 = vunpack.c.l.b16 %v5097
    %v5553 = vunpack.c.h.b16 %v5097
    %v5554 = vunpack.c.l.b16 %v5098
    %v5555 = vunpack.c.h.b16 %v5098
    %v5556 = vunpack.c.l.b16 %v5099
    %v5557 = vunpack.c.h.b16 %v5099
    %v5558 = vunpack.c.l.b16 %v5100
    %v5559 = vunpack.c.h.b16 %v5100
    %v5560 = vunpack.c.l.b16 %v5101
    %v5561 = vunpack.c.h.b16 %v5101
    %v5562 = vunpack.c.l.b16 %v5102
    %v5563 = vunpack.c.h.b16 %v5102
    %v5564 = vunpack.c.l.b16 %v5103
    %v5565 = vunpack.c.h.b16 %v5103
    %v5566 = vunpack.c.l.b16 %v5104
    %v5567 = vunpack.c.h.b16 %v5104
    %v5568 = vunpack.c.l.b16 %v5105
    %v5569 = vunpack.c.h.b16 %v5105
    %v5570 = vunpack.c.l.b16 %v5106
    %v5571 = vunpack.c.h.b16 %v5106
    %v5572 = vunpack.c.l.b16 %v5107
    %v5573 = vunpack.c.h.b16 %v5107
    %v5574 = vunpack.c.l.b16 %v5108
    %v5575 = vunpack.c.h.b16 %v5108
    %v5576 = vunpack.c.l.b16 %v5109
    %v5577 = vunpack.c.h.b16 %v5109
    %v5578 = vunpack.c.l.b16 %v5110
    %v5579 = vunpack.c.h.b16 %v5110
    %v5580 = vunpack.c.l.b16 %v5111
    %v5581 = vunpack.c.h.b16 %v5111
    %v5582 = vunpack.c.l.b16 %v5112
    %v5583 = vunpack.c.h.b16 %v5112
    %v5584 = vpack.c.b16 %v5330, %v5328
    %v5585 = vpack.c.b16 %v5331, %v5329
    %v5586 = vpack.c.b16 %v5334, %v5332
    %v5587 = vpack.c.b16 %v5335, %v5333
    %v5588 = vpack.c.b16 %v5338, %v5336
    %v5589 = vpack.c.b16 %v5339, %v5337
    %v5590 = vpack.c.b16 %v5342, %v5340
    %v5591 = vpack.c.b16 %v5343, %v5341
    %v5592 = vpack.c.b16 %v5346, %v5344
    %v5593 = vpack.c.b16 %v5347, %v5345
    %v5594 = vpack.c.b16 %v5350, %v5348
    %v5595 = vpack.c.b16 %v5351, %v5349
    %v5596 = vpack.c.b16 %v5354, %v5352
    %v5597 = vpack.c.b16 %v5355, %v5353
    %v5598 = vpack.c.b16 %v5358, %v5356
    %v5599 = vpack.c.b16 %v5359, %v5357
    %v5600 = vpack.c.b16 %v5362, %v5360
    %v5601 = vpack.c.b16 %v5363, %v5361
    %v5602 = vpack.c.b16 %v5366, %v5364
    %v5603 = vpack.c.b16 %v5367, %v5365
    %v5604 = vpack.c.b16 %v5370, %v5368
    %v5605 = vpack.c.b16 %v5371, %v5369
    %v5606 = vpack.c.b16 %v5374, %v5372
    %v5607 = vpack.c.b16 %v5375, %v5373
    %v5608 = vpack.c.b16 %v5378, %v5376
    %v5609 = vpack.c.b16 %v5379, %v5377
    %v5610 = vpack.c.b16 %v5382, %v5380
    %v5611 = vpack.c.b16 %v5383, %v5381
    %v5612 = vpack.c.b16 %v5386, %v5384
    %v5613 = vpack.c.b16 %v5387, %v5385
    %v5614 = vpack.c.b16 %v5390, %v5388
    %v5615 = vpack.c.b16 %v5391, %v5389
    %v5616 = vpack.c.b16 %v5394, %v5392
    %v5617 = vpack.c.b16 %v5395, %v5393
    %v5618 = vpack.c.b16 %v5398, %v5396
    %v5619 = vpack.c.b16 %v5399, %v5397
    %v5620 = vpack.c.b16 %v5402, %v5400
    %v5621 = vpack.c.b16 %v5403, %v5401
    %v5622 = vpack.c.b16 %v5406, %v5404
    %v5623 = vpack.c.b16 %v5407, %v5405
    %v5624 = vpack.c.b16 %v5410, %v5408
    %v5625 = vpack.c.b16 %v5411, %v5409
    %v5626 = vpack.c.b16 %v5414, %v5412
    %v5627 = vpack.c.b16 %v5415, %v5413
    %v5628 = vpack.c.b16 %v5418, %v5416
    %v5629 = vpack.c.b16 %v5419, %v5417
    %v5630 = vpack.c.b16 %v5422, %v5420
    %v5631 = vpack.c.b16 %v5423, %v5421
    %v5632 = vpack.c.b16 %v5426, %v5424
    %v5633 = vpack.c.b16 %v5427, %v5425
    %v5634 = vpack.c.b16 %v5430, %v5428
    %v5635 = vpack.c.b16 %v5431, %v5429
    %v5636 = vpack.c.b16 %v5434, %v5432
    %v5637 = vpack.c.b16 %v5435, %v5433
    %v5638 = vpack.c.b16 %v5438, %v5436
    %v5639 = vpack.c.b16 %v5439, %v5437
    %v5640 = vpack.c.b16 %v5442, %v5440
    %v5641 = vpack.c.b16 %v5443, %v5441
    %v5642 = vpack.c.b16 %v5446, %v5444
    %v5643 = vpack.c.b16 %v5447, %v5445
    %v5644 = vpack.c.b16 %v5450, %v5448
    %v5645 = vpack.c.b16 %v5451, %v5449
    %v5646 = vpack.c.b16 %v5454, %v5452
    %v5647 = vpack.c.b16 %v5455, %v5453
    %v5648 = vpack.c.b16 %v5458, %v5456
    %v5649 = vpack.c.b16 %v5459, %v5457
    %v5650 = vpack.c.b16 %v5462, %v5460
    %v5651 = vpack.c.b16 %v5463, %v5461
    %v5652 = vpack.c.b16 %v5466, %v5464
    %v5653 = vpack.c.b16 %v5467, %v5465
    %v5654 = vpack.c.b16 %v5470, %v5468
    %v5655 = vpack.c.b16 %v5471, %v5469
    %v5656 = vpack.c.b16 %v5474, %v5472
    %v5657 = vpack.c.b16 %v5475, %v5473
    %v5658 = vpack.c.b16 %v5478, %v5476
    %v5659 = vpack.c.b16 %v5479, %v5477
    %v5660 = vpack.c.b16 %v5482, %v5480
    %v5661 = vpack.c.b16 %v5483, %v5481
    %v5662 = vpack.c.b16 %v5486, %v5484
    %v5663 = vpack.c.b16 %v5487, %v5485
    %v5664 = vpack.c.b16 %v5490, %v5488
    %v5665 = vpack.c.b16 %v5491, %v5489
    %v5666 = vpack.c.b16 %v5494, %v5492
    %v5667 = vpack.c.b16 %v5495, %v5493
    %v5668 = vpack.c.b16 %v5498, %v5496
    %v5669 = vpack.c.b16 %v5499, %v5497
    %v5670 = vpack.c.b16 %v5502, %v5500
    %v5671 = vpack.c.b16 %v5503, %v5501
    %v5672 = vpack.c.b16 %v5506, %v5504
    %v5673 = vpack.c.b16 %v5507, %v5505
    %v5674 = vpack.c.b16 %v5510, %v5508
    %v5675 = vpack.c.b16 %v5511, %v5509
    %v5676 = vpack.c.b16 %v5514, %v5512
    %v5677 = vpack.c.b16 %v5515, %v5513
    %v5678 = vpack.c.b16 %v5518, %v5516
    %v5679 = vpack.c.b16 %v5519, %v5517
    %v5680 = vpack.c.b16 %v5522, %v5520
    %v5681 = vpack.c.b16 %v5523, %v5521
    %v5682 = vpack.c.b16 %v5526, %v5524
    %v5683 = vpack.c.b16 %v5527, %v5525
    %v5684 = vpack.c.b16 %v5530, %v5528
    %v5685 = vpack.c.b16 %v5531, %v5529
    %v5686 = vpack.c.b16 %v5534, %v5532
    %v5687 = vpack.c.b16 %v5535, %v5533
    %v5688 = vpack.c.b16 %v5538, %v5536
    %v5689 = vpack.c.b16 %v5539, %v5537
    %v5690 = vpack.c.b16 %v5542, %v5540
    %v5691 = vpack.c.b16 %v5543, %v5541
    %v5692 = vpack.c.b16 %v5546, %v5544
    %v5693 = vpack.c.b16 %v5547, %v5545
    %v5694 = vpack.c.b16 %v5550, %v5548
    %v5695 = vpack.c.b16 %v5551, %v5549
    %v5696 = vpack.c.b16 %v5554, %v5552
    %v5697 = vpack.c.b16 %v5555, %v5553
    %v5698 = vpack.c.b16 %v5558, %v5556
    %v5699 = vpack.c.b16 %v5559, %v5557
    %v5700 = vpack.c.b16 %v5562, %v5560
    %v5701 = vpack.c.b16 %v5563, %v5561
    %v5702 = vpack.c.b16 %v5566, %v5564
    %v5703 = vpack.c.b16 %v5567, %v5565
    %v5704 = vpack.c.b16 %v5570, %v5568
    %v5705 = vpack.c.b16 %v5571, %v5569
    %v5706 = vpack.c.b16 %v5574, %v5572
    %v5707 = vpack.c.b16 %v5575, %v5573
    %v5708 = vpack.c.b16 %v5578, %v5576
    %v5709 = vpack.c.b16 %v5579, %v5577
    %v5710 = vpack.c.b16 %v5582, %v5580
    %v5711 = vpack.c.b16 %v5583, %v5581
    %5840 = vmatprep.subr.bf16.mxu0 %v5585
    %5841 = vmatpush1.bf16.msra.mxu0 %v5584
    %5842 = vmatprep.subr.bf16.mxu0 %v5587
    %5843 = vmatpush1.bf16.msra.mxu0 %v5586
    %5844 = vmatprep.subr.bf16.mxu0 %v5589
    %5845 = vmatpush1.bf16.msra.mxu0 %v5588
    %5846 = vmatprep.subr.bf16.mxu0 %v5591
    %5847 = vmatpush1.bf16.msra.mxu0 %v5590
    %5848 = vmatprep.subr.bf16.mxu0 %v5593
    %5849 = vmatpush1.bf16.msra.mxu0 %v5592
    %5850 = vmatprep.subr.bf16.mxu0 %v5595
    %5851 = vmatpush1.bf16.msra.mxu0 %v5594
    %5852 = vmatprep.subr.bf16.mxu0 %v5597
    %5853 = vmatpush1.bf16.msra.mxu0 %v5596
    %5854 = vmatprep.subr.bf16.mxu0 %v5599
    %5855 = vmatpush1.bf16.msra.mxu0 %v5598
    %5856 = vmatprep.subr.bf16.mxu0 %v5601
    %5857 = vmatpush1.bf16.msra.mxu0 %v5600
    %5858 = vmatprep.subr.bf16.mxu0 %v5603
    %5859 = vmatpush1.bf16.msra.mxu0 %v5602
    %5860 = vmatprep.subr.bf16.mxu0 %v5605
    %5861 = vmatpush1.bf16.msra.mxu0 %v5604
    %5862 = vmatprep.subr.bf16.mxu0 %v5607
    %5863 = vmatpush1.bf16.msra.mxu0 %v5606
    %5864 = vmatprep.subr.bf16.mxu0 %v5609
    %5865 = vmatpush1.bf16.msra.mxu0 %v5608
    %5866 = vmatprep.subr.bf16.mxu0 %v5611
    %5867 = vmatpush1.bf16.msra.mxu0 %v5610
    %5868 = vmatprep.subr.bf16.mxu0 %v5613
    %5869 = vmatpush1.bf16.msra.mxu0 %v5612
    %5870 = vmatprep.subr.bf16.mxu0 %v5615
    %5871 = vmatpush1.bf16.msra.mxu0 %v5614
    %5872 = vmatprep.mubr.bf16.mxu0 %v5182
    %5873 = vmatmul.mubr.bf16.gmra.mrb[0].mxu0 %v5181
    %v5874 = vpop.f32.mrb[0].mxu0
    %v5875 = vadd.f32 %v5193, %v5874
    %v5876 = vpop.f32.mrb[0].mxu0
    %v5877 = vadd.f32 %v5197, %v5876
    %v5878 = vpop.f32.mrb[0].mxu0
    %v5879 = vpop.f32.mrb[0].mxu0
    %5880 = vdwg.mxu0
    %5881 = vmatprep.subr.bf16.mxu0 %v5617
    %5882 = vmatpush1.bf16.msra.mxu0 %v5616
    %5883 = vmatprep.subr.bf16.mxu0 %v5619
    %5884 = vmatpush1.bf16.msra.mxu0 %v5618
    %5885 = vmatprep.subr.bf16.mxu0 %v5621
    %5886 = vmatpush1.bf16.msra.mxu0 %v5620
    %5887 = vmatprep.subr.bf16.mxu0 %v5623
    %5888 = vmatpush1.bf16.msra.mxu0 %v5622
    %5889 = vmatprep.subr.bf16.mxu0 %v5625
    %5890 = vmatpush1.bf16.msra.mxu0 %v5624
    %5891 = vmatprep.subr.bf16.mxu0 %v5627
    %5892 = vmatpush1.bf16.msra.mxu0 %v5626
    %5893 = vmatprep.subr.bf16.mxu0 %v5629
    %5894 = vmatpush1.bf16.msra.mxu0 %v5628
    %5895 = vmatprep.subr.bf16.mxu0 %v5631
    %5896 = vmatpush1.bf16.msra.mxu0 %v5630
    %5897 = vmatprep.subr.bf16.mxu0 %v5633
    %5898 = vmatpush1.bf16.msra.mxu0 %v5632
    %5899 = vmatprep.subr.bf16.mxu0 %v5635
    %5900 = vmatpush1.bf16.msra.mxu0 %v5634
    %5901 = vmatprep.subr.bf16.mxu0 %v5637
    %5902 = vmatpush1.bf16.msra.mxu0 %v5636
    %5903 = vmatprep.subr.bf16.mxu0 %v5639
    %5904 = vmatpush1.bf16.msra.mxu0 %v5638
    %5905 = vmatprep.subr.bf16.mxu0 %v5641
    %5906 = vmatpush1.bf16.msra.mxu0 %v5640
    %5907 = vmatprep.subr.bf16.mxu0 %v5643
    %5908 = vmatpush1.bf16.msra.mxu0 %v5642
    %5909 = vmatprep.subr.bf16.mxu0 %v5645
    %5910 = vmatpush1.bf16.msra.mxu0 %v5644
    %5911 = vmatprep.subr.bf16.mxu0 %v5647
    %5912 = vmatpush1.bf16.msra.mxu0 %v5646
    %5913 = vmatprep.mubr.bf16.mxu0 %v5184
    %5914 = vmatmul.mubr.bf16.gmra.mrb[0].mxu0 %v5183
    %v5915 = vpop.f32.mrb[0].mxu0
    %v5916 = vadd.f32 %v5875, %v5915
    %v5917 = vpop.f32.mrb[0].mxu0
    %v5918 = vadd.f32 %v5877, %v5917
    %v5919 = vpop.f32.mrb[0].mxu0
    %v5920 = vpop.f32.mrb[0].mxu0
    %5921 = vdwg.mxu0
    %5922 = vmatprep.subr.bf16.mxu0 %v5649
    %5923 = vmatpush1.bf16.msra.mxu0 %v5648
    %5924 = vmatprep.subr.bf16.mxu0 %v5651
    %5925 = vmatpush1.bf16.msra.mxu0 %v5650
    %5926 = vmatprep.subr.bf16.mxu0 %v5653
    %5927 = vmatpush1.bf16.msra.mxu0 %v5652
    %5928 = vmatprep.subr.bf16.mxu0 %v5655
    %5929 = vmatpush1.bf16.msra.mxu0 %v5654
    %5930 = vmatprep.subr.bf16.mxu0 %v5657
    %5931 = vmatpush1.bf16.msra.mxu0 %v5656
    %5932 = vmatprep.subr.bf16.mxu0 %v5659
    %5933 = vmatpush1.bf16.msra.mxu0 %v5658
    %5934 = vmatprep.subr.bf16.mxu0 %v5661
    %5935 = vmatpush1.bf16.msra.mxu0 %v5660
    %5936 = vmatprep.subr.bf16.mxu0 %v5663
    %5937 = vmatpush1.bf16.msra.mxu0 %v5662
    %5938 = vmatprep.subr.bf16.mxu0 %v5665
    %5939 = vmatpush1.bf16.msra.mxu0 %v5664
    %5940 = vmatprep.subr.bf16.mxu0 %v5667
    %5941 = vmatpush1.bf16.msra.mxu0 %v5666
    %5942 = vmatprep.subr.bf16.mxu0 %v5669
    %5943 = vmatpush1.bf16.msra.mxu0 %v5668
    %5944 = vmatprep.subr.bf16.mxu0 %v5671
    %5945 = vmatpush1.bf16.msra.mxu0 %v5670
    %5946 = vmatprep.subr.bf16.mxu0 %v5673
    %5947 = vmatpush1.bf16.msra.mxu0 %v5672
    %5948 = vmatprep.subr.bf16.mxu0 %v5675
    %5949 = vmatpush1.bf16.msra.mxu0 %v5674
    %5950 = vmatprep.subr.bf16.mxu0 %v5677
    %5951 = vmatpush1.bf16.msra.mxu0 %v5676
    %5952 = vmatprep.subr.bf16.mxu0 %v5679
    %5953 = vmatpush1.bf16.msra.mxu0 %v5678
    %5954 = vmatprep.mubr.bf16.mxu0 %v5186
    %5955 = vmatmul.mubr.bf16.gmra.mrb[0].mxu0 %v5185
    %v5956 = vpop.f32.mrb[0].mxu0
    %v5957 = vadd.f32 %v5916, %v5956
    %v5958 = vpop.f32.mrb[0].mxu0
    %v5959 = vadd.f32 %v5918, %v5958
    %v5960 = vpop.f32.mrb[0].mxu0
    %v5961 = vpop.f32.mrb[0].mxu0
    %5962 = vdwg.mxu0
    %5963 = vmatprep.subr.bf16.mxu0 %v5681
    %5964 = vmatpush1.bf16.msra.mxu0 %v5680
    %5965 = vmatprep.subr.bf16.mxu0 %v5683
    %5966 = vmatpush1.bf16.msra.mxu0 %v5682
    %5967 = vmatprep.subr.bf16.mxu0 %v5685
    %5968 = vmatpush1.bf16.msra.mxu0 %v5684
    %5969 = vmatprep.subr.bf16.mxu0 %v5687
    %5970 = vmatpush1.bf16.msra.mxu0 %v5686
    %5971 = vmatprep.subr.bf16.mxu0 %v5689
    %5972 = vmatpush1.bf16.msra.mxu0 %v5688
    %5973 = vmatprep.subr.bf16.mxu0 %v5691
    %5974 = vmatpush1.bf16.msra.mxu0 %v5690
    %5975 = vmatprep.subr.bf16.mxu0 %v5693
    %5976 = vmatpush1.bf16.msra.mxu0 %v5692
    %5977 = vmatprep.subr.bf16.mxu0 %v5695
    %5978 = vmatpush1.bf16.msra.mxu0 %v5694
    %5979 = vmatprep.subr.bf16.mxu0 %v5697
    %5980 = vmatpush1.bf16.msra.mxu0 %v5696
    %5981 = vmatprep.subr.bf16.mxu0 %v5699
    %5982 = vmatpush1.bf16.msra.mxu0 %v5698
    %5983 = vmatprep.subr.bf16.mxu0 %v5701
    %5984 = vmatpush1.bf16.msra.mxu0 %v5700
    %5985 = vmatprep.subr.bf16.mxu0 %v5703
    %5986 = vmatpush1.bf16.msra.mxu0 %v5702
    %5987 = vmatprep.subr.bf16.mxu0 %v5705
    %5988 = vmatpush1.bf16.msra.mxu0 %v5704
    %5989 = vmatprep.subr.bf16.mxu0 %v5707
    %5990 = vmatpush1.bf16.msra.mxu0 %v5706
    %5991 = vmatprep.subr.bf16.mxu0 %v5709
    %5992 = vmatpush1.bf16.msra.mxu0 %v5708
    %5993 = vmatprep.subr.bf16.mxu0 %v5711
    %5994 = vmatpush1.bf16.msra.mxu0 %v5710
    %5995 = vmatprep.mubr.bf16.mxu0 %v5188
    %5996 = vmatmul.mubr.bf16.gmra.mrb[0].mxu0 %v5187
    %v5997 = vpop.f32.mrb[0].mxu0
    %v5998 = vadd.f32 %v5957, %v5997
    %v5999 = vpop.f32.mrb[0].mxu0
    %v6000 = vadd.f32 %v5959, %v5999
    %v6001 = vpop.f32.mrb[0].mxu0
    %v6002 = vpop.f32.mrb[0].mxu0
    %6003 = vdwg.mxu0
    %v6004 = vmul.f32 %v5998, 0.5
    %v6005 = vmul.f32 %v6000, 0.5
    %v6006 = vmul.f32 %v5998, 0.044715
    %v6007 = vmul.f32 %v6000, 0.044715
    %v6008 = vmul.f32 %v6006, %v5998
    %v6009 = vmul.f32 %v6007, %v6000
    %v6010 = vmul.f32 %v6008, %v5998
    %v6011 = vmul.f32 %v6009, %v6000
    %v6012 = vadd.f32 %v5998, %v6010
    %v6013 = vadd.f32 %v6000, %v6011
    %v6014 = vmul.f32 %v6012, 0.7978846
    %v6015 = vmul.f32 %v6013, 0.7978846
    %v6016 = vtanh.pop %v6014
    %v6017 = vtanh.pop %v6015
    %v6018 = vadd.f32 %v6016, 1.0
    %v6019 = vadd.f32 %v6017, 1.0
    %v6020 = vmul.f32 %v6004, %v6018
    %v6021 = vmul.f32 %v6005, %v6019
    %v6023 = vlaneseq
    %v6024 = vshrl.u32 %v6023, 7
    %v6025 = vsub.s32 0, %v6024
    %v6026 = vrot.slane %v5178, %v6025
    %v6027 = vlaneseq
    %v6028 = vshrl.u32 %v6027, 7
    %v6029 = vsub.s32 1, %v6028
    %v6030 = vrot.slane %v5178, %v6029
    %6033 = vmatprep.subr.mxu0 %v5115
    %6034 = vmatpush1.msra.mxu0 %v5114
    %6035 = vmatprep.subr.mxu0 %v5117
    %6036 = vmatpush1.msra.mxu0 %v5116
    %6037 = vmatprep.subr.mxu0 %v5119
    %6038 = vmatpush1.msra.mxu0 %v5118
    %6039 = vmatprep.subr.mxu0 %v5121
    %6040 = vmatpush1.msra.mxu0 %v5120
    %6041 = vmatprep.subr.mxu0 %v5123
    %6042 = vmatpush1.msra.mxu0 %v5122
    %6043 = vmatprep.subr.mxu0 %v5125
    %6044 = vmatpush1.msra.mxu0 %v5124
    %6045 = vmatprep.subr.mxu0 %v5127
    %6046 = vmatpush1.msra.mxu0 %v5126
    %6047 = vmatprep.subr.mxu0 %v5129
    %6048 = vmatpush1.msra.mxu0 %v5128
    %6049 = vmatprep.subr.mxu0 %v5131
    %6050 = vmatpush1.msra.mxu0 %v5130
    %6051 = vmatprep.subr.mxu0 %v5133
    %6052 = vmatpush1.msra.mxu0 %v5132
    %6053 = vmatprep.subr.mxu0 %v5135
    %6054 = vmatpush1.msra.mxu0 %v5134
    %6055 = vmatprep.subr.mxu0 %v5137
    %6056 = vmatpush1.msra.mxu0 %v5136
    %6057 = vmatprep.subr.mxu0 %v5139
    %6058 = vmatpush1.msra.mxu0 %v5138
    %6059 = vmatprep.subr.mxu0 %v5141
    %6060 = vmatpush1.msra.mxu0 %v5140
    %6061 = vmatprep.subr.mxu0 %v5143
    %6062 = vmatpush1.msra.mxu0 %v5142
    %6063 = vmatprep.subr.mxu0 %v5145
    %6064 = vmatpush1.msra.mxu0 %v5144
    %6065 = vmatprep.subr.mxu0 %v5147
    %6066 = vmatpush1.msra.mxu0 %v5146
    %6067 = vmatprep.subr.mxu0 %v5149
    %6068 = vmatpush1.msra.mxu0 %v5148
    %6069 = vmatprep.subr.mxu0 %v5151
    %6070 = vmatpush1.msra.mxu0 %v5150
    %6071 = vmatprep.subr.mxu0 %v5153
    %6072 = vmatpush1.msra.mxu0 %v5152
    %6073 = vmatprep.subr.mxu0 %v5155
    %6074 = vmatpush1.msra.mxu0 %v5154
    %6075 = vmatprep.subr.mxu0 %v5157
    %6076 = vmatpush1.msra.mxu0 %v5156
    %6077 = vmatprep.subr.mxu0 %v5159
    %6078 = vmatpush1.msra.mxu0 %v5158
    %6079 = vmatprep.subr.mxu0 %v5161
    %6080 = vmatpush1.msra.mxu0 %v5160
    %6081 = vmatprep.subr.mxu0 %v5163
    %6082 = vmatpush1.msra.mxu0 %v5162
    %6083 = vmatprep.subr.mxu0 %v5165
    %6084 = vmatpush1.msra.mxu0 %v5164
    %6085 = vmatprep.subr.mxu0 %v5167
    %6086 = vmatpush1.msra.mxu0 %v5166
    %6087 = vmatprep.subr.mxu0 %v5169
    %6088 = vmatpush1.msra.mxu0 %v5168
    %6089 = vmatprep.subr.mxu0 %v5171
    %6090 = vmatpush1.msra.mxu0 %v5170
    %6091 = vmatprep.subr.mxu0 %v5173
    %6092 = vmatpush1.msra.mxu0 %v5172
    %6093 = vmatprep.subr.mxu0 %v5175
    %6094 = vmatpush1.msra.mxu0 %v5174
    %6095 = vmatprep.subr.mxu0 %v5177
    %6096 = vmatpush1.msra.mxu0 %v5176
    %6097 = vmatprep.mubr.f32.mxu0 %v6021
    %6098 = vmatmul.mubr.f32.gmra.mrb[0].mxu0 %v6020
    %v6099 = vpop.f32.mrb[0].mxu0
    %v6100 = vadd.f32 %v6026, %v6099
    %v6101 = vpop.f32.mrb[0].mxu0
    %v6102 = vadd.f32 %v6030, %v6101
    %6103 = vdwg.mxu0
    %v6104 = vadd.f32 %v6100, %v5998
    %v6105 = vadd.f32 %v6102, %v6000
    %v6106 = vsel %vm4914, %v6104, 0.0
    %v6107 = vsel %vm4914, %v6105, 0.0
    %v6108 = vadd.f32 %v6106, %v6107
    %6109 = vadd.xlane.f32.xlu0 %v6108
    %v6110 = vpop.xlane.xlu0 %6109
    %v6111 = vrcp.pop 256.0
    %v6112 = vmul.f32 %v6110, %v6111
    %v6113 = vsub.f32 %v6104, %v6112
    %v6114 = vsub.f32 %v6105, %v6112
    %v6115 = vmul.f32 %v6113, %v6113
    %v6116 = vmul.f32 %v6114, %v6114
    %v6117 = vsel %vm4914, %v6115, 0.0
    %v6118 = vsel %vm4914, %v6116, 0.0
    %v6119 = vadd.f32 %v6117, %v6118
    %6120 = vadd.xlane.f32.xlu0 %v6119
    %v6121 = vpop.xlane.xlu0 %6120
    %v6122 = vmul.f32 %v6121, %v6111
    %v6123 = vadd.f32 %v6122, 1e-05
    %v6124 = vrsqrt.pop %v6123
    %v6125 = vmul.f32 %v6113, %v6124
    %v6126 = vmul.f32 %v6114, %v6124
    %v6128 = vlaneseq
    %v6129 = vshrl.u32 %v6128, 7
    %v6130 = vsub.s32 0, %v6129
    %v6131 = vrot.slane %v5179, %v6130
    %v6132 = vlaneseq
    %v6133 = vshrl.u32 %v6132, 7
    %v6134 = vsub.s32 1, %v6133
    %v6135 = vrot.slane %v5179, %v6134
    %v6138 = vmul.f32 %v6125, %v6131
    %v6139 = vmul.f32 %v6126, %v6135
    %v6141 = vlaneseq
    %v6142 = vshrl.u32 %v6141, 7
    %v6143 = vsub.s32 0, %v6142
    %v6144 = vrot.slane %v5180, %v6143
    %v6145 = vlaneseq
    %v6146 = vshrl.u32 %v6145, 7
    %v6147 = vsub.s32 1, %v6146
    %v6148 = vrot.slane %v5180, %v6147
    %v6151 = vadd.f32 %v6138, %v6144
    %v6152 = vadd.f32 %v6139, %v6148
    %v6153 = vld [vmem:[#allocation29] sm:$0xff]
    %v6154 = vld [vmem:[#allocation29 + $0x8] sm:$0xff]
    %v6155 = vld [vmem:[#allocation29 + $0x10] sm:$0xff]
    %v6156 = vld [vmem:[#allocation29 + $0x18] sm:$0xff]
    %v6157 = vld [vmem:[#allocation29 + $0x20] sm:$0xff]
    %v6158 = vld [vmem:[#allocation29 + $0x28] sm:$0xff]
    %v6159 = vld [vmem:[#allocation29 + $0x30] sm:$0xff]
    %v6160 = vld [vmem:[#allocation29 + $0x38] sm:$0xff]
    %v6161 = vld [vmem:[#allocation29 + $0x40] sm:$0xff]
    %v6162 = vld [vmem:[#allocation29 + $0x48] sm:$0xff]
    %v6163 = vld [vmem:[#allocation29 + $0x50] sm:$0xff]
    %v6164 = vld [vmem:[#allocation29 + $0x58] sm:$0xff]
    %v6165 = vld [vmem:[#allocation29 + $0x60] sm:$0xff]
    %v6166 = vld [vmem:[#allocation29 + $0x68] sm:$0xff]
    %v6167 = vld [vmem:[#allocation29 + $0x70] sm:$0xff]
    %v6168 = vld [vmem:[#allocation29 + $0x78] sm:$0xff]
    %v6169 = vld [vmem:[#allocation29 + $0x80] sm:$0xff]
    %v6170 = vld [vmem:[#allocation29 + $0x88] sm:$0xff]
    %v6171 = vld [vmem:[#allocation29 + $0x90] sm:$0xff]
    %v6172 = vld [vmem:[#allocation29 + $0x98] sm:$0xff]
    %v6173 = vld [vmem:[#allocation29 + $0xa0] sm:$0xff]
    %v6174 = vld [vmem:[#allocation29 + $0xa8] sm:$0xff]
    %v6175 = vld [vmem:[#allocation29 + $0xb0] sm:$0xff]
    %v6176 = vld [vmem:[#allocation29 + $0xb8] sm:$0xff]
    %v6177 = vld [vmem:[#allocation29 + $0xc0] sm:$0xff]
    %v6178 = vld [vmem:[#allocation29 + $0xc8] sm:$0xff]
    %v6179 = vld [vmem:[#allocation29 + $0xd0] sm:$0xff]
    %v6180 = vld [vmem:[#allocation29 + $0xd8] sm:$0xff]
    %v6181 = vld [vmem:[#allocation29 + $0xe0] sm:$0xff]
    %v6182 = vld [vmem:[#allocation29 + $0xe8] sm:$0xff]
    %v6183 = vld [vmem:[#allocation29 + $0xf0] sm:$0xff]
    %v6184 = vld [vmem:[#allocation29 + $0xf8] sm:$0xff]
    %v6185 = vld [vmem:[#allocation31] sm:$0x3]
    %v6186 = vld [vmem:[#allocation32] sm:$0xff]
    %v6187 = vld [vmem:[#allocation32 + $0x8] sm:$0xff]
    %v6188 = vld [vmem:[#allocation32 + $0x10] sm:$0xff]
    %v6189 = vld [vmem:[#allocation32 + $0x18] sm:$0xff]
    %v6190 = vld [vmem:[#allocation32 + $0x20] sm:$0xff]
    %v6191 = vld [vmem:[#allocation32 + $0x28] sm:$0xff]
    %v6192 = vld [vmem:[#allocation32 + $0x30] sm:$0xff]
    %v6193 = vld [vmem:[#allocation32 + $0x38] sm:$0xff]
    %v6194 = vld [vmem:[#allocation32 + $0x40] sm:$0xff]
    %v6195 = vld [vmem:[#allocation32 + $0x48] sm:$0xff]
    %v6196 = vld [vmem:[#allocation32 + $0x50] sm:$0xff]
    %v6197 = vld [vmem:[#allocation32 + $0x58] sm:$0xff]
    %v6198 = vld [vmem:[#allocation32 + $0x60] sm:$0xff]
    %v6199 = vld [vmem:[#allocation32 + $0x68] sm:$0xff]
    %v6200 = vld [vmem:[#allocation32 + $0x70] sm:$0xff]
    %v6201 = vld [vmem:[#allocation32 + $0x78] sm:$0xff]
    %v6202 = vld [vmem:[#allocation32 + $0x80] sm:$0xff]
    %v6203 = vld [vmem:[#allocation32 + $0x88] sm:$0xff]
    %v6204 = vld [vmem:[#allocation32 + $0x90] sm:$0xff]
    %v6205 = vld [vmem:[#allocation32 + $0x98] sm:$0xff]
    %v6206 = vld [vmem:[#allocation32 + $0xa0] sm:$0xff]
    %v6207 = vld [vmem:[#allocation32 + $0xa8] sm:$0xff]
    %v6208 = vld [vmem:[#allocation32 + $0xb0] sm:$0xff]
    %v6209 = vld [vmem:[#allocation32 + $0xb8] sm:$0xff]
    %v6210 = vld [vmem:[#allocation32 + $0xc0] sm:$0xff]
    %v6211 = vld [vmem:[#allocation32 + $0xc8] sm:$0xff]
    %v6212 = vld [vmem:[#allocation32 + $0xd0] sm:$0xff]
    %v6213 = vld [vmem:[#allocation32 + $0xd8] sm:$0xff]
    %v6214 = vld [vmem:[#allocation32 + $0xe0] sm:$0xff]
    %v6215 = vld [vmem:[#allocation32 + $0xe8] sm:$0xff]
    %v6216 = vld [vmem:[#allocation32 + $0xf0] sm:$0xff]
    %v6217 = vld [vmem:[#allocation32 + $0xf8] sm:$0xff]
    %v6218 = vld [vmem:[#allocation32 + $0x100] sm:$0xff]
    %v6219 = vld [vmem:[#allocation32 + $0x108] sm:$0xff]
    %v6220 = vld [vmem:[#allocation32 + $0x110] sm:$0xff]
    %v6221 = vld [vmem:[#allocation32 + $0x118] sm:$0xff]
    %v6222 = vld [vmem:[#allocation32 + $0x120] sm:$0xff]
    %v6223 = vld [vmem:[#allocation32 + $0x128] sm:$0xff]
    %v6224 = vld [vmem:[#allocation32 + $0x130] sm:$0xff]
    %v6225 = vld [vmem:[#allocation32 + $0x138] sm:$0xff]
    %v6226 = vld [vmem:[#allocation32 + $0x140] sm:$0xff]
    %v6227 = vld [vmem:[#allocation32 + $0x148] sm:$0xff]
    %v6228 = vld [vmem:[#allocation32 + $0x150] sm:$0xff]
    %v6229 = vld [vmem:[#allocation32 + $0x158] sm:$0xff]
    %v6230 = vld [vmem:[#allocation32 + $0x160] sm:$0xff]
    %v6231 = vld [vmem:[#allocation32 + $0x168] sm:$0xff]
    %v6232 = vld [vmem:[#allocation32 + $0x170] sm:$0xff]
    %v6233 = vld [vmem:[#allocation32 + $0x178] sm:$0xff]
    %v6234 = vld [vmem:[#allocation32 + $0x180] sm:$0xff]
    %v6235 = vld [vmem:[#allocation32 + $0x188] sm:$0xff]
    %v6236 = vld [vmem:[#allocation32 + $0x190] sm:$0xff]
    %v6237 = vld [vmem:[#allocation32 + $0x198] sm:$0xff]
    %v6238 = vld [vmem:[#allocation32 + $0x1a0] sm:$0xff]
    %v6239 = vld [vmem:[#allocation32 + $0x1a8] sm:$0xff]
    %v6240 = vld [vmem:[#allocation32 + $0x1b0] sm:$0xff]
    %v6241 = vld [vmem:[#allocation32 + $0x1b8] sm:$0xff]
    %v6242 = vld [vmem:[#allocation32 + $0x1c0] sm:$0xff]
    %v6243 = vld [vmem:[#allocation32 + $0x1c8] sm:$0xff]
    %v6244 = vld [vmem:[#allocation32 + $0x1d0] sm:$0xff]
    %v6245 = vld [vmem:[#allocation32 + $0x1d8] sm:$0xff]
    %v6246 = vld [vmem:[#allocation32 + $0x1e0] sm:$0xff]
    %v6247 = vld [vmem:[#allocation32 + $0x1e8] sm:$0xff]
    %v6248 = vld [vmem:[#allocation32 + $0x1f0] sm:$0xff]
    %v6249 = vld [vmem:[#allocation32 + $0x1f8] sm:$0xff]
    %v6250 = vld [vmem:[#allocation34] sm:$0x3]
    %v6251 = vld [vmem:[#allocation35] sm:$0x3]
    %v6252 = vld [vmem:[#allocation37] sm:$0x3]
    %v6254 = vlaneseq
    %v6255 = vshrl.u32 %v6254, 7
    %v6256 = vsub.s32 0, %v6255
    %v6257 = vrot.slane %v6185, %v6256
    %v6258 = vlaneseq
    %v6259 = vshrl.u32 %v6258, 7
    %v6260 = vsub.s32 1, %v6259
    %v6261 = vrot.slane %v6185, %v6260
    %v6268 = vrot.slane %v4982, 7
    %v6269 = vsel %vm4905, %v6268, %v4981
    %v6270 = vrot.slane %v4983, 6
    %v6271 = vsel %vm4908, %v6270, %v6269
    %v6272 = vrot.slane %v4984, 5
    %v6273 = vsel %vm4911, %v6272, %v6271
    %6275 = vmatprep.subr.mxu0 %v6154
    %6276 = vmatpush1.msra.mxu0 %v6153
    %6277 = vmatprep.subr.mxu0 %v6156
    %6278 = vmatpush1.msra.mxu0 %v6155
    %6279 = vmatprep.subr.mxu0 %v6158
    %6280 = vmatpush1.msra.mxu0 %v6157
    %6281 = vmatprep.subr.mxu0 %v6160
    %6282 = vmatpush1.msra.mxu0 %v6159
    %6283 = vmatprep.subr.mxu0 %v6162
    %6284 = vmatpush1.msra.mxu0 %v6161
    %6285 = vmatprep.subr.mxu0 %v6164
    %6286 = vmatpush1.msra.mxu0 %v6163
    %6287 = vmatprep.subr.mxu0 %v6166
    %6288 = vmatpush1.msra.mxu0 %v6165
    %6289 = vmatprep.subr.mxu0 %v6168
    %6290 = vmatpush1.msra.mxu0 %v6167
    %6291 = vmatprep.subr.mxu0 %v6170
    %6292 = vmatpush1.msra.mxu0 %v6169
    %6293 = vmatprep.subr.mxu0 %v6172
    %6294 = vmatpush1.msra.mxu0 %v6171
    %6295 = vmatprep.subr.mxu0 %v6174
    %6296 = vmatpush1.msra.mxu0 %v6173
    %6297 = vmatprep.subr.mxu0 %v6176
    %6298 = vmatpush1.msra.mxu0 %v6175
    %6299 = vmatprep.subr.mxu0 %v6178
    %6300 = vmatpush1.msra.mxu0 %v6177
    %6301 = vmatprep.subr.mxu0 %v6180
    %6302 = vmatpush1.msra.mxu0 %v6179
    %6303 = vmatprep.subr.mxu0 %v6182
    %6304 = vmatpush1.msra.mxu0 %v6181
    %6305 = vmatprep.subr.mxu0 %v6184
    %6306 = vmatpush1.msra.mxu0 %v6183
    %6307 = vmatprep.subr.mxu0 0.0
    %6308 = vmatpush1.msra.mxu0 0.0
    %6309 = vmatprep.subr.mxu0 0.0
    %6310 = vmatpush1.msra.mxu0 0.0
    %6311 = vmatprep.subr.mxu0 0.0
    %6312 = vmatpush1.msra.mxu0 0.0
    %6313 = vmatprep.subr.mxu0 0.0
    %6314 = vmatpush1.msra.mxu0 0.0
    %6315 = vmatprep.subr.mxu0 0.0
    %6316 = vmatpush1.msra.mxu0 0.0
    %6317 = vmatprep.subr.mxu0 0.0
    %6318 = vmatpush1.msra.mxu0 0.0
    %6319 = vmatprep.subr.mxu0 0.0
    %6320 = vmatpush1.msra.mxu0 0.0
    %6321 = vmatprep.subr.mxu0 0.0
    %6322 = vmatpush1.msra.mxu0 0.0
    %6323 = vmatprep.subr.mxu0 0.0
    %6324 = vmatpush1.msra.mxu0 0.0
    %6325 = vmatprep.subr.mxu0 0.0
    %6326 = vmatpush1.msra.mxu0 0.0
    %6327 = vmatprep.subr.mxu0 0.0
    %6328 = vmatpush1.msra.mxu0 0.0
    %6329 = vmatprep.subr.mxu0 0.0
    %6330 = vmatpush1.msra.mxu0 0.0
    %6331 = vmatprep.subr.mxu0 0.0
    %6332 = vmatpush1.msra.mxu0 0.0
    %6333 = vmatprep.subr.mxu0 0.0
    %6334 = vmatpush1.msra.mxu0 0.0
    %6335 = vmatprep.subr.mxu0 0.0
    %6336 = vmatpush1.msra.mxu0 0.0
    %6337 = vmatprep.subr.mxu0 0.0
    %6338 = vmatpush1.msra.mxu0 0.0
    %6339 = vmatprep.mubr.f32.mxu0 0.0
    %6340 = vmatmul.mubr.f32.gmra.mrb[0].mxu0 %v6273
    %v6341 = vpop.f32.mrb[0].mxu0
    %v6342 = vadd.f32 %v6257, %v6341
    %v6343 = vpop.f32.mrb[0].mxu0
    %v6344 = vadd.f32 %v6261, %v6343
    %6345 = vdwg.mxu0
    %v6346 = vmul.f32 %v6342, 0.5
    %v6347 = vmul.f32 %v6344, 0.5
    %v6348 = vmul.f32 %v6342, 0.044715
    %v6349 = vmul.f32 %v6344, 0.044715
    %v6350 = vmul.f32 %v6348, %v6342
    %v6351 = vmul.f32 %v6349, %v6344
    %v6352 = vmul.f32 %v6350, %v6342
    %v6353 = vmul.f32 %v6351, %v6344
    %v6354 = vadd.f32 %v6342, %v6352
    %v6355 = vadd.f32 %v6344, %v6353
    %v6356 = vmul.f32 %v6354, 0.7978846
    %v6357 = vmul.f32 %v6355, 0.7978846
    %v6358 = vtanh.pop %v6356
    %v6359 = vtanh.pop %v6357
    %v6360 = vadd.f32 %v6358, 1.0
    %v6361 = vadd.f32 %v6359, 1.0
    %v6362 = vmul.f32 %v6346, %v6360
    %v6363 = vmul.f32 %v6347, %v6361
    %v6365 = vlaneseq
    %v6366 = vshrl.u32 %v6365, 7
    %v6367 = vsub.s32 0, %v6366
    %v6368 = vrot.slane %v6250, %v6367
    %v6369 = vlaneseq
    %v6370 = vshrl.u32 %v6369, 7
    %v6371 = vsub.s32 1, %v6370
    %v6372 = vrot.slane %v6250, %v6371
    %6375 = vmatprep.subr.mxu0 %v6187
    %6376 = vmatpush1.msra.mxu0 %v6186
    %6377 = vmatprep.subr.mxu0 %v6189
    %6378 = vmatpush1.msra.mxu0 %v6188
    %6379 = vmatprep.subr.mxu0 %v6191
    %6380 = vmatpush1.msra.mxu0 %v6190
    %6381 = vmatprep.subr.mxu0 %v6193
    %6382 = vmatpush1.msra.mxu0 %v6192
    %6383 = vmatprep.subr.mxu0 %v6195
    %6384 = vmatpush1.msra.mxu0 %v6194
    %6385 = vmatprep.subr.mxu0 %v6197
    %6386 = vmatpush1.msra.mxu0 %v6196
    %6387 = vmatprep.subr.mxu0 %v6199
    %6388 = vmatpush1.msra.mxu0 %v6198
    %6389 = vmatprep.subr.mxu0 %v6201
    %6390 = vmatpush1.msra.mxu0 %v6200
    %6391 = vmatprep.subr.mxu0 %v6203
    %6392 = vmatpush1.msra.mxu0 %v6202
    %6393 = vmatprep.subr.mxu0 %v6205
    %6394 = vmatpush1.msra.mxu0 %v6204
    %6395 = vmatprep.subr.mxu0 %v6207
    %6396 = vmatpush1.msra.mxu0 %v6206
    %6397 = vmatprep.subr.mxu0 %v6209
    %6398 = vmatpush1.msra.mxu0 %v6208
    %6399 = vmatprep.subr.mxu0 %v6211
    %6400 = vmatpush1.msra.mxu0 %v6210
    %6401 = vmatprep.subr.mxu0 %v6213
    %6402 = vmatpush1.msra.mxu0 %v6212
    %6403 = vmatprep.subr.mxu0 %v6215
    %6404 = vmatpush1.msra.mxu0 %v6214
    %6405 = vmatprep.subr.mxu0 %v6217
    %6406 = vmatpush1.msra.mxu0 %v6216
    %6407 = vmatprep.subr.mxu0 %v6219
    %6408 = vmatpush1.msra.mxu0 %v6218
    %6409 = vmatprep.subr.mxu0 %v6221
    %6410 = vmatpush1.msra.mxu0 %v6220
    %6411 = vmatprep.subr.mxu0 %v6223
    %6412 = vmatpush1.msra.mxu0 %v6222
    %6413 = vmatprep.subr.mxu0 %v6225
    %6414 = vmatpush1.msra.mxu0 %v6224
    %6415 = vmatprep.subr.mxu0 %v6227
    %6416 = vmatpush1.msra.mxu0 %v6226
    %6417 = vmatprep.subr.mxu0 %v6229
    %6418 = vmatpush1.msra.mxu0 %v6228
    %6419 = vmatprep.subr.mxu0 %v6231
    %6420 = vmatpush1.msra.mxu0 %v6230
    %6421 = vmatprep.subr.mxu0 %v6233
    %6422 = vmatpush1.msra.mxu0 %v6232
    %6423 = vmatprep.subr.mxu0 %v6235
    %6424 = vmatpush1.msra.mxu0 %v6234
    %6425 = vmatprep.subr.mxu0 %v6237
    %6426 = vmatpush1.msra.mxu0 %v6236
    %6427 = vmatprep.subr.mxu0 %v6239
    %6428 = vmatpush1.msra.mxu0 %v6238
    %6429 = vmatprep.subr.mxu0 %v6241
    %6430 = vmatpush1.msra.mxu0 %v6240
    %6431 = vmatprep.subr.mxu0 %v6243
    %6432 = vmatpush1.msra.mxu0 %v6242
    %6433 = vmatprep.subr.mxu0 %v6245
    %6434 = vmatpush1.msra.mxu0 %v6244
    %6435 = vmatprep.subr.mxu0 %v6247
    %6436 = vmatpush1.msra.mxu0 %v6246
    %6437 = vmatprep.subr.mxu0 %v6249
    %6438 = vmatpush1.msra.mxu0 %v6248
    %6439 = vmatprep.mubr.f32.mxu0 %v6363
    %6440 = vmatmul.mubr.f32.gmra.mrb[0].mxu0 %v6362
    %v6441 = vpop.f32.mrb[0].mxu0
    %v6442 = vadd.f32 %v6368, %v6441
    %v6443 = vpop.f32.mrb[0].mxu0
    %v6444 = vadd.f32 %v6372, %v6443
    %6445 = vdwg.mxu0
    %v6446 = vadd.f32 %v6442, %v6342
    %v6447 = vadd.f32 %v6444, %v6344
    %v6448 = vsel %vm4914, %v6446, 0.0
    %v6449 = vsel %vm4914, %v6447, 0.0
    %v6450 = vadd.f32 %v6448, %v6449
    %6451 = vadd.xlane.f32.xlu0 %v6450
    %v6452 = vpop.xlane.xlu0 %6451
    %v6453 = vmul.f32 %v6452, %v6111
    %v6454 = vsub.f32 %v6446, %v6453
    %v6455 = vsub.f32 %v6447, %v6453
    %v6456 = vmul.f32 %v6454, %v6454
    %v6457 = vmul.f32 %v6455, %v6455
    %v6458 = vsel %vm4914, %v6456, 0.0
    %v6459 = vsel %vm4914, %v6457, 0.0
    %v6460 = vadd.f32 %v6458, %v6459
    %6461 = vadd.xlane.f32.xlu0 %v6460
    %v6462 = vpop.xlane.xlu0 %6461
    %v6463 = vmul.f32 %v6462, %v6111
    %v6464 = vadd.f32 %v6463, 1e-05
    %v6465 = vrsqrt.pop %v6464
    %v6466 = vmul.f32 %v6454, %v6465
    %v6467 = vmul.f32 %v6455, %v6465
    %v6469 = vlaneseq
    %v6470 = vshrl.u32 %v6469, 7
    %v6471 = vsub.s32 0, %v6470
    %v6472 = vrot.slane %v6251, %v6471
    %v6473 = vlaneseq
    %v6474 = vshrl.u32 %v6473, 7
    %v6475 = vsub.s32 1, %v6474
    %v6476 = vrot.slane %v6251, %v6475
    %v6479 = vmul.f32 %v6466, %v6472
    %v6480 = vmul.f32 %v6467, %v6476
    %v6482 = vlaneseq
    %v6483 = vshrl.u32 %v6482, 7
    %v6484 = vsub.s32 0, %v6483
    %v6485 = vrot.slane %v6252, %v6484
    %v6486 = vlaneseq
    %v6487 = vshrl.u32 %v6486, 7
    %v6488 = vsub.s32 1, %v6487
    %v6489 = vrot.slane %v6252, %v6488
    %v6492 = vadd.f32 %v6479, %v6485
    %v6493 = vadd.f32 %v6480, %v6489
    %v6494 = vld [vmem:[#allocation2] sm:$0xf]
    %6495 = vmatprep.subr.mxu0 %v6152
    %6496 = vmatpush1.xpose.msra.mxu0 %v6151
    %6497 = vmatprep.subr.mxu0 0.0
    %6498 = vmatpush1.xpose.msra.mxu0 0.0
    %6499 = vmatprep.subr.mxu0 0.0
    %6500 = vmatpush1.xpose.msra.mxu0 0.0
    %6501 = vmatprep.subr.mxu0 0.0
    %6502 = vmatpush1.xpose.msra.mxu0 0.0
    %6503 = vmatprep.subr.mxu0 0.0
    %6504 = vmatpush1.xpose.msra.mxu0 0.0
    %6505 = vmatprep.subr.mxu0 0.0
    %6506 = vmatpush1.xpose.msra.mxu0 0.0
    %6507 = vmatprep.subr.mxu0 0.0
    %6508 = vmatpush1.xpose.msra.mxu0 0.0
    %6509 = vmatprep.subr.mxu0 0.0
    %6510 = vmatpush1.xpose.msra.mxu0 0.0
    %6511 = vmatprep.subr.mxu0 0.0
    %6512 = vmatpush1.xpose.msra.mxu0 0.0
    %6513 = vmatprep.subr.mxu0 0.0
    %6514 = vmatpush1.xpose.msra.mxu0 0.0
    %6515 = vmatprep.subr.mxu0 0.0
    %6516 = vmatpush1.xpose.msra.mxu0 0.0
    %6517 = vmatprep.subr.mxu0 0.0
    %6518 = vmatpush1.xpose.msra.mxu0 0.0
    %6519 = vmatprep.subr.mxu0 0.0
    %6520 = vmatpush1.xpose.msra.mxu0 0.0
    %6521 = vmatprep.subr.mxu0 0.0
    %6522 = vmatpush1.xpose.msra.mxu0 0.0
    %6523 = vmatprep.subr.mxu0 0.0
    %6524 = vmatpush1.xpose.msra.mxu0 0.0
    %6525 = vmatprep.subr.mxu0 0.0
    %6526 = vmatpush1.xpose.msra.mxu0 0.0
    %6527 = vmatprep.subr.mxu0 0.0
    %6528 = vmatpush1.xpose.msra.mxu0 0.0
    %6529 = vmatprep.subr.mxu0 0.0
    %6530 = vmatpush1.xpose.msra.mxu0 0.0
    %6531 = vmatprep.subr.mxu0 0.0
    %6532 = vmatpush1.xpose.msra.mxu0 0.0
    %6533 = vmatprep.subr.mxu0 0.0
    %6534 = vmatpush1.xpose.msra.mxu0 0.0
    %6535 = vmatprep.subr.mxu0 0.0
    %6536 = vmatpush1.xpose.msra.mxu0 0.0
    %6537 = vmatprep.subr.mxu0 0.0
    %6538 = vmatpush1.xpose.msra.mxu0 0.0
    %6539 = vmatprep.subr.mxu0 0.0
    %6540 = vmatpush1.xpose.msra.mxu0 0.0
    %6541 = vmatprep.subr.mxu0 0.0
    %6542 = vmatpush1.xpose.msra.mxu0 0.0
    %6543 = vmatprep.subr.mxu0 0.0
    %6544 = vmatpush1.xpose.msra.mxu0 0.0
    %6545 = vmatprep.subr.mxu0 0.0
    %6546 = vmatpush1.xpose.msra.mxu0 0.0
    %6547 = vmatprep.subr.mxu0 0.0
    %6548 = vmatpush1.xpose.msra.mxu0 0.0
    %6549 = vmatprep.subr.mxu0 0.0
    %6550 = vmatpush1.xpose.msra.mxu0 0.0
    %6551 = vmatprep.subr.mxu0 0.0
    %6552 = vmatpush1.xpose.msra.mxu0 0.0
    %6553 = vmatprep.subr.mxu0 0.0
    %6554 = vmatpush1.xpose.msra.mxu0 0.0
    %6555 = vmatprep.subr.mxu0 0.0
    %6556 = vmatpush1.xpose.msra.mxu0 0.0
    %6557 = vmatprep.subr.mxu0 0.0
    %6558 = vmatpush1.xpose.msra.mxu0 0.0
    %6559 = vmatprep.mubr.f32.mxu0 %v6493
    %6560 = vmatmul.mubr.f32.gmra.mrb[0].mxu0 %v6492
    %v6561 = vpop.f32.mrb[0].mxu0
    %v6562 = vadd.f32 0.0, %v6561
    %v6563 = vpop.f32.mrb[0].mxu0
    %6564 = vdwg.mxu0
    %vm6565 = vcmp.eq.f32.partialorder %v6494, 0.0
    %v6566 = vsel %vm6565, 1.0, 0.0
    %v6567 = vmul.f32 %v6562, %v6566
    %v6568 = vmul.f32 %v6494, 1000.0
    %v6569 = vsub.f32 %v6567, %v6568
    %v6570 = vlaneseq
    %v6571 = vand.u32 %v6570, 127
    %vm6572 = vcmp.eq.s32.totalorder %v3253, %v6571
    %v6573 = vsel %vm6572, 1, 0
    %v6574 = vcvt.s32.f32 %v6573
    %v6575 = vmul.f32 %v6569, %v6574
    %vm6576 = vcmask 27648
    %v6577 = vsel %vm6576, %v6575, 0.0
    %6578 = vadd.xlane.f32.xlu0 %v6577
    %v6579 = vpop.xlane.xlu0 %6578
    %v6580 = vsel %vm6576, %v6569, -inf
    %6581 = vmax.xlane.f32.xlu0 %v6580
    %v6582 = vpop.xlane.xlu0 %6581
    %v6583 = vsub.f32 %v6569, %v6582
    %v6584 = vmul.f32 %v6583, 1.442695
    %v6585 = vpow.pop %v6584
    %v6586 = vsel %vm6576, %v6585, 0.0
    %6587 = vadd.xlane.f32.xlu0 %v6586
    %v6588 = vpop.xlane.xlu0 %6587
    %v6589 = vlog2.pop %v6588
    %v6590 = vmul.f32 %v6589, 0.6931472
    %v6591 = vadd.f32 %v6582, %v6590
    %v6592 = vrot.slane %v6580, 4
    %v6593 = vmax.f32 %v6580, %v6592
    %v6594 = vrot.slane %v6593, 2
    %v6595 = vmax.f32 %v6593, %v6594
    %v6596 = vrot.slane %v6595, 1
    %v6597 = vmax.f32 %v6595, %v6596
    %v6598 = vsub.f32 %v6569, %v6597
    %v6599 = vmul.f32 %v6598, 1.442695
    %v6600 = vpow.pop %v6599
    %v6601 = vsel %vm6576, %v6600, 0.0
    %v6602 = vrot.slane %v6601, 4
    %v6603 = vadd.f32 %v6601, %v6602
    %v6604 = vrot.slane %v6603, 2
    %v6605 = vadd.f32 %v6603, %v6604
    %v6606 = vrot.slane %v6605, 1
    %v6607 = vadd.f32 %v6605, %v6606
    %v6608 = vlog2.pop %v6607
    %v6609 = vmul.f32 %v6608, 0.6931472
    %v6610 = vadd.f32 %v6597, %v6609
    %v6611 = vsel %vm4914, %v6591, 0.0
    %v6612 = vrot.slane %v6611, 4
    %v6613 = vadd.f32 %v6611, %v6612
    %v6614 = vrot.slane %v6613, 2
    %v6615 = vadd.f32 %v6613, %v6614
    %v6616 = vrot.slane %v6615, 1
    %v6617 = vadd.f32 %v6615, %v6616
    %v6618 = vmul.f32 %v6617, 0.25
    %vm6619 = vcmask 31744
    %v6620 = vsel %vm6619, %v6610, 0.0
    %6621 = vadd.xlane.f32.xlu0 %v6620
    %v6622 = vpop.xlane.xlu0 %6621
    %v6623 = vmul.f32 %v6622, 0.25
    %v6624 = vsel %vm4914, %v6579, 0.0
    %v6625 = vrot.slane %v6624, 4
    %v6626 = vadd.f32 %v6624, %v6625
    %v6627 = vrot.slane %v6626, 2
    %v6628 = vadd.f32 %v6626, %v6627
    %v6629 = vrot.slane %v6628, 1
    %v6630 = vadd.f32 %v6628, %v6629
    %v6631 = vmul.f32 %v6630, 0.25
    %v6632 = vadd.f32 %v6618, %v6623
    %v6633 = vmul.f32 %v6632, 0.5
    %v6634 = vsub.f32 %v6633, %v6631
    %vm6635 = vcmask 0
    %6636 = vst.msk [vmem:[#allocation38] sm:$0x1] %vm6635, %v6634
    // Predicated region
    $region194: #{ctip_forward.1} parent=1 // pred_check
      _
    $region195: #{ctip_forward.1} parent=1 // pred_check_branch
      %6638 = sbr.rel (0) target = $region197
    $region196: #{ctip_forward.1} parent=1 // pred_region
      %s6640 = ssub.s32 16, 16
      %6641 = vsyncadd [#allocation4], %s6640
      %s6643 = sshll.u32 [#allocation38], 4
      %s6644 = int_to_ptr.vmem [resolvable:$true] %s6643
      %6646 = dma.vmem_to_hbm [thread:$0]  %s6644, 16, %s25, [#allocation4]
    $region197: #{ctip_forward.1} parent=1 // pred_fallthru
      _
    // Predicated region
    $region198: #{ctip_forward.1} parent=1 // pred_check
      _
    $region199: #{ctip_forward.1} parent=1 // pred_check_branch
      %6648 = sbr.rel (0) target = $region201
    $region200: #{ctip_forward.1} parent=1 // pred_region
      %6649 = dma.done [#allocation4], 16
    $region201: #{ctip_forward.1} parent=1 // pred_fallthru
      _
    %6650 = vsyncpa [#allocation3], 1
    %6651 = vsyncpa [#allocation6], 1
    %6652 = vsyncpa [#allocation9], 1
    %6653 = vsyncpa [#allocation12], 1
    %6654 = vsyncpa [#allocation15], 1
    %6655 = vsyncpa [#allocation18], 1
    %6656 = vsyncpa [#allocation21], 1
    %6657 = vsyncpa [#allocation24], 1
    %6658 = vsyncpa [#allocation27], 1
    %6659 = vsyncpa [#allocation30], 1
    %6660 = vsyncpa [#allocation33], 1
    %6661 = vsyncpa [#allocation36], 1
    %6662 = vsyncpa [#allocation4], 1

</llo_original>
